<compile_context>
chip_gen: v7x
topology: tpu7x:2x2x1
jax: 0.10.0
libtpu: 0.0.40
codegen_flags: <defaults>
</compile_context>

<pallas_src>
import functools

import jax
import jax.numpy as jnp
from jax.experimental import pallas as pl
from jax.experimental.pallas import tpu as pltpu


# ----------------------------------------------------------------------------
# Fused kernel: 3-layer biLSTM + FC, all in VMEM, fully unrolled recurrence.
# ----------------------------------------------------------------------------
def _birnn_fused_kernel(*refs, T, B, H, num_layers):
    """refs layout (all whole-array VMEM refs):
      [0]                     x       : (T*B, Din)  time-major flattened input
      [1+4l .. 4+4l]          layer l : wih (Din_l, 8H)  direction-stacked, gate order i,f,o,g
                                        whh_f (H, 4H), whh_r (H, 4H)
                                        bias (1, 8H)      (b_ih + b_hh, both directions)
      [1+4L], [2+4L]          fc_w (2H, C), fc_b (1, C)
      [3+4L]                  out     : (B, C)
      [4+4L]                  scratch : (T*B, 2H) f32  layer-output sequence buffer
    """
    x_ref = refs[0]
    layer_refs = [refs[1 + 4 * l: 5 + 4 * l] for l in range(num_layers)]
    fcw_ref = refs[1 + 4 * num_layers]
    fcb_ref = refs[2 + 4 * num_layers]
    out_ref = refs[3 + 4 * num_layers]
    seq_scr = refs[4 + 4 * num_layers]

    seq = x_ref[...].astype(jnp.float32)               # (T*B, Din)

    for wih_ref, whhf_ref, whhr_ref, b_ref in layer_refs:
        whh_f = whhf_ref[...]
        whh_r = whhr_ref[...]

        # Hoisted input matmul: gate pre-activations for the whole sequence and
        # both directions at once (M = T*B, N = 8H = 256 lanes).
        gates_pre = (
            jnp.dot(seq, wih_ref[...], preferred_element_type=jnp.float32)
            + b_ref[...]
        )                                               # (T*B, 8H)

        h_f = jnp.zeros((B, H), jnp.float32)
        c_f = jnp.zeros((B, H), jnp.float32)
        h_r = jnp.zeros((B, H), jnp.float32)
        c_r = jnp.zeros((B, H), jnp.float32)

        for t in range(T):                              # fully unrolled (static, small T)
            tr = T - 1 - t
            # ---- forward direction: consumes x_t, output stored at position t ----
            gf = gates_pre[t * B:(t + 1) * B, 0:4 * H] + jnp.dot(
                h_f, whh_f, preferred_element_type=jnp.float32)
            sf = jax.nn.sigmoid(gf[:, 0:3 * H])         # i | f | o  (contiguous slice)
            gg = jnp.tanh(gf[:, 3 * H:4 * H])           # g
            c_f = sf[:, H:2 * H] * c_f + sf[:, 0:H] * gg
            h_f = sf[:, 2 * H:3 * H] * jnp.tanh(c_f)
            seq_scr[t * B:(t + 1) * B, 0:H] = h_f
            # ---- reverse direction: consumes x_{T-1-t}, output stored at T-1-t ----
            gr = gates_pre[tr * B:(tr + 1) * B, 4 * H:8 * H] + jnp.dot(
                h_r, whh_r, preferred_element_type=jnp.float32)
            sr = jax.nn.sigmoid(gr[:, 0:3 * H])
            ggr = jnp.tanh(gr[:, 3 * H:4 * H])
            c_r = sr[:, H:2 * H] * c_r + sr[:, 0:H] * ggr
            h_r = sr[:, 2 * H:3 * H] * jnp.tanh(c_r)
            seq_scr[tr * B:(tr + 1) * B, H:2 * H] = h_r

        seq = seq_scr[...]                              # (T*B, 2H) -> next layer input

    # Final Linear on the middle time step: fc(rnn_out[:, T//2, :]).
    mid = seq[(T // 2) * B:(T // 2 + 1) * B, :]         # (B, 2H)
    out_ref[...] = (
        jnp.dot(mid, fcw_ref[...], preferred_element_type=jnp.float32)
        + fcb_ref[...]
    )


# ----------------------------------------------------------------------------
# Wrapper: one pallas_call for the whole forward pass.
# ----------------------------------------------------------------------------
@jax.jit
def birnn_basic_forward(x, params):
    """x: (B, T, D) batch_first, params in kernel layout (see pack_params)."""
    B, T, _ = x.shape
    H = params["layers"][0][1].shape[0]                 # whh_f is (H, 4H)
    num_layers = len(params["layers"])
    C = params["fc_w"].shape[1]

    # time-major, flattened to 2D (row index = t*B + b); tiny XLA-side reshape.
    seq2d = jnp.transpose(x, (1, 0, 2)).reshape(T * B, -1).astype(jnp.float32)

    flat_inputs = [seq2d]
    for (wih, whh_f, whh_r, b) in params["layers"]:
        flat_inputs += [wih, whh_f, whh_r, b]
    flat_inputs += [params["fc_w"], params["fc_b"]]

    kernel = functools.partial(
        _birnn_fused_kernel, T=T, B=B, H=H, num_layers=num_layers)

    return pl.pallas_call(
        kernel,
        out_shape=jax.ShapeDtypeStruct((B, C), jnp.float32),
        in_specs=[pl.BlockSpec(memory_space=pltpu.MemorySpace.VMEM)] * len(flat_inputs),
        out_specs=pl.BlockSpec(memory_space=pltpu.MemorySpace.VMEM),
        scratch_shapes=[pltpu.VMEM((T * B, 2 * H), jnp.float32)],
    )(*flat_inputs)
    # NOTE: at these sizes everything fits VMEM with huge margin on v5e/v6e/v7x; if
    # B/T/H grow, the first buffers to tile are the (T*B, 8H) gate precompute and the
    # (T*B, 2H) sequence scratch (threshold is 2x smaller on v7x's 64 MiB VMEM).


# ----------------------------------------------------------------------------
# Parameters: PyTorch-layout init (deterministic, uniform(-1/sqrt(H), 1/sqrt(H)))
# and conversion to the kernel layout (transposed, gate-reordered, dir-stacked).
# ----------------------------------------------------------------------------
def init_torch_params(key, input_size, hidden_size, num_layers, num_classes):
    H = hidden_size
    k = 1.0 / (H ** 0.5)
    layers = []
    for layer in range(num_layers):
        din = input_size if layer == 0 else 2 * H
        dirs = []
        for _ in range(2):                              # forward, reverse
            key, k1, k2, k3, k4 = jax.random.split(key, 5)
            w_ih = jax.random.uniform(k1, (4 * H, din), jnp.float32, -k, k)
            w_hh = jax.random.uniform(k2, (4 * H, H), jnp.float32, -k, k)
            b_ih = jax.random.uniform(k3, (4 * H,), jnp.float32, -k, k)
            b_hh = jax.random.uniform(k4, (4 * H,), jnp.float32, -k, k)
            dirs.append((w_ih, w_hh, b_ih, b_hh))
        layers.append(tuple(dirs))
    key, k1, k2 = jax.random.split(key, 3)
    kf = 1.0 / ((2 * H) ** 0.5)
    fc_w = jax.random.uniform(k1, (num_classes, 2 * H), jnp.float32, -kf, kf)
    fc_b = jax.random.uniform(k2, (num_classes,), jnp.float32, -kf, kf)
    return {"layers": layers, "fc_w": fc_w, "fc_b": fc_b}


def _reorder_gates(a, H):
    # PyTorch gate order (i, f, g, o) along axis 0 -> kernel order (i, f, o, g),
    # so sigmoid applies to one contiguous 3H slice and tanh to one H slice.
    return jnp.concatenate(
        [a[0:H], a[H:2 * H], a[3 * H:4 * H], a[2 * H:3 * H]], axis=0)


def pack_params(torch_params, hidden_size):
    H = hidden_size
    layers = []
    for (fwd, rev) in torch_params["layers"]:
        packed = []
        for (w_ih, w_hh, b_ih, b_hh) in (fwd, rev):
            wih_t = _reorder_gates(w_ih, H).T           # (din, 4H), cols i,f,o,g
            whh_t = _reorder_gates(w_hh, H).T           # (H, 4H)
            bias = _reorder_gates(b_ih + b_hh, H)       # (4H,)
            packed.append((wih_t, whh_t, bias))
        (wih_f, whh_f, b_f), (wih_r, whh_r, b_r) = packed
        wih = jnp.concatenate([wih_f, wih_r], axis=1)   # (din, 8H) direction-stacked
        bias = jnp.concatenate([b_f, b_r]).reshape(1, 8 * H)
        layers.append((wih, whh_f, whh_r, bias))
    fc_w = torch_params["fc_w"].T                       # (2H, C)
    fc_b = torch_params["fc_b"].reshape(1, -1)          # (1, C)
    return {"layers": layers, "fc_w": fc_w, "fc_b": fc_b}


# ----------------------------------------------------------------------------
# Pure-JAX reference (nn.LSTM semantics) for a correctness check.
# ----------------------------------------------------------------------------
def _ref_lstm_direction(x_seq, w_ih, w_hh, b_ih, b_hh):
    H = w_hh.shape[1]
    B = x_seq.shape[1]

    def cell(carry, x_t):
        h, c = carry
        g = x_t @ w_ih.T + b_ih + h @ w_hh.T + b_hh
        i = jax.nn.sigmoid(g[:, 0:H])
        f = jax.nn.sigmoid(g[:, H:2 * H])
        gg = jnp.tanh(g[:, 2 * H:3 * H])
        o = jax.nn.sigmoid(g[:, 3 * H:4 * H])
        c = f * c + i * gg
        h = o * jnp.tanh(c)
        return (h, c), h

    init = (jnp.zeros((B, H), jnp.float32), jnp.zeros((B, H), jnp.float32))
    _, hs = jax.lax.scan(cell, init, x_seq)
    return hs


def birnn_reference(x, torch_params):
    _, T, _ = x.shape
    seq = jnp.transpose(x, (1, 0, 2)).astype(jnp.float32)   # (T, B, D)
    for (fwd, rev) in torch_params["layers"]:
        out_f = _ref_lstm_direction(seq, *fwd)
        out_r = _ref_lstm_direction(seq[::-1], *rev)[::-1]
        seq = jnp.concatenate([out_f, out_r], axis=-1)
    mid = seq[T // 2]                                        # (B, 2H)
    return mid @ torch_params["fc_w"].T + torch_params["fc_b"]


if __name__ == "__main__":
    # Small shapes consistent with the module's forward.
    B, T = 2, 8
    input_size, hidden_size, num_layers, num_classes = 7, 32, 3, 2

    key = jax.random.PRNGKey(0)
    key, kx = jax.random.split(key)
    x = jax.random.normal(kx, (B, T, input_size), jnp.float32)

    torch_params = init_torch_params(
        key, input_size, hidden_size, num_layers, num_classes)
    kernel_params = pack_params(torch_params, hidden_size)

    out = birnn_basic_forward(x, kernel_params)
    out = jax.block_until_ready(out)
    assert out.shape == (B, num_classes), out.shape

    # Correctness check against the pure-JAX nn.LSTM-semantics reference.
    ref = jax.block_until_ready(birnn_reference(x, torch_params))
    max_err = float(jnp.max(jnp.abs(out - ref)))
    assert max_err < 1e-2, f"max abs error vs reference: {max_err}"

    print("KERNEL_OK")
</pallas_src>

<mosaic_0001>
module attributes {stable_mosaic.version = 11 : i64} {
  func.func @_birnn_fused_kernel(%arg0: memref<16x7xf32, #tpu.memory_space<vmem>>, %arg1: memref<7x256xf32, #tpu.memory_space<vmem>>, %arg2: memref<32x128xf32, #tpu.memory_space<vmem>>, %arg3: memref<32x128xf32, #tpu.memory_space<vmem>>, %arg4: memref<1x256xf32, #tpu.memory_space<vmem>>, %arg5: memref<64x256xf32, #tpu.memory_space<vmem>>, %arg6: memref<32x128xf32, #tpu.memory_space<vmem>>, %arg7: memref<32x128xf32, #tpu.memory_space<vmem>>, %arg8: memref<1x256xf32, #tpu.memory_space<vmem>>, %arg9: memref<64x256xf32, #tpu.memory_space<vmem>>, %arg10: memref<32x128xf32, #tpu.memory_space<vmem>>, %arg11: memref<32x128xf32, #tpu.memory_space<vmem>>, %arg12: memref<1x256xf32, #tpu.memory_space<vmem>>, %arg13: memref<64x2xf32, #tpu.memory_space<vmem>>, %arg14: memref<1x2xf32, #tpu.memory_space<vmem>>, %arg15: memref<2x2xf32, #tpu.memory_space<vmem>>, %arg16: memref<16x64xf32, #tpu.memory_space<vmem>>) attributes {dimension_semantics = [], scalar_prefetch = 0 : i64, scratch_operands = 1 : i64, tpu.core_type = #tpu.core_type<tc>} {
    %c0 = arith.constant 0 : index
    %c0_0 = arith.constant 0 : index
    %0 = vector.load %arg0[%c0, %c0_0] : memref<16x7xf32, #tpu.memory_space<vmem>>, vector<16x7xf32>
    %c0_1 = arith.constant 0 : index
    %c0_2 = arith.constant 0 : index
    %1 = vector.load %arg2[%c0_1, %c0_2] : memref<32x128xf32, #tpu.memory_space<vmem>>, vector<32x128xf32>
    %c0_3 = arith.constant 0 : index
    %c0_4 = arith.constant 0 : index
    %2 = vector.load %arg3[%c0_3, %c0_4] : memref<32x128xf32, #tpu.memory_space<vmem>>, vector<32x128xf32>
    %c0_5 = arith.constant 0 : index
    %c0_6 = arith.constant 0 : index
    %3 = vector.load %arg1[%c0_5, %c0_6] : memref<7x256xf32, #tpu.memory_space<vmem>>, vector<7x256xf32>
    %cst = arith.constant dense<0.000000e+00> : vector<16x256xf32>
    %4 = tpu.matmul %0, %3, %cst {dimension_numbers = #tpu.dot_dimension_numbers<[1], [0], [0], [1], [0, 0, 1, 1], [], []>} : vector<16x7xf32>, vector<7x256xf32>, vector<16x256xf32> -> vector<16x256xf32>
    %c0_7 = arith.constant 0 : index
    %c0_8 = arith.constant 0 : index
    %5 = vector.load %arg4[%c0_7, %c0_8] : memref<1x256xf32, #tpu.memory_space<vmem>>, vector<1x256xf32>
    %6 = vector.broadcast %5 : vector<1x256xf32> to vector<16x256xf32>
    %7 = arith.addf %4, %6 : vector<16x256xf32>
    %cst_9 = arith.constant 0.000000e+00 : f32
    %8 = vector.broadcast %cst_9 : f32 to vector<2x32xf32>
    %cst_10 = arith.constant 0.000000e+00 : f32
    %9 = vector.broadcast %cst_10 : f32 to vector<2x32xf32>
    %cst_11 = arith.constant 0.000000e+00 : f32
    %10 = vector.broadcast %cst_11 : f32 to vector<2x32xf32>
    %cst_12 = arith.constant 0.000000e+00 : f32
    %11 = vector.broadcast %cst_12 : f32 to vector<2x32xf32>
    %12 = vector.extract_strided_slice %7 {offsets = [0, 0], sizes = [2, 128], strides = [1, 1]} : vector<16x256xf32> to vector<2x128xf32>
    %cst_13 = arith.constant dense<0.000000e+00> : vector<2x128xf32>
    %13 = tpu.matmul %8, %1, %cst_13 {dimension_numbers = #tpu.dot_dimension_numbers<[1], [0], [0], [1], [0, 0, 1, 1], [], []>} : vector<2x32xf32>, vector<32x128xf32>, vector<2x128xf32> -> vector<2x128xf32>
    %14 = arith.addf %12, %13 : vector<2x128xf32>
    %15 = vector.extract_strided_slice %14 {offsets = [0, 0], sizes = [2, 96], strides = [1, 1]} : vector<2x128xf32> to vector<2x96xf32>
    %16 = arith.negf %15 : vector<2x96xf32>
    %17 = math.exp %16 : vector<2x96xf32>
    %cst_14 = arith.constant 1.000000e+00 : f32
    %18 = vector.broadcast %cst_14 : f32 to vector<2x96xf32>
    %19 = arith.addf %18, %17 : vector<2x96xf32>
    %20 = arith.divf %18, %19 : vector<2x96xf32>
    %21 = vector.extract_strided_slice %14 {offsets = [0, 96], sizes = [2, 32], strides = [1, 1]} : vector<2x128xf32> to vector<2x32xf32>
    %22 = math.tanh %21 : vector<2x32xf32>
    %23 = vector.extract_strided_slice %20 {offsets = [0, 32], sizes = [2, 32], strides = [1, 1]} : vector<2x96xf32> to vector<2x32xf32>
    %24 = arith.mulf %23, %9 : vector<2x32xf32>
    %25 = vector.extract_strided_slice %20 {offsets = [0, 0], sizes = [2, 32], strides = [1, 1]} : vector<2x96xf32> to vector<2x32xf32>
    %26 = arith.mulf %25, %22 : vector<2x32xf32>
    %27 = arith.addf %24, %26 : vector<2x32xf32>
    %28 = vector.extract_strided_slice %20 {offsets = [0, 64], sizes = [2, 32], strides = [1, 1]} : vector<2x96xf32> to vector<2x32xf32>
    %29 = math.tanh %27 : vector<2x32xf32>
    %30 = arith.mulf %28, %29 : vector<2x32xf32>
    %c0_15 = arith.constant 0 : index
    %c0_16 = arith.constant 0 : index
    %31 = vector.load %arg16[%c0_15, %c0_16] : memref<16x64xf32, #tpu.memory_space<vmem>>, vector<2x32xf32>
    tpu.vector_store %arg16[%c0_15, %c0_16], %30 {strides = array<i32>} : memref<16x64xf32, #tpu.memory_space<vmem>>, vector<2x32xf32>,
    %32 = vector.extract_strided_slice %7 {offsets = [14, 128], sizes = [2, 128], strides = [1, 1]} : vector<16x256xf32> to vector<2x128xf32>
    %cst_17 = arith.constant dense<0.000000e+00> : vector<2x128xf32>
    %33 = tpu.matmul %10, %2, %cst_17 {dimension_numbers = #tpu.dot_dimension_numbers<[1], [0], [0], [1], [0, 0, 1, 1], [], []>} : vector<2x32xf32>, vector<32x128xf32>, vector<2x128xf32> -> vector<2x128xf32>
    %34 = arith.addf %32, %33 : vector<2x128xf32>
    %35 = vector.extract_strided_slice %34 {offsets = [0, 0], sizes = [2, 96], strides = [1, 1]} : vector<2x128xf32> to vector<2x96xf32>
    %36 = arith.negf %35 : vector<2x96xf32>
    %37 = math.exp %36 : vector<2x96xf32>
    %cst_18 = arith.constant 1.000000e+00 : f32
    %38 = vector.broadcast %cst_18 : f32 to vector<2x96xf32>
    %39 = arith.addf %38, %37 : vector<2x96xf32>
    %40 = arith.divf %38, %39 : vector<2x96xf32>
    %41 = vector.extract_strided_slice %34 {offsets = [0, 96], sizes = [2, 32], strides = [1, 1]} : vector<2x128xf32> to vector<2x32xf32>
    %42 = math.tanh %41 : vector<2x32xf32>
    %43 = vector.extract_strided_slice %40 {offsets = [0, 32], sizes = [2, 32], strides = [1, 1]} : vector<2x96xf32> to vector<2x32xf32>
    %44 = arith.mulf %43, %11 : vector<2x32xf32>
    %45 = vector.extract_strided_slice %40 {offsets = [0, 0], sizes = [2, 32], strides = [1, 1]} : vector<2x96xf32> to vector<2x32xf32>
    %46 = arith.mulf %45, %42 : vector<2x32xf32>
    %47 = arith.addf %44, %46 : vector<2x32xf32>
    %48 = vector.extract_strided_slice %40 {offsets = [0, 64], sizes = [2, 32], strides = [1, 1]} : vector<2x96xf32> to vector<2x32xf32>
    %49 = math.tanh %47 : vector<2x32xf32>
    %50 = arith.mulf %48, %49 : vector<2x32xf32>
    %c14 = arith.constant 14 : index
    %c32 = arith.constant 32 : index
    %51 = vector.load %arg16[%c14, %c32] : memref<16x64xf32, #tpu.memory_space<vmem>>, vector<2x32xf32>
    tpu.vector_store %arg16[%c14, %c32], %50 {strides = array<i32>} : memref<16x64xf32, #tpu.memory_space<vmem>>, vector<2x32xf32>,
    %52 = vector.extract_strided_slice %7 {offsets = [2, 0], sizes = [2, 128], strides = [1, 1]} : vector<16x256xf32> to vector<2x128xf32>
    %cst_19 = arith.constant dense<0.000000e+00> : vector<2x128xf32>
    %53 = tpu.matmul %30, %1, %cst_19 {dimension_numbers = #tpu.dot_dimension_numbers<[1], [0], [0], [1], [0, 0, 1, 1], [], []>} : vector<2x32xf32>, vector<32x128xf32>, vector<2x128xf32> -> vector<2x128xf32>
    %54 = arith.addf %52, %53 : vector<2x128xf32>
    %55 = vector.extract_strided_slice %54 {offsets = [0, 0], sizes = [2, 96], strides = [1, 1]} : vector<2x128xf32> to vector<2x96xf32>
    %56 = arith.negf %55 : vector<2x96xf32>
    %57 = math.exp %56 : vector<2x96xf32>
    %cst_20 = arith.constant 1.000000e+00 : f32
    %58 = vector.broadcast %cst_20 : f32 to vector<2x96xf32>
    %59 = arith.addf %58, %57 : vector<2x96xf32>
    %60 = arith.divf %58, %59 : vector<2x96xf32>
    %61 = vector.extract_strided_slice %54 {offsets = [0, 96], sizes = [2, 32], strides = [1, 1]} : vector<2x128xf32> to vector<2x32xf32>
    %62 = math.tanh %61 : vector<2x32xf32>
    %63 = vector.extract_strided_slice %60 {offsets = [0, 32], sizes = [2, 32], strides = [1, 1]} : vector<2x96xf32> to vector<2x32xf32>
    %64 = arith.mulf %63, %27 : vector<2x32xf32>
    %65 = vector.extract_strided_slice %60 {offsets = [0, 0], sizes = [2, 32], strides = [1, 1]} : vector<2x96xf32> to vector<2x32xf32>
    %66 = arith.mulf %65, %62 : vector<2x32xf32>
    %67 = arith.addf %64, %66 : vector<2x32xf32>
    %68 = vector.extract_strided_slice %60 {offsets = [0, 64], sizes = [2, 32], strides = [1, 1]} : vector<2x96xf32> to vector<2x32xf32>
    %69 = math.tanh %67 : vector<2x32xf32>
    %70 = arith.mulf %68, %69 : vector<2x32xf32>
    %c2 = arith.constant 2 : index
    %c0_21 = arith.constant 0 : index
    %71 = vector.load %arg16[%c2, %c0_21] : memref<16x64xf32, #tpu.memory_space<vmem>>, vector<2x32xf32>
    tpu.vector_store %arg16[%c2, %c0_21], %70 {strides = array<i32>} : memref<16x64xf32, #tpu.memory_space<vmem>>, vector<2x32xf32>,
    %72 = vector.extract_strided_slice %7 {offsets = [12, 128], sizes = [2, 128], strides = [1, 1]} : vector<16x256xf32> to vector<2x128xf32>
    %cst_22 = arith.constant dense<0.000000e+00> : vector<2x128xf32>
    %73 = tpu.matmul %50, %2, %cst_22 {dimension_numbers = #tpu.dot_dimension_numbers<[1], [0], [0], [1], [0, 0, 1, 1], [], []>} : vector<2x32xf32>, vector<32x128xf32>, vector<2x128xf32> -> vector<2x128xf32>
    %74 = arith.addf %72, %73 : vector<2x128xf32>
    %75 = vector.extract_strided_slice %74 {offsets = [0, 0], sizes = [2, 96], strides = [1, 1]} : vector<2x128xf32> to vector<2x96xf32>
    %76 = arith.negf %75 : vector<2x96xf32>
    %77 = math.exp %76 : vector<2x96xf32>
    %cst_23 = arith.constant 1.000000e+00 : f32
    %78 = vector.broadcast %cst_23 : f32 to vector<2x96xf32>
    %79 = arith.addf %78, %77 : vector<2x96xf32>
    %80 = arith.divf %78, %79 : vector<2x96xf32>
    %81 = vector.extract_strided_slice %74 {offsets = [0, 96], sizes = [2, 32], strides = [1, 1]} : vector<2x128xf32> to vector<2x32xf32>
    %82 = math.tanh %81 : vector<2x32xf32>
    %83 = vector.extract_strided_slice %80 {offsets = [0, 32], sizes = [2, 32], strides = [1, 1]} : vector<2x96xf32> to vector<2x32xf32>
    %84 = arith.mulf %83, %47 : vector<2x32xf32>
    %85 = vector.extract_strided_slice %80 {offsets = [0, 0], sizes = [2, 32], strides = [1, 1]} : vector<2x96xf32> to vector<2x32xf32>
    %86 = arith.mulf %85, %82 : vector<2x32xf32>
    %87 = arith.addf %84, %86 : vector<2x32xf32>
    %88 = vector.extract_strided_slice %80 {offsets = [0, 64], sizes = [2, 32], strides = [1, 1]} : vector<2x96xf32> to vector<2x32xf32>
    %89 = math.tanh %87 : vector<2x32xf32>
    %90 = arith.mulf %88, %89 : vector<2x32xf32>
    %c12 = arith.constant 12 : index
    %c32_24 = arith.constant 32 : index
    %91 = vector.load %arg16[%c12, %c32_24] : memref<16x64xf32, #tpu.memory_space<vmem>>, vector<2x32xf32>
    tpu.vector_store %arg16[%c12, %c32_24], %90 {strides = array<i32>} : memref<16x64xf32, #tpu.memory_space<vmem>>, vector<2x32xf32>,
    %92 = vector.extract_strided_slice %7 {offsets = [4, 0], sizes = [2, 128], strides = [1, 1]} : vector<16x256xf32> to vector<2x128xf32>
    %cst_25 = arith.constant dense<0.000000e+00> : vector<2x128xf32>
    %93 = tpu.matmul %70, %1, %cst_25 {dimension_numbers = #tpu.dot_dimension_numbers<[1], [0], [0], [1], [0, 0, 1, 1], [], []>} : vector<2x32xf32>, vector<32x128xf32>, vector<2x128xf32> -> vector<2x128xf32>
    %94 = arith.addf %92, %93 : vector<2x128xf32>
    %95 = vector.extract_strided_slice %94 {offsets = [0, 0], sizes = [2, 96], strides = [1, 1]} : vector<2x128xf32> to vector<2x96xf32>
    %96 = arith.negf %95 : vector<2x96xf32>
    %97 = math.exp %96 : vector<2x96xf32>
    %cst_26 = arith.constant 1.000000e+00 : f32
    %98 = vector.broadcast %cst_26 : f32 to vector<2x96xf32>
    %99 = arith.addf %98, %97 : vector<2x96xf32>
    %100 = arith.divf %98, %99 : vector<2x96xf32>
    %101 = vector.extract_strided_slice %94 {offsets = [0, 96], sizes = [2, 32], strides = [1, 1]} : vector<2x128xf32> to vector<2x32xf32>
    %102 = math.tanh %101 : vector<2x32xf32>
    %103 = vector.extract_strided_slice %100 {offsets = [0, 32], sizes = [2, 32], strides = [1, 1]} : vector<2x96xf32> to vector<2x32xf32>
    %104 = arith.mulf %103, %67 : vector<2x32xf32>
    %105 = vector.extract_strided_slice %100 {offsets = [0, 0], sizes = [2, 32], strides = [1, 1]} : vector<2x96xf32> to vector<2x32xf32>
    %106 = arith.mulf %105, %102 : vector<2x32xf32>
    %107 = arith.addf %104, %106 : vector<2x32xf32>
    %108 = vector.extract_strided_slice %100 {offsets = [0, 64], sizes = [2, 32], strides = [1, 1]} : vector<2x96xf32> to vector<2x32xf32>
    %109 = math.tanh %107 : vector<2x32xf32>
    %110 = arith.mulf %108, %109 : vector<2x32xf32>
    %c4 = arith.constant 4 : index
    %c0_27 = arith.constant 0 : index
    %111 = vector.load %arg16[%c4, %c0_27] : memref<16x64xf32, #tpu.memory_space<vmem>>, vector<2x32xf32>
    tpu.vector_store %arg16[%c4, %c0_27], %110 {strides = array<i32>} : memref<16x64xf32, #tpu.memory_space<vmem>>, vector<2x32xf32>,
    %112 = vector.extract_strided_slice %7 {offsets = [10, 128], sizes = [2, 128], strides = [1, 1]} : vector<16x256xf32> to vector<2x128xf32>
    %cst_28 = arith.constant dense<0.000000e+00> : vector<2x128xf32>
    %113 = tpu.matmul %90, %2, %cst_28 {dimension_numbers = #tpu.dot_dimension_numbers<[1], [0], [0], [1], [0, 0, 1, 1], [], []>} : vector<2x32xf32>, vector<32x128xf32>, vector<2x128xf32> -> vector<2x128xf32>
    %114 = arith.addf %112, %113 : vector<2x128xf32>
    %115 = vector.extract_strided_slice %114 {offsets = [0, 0], sizes = [2, 96], strides = [1, 1]} : vector<2x128xf32> to vector<2x96xf32>
    %116 = arith.negf %115 : vector<2x96xf32>
    %117 = math.exp %116 : vector<2x96xf32>
    %cst_29 = arith.constant 1.000000e+00 : f32
    %118 = vector.broadcast %cst_29 : f32 to vector<2x96xf32>
    %119 = arith.addf %118, %117 : vector<2x96xf32>
    %120 = arith.divf %118, %119 : vector<2x96xf32>
    %121 = vector.extract_strided_slice %114 {offsets = [0, 96], sizes = [2, 32], strides = [1, 1]} : vector<2x128xf32> to vector<2x32xf32>
    %122 = math.tanh %121 : vector<2x32xf32>
    %123 = vector.extract_strided_slice %120 {offsets = [0, 32], sizes = [2, 32], strides = [1, 1]} : vector<2x96xf32> to vector<2x32xf32>
    %124 = arith.mulf %123, %87 : vector<2x32xf32>
    %125 = vector.extract_strided_slice %120 {offsets = [0, 0], sizes = [2, 32], strides = [1, 1]} : vector<2x96xf32> to vector<2x32xf32>
    %126 = arith.mulf %125, %122 : vector<2x32xf32>
    %127 = arith.addf %124, %126 : vector<2x32xf32>
    %128 = vector.extract_strided_slice %120 {offsets = [0, 64], sizes = [2, 32], strides = [1, 1]} : vector<2x96xf32> to vector<2x32xf32>
    %129 = math.tanh %127 : vector<2x32xf32>
    %130 = arith.mulf %128, %129 : vector<2x32xf32>
    %c10 = arith.constant 10 : index
    %c32_30 = arith.constant 32 : index
    %131 = vector.load %arg16[%c10, %c32_30] : memref<16x64xf32, #tpu.memory_space<vmem>>, vector<2x32xf32>
    tpu.vector_store %arg16[%c10, %c32_30], %130 {strides = array<i32>} : memref<16x64xf32, #tpu.memory_space<vmem>>, vector<2x32xf32>,
    %132 = vector.extract_strided_slice %7 {offsets = [6, 0], sizes = [2, 128], strides = [1, 1]} : vector<16x256xf32> to vector<2x128xf32>
    %cst_31 = arith.constant dense<0.000000e+00> : vector<2x128xf32>
    %133 = tpu.matmul %110, %1, %cst_31 {dimension_numbers = #tpu.dot_dimension_numbers<[1], [0], [0], [1], [0, 0, 1, 1], [], []>} : vector<2x32xf32>, vector<32x128xf32>, vector<2x128xf32> -> vector<2x128xf32>
    %134 = arith.addf %132, %133 : vector<2x128xf32>
    %135 = vector.extract_strided_slice %134 {offsets = [0, 0], sizes = [2, 96], strides = [1, 1]} : vector<2x128xf32> to vector<2x96xf32>
    %136 = arith.negf %135 : vector<2x96xf32>
    %137 = math.exp %136 : vector<2x96xf32>
    %cst_32 = arith.constant 1.000000e+00 : f32
    %138 = vector.broadcast %cst_32 : f32 to vector<2x96xf32>
    %139 = arith.addf %138, %137 : vector<2x96xf32>
    %140 = arith.divf %138, %139 : vector<2x96xf32>
    %141 = vector.extract_strided_slice %134 {offsets = [0, 96], sizes = [2, 32], strides = [1, 1]} : vector<2x128xf32> to vector<2x32xf32>
    %142 = math.tanh %141 : vector<2x32xf32>
    %143 = vector.extract_strided_slice %140 {offsets = [0, 32], sizes = [2, 32], strides = [1, 1]} : vector<2x96xf32> to vector<2x32xf32>
    %144 = arith.mulf %143, %107 : vector<2x32xf32>
    %145 = vector.extract_strided_slice %140 {offsets = [0, 0], sizes = [2, 32], strides = [1, 1]} : vector<2x96xf32> to vector<2x32xf32>
    %146 = arith.mulf %145, %142 : vector<2x32xf32>
    %147 = arith.addf %144, %146 : vector<2x32xf32>
    %148 = vector.extract_strided_slice %140 {offsets = [0, 64], sizes = [2, 32], strides = [1, 1]} : vector<2x96xf32> to vector<2x32xf32>
    %149 = math.tanh %147 : vector<2x32xf32>
    %150 = arith.mulf %148, %149 : vector<2x32xf32>
    %c6 = arith.constant 6 : index
    %c0_33 = arith.constant 0 : index
    %151 = vector.load %arg16[%c6, %c0_33] : memref<16x64xf32, #tpu.memory_space<vmem>>, vector<2x32xf32>
    tpu.vector_store %arg16[%c6, %c0_33], %150 {strides = array<i32>} : memref<16x64xf32, #tpu.memory_space<vmem>>, vector<2x32xf32>,
    %152 = vector.extract_strided_slice %7 {offsets = [8, 128], sizes = [2, 128], strides = [1, 1]} : vector<16x256xf32> to vector<2x128xf32>
    %cst_34 = arith.constant dense<0.000000e+00> : vector<2x128xf32>
    %153 = tpu.matmul %130, %2, %cst_34 {dimension_numbers = #tpu.dot_dimension_numbers<[1], [0], [0], [1], [0, 0, 1, 1], [], []>} : vector<2x32xf32>, vector<32x128xf32>, vector<2x128xf32> -> vector<2x128xf32>
    %154 = arith.addf %152, %153 : vector<2x128xf32>
    %155 = vector.extract_strided_slice %154 {offsets = [0, 0], sizes = [2, 96], strides = [1, 1]} : vector<2x128xf32> to vector<2x96xf32>
    %156 = arith.negf %155 : vector<2x96xf32>
    %157 = math.exp %156 : vector<2x96xf32>
    %cst_35 = arith.constant 1.000000e+00 : f32
    %158 = vector.broadcast %cst_35 : f32 to vector<2x96xf32>
    %159 = arith.addf %158, %157 : vector<2x96xf32>
    %160 = arith.divf %158, %159 : vector<2x96xf32>
    %161 = vector.extract_strided_slice %154 {offsets = [0, 96], sizes = [2, 32], strides = [1, 1]} : vector<2x128xf32> to vector<2x32xf32>
    %162 = math.tanh %161 : vector<2x32xf32>
    %163 = vector.extract_strided_slice %160 {offsets = [0, 32], sizes = [2, 32], strides = [1, 1]} : vector<2x96xf32> to vector<2x32xf32>
    %164 = arith.mulf %163, %127 : vector<2x32xf32>
    %165 = vector.extract_strided_slice %160 {offsets = [0, 0], sizes = [2, 32], strides = [1, 1]} : vector<2x96xf32> to vector<2x32xf32>
    %166 = arith.mulf %165, %162 : vector<2x32xf32>
    %167 = arith.addf %164, %166 : vector<2x32xf32>
    %168 = vector.extract_strided_slice %160 {offsets = [0, 64], sizes = [2, 32], strides = [1, 1]} : vector<2x96xf32> to vector<2x32xf32>
    %169 = math.tanh %167 : vector<2x32xf32>
    %170 = arith.mulf %168, %169 : vector<2x32xf32>
    %c8 = arith.constant 8 : index
    %c32_36 = arith.constant 32 : index
    %171 = vector.load %arg16[%c8, %c32_36] : memref<16x64xf32, #tpu.memory_space<vmem>>, vector<2x32xf32>
    tpu.vector_store %arg16[%c8, %c32_36], %170 {strides = array<i32>} : memref<16x64xf32, #tpu.memory_space<vmem>>, vector<2x32xf32>,
    %172 = vector.extract_strided_slice %7 {offsets = [8, 0], sizes = [2, 128], strides = [1, 1]} : vector<16x256xf32> to vector<2x128xf32>
    %cst_37 = arith.constant dense<0.000000e+00> : vector<2x128xf32>
    %173 = tpu.matmul %150, %1, %cst_37 {dimension_numbers = #tpu.dot_dimension_numbers<[1], [0], [0], [1], [0, 0, 1, 1], [], []>} : vector<2x32xf32>, vector<32x128xf32>, vector<2x128xf32> -> vector<2x128xf32>
    %174 = arith.addf %172, %173 : vector<2x128xf32>
    %175 = vector.extract_strided_slice %174 {offsets = [0, 0], sizes = [2, 96], strides = [1, 1]} : vector<2x128xf32> to vector<2x96xf32>
    %176 = arith.negf %175 : vector<2x96xf32>
    %177 = math.exp %176 : vector<2x96xf32>
    %cst_38 = arith.constant 1.000000e+00 : f32
    %178 = vector.broadcast %cst_38 : f32 to vector<2x96xf32>
    %179 = arith.addf %178, %177 : vector<2x96xf32>
    %180 = arith.divf %178, %179 : vector<2x96xf32>
    %181 = vector.extract_strided_slice %174 {offsets = [0, 96], sizes = [2, 32], strides = [1, 1]} : vector<2x128xf32> to vector<2x32xf32>
    %182 = math.tanh %181 : vector<2x32xf32>
    %183 = vector.extract_strided_slice %180 {offsets = [0, 32], sizes = [2, 32], strides = [1, 1]} : vector<2x96xf32> to vector<2x32xf32>
    %184 = arith.mulf %183, %147 : vector<2x32xf32>
    %185 = vector.extract_strided_slice %180 {offsets = [0, 0], sizes = [2, 32], strides = [1, 1]} : vector<2x96xf32> to vector<2x32xf32>
    %186 = arith.mulf %185, %182 : vector<2x32xf32>
    %187 = arith.addf %184, %186 : vector<2x32xf32>
    %188 = vector.extract_strided_slice %180 {offsets = [0, 64], sizes = [2, 32], strides = [1, 1]} : vector<2x96xf32> to vector<2x32xf32>
    %189 = math.tanh %187 : vector<2x32xf32>
    %190 = arith.mulf %188, %189 : vector<2x32xf32>
    %c8_39 = arith.constant 8 : index
    %c0_40 = arith.constant 0 : index
    %191 = vector.load %arg16[%c8_39, %c0_40] : memref<16x64xf32, #tpu.memory_space<vmem>>, vector<2x32xf32>
    tpu.vector_store %arg16[%c8_39, %c0_40], %190 {strides = array<i32>} : memref<16x64xf32, #tpu.memory_space<vmem>>, vector<2x32xf32>,
    %192 = vector.extract_strided_slice %7 {offsets = [6, 128], sizes = [2, 128], strides = [1, 1]} : vector<16x256xf32> to vector<2x128xf32>
    %cst_41 = arith.constant dense<0.000000e+00> : vector<2x128xf32>
    %193 = tpu.matmul %170, %2, %cst_41 {dimension_numbers = #tpu.dot_dimension_numbers<[1], [0], [0], [1], [0, 0, 1, 1], [], []>} : vector<2x32xf32>, vector<32x128xf32>, vector<2x128xf32> -> vector<2x128xf32>
    %194 = arith.addf %192, %193 : vector<2x128xf32>
    %195 = vector.extract_strided_slice %194 {offsets = [0, 0], sizes = [2, 96], strides = [1, 1]} : vector<2x128xf32> to vector<2x96xf32>
    %196 = arith.negf %195 : vector<2x96xf32>
    %197 = math.exp %196 : vector<2x96xf32>
    %cst_42 = arith.constant 1.000000e+00 : f32
    %198 = vector.broadcast %cst_42 : f32 to vector<2x96xf32>
    %199 = arith.addf %198, %197 : vector<2x96xf32>
    %200 = arith.divf %198, %199 : vector<2x96xf32>
    %201 = vector.extract_strided_slice %194 {offsets = [0, 96], sizes = [2, 32], strides = [1, 1]} : vector<2x128xf32> to vector<2x32xf32>
    %202 = math.tanh %201 : vector<2x32xf32>
    %203 = vector.extract_strided_slice %200 {offsets = [0, 32], sizes = [2, 32], strides = [1, 1]} : vector<2x96xf32> to vector<2x32xf32>
    %204 = arith.mulf %203, %167 : vector<2x32xf32>
    %205 = vector.extract_strided_slice %200 {offsets = [0, 0], sizes = [2, 32], strides = [1, 1]} : vector<2x96xf32> to vector<2x32xf32>
    %206 = arith.mulf %205, %202 : vector<2x32xf32>
    %207 = arith.addf %204, %206 : vector<2x32xf32>
    %208 = vector.extract_strided_slice %200 {offsets = [0, 64], sizes = [2, 32], strides = [1, 1]} : vector<2x96xf32> to vector<2x32xf32>
    %209 = math.tanh %207 : vector<2x32xf32>
    %210 = arith.mulf %208, %209 : vector<2x32xf32>
    %c6_43 = arith.constant 6 : index
    %c32_44 = arith.constant 32 : index
    %211 = vector.load %arg16[%c6_43, %c32_44] : memref<16x64xf32, #tpu.memory_space<vmem>>, vector<2x32xf32>
    tpu.vector_store %arg16[%c6_43, %c32_44], %210 {strides = array<i32>} : memref<16x64xf32, #tpu.memory_space<vmem>>, vector<2x32xf32>,
    %212 = vector.extract_strided_slice %7 {offsets = [10, 0], sizes = [2, 128], strides = [1, 1]} : vector<16x256xf32> to vector<2x128xf32>
    %cst_45 = arith.constant dense<0.000000e+00> : vector<2x128xf32>
    %213 = tpu.matmul %190, %1, %cst_45 {dimension_numbers = #tpu.dot_dimension_numbers<[1], [0], [0], [1], [0, 0, 1, 1], [], []>} : vector<2x32xf32>, vector<32x128xf32>, vector<2x128xf32> -> vector<2x128xf32>
    %214 = arith.addf %212, %213 : vector<2x128xf32>
    %215 = vector.extract_strided_slice %214 {offsets = [0, 0], sizes = [2, 96], strides = [1, 1]} : vector<2x128xf32> to vector<2x96xf32>
    %216 = arith.negf %215 : vector<2x96xf32>
    %217 = math.exp %216 : vector<2x96xf32>
    %cst_46 = arith.constant 1.000000e+00 : f32
    %218 = vector.broadcast %cst_46 : f32 to vector<2x96xf32>
    %219 = arith.addf %218, %217 : vector<2x96xf32>
    %220 = arith.divf %218, %219 : vector<2x96xf32>
    %221 = vector.extract_strided_slice %214 {offsets = [0, 96], sizes = [2, 32], strides = [1, 1]} : vector<2x128xf32> to vector<2x32xf32>
    %222 = math.tanh %221 : vector<2x32xf32>
    %223 = vector.extract_strided_slice %220 {offsets = [0, 32], sizes = [2, 32], strides = [1, 1]} : vector<2x96xf32> to vector<2x32xf32>
    %224 = arith.mulf %223, %187 : vector<2x32xf32>
    %225 = vector.extract_strided_slice %220 {offsets = [0, 0], sizes = [2, 32], strides = [1, 1]} : vector<2x96xf32> to vector<2x32xf32>
    %226 = arith.mulf %225, %222 : vector<2x32xf32>
    %227 = arith.addf %224, %226 : vector<2x32xf32>
    %228 = vector.extract_strided_slice %220 {offsets = [0, 64], sizes = [2, 32], strides = [1, 1]} : vector<2x96xf32> to vector<2x32xf32>
    %229 = math.tanh %227 : vector<2x32xf32>
    %230 = arith.mulf %228, %229 : vector<2x32xf32>
    %c10_47 = arith.constant 10 : index
    %c0_48 = arith.constant 0 : index
    %231 = vector.load %arg16[%c10_47, %c0_48] : memref<16x64xf32, #tpu.memory_space<vmem>>, vector<2x32xf32>
    tpu.vector_store %arg16[%c10_47, %c0_48], %230 {strides = array<i32>} : memref<16x64xf32, #tpu.memory_space<vmem>>, vector<2x32xf32>,
    %232 = vector.extract_strided_slice %7 {offsets = [4, 128], sizes = [2, 128], strides = [1, 1]} : vector<16x256xf32> to vector<2x128xf32>
    %cst_49 = arith.constant dense<0.000000e+00> : vector<2x128xf32>
    %233 = tpu.matmul %210, %2, %cst_49 {dimension_numbers = #tpu.dot_dimension_numbers<[1], [0], [0], [1], [0, 0, 1, 1], [], []>} : vector<2x32xf32>, vector<32x128xf32>, vector<2x128xf32> -> vector<2x128xf32>
    %234 = arith.addf %232, %233 : vector<2x128xf32>
    %235 = vector.extract_strided_slice %234 {offsets = [0, 0], sizes = [2, 96], strides = [1, 1]} : vector<2x128xf32> to vector<2x96xf32>
    %236 = arith.negf %235 : vector<2x96xf32>
    %237 = math.exp %236 : vector<2x96xf32>
    %cst_50 = arith.constant 1.000000e+00 : f32
    %238 = vector.broadcast %cst_50 : f32 to vector<2x96xf32>
    %239 = arith.addf %238, %237 : vector<2x96xf32>
    %240 = arith.divf %238, %239 : vector<2x96xf32>
    %241 = vector.extract_strided_slice %234 {offsets = [0, 96], sizes = [2, 32], strides = [1, 1]} : vector<2x128xf32> to vector<2x32xf32>
    %242 = math.tanh %241 : vector<2x32xf32>
    %243 = vector.extract_strided_slice %240 {offsets = [0, 32], sizes = [2, 32], strides = [1, 1]} : vector<2x96xf32> to vector<2x32xf32>
    %244 = arith.mulf %243, %207 : vector<2x32xf32>
    %245 = vector.extract_strided_slice %240 {offsets = [0, 0], sizes = [2, 32], strides = [1, 1]} : vector<2x96xf32> to vector<2x32xf32>
    %246 = arith.mulf %245, %242 : vector<2x32xf32>
    %247 = arith.addf %244, %246 : vector<2x32xf32>
    %248 = vector.extract_strided_slice %240 {offsets = [0, 64], sizes = [2, 32], strides = [1, 1]} : vector<2x96xf32> to vector<2x32xf32>
    %249 = math.tanh %247 : vector<2x32xf32>
    %250 = arith.mulf %248, %249 : vector<2x32xf32>
    %c4_51 = arith.constant 4 : index
    %c32_52 = arith.constant 32 : index
    %251 = vector.load %arg16[%c4_51, %c32_52] : memref<16x64xf32, #tpu.memory_space<vmem>>, vector<2x32xf32>
    tpu.vector_store %arg16[%c4_51, %c32_52], %250 {strides = array<i32>} : memref<16x64xf32, #tpu.memory_space<vmem>>, vector<2x32xf32>,
    %252 = vector.extract_strided_slice %7 {offsets = [12, 0], sizes = [2, 128], strides = [1, 1]} : vector<16x256xf32> to vector<2x128xf32>
    %cst_53 = arith.constant dense<0.000000e+00> : vector<2x128xf32>
    %253 = tpu.matmul %230, %1, %cst_53 {dimension_numbers = #tpu.dot_dimension_numbers<[1], [0], [0], [1], [0, 0, 1, 1], [], []>} : vector<2x32xf32>, vector<32x128xf32>, vector<2x128xf32> -> vector<2x128xf32>
    %254 = arith.addf %252, %253 : vector<2x128xf32>
    %255 = vector.extract_strided_slice %254 {offsets = [0, 0], sizes = [2, 96], strides = [1, 1]} : vector<2x128xf32> to vector<2x96xf32>
    %256 = arith.negf %255 : vector<2x96xf32>
    %257 = math.exp %256 : vector<2x96xf32>
    %cst_54 = arith.constant 1.000000e+00 : f32
    %258 = vector.broadcast %cst_54 : f32 to vector<2x96xf32>
    %259 = arith.addf %258, %257 : vector<2x96xf32>
    %260 = arith.divf %258, %259 : vector<2x96xf32>
    %261 = vector.extract_strided_slice %254 {offsets = [0, 96], sizes = [2, 32], strides = [1, 1]} : vector<2x128xf32> to vector<2x32xf32>
    %262 = math.tanh %261 : vector<2x32xf32>
    %263 = vector.extract_strided_slice %260 {offsets = [0, 32], sizes = [2, 32], strides = [1, 1]} : vector<2x96xf32> to vector<2x32xf32>
    %264 = arith.mulf %263, %227 : vector<2x32xf32>
    %265 = vector.extract_strided_slice %260 {offsets = [0, 0], sizes = [2, 32], strides = [1, 1]} : vector<2x96xf32> to vector<2x32xf32>
    %266 = arith.mulf %265, %262 : vector<2x32xf32>
    %267 = arith.addf %264, %266 : vector<2x32xf32>
    %268 = vector.extract_strided_slice %260 {offsets = [0, 64], sizes = [2, 32], strides = [1, 1]} : vector<2x96xf32> to vector<2x32xf32>
    %269 = math.tanh %267 : vector<2x32xf32>
    %270 = arith.mulf %268, %269 : vector<2x32xf32>
    %c12_55 = arith.constant 12 : index
    %c0_56 = arith.constant 0 : index
    %271 = vector.load %arg16[%c12_55, %c0_56] : memref<16x64xf32, #tpu.memory_space<vmem>>, vector<2x32xf32>
    tpu.vector_store %arg16[%c12_55, %c0_56], %270 {strides = array<i32>} : memref<16x64xf32, #tpu.memory_space<vmem>>, vector<2x32xf32>,
    %272 = vector.extract_strided_slice %7 {offsets = [2, 128], sizes = [2, 128], strides = [1, 1]} : vector<16x256xf32> to vector<2x128xf32>
    %cst_57 = arith.constant dense<0.000000e+00> : vector<2x128xf32>
    %273 = tpu.matmul %250, %2, %cst_57 {dimension_numbers = #tpu.dot_dimension_numbers<[1], [0], [0], [1], [0, 0, 1, 1], [], []>} : vector<2x32xf32>, vector<32x128xf32>, vector<2x128xf32> -> vector<2x128xf32>
    %274 = arith.addf %272, %273 : vector<2x128xf32>
    %275 = vector.extract_strided_slice %274 {offsets = [0, 0], sizes = [2, 96], strides = [1, 1]} : vector<2x128xf32> to vector<2x96xf32>
    %276 = arith.negf %275 : vector<2x96xf32>
    %277 = math.exp %276 : vector<2x96xf32>
    %cst_58 = arith.constant 1.000000e+00 : f32
    %278 = vector.broadcast %cst_58 : f32 to vector<2x96xf32>
    %279 = arith.addf %278, %277 : vector<2x96xf32>
    %280 = arith.divf %278, %279 : vector<2x96xf32>
    %281 = vector.extract_strided_slice %274 {offsets = [0, 96], sizes = [2, 32], strides = [1, 1]} : vector<2x128xf32> to vector<2x32xf32>
    %282 = math.tanh %281 : vector<2x32xf32>
    %283 = vector.extract_strided_slice %280 {offsets = [0, 32], sizes = [2, 32], strides = [1, 1]} : vector<2x96xf32> to vector<2x32xf32>
    %284 = arith.mulf %283, %247 : vector<2x32xf32>
    %285 = vector.extract_strided_slice %280 {offsets = [0, 0], sizes = [2, 32], strides = [1, 1]} : vector<2x96xf32> to vector<2x32xf32>
    %286 = arith.mulf %285, %282 : vector<2x32xf32>
    %287 = arith.addf %284, %286 : vector<2x32xf32>
    %288 = vector.extract_strided_slice %280 {offsets = [0, 64], sizes = [2, 32], strides = [1, 1]} : vector<2x96xf32> to vector<2x32xf32>
    %289 = math.tanh %287 : vector<2x32xf32>
    %290 = arith.mulf %288, %289 : vector<2x32xf32>
    %c2_59 = arith.constant 2 : index
    %c32_60 = arith.constant 32 : index
    %291 = vector.load %arg16[%c2_59, %c32_60] : memref<16x64xf32, #tpu.memory_space<vmem>>, vector<2x32xf32>
    tpu.vector_store %arg16[%c2_59, %c32_60], %290 {strides = array<i32>} : memref<16x64xf32, #tpu.memory_space<vmem>>, vector<2x32xf32>,
    %292 = vector.extract_strided_slice %7 {offsets = [14, 0], sizes = [2, 128], strides = [1, 1]} : vector<16x256xf32> to vector<2x128xf32>
    %cst_61 = arith.constant dense<0.000000e+00> : vector<2x128xf32>
    %293 = tpu.matmul %270, %1, %cst_61 {dimension_numbers = #tpu.dot_dimension_numbers<[1], [0], [0], [1], [0, 0, 1, 1], [], []>} : vector<2x32xf32>, vector<32x128xf32>, vector<2x128xf32> -> vector<2x128xf32>
    %294 = arith.addf %292, %293 : vector<2x128xf32>
    %295 = vector.extract_strided_slice %294 {offsets = [0, 0], sizes = [2, 96], strides = [1, 1]} : vector<2x128xf32> to vector<2x96xf32>
    %296 = arith.negf %295 : vector<2x96xf32>
    %297 = math.exp %296 : vector<2x96xf32>
    %cst_62 = arith.constant 1.000000e+00 : f32
    %298 = vector.broadcast %cst_62 : f32 to vector<2x96xf32>
    %299 = arith.addf %298, %297 : vector<2x96xf32>
    %300 = arith.divf %298, %299 : vector<2x96xf32>
    %301 = vector.extract_strided_slice %294 {offsets = [0, 96], sizes = [2, 32], strides = [1, 1]} : vector<2x128xf32> to vector<2x32xf32>
    %302 = math.tanh %301 : vector<2x32xf32>
    %303 = vector.extract_strided_slice %300 {offsets = [0, 32], sizes = [2, 32], strides = [1, 1]} : vector<2x96xf32> to vector<2x32xf32>
    %304 = arith.mulf %303, %267 : vector<2x32xf32>
    %305 = vector.extract_strided_slice %300 {offsets = [0, 0], sizes = [2, 32], strides = [1, 1]} : vector<2x96xf32> to vector<2x32xf32>
    %306 = arith.mulf %305, %302 : vector<2x32xf32>
    %307 = arith.addf %304, %306 : vector<2x32xf32>
    %308 = vector.extract_strided_slice %300 {offsets = [0, 64], sizes = [2, 32], strides = [1, 1]} : vector<2x96xf32> to vector<2x32xf32>
    %309 = math.tanh %307 : vector<2x32xf32>
    %310 = arith.mulf %308, %309 : vector<2x32xf32>
    %c14_63 = arith.constant 14 : index
    %c0_64 = arith.constant 0 : index
    %311 = vector.load %arg16[%c14_63, %c0_64] : memref<16x64xf32, #tpu.memory_space<vmem>>, vector<2x32xf32>
    tpu.vector_store %arg16[%c14_63, %c0_64], %310 {strides = array<i32>} : memref<16x64xf32, #tpu.memory_space<vmem>>, vector<2x32xf32>,
    %312 = vector.extract_strided_slice %7 {offsets = [0, 128], sizes = [2, 128], strides = [1, 1]} : vector<16x256xf32> to vector<2x128xf32>
    %cst_65 = arith.constant dense<0.000000e+00> : vector<2x128xf32>
    %313 = tpu.matmul %290, %2, %cst_65 {dimension_numbers = #tpu.dot_dimension_numbers<[1], [0], [0], [1], [0, 0, 1, 1], [], []>} : vector<2x32xf32>, vector<32x128xf32>, vector<2x128xf32> -> vector<2x128xf32>
    %314 = arith.addf %312, %313 : vector<2x128xf32>
    %315 = vector.extract_strided_slice %314 {offsets = [0, 0], sizes = [2, 96], strides = [1, 1]} : vector<2x128xf32> to vector<2x96xf32>
    %316 = arith.negf %315 : vector<2x96xf32>
    %317 = math.exp %316 : vector<2x96xf32>
    %cst_66 = arith.constant 1.000000e+00 : f32
    %318 = vector.broadcast %cst_66 : f32 to vector<2x96xf32>
    %319 = arith.addf %318, %317 : vector<2x96xf32>
    %320 = arith.divf %318, %319 : vector<2x96xf32>
    %321 = vector.extract_strided_slice %314 {offsets = [0, 96], sizes = [2, 32], strides = [1, 1]} : vector<2x128xf32> to vector<2x32xf32>
    %322 = math.tanh %321 : vector<2x32xf32>
    %323 = vector.extract_strided_slice %320 {offsets = [0, 32], sizes = [2, 32], strides = [1, 1]} : vector<2x96xf32> to vector<2x32xf32>
    %324 = arith.mulf %323, %287 : vector<2x32xf32>
    %325 = vector.extract_strided_slice %320 {offsets = [0, 0], sizes = [2, 32], strides = [1, 1]} : vector<2x96xf32> to vector<2x32xf32>
    %326 = arith.mulf %325, %322 : vector<2x32xf32>
    %327 = arith.addf %324, %326 : vector<2x32xf32>
    %328 = vector.extract_strided_slice %320 {offsets = [0, 64], sizes = [2, 32], strides = [1, 1]} : vector<2x96xf32> to vector<2x32xf32>
    %329 = math.tanh %327 : vector<2x32xf32>
    %330 = arith.mulf %328, %329 : vector<2x32xf32>
    %c0_67 = arith.constant 0 : index
    %c32_68 = arith.constant 32 : index
    %331 = vector.load %arg16[%c0_67, %c32_68] : memref<16x64xf32, #tpu.memory_space<vmem>>, vector<2x32xf32>
    tpu.vector_store %arg16[%c0_67, %c32_68], %330 {strides = array<i32>} : memref<16x64xf32, #tpu.memory_space<vmem>>, vector<2x32xf32>,
    %c0_69 = arith.constant 0 : index
    %c0_70 = arith.constant 0 : index
    %332 = vector.load %arg16[%c0_69, %c0_70] : memref<16x64xf32, #tpu.memory_space<vmem>>, vector<16x64xf32>
    %c0_71 = arith.constant 0 : index
    %c0_72 = arith.constant 0 : index
    %333 = vector.load %arg6[%c0_71, %c0_72] : memref<32x128xf32, #tpu.memory_space<vmem>>, vector<32x128xf32>
    %c0_73 = arith.constant 0 : index
    %c0_74 = arith.constant 0 : index
    %334 = vector.load %arg7[%c0_73, %c0_74] : memref<32x128xf32, #tpu.memory_space<vmem>>, vector<32x128xf32>
    %c0_75 = arith.constant 0 : index
    %c0_76 = arith.constant 0 : index
    %335 = vector.load %arg5[%c0_75, %c0_76] : memref<64x256xf32, #tpu.memory_space<vmem>>, vector<64x256xf32>
    %cst_77 = arith.constant dense<0.000000e+00> : vector<16x256xf32>
    %336 = tpu.matmul %332, %335, %cst_77 {dimension_numbers = #tpu.dot_dimension_numbers<[1], [0], [0], [1], [0, 0, 1, 1], [], []>} : vector<16x64xf32>, vector<64x256xf32>, vector<16x256xf32> -> vector<16x256xf32>
    %c0_78 = arith.constant 0 : index
    %c0_79 = arith.constant 0 : index
    %337 = vector.load %arg8[%c0_78, %c0_79] : memref<1x256xf32, #tpu.memory_space<vmem>>, vector<1x256xf32>
    %338 = vector.broadcast %337 : vector<1x256xf32> to vector<16x256xf32>
    %339 = arith.addf %336, %338 : vector<16x256xf32>
    %cst_80 = arith.constant 0.000000e+00 : f32
    %340 = vector.broadcast %cst_80 : f32 to vector<2x32xf32>
    %cst_81 = arith.constant 0.000000e+00 : f32
    %341 = vector.broadcast %cst_81 : f32 to vector<2x32xf32>
    %cst_82 = arith.constant 0.000000e+00 : f32
    %342 = vector.broadcast %cst_82 : f32 to vector<2x32xf32>
    %cst_83 = arith.constant 0.000000e+00 : f32
    %343 = vector.broadcast %cst_83 : f32 to vector<2x32xf32>
    %344 = vector.extract_strided_slice %339 {offsets = [0, 0], sizes = [2, 128], strides = [1, 1]} : vector<16x256xf32> to vector<2x128xf32>
    %cst_84 = arith.constant dense<0.000000e+00> : vector<2x128xf32>
    %345 = tpu.matmul %340, %333, %cst_84 {dimension_numbers = #tpu.dot_dimension_numbers<[1], [0], [0], [1], [0, 0, 1, 1], [], []>} : vector<2x32xf32>, vector<32x128xf32>, vector<2x128xf32> -> vector<2x128xf32>
    %346 = arith.addf %344, %345 : vector<2x128xf32>
    %347 = vector.extract_strided_slice %346 {offsets = [0, 0], sizes = [2, 96], strides = [1, 1]} : vector<2x128xf32> to vector<2x96xf32>
    %348 = arith.negf %347 : vector<2x96xf32>
    %349 = math.exp %348 : vector<2x96xf32>
    %cst_85 = arith.constant 1.000000e+00 : f32
    %350 = vector.broadcast %cst_85 : f32 to vector<2x96xf32>
    %351 = arith.addf %350, %349 : vector<2x96xf32>
    %352 = arith.divf %350, %351 : vector<2x96xf32>
    %353 = vector.extract_strided_slice %346 {offsets = [0, 96], sizes = [2, 32], strides = [1, 1]} : vector<2x128xf32> to vector<2x32xf32>
    %354 = math.tanh %353 : vector<2x32xf32>
    %355 = vector.extract_strided_slice %352 {offsets = [0, 32], sizes = [2, 32], strides = [1, 1]} : vector<2x96xf32> to vector<2x32xf32>
    %356 = arith.mulf %355, %341 : vector<2x32xf32>
    %357 = vector.extract_strided_slice %352 {offsets = [0, 0], sizes = [2, 32], strides = [1, 1]} : vector<2x96xf32> to vector<2x32xf32>
    %358 = arith.mulf %357, %354 : vector<2x32xf32>
    %359 = arith.addf %356, %358 : vector<2x32xf32>
    %360 = vector.extract_strided_slice %352 {offsets = [0, 64], sizes = [2, 32], strides = [1, 1]} : vector<2x96xf32> to vector<2x32xf32>
    %361 = math.tanh %359 : vector<2x32xf32>
    %362 = arith.mulf %360, %361 : vector<2x32xf32>
    %c0_86 = arith.constant 0 : index
    %c0_87 = arith.constant 0 : index
    %363 = vector.load %arg16[%c0_86, %c0_87] : memref<16x64xf32, #tpu.memory_space<vmem>>, vector<2x32xf32>
    tpu.vector_store %arg16[%c0_86, %c0_87], %362 {strides = array<i32>} : memref<16x64xf32, #tpu.memory_space<vmem>>, vector<2x32xf32>,
    %364 = vector.extract_strided_slice %339 {offsets = [14, 128], sizes = [2, 128], strides = [1, 1]} : vector<16x256xf32> to vector<2x128xf32>
    %cst_88 = arith.constant dense<0.000000e+00> : vector<2x128xf32>
    %365 = tpu.matmul %342, %334, %cst_88 {dimension_numbers = #tpu.dot_dimension_numbers<[1], [0], [0], [1], [0, 0, 1, 1], [], []>} : vector<2x32xf32>, vector<32x128xf32>, vector<2x128xf32> -> vector<2x128xf32>
    %366 = arith.addf %364, %365 : vector<2x128xf32>
    %367 = vector.extract_strided_slice %366 {offsets = [0, 0], sizes = [2, 96], strides = [1, 1]} : vector<2x128xf32> to vector<2x96xf32>
    %368 = arith.negf %367 : vector<2x96xf32>
    %369 = math.exp %368 : vector<2x96xf32>
    %cst_89 = arith.constant 1.000000e+00 : f32
    %370 = vector.broadcast %cst_89 : f32 to vector<2x96xf32>
    %371 = arith.addf %370, %369 : vector<2x96xf32>
    %372 = arith.divf %370, %371 : vector<2x96xf32>
    %373 = vector.extract_strided_slice %366 {offsets = [0, 96], sizes = [2, 32], strides = [1, 1]} : vector<2x128xf32> to vector<2x32xf32>
    %374 = math.tanh %373 : vector<2x32xf32>
    %375 = vector.extract_strided_slice %372 {offsets = [0, 32], sizes = [2, 32], strides = [1, 1]} : vector<2x96xf32> to vector<2x32xf32>
    %376 = arith.mulf %375, %343 : vector<2x32xf32>
    %377 = vector.extract_strided_slice %372 {offsets = [0, 0], sizes = [2, 32], strides = [1, 1]} : vector<2x96xf32> to vector<2x32xf32>
    %378 = arith.mulf %377, %374 : vector<2x32xf32>
    %379 = arith.addf %376, %378 : vector<2x32xf32>
    %380 = vector.extract_strided_slice %372 {offsets = [0, 64], sizes = [2, 32], strides = [1, 1]} : vector<2x96xf32> to vector<2x32xf32>
    %381 = math.tanh %379 : vector<2x32xf32>
    %382 = arith.mulf %380, %381 : vector<2x32xf32>
    %c14_90 = arith.constant 14 : index
    %c32_91 = arith.constant 32 : index
    %383 = vector.load %arg16[%c14_90, %c32_91] : memref<16x64xf32, #tpu.memory_space<vmem>>, vector<2x32xf32>
    tpu.vector_store %arg16[%c14_90, %c32_91], %382 {strides = array<i32>} : memref<16x64xf32, #tpu.memory_space<vmem>>, vector<2x32xf32>,
    %384 = vector.extract_strided_slice %339 {offsets = [2, 0], sizes = [2, 128], strides = [1, 1]} : vector<16x256xf32> to vector<2x128xf32>
    %cst_92 = arith.constant dense<0.000000e+00> : vector<2x128xf32>
    %385 = tpu.matmul %362, %333, %cst_92 {dimension_numbers = #tpu.dot_dimension_numbers<[1], [0], [0], [1], [0, 0, 1, 1], [], []>} : vector<2x32xf32>, vector<32x128xf32>, vector<2x128xf32> -> vector<2x128xf32>
    %386 = arith.addf %384, %385 : vector<2x128xf32>
    %387 = vector.extract_strided_slice %386 {offsets = [0, 0], sizes = [2, 96], strides = [1, 1]} : vector<2x128xf32> to vector<2x96xf32>
    %388 = arith.negf %387 : vector<2x96xf32>
    %389 = math.exp %388 : vector<2x96xf32>
    %cst_93 = arith.constant 1.000000e+00 : f32
    %390 = vector.broadcast %cst_93 : f32 to vector<2x96xf32>
    %391 = arith.addf %390, %389 : vector<2x96xf32>
    %392 = arith.divf %390, %391 : vector<2x96xf32>
    %393 = vector.extract_strided_slice %386 {offsets = [0, 96], sizes = [2, 32], strides = [1, 1]} : vector<2x128xf32> to vector<2x32xf32>
    %394 = math.tanh %393 : vector<2x32xf32>
    %395 = vector.extract_strided_slice %392 {offsets = [0, 32], sizes = [2, 32], strides = [1, 1]} : vector<2x96xf32> to vector<2x32xf32>
    %396 = arith.mulf %395, %359 : vector<2x32xf32>
    %397 = vector.extract_strided_slice %392 {offsets = [0, 0], sizes = [2, 32], strides = [1, 1]} : vector<2x96xf32> to vector<2x32xf32>
    %398 = arith.mulf %397, %394 : vector<2x32xf32>
    %399 = arith.addf %396, %398 : vector<2x32xf32>
    %400 = vector.extract_strided_slice %392 {offsets = [0, 64], sizes = [2, 32], strides = [1, 1]} : vector<2x96xf32> to vector<2x32xf32>
    %401 = math.tanh %399 : vector<2x32xf32>
    %402 = arith.mulf %400, %401 : vector<2x32xf32>
    %c2_94 = arith.constant 2 : index
    %c0_95 = arith.constant 0 : index
    %403 = vector.load %arg16[%c2_94, %c0_95] : memref<16x64xf32, #tpu.memory_space<vmem>>, vector<2x32xf32>
    tpu.vector_store %arg16[%c2_94, %c0_95], %402 {strides = array<i32>} : memref<16x64xf32, #tpu.memory_space<vmem>>, vector<2x32xf32>,
    %404 = vector.extract_strided_slice %339 {offsets = [12, 128], sizes = [2, 128], strides = [1, 1]} : vector<16x256xf32> to vector<2x128xf32>
    %cst_96 = arith.constant dense<0.000000e+00> : vector<2x128xf32>
    %405 = tpu.matmul %382, %334, %cst_96 {dimension_numbers = #tpu.dot_dimension_numbers<[1], [0], [0], [1], [0, 0, 1, 1], [], []>} : vector<2x32xf32>, vector<32x128xf32>, vector<2x128xf32> -> vector<2x128xf32>
    %406 = arith.addf %404, %405 : vector<2x128xf32>
    %407 = vector.extract_strided_slice %406 {offsets = [0, 0], sizes = [2, 96], strides = [1, 1]} : vector<2x128xf32> to vector<2x96xf32>
    %408 = arith.negf %407 : vector<2x96xf32>
    %409 = math.exp %408 : vector<2x96xf32>
    %cst_97 = arith.constant 1.000000e+00 : f32
    %410 = vector.broadcast %cst_97 : f32 to vector<2x96xf32>
    %411 = arith.addf %410, %409 : vector<2x96xf32>
    %412 = arith.divf %410, %411 : vector<2x96xf32>
    %413 = vector.extract_strided_slice %406 {offsets = [0, 96], sizes = [2, 32], strides = [1, 1]} : vector<2x128xf32> to vector<2x32xf32>
    %414 = math.tanh %413 : vector<2x32xf32>
    %415 = vector.extract_strided_slice %412 {offsets = [0, 32], sizes = [2, 32], strides = [1, 1]} : vector<2x96xf32> to vector<2x32xf32>
    %416 = arith.mulf %415, %379 : vector<2x32xf32>
    %417 = vector.extract_strided_slice %412 {offsets = [0, 0], sizes = [2, 32], strides = [1, 1]} : vector<2x96xf32> to vector<2x32xf32>
    %418 = arith.mulf %417, %414 : vector<2x32xf32>
    %419 = arith.addf %416, %418 : vector<2x32xf32>
    %420 = vector.extract_strided_slice %412 {offsets = [0, 64], sizes = [2, 32], strides = [1, 1]} : vector<2x96xf32> to vector<2x32xf32>
    %421 = math.tanh %419 : vector<2x32xf32>
    %422 = arith.mulf %420, %421 : vector<2x32xf32>
    %c12_98 = arith.constant 12 : index
    %c32_99 = arith.constant 32 : index
    %423 = vector.load %arg16[%c12_98, %c32_99] : memref<16x64xf32, #tpu.memory_space<vmem>>, vector<2x32xf32>
    tpu.vector_store %arg16[%c12_98, %c32_99], %422 {strides = array<i32>} : memref<16x64xf32, #tpu.memory_space<vmem>>, vector<2x32xf32>,
    %424 = vector.extract_strided_slice %339 {offsets = [4, 0], sizes = [2, 128], strides = [1, 1]} : vector<16x256xf32> to vector<2x128xf32>
    %cst_100 = arith.constant dense<0.000000e+00> : vector<2x128xf32>
    %425 = tpu.matmul %402, %333, %cst_100 {dimension_numbers = #tpu.dot_dimension_numbers<[1], [0], [0], [1], [0, 0, 1, 1], [], []>} : vector<2x32xf32>, vector<32x128xf32>, vector<2x128xf32> -> vector<2x128xf32>
    %426 = arith.addf %424, %425 : vector<2x128xf32>
    %427 = vector.extract_strided_slice %426 {offsets = [0, 0], sizes = [2, 96], strides = [1, 1]} : vector<2x128xf32> to vector<2x96xf32>
    %428 = arith.negf %427 : vector<2x96xf32>
    %429 = math.exp %428 : vector<2x96xf32>
    %cst_101 = arith.constant 1.000000e+00 : f32
    %430 = vector.broadcast %cst_101 : f32 to vector<2x96xf32>
    %431 = arith.addf %430, %429 : vector<2x96xf32>
    %432 = arith.divf %430, %431 : vector<2x96xf32>
    %433 = vector.extract_strided_slice %426 {offsets = [0, 96], sizes = [2, 32], strides = [1, 1]} : vector<2x128xf32> to vector<2x32xf32>
    %434 = math.tanh %433 : vector<2x32xf32>
    %435 = vector.extract_strided_slice %432 {offsets = [0, 32], sizes = [2, 32], strides = [1, 1]} : vector<2x96xf32> to vector<2x32xf32>
    %436 = arith.mulf %435, %399 : vector<2x32xf32>
    %437 = vector.extract_strided_slice %432 {offsets = [0, 0], sizes = [2, 32], strides = [1, 1]} : vector<2x96xf32> to vector<2x32xf32>
    %438 = arith.mulf %437, %434 : vector<2x32xf32>
    %439 = arith.addf %436, %438 : vector<2x32xf32>
    %440 = vector.extract_strided_slice %432 {offsets = [0, 64], sizes = [2, 32], strides = [1, 1]} : vector<2x96xf32> to vector<2x32xf32>
    %441 = math.tanh %439 : vector<2x32xf32>
    %442 = arith.mulf %440, %441 : vector<2x32xf32>
    %c4_102 = arith.constant 4 : index
    %c0_103 = arith.constant 0 : index
    %443 = vector.load %arg16[%c4_102, %c0_103] : memref<16x64xf32, #tpu.memory_space<vmem>>, vector<2x32xf32>
    tpu.vector_store %arg16[%c4_102, %c0_103], %442 {strides = array<i32>} : memref<16x64xf32, #tpu.memory_space<vmem>>, vector<2x32xf32>,
    %444 = vector.extract_strided_slice %339 {offsets = [10, 128], sizes = [2, 128], strides = [1, 1]} : vector<16x256xf32> to vector<2x128xf32>
    %cst_104 = arith.constant dense<0.000000e+00> : vector<2x128xf32>
    %445 = tpu.matmul %422, %334, %cst_104 {dimension_numbers = #tpu.dot_dimension_numbers<[1], [0], [0], [1], [0, 0, 1, 1], [], []>} : vector<2x32xf32>, vector<32x128xf32>, vector<2x128xf32> -> vector<2x128xf32>
    %446 = arith.addf %444, %445 : vector<2x128xf32>
    %447 = vector.extract_strided_slice %446 {offsets = [0, 0], sizes = [2, 96], strides = [1, 1]} : vector<2x128xf32> to vector<2x96xf32>
    %448 = arith.negf %447 : vector<2x96xf32>
    %449 = math.exp %448 : vector<2x96xf32>
    %cst_105 = arith.constant 1.000000e+00 : f32
    %450 = vector.broadcast %cst_105 : f32 to vector<2x96xf32>
    %451 = arith.addf %450, %449 : vector<2x96xf32>
    %452 = arith.divf %450, %451 : vector<2x96xf32>
    %453 = vector.extract_strided_slice %446 {offsets = [0, 96], sizes = [2, 32], strides = [1, 1]} : vector<2x128xf32> to vector<2x32xf32>
    %454 = math.tanh %453 : vector<2x32xf32>
    %455 = vector.extract_strided_slice %452 {offsets = [0, 32], sizes = [2, 32], strides = [1, 1]} : vector<2x96xf32> to vector<2x32xf32>
    %456 = arith.mulf %455, %419 : vector<2x32xf32>
    %457 = vector.extract_strided_slice %452 {offsets = [0, 0], sizes = [2, 32], strides = [1, 1]} : vector<2x96xf32> to vector<2x32xf32>
    %458 = arith.mulf %457, %454 : vector<2x32xf32>
    %459 = arith.addf %456, %458 : vector<2x32xf32>
    %460 = vector.extract_strided_slice %452 {offsets = [0, 64], sizes = [2, 32], strides = [1, 1]} : vector<2x96xf32> to vector<2x32xf32>
    %461 = math.tanh %459 : vector<2x32xf32>
    %462 = arith.mulf %460, %461 : vector<2x32xf32>
    %c10_106 = arith.constant 10 : index
    %c32_107 = arith.constant 32 : index
    %463 = vector.load %arg16[%c10_106, %c32_107] : memref<16x64xf32, #tpu.memory_space<vmem>>, vector<2x32xf32>
    tpu.vector_store %arg16[%c10_106, %c32_107], %462 {strides = array<i32>} : memref<16x64xf32, #tpu.memory_space<vmem>>, vector<2x32xf32>,
    %464 = vector.extract_strided_slice %339 {offsets = [6, 0], sizes = [2, 128], strides = [1, 1]} : vector<16x256xf32> to vector<2x128xf32>
    %cst_108 = arith.constant dense<0.000000e+00> : vector<2x128xf32>
    %465 = tpu.matmul %442, %333, %cst_108 {dimension_numbers = #tpu.dot_dimension_numbers<[1], [0], [0], [1], [0, 0, 1, 1], [], []>} : vector<2x32xf32>, vector<32x128xf32>, vector<2x128xf32> -> vector<2x128xf32>
    %466 = arith.addf %464, %465 : vector<2x128xf32>
    %467 = vector.extract_strided_slice %466 {offsets = [0, 0], sizes = [2, 96], strides = [1, 1]} : vector<2x128xf32> to vector<2x96xf32>
    %468 = arith.negf %467 : vector<2x96xf32>
    %469 = math.exp %468 : vector<2x96xf32>
    %cst_109 = arith.constant 1.000000e+00 : f32
    %470 = vector.broadcast %cst_109 : f32 to vector<2x96xf32>
    %471 = arith.addf %470, %469 : vector<2x96xf32>
    %472 = arith.divf %470, %471 : vector<2x96xf32>
    %473 = vector.extract_strided_slice %466 {offsets = [0, 96], sizes = [2, 32], strides = [1, 1]} : vector<2x128xf32> to vector<2x32xf32>
    %474 = math.tanh %473 : vector<2x32xf32>
    %475 = vector.extract_strided_slice %472 {offsets = [0, 32], sizes = [2, 32], strides = [1, 1]} : vector<2x96xf32> to vector<2x32xf32>
    %476 = arith.mulf %475, %439 : vector<2x32xf32>
    %477 = vector.extract_strided_slice %472 {offsets = [0, 0], sizes = [2, 32], strides = [1, 1]} : vector<2x96xf32> to vector<2x32xf32>
    %478 = arith.mulf %477, %474 : vector<2x32xf32>
    %479 = arith.addf %476, %478 : vector<2x32xf32>
    %480 = vector.extract_strided_slice %472 {offsets = [0, 64], sizes = [2, 32], strides = [1, 1]} : vector<2x96xf32> to vector<2x32xf32>
    %481 = math.tanh %479 : vector<2x32xf32>
    %482 = arith.mulf %480, %481 : vector<2x32xf32>
    %c6_110 = arith.constant 6 : index
    %c0_111 = arith.constant 0 : index
    %483 = vector.load %arg16[%c6_110, %c0_111] : memref<16x64xf32, #tpu.memory_space<vmem>>, vector<2x32xf32>
    tpu.vector_store %arg16[%c6_110, %c0_111], %482 {strides = array<i32>} : memref<16x64xf32, #tpu.memory_space<vmem>>, vector<2x32xf32>,
    %484 = vector.extract_strided_slice %339 {offsets = [8, 128], sizes = [2, 128], strides = [1, 1]} : vector<16x256xf32> to vector<2x128xf32>
    %cst_112 = arith.constant dense<0.000000e+00> : vector<2x128xf32>
    %485 = tpu.matmul %462, %334, %cst_112 {dimension_numbers = #tpu.dot_dimension_numbers<[1], [0], [0], [1], [0, 0, 1, 1], [], []>} : vector<2x32xf32>, vector<32x128xf32>, vector<2x128xf32> -> vector<2x128xf32>
    %486 = arith.addf %484, %485 : vector<2x128xf32>
    %487 = vector.extract_strided_slice %486 {offsets = [0, 0], sizes = [2, 96], strides = [1, 1]} : vector<2x128xf32> to vector<2x96xf32>
    %488 = arith.negf %487 : vector<2x96xf32>
    %489 = math.exp %488 : vector<2x96xf32>
    %cst_113 = arith.constant 1.000000e+00 : f32
    %490 = vector.broadcast %cst_113 : f32 to vector<2x96xf32>
    %491 = arith.addf %490, %489 : vector<2x96xf32>
    %492 = arith.divf %490, %491 : vector<2x96xf32>
    %493 = vector.extract_strided_slice %486 {offsets = [0, 96], sizes = [2, 32], strides = [1, 1]} : vector<2x128xf32> to vector<2x32xf32>
    %494 = math.tanh %493 : vector<2x32xf32>
    %495 = vector.extract_strided_slice %492 {offsets = [0, 32], sizes = [2, 32], strides = [1, 1]} : vector<2x96xf32> to vector<2x32xf32>
    %496 = arith.mulf %495, %459 : vector<2x32xf32>
    %497 = vector.extract_strided_slice %492 {offsets = [0, 0], sizes = [2, 32], strides = [1, 1]} : vector<2x96xf32> to vector<2x32xf32>
    %498 = arith.mulf %497, %494 : vector<2x32xf32>
    %499 = arith.addf %496, %498 : vector<2x32xf32>
    %500 = vector.extract_strided_slice %492 {offsets = [0, 64], sizes = [2, 32], strides = [1, 1]} : vector<2x96xf32> to vector<2x32xf32>
    %501 = math.tanh %499 : vector<2x32xf32>
    %502 = arith.mulf %500, %501 : vector<2x32xf32>
    %c8_114 = arith.constant 8 : index
    %c32_115 = arith.constant 32 : index
    %503 = vector.load %arg16[%c8_114, %c32_115] : memref<16x64xf32, #tpu.memory_space<vmem>>, vector<2x32xf32>
    tpu.vector_store %arg16[%c8_114, %c32_115], %502 {strides = array<i32>} : memref<16x64xf32, #tpu.memory_space<vmem>>, vector<2x32xf32>,
    %504 = vector.extract_strided_slice %339 {offsets = [8, 0], sizes = [2, 128], strides = [1, 1]} : vector<16x256xf32> to vector<2x128xf32>
    %cst_116 = arith.constant dense<0.000000e+00> : vector<2x128xf32>
    %505 = tpu.matmul %482, %333, %cst_116 {dimension_numbers = #tpu.dot_dimension_numbers<[1], [0], [0], [1], [0, 0, 1, 1], [], []>} : vector<2x32xf32>, vector<32x128xf32>, vector<2x128xf32> -> vector<2x128xf32>
    %506 = arith.addf %504, %505 : vector<2x128xf32>
    %507 = vector.extract_strided_slice %506 {offsets = [0, 0], sizes = [2, 96], strides = [1, 1]} : vector<2x128xf32> to vector<2x96xf32>
    %508 = arith.negf %507 : vector<2x96xf32>
    %509 = math.exp %508 : vector<2x96xf32>
    %cst_117 = arith.constant 1.000000e+00 : f32
    %510 = vector.broadcast %cst_117 : f32 to vector<2x96xf32>
    %511 = arith.addf %510, %509 : vector<2x96xf32>
    %512 = arith.divf %510, %511 : vector<2x96xf32>
    %513 = vector.extract_strided_slice %506 {offsets = [0, 96], sizes = [2, 32], strides = [1, 1]} : vector<2x128xf32> to vector<2x32xf32>
    %514 = math.tanh %513 : vector<2x32xf32>
    %515 = vector.extract_strided_slice %512 {offsets = [0, 32], sizes = [2, 32], strides = [1, 1]} : vector<2x96xf32> to vector<2x32xf32>
    %516 = arith.mulf %515, %479 : vector<2x32xf32>
    %517 = vector.extract_strided_slice %512 {offsets = [0, 0], sizes = [2, 32], strides = [1, 1]} : vector<2x96xf32> to vector<2x32xf32>
    %518 = arith.mulf %517, %514 : vector<2x32xf32>
    %519 = arith.addf %516, %518 : vector<2x32xf32>
    %520 = vector.extract_strided_slice %512 {offsets = [0, 64], sizes = [2, 32], strides = [1, 1]} : vector<2x96xf32> to vector<2x32xf32>
    %521 = math.tanh %519 : vector<2x32xf32>
    %522 = arith.mulf %520, %521 : vector<2x32xf32>
    %c8_118 = arith.constant 8 : index
    %c0_119 = arith.constant 0 : index
    %523 = vector.load %arg16[%c8_118, %c0_119] : memref<16x64xf32, #tpu.memory_space<vmem>>, vector<2x32xf32>
    tpu.vector_store %arg16[%c8_118, %c0_119], %522 {strides = array<i32>} : memref<16x64xf32, #tpu.memory_space<vmem>>, vector<2x32xf32>,
    %524 = vector.extract_strided_slice %339 {offsets = [6, 128], sizes = [2, 128], strides = [1, 1]} : vector<16x256xf32> to vector<2x128xf32>
    %cst_120 = arith.constant dense<0.000000e+00> : vector<2x128xf32>
    %525 = tpu.matmul %502, %334, %cst_120 {dimension_numbers = #tpu.dot_dimension_numbers<[1], [0], [0], [1], [0, 0, 1, 1], [], []>} : vector<2x32xf32>, vector<32x128xf32>, vector<2x128xf32> -> vector<2x128xf32>
    %526 = arith.addf %524, %525 : vector<2x128xf32>
    %527 = vector.extract_strided_slice %526 {offsets = [0, 0], sizes = [2, 96], strides = [1, 1]} : vector<2x128xf32> to vector<2x96xf32>
    %528 = arith.negf %527 : vector<2x96xf32>
    %529 = math.exp %528 : vector<2x96xf32>
    %cst_121 = arith.constant 1.000000e+00 : f32
    %530 = vector.broadcast %cst_121 : f32 to vector<2x96xf32>
    %531 = arith.addf %530, %529 : vector<2x96xf32>
    %532 = arith.divf %530, %531 : vector<2x96xf32>
    %533 = vector.extract_strided_slice %526 {offsets = [0, 96], sizes = [2, 32], strides = [1, 1]} : vector<2x128xf32> to vector<2x32xf32>
    %534 = math.tanh %533 : vector<2x32xf32>
    %535 = vector.extract_strided_slice %532 {offsets = [0, 32], sizes = [2, 32], strides = [1, 1]} : vector<2x96xf32> to vector<2x32xf32>
    %536 = arith.mulf %535, %499 : vector<2x32xf32>
    %537 = vector.extract_strided_slice %532 {offsets = [0, 0], sizes = [2, 32], strides = [1, 1]} : vector<2x96xf32> to vector<2x32xf32>
    %538 = arith.mulf %537, %534 : vector<2x32xf32>
    %539 = arith.addf %536, %538 : vector<2x32xf32>
    %540 = vector.extract_strided_slice %532 {offsets = [0, 64], sizes = [2, 32], strides = [1, 1]} : vector<2x96xf32> to vector<2x32xf32>
    %541 = math.tanh %539 : vector<2x32xf32>
    %542 = arith.mulf %540, %541 : vector<2x32xf32>
    %c6_122 = arith.constant 6 : index
    %c32_123 = arith.constant 32 : index
    %543 = vector.load %arg16[%c6_122, %c32_123] : memref<16x64xf32, #tpu.memory_space<vmem>>, vector<2x32xf32>
    tpu.vector_store %arg16[%c6_122, %c32_123], %542 {strides = array<i32>} : memref<16x64xf32, #tpu.memory_space<vmem>>, vector<2x32xf32>,
    %544 = vector.extract_strided_slice %339 {offsets = [10, 0], sizes = [2, 128], strides = [1, 1]} : vector<16x256xf32> to vector<2x128xf32>
    %cst_124 = arith.constant dense<0.000000e+00> : vector<2x128xf32>
    %545 = tpu.matmul %522, %333, %cst_124 {dimension_numbers = #tpu.dot_dimension_numbers<[1], [0], [0], [1], [0, 0, 1, 1], [], []>} : vector<2x32xf32>, vector<32x128xf32>, vector<2x128xf32> -> vector<2x128xf32>
    %546 = arith.addf %544, %545 : vector<2x128xf32>
    %547 = vector.extract_strided_slice %546 {offsets = [0, 0], sizes = [2, 96], strides = [1, 1]} : vector<2x128xf32> to vector<2x96xf32>
    %548 = arith.negf %547 : vector<2x96xf32>
    %549 = math.exp %548 : vector<2x96xf32>
    %cst_125 = arith.constant 1.000000e+00 : f32
    %550 = vector.broadcast %cst_125 : f32 to vector<2x96xf32>
    %551 = arith.addf %550, %549 : vector<2x96xf32>
    %552 = arith.divf %550, %551 : vector<2x96xf32>
    %553 = vector.extract_strided_slice %546 {offsets = [0, 96], sizes = [2, 32], strides = [1, 1]} : vector<2x128xf32> to vector<2x32xf32>
    %554 = math.tanh %553 : vector<2x32xf32>
    %555 = vector.extract_strided_slice %552 {offsets = [0, 32], sizes = [2, 32], strides = [1, 1]} : vector<2x96xf32> to vector<2x32xf32>
    %556 = arith.mulf %555, %519 : vector<2x32xf32>
    %557 = vector.extract_strided_slice %552 {offsets = [0, 0], sizes = [2, 32], strides = [1, 1]} : vector<2x96xf32> to vector<2x32xf32>
    %558 = arith.mulf %557, %554 : vector<2x32xf32>
    %559 = arith.addf %556, %558 : vector<2x32xf32>
    %560 = vector.extract_strided_slice %552 {offsets = [0, 64], sizes = [2, 32], strides = [1, 1]} : vector<2x96xf32> to vector<2x32xf32>
    %561 = math.tanh %559 : vector<2x32xf32>
    %562 = arith.mulf %560, %561 : vector<2x32xf32>
    %c10_126 = arith.constant 10 : index
    %c0_127 = arith.constant 0 : index
    %563 = vector.load %arg16[%c10_126, %c0_127] : memref<16x64xf32, #tpu.memory_space<vmem>>, vector<2x32xf32>
    tpu.vector_store %arg16[%c10_126, %c0_127], %562 {strides = array<i32>} : memref<16x64xf32, #tpu.memory_space<vmem>>, vector<2x32xf32>,
    %564 = vector.extract_strided_slice %339 {offsets = [4, 128], sizes = [2, 128], strides = [1, 1]} : vector<16x256xf32> to vector<2x128xf32>
    %cst_128 = arith.constant dense<0.000000e+00> : vector<2x128xf32>
    %565 = tpu.matmul %542, %334, %cst_128 {dimension_numbers = #tpu.dot_dimension_numbers<[1], [0], [0], [1], [0, 0, 1, 1], [], []>} : vector<2x32xf32>, vector<32x128xf32>, vector<2x128xf32> -> vector<2x128xf32>
    %566 = arith.addf %564, %565 : vector<2x128xf32>
    %567 = vector.extract_strided_slice %566 {offsets = [0, 0], sizes = [2, 96], strides = [1, 1]} : vector<2x128xf32> to vector<2x96xf32>
    %568 = arith.negf %567 : vector<2x96xf32>
    %569 = math.exp %568 : vector<2x96xf32>
    %cst_129 = arith.constant 1.000000e+00 : f32
    %570 = vector.broadcast %cst_129 : f32 to vector<2x96xf32>
    %571 = arith.addf %570, %569 : vector<2x96xf32>
    %572 = arith.divf %570, %571 : vector<2x96xf32>
    %573 = vector.extract_strided_slice %566 {offsets = [0, 96], sizes = [2, 32], strides = [1, 1]} : vector<2x128xf32> to vector<2x32xf32>
    %574 = math.tanh %573 : vector<2x32xf32>
    %575 = vector.extract_strided_slice %572 {offsets = [0, 32], sizes = [2, 32], strides = [1, 1]} : vector<2x96xf32> to vector<2x32xf32>
    %576 = arith.mulf %575, %539 : vector<2x32xf32>
    %577 = vector.extract_strided_slice %572 {offsets = [0, 0], sizes = [2, 32], strides = [1, 1]} : vector<2x96xf32> to vector<2x32xf32>
    %578 = arith.mulf %577, %574 : vector<2x32xf32>
    %579 = arith.addf %576, %578 : vector<2x32xf32>
    %580 = vector.extract_strided_slice %572 {offsets = [0, 64], sizes = [2, 32], strides = [1, 1]} : vector<2x96xf32> to vector<2x32xf32>
    %581 = math.tanh %579 : vector<2x32xf32>
    %582 = arith.mulf %580, %581 : vector<2x32xf32>
    %c4_130 = arith.constant 4 : index
    %c32_131 = arith.constant 32 : index
    %583 = vector.load %arg16[%c4_130, %c32_131] : memref<16x64xf32, #tpu.memory_space<vmem>>, vector<2x32xf32>
    tpu.vector_store %arg16[%c4_130, %c32_131], %582 {strides = array<i32>} : memref<16x64xf32, #tpu.memory_space<vmem>>, vector<2x32xf32>,
    %584 = vector.extract_strided_slice %339 {offsets = [12, 0], sizes = [2, 128], strides = [1, 1]} : vector<16x256xf32> to vector<2x128xf32>
    %cst_132 = arith.constant dense<0.000000e+00> : vector<2x128xf32>
    %585 = tpu.matmul %562, %333, %cst_132 {dimension_numbers = #tpu.dot_dimension_numbers<[1], [0], [0], [1], [0, 0, 1, 1], [], []>} : vector<2x32xf32>, vector<32x128xf32>, vector<2x128xf32> -> vector<2x128xf32>
    %586 = arith.addf %584, %585 : vector<2x128xf32>
    %587 = vector.extract_strided_slice %586 {offsets = [0, 0], sizes = [2, 96], strides = [1, 1]} : vector<2x128xf32> to vector<2x96xf32>
    %588 = arith.negf %587 : vector<2x96xf32>
    %589 = math.exp %588 : vector<2x96xf32>
    %cst_133 = arith.constant 1.000000e+00 : f32
    %590 = vector.broadcast %cst_133 : f32 to vector<2x96xf32>
    %591 = arith.addf %590, %589 : vector<2x96xf32>
    %592 = arith.divf %590, %591 : vector<2x96xf32>
    %593 = vector.extract_strided_slice %586 {offsets = [0, 96], sizes = [2, 32], strides = [1, 1]} : vector<2x128xf32> to vector<2x32xf32>
    %594 = math.tanh %593 : vector<2x32xf32>
    %595 = vector.extract_strided_slice %592 {offsets = [0, 32], sizes = [2, 32], strides = [1, 1]} : vector<2x96xf32> to vector<2x32xf32>
    %596 = arith.mulf %595, %559 : vector<2x32xf32>
    %597 = vector.extract_strided_slice %592 {offsets = [0, 0], sizes = [2, 32], strides = [1, 1]} : vector<2x96xf32> to vector<2x32xf32>
    %598 = arith.mulf %597, %594 : vector<2x32xf32>
    %599 = arith.addf %596, %598 : vector<2x32xf32>
    %600 = vector.extract_strided_slice %592 {offsets = [0, 64], sizes = [2, 32], strides = [1, 1]} : vector<2x96xf32> to vector<2x32xf32>
    %601 = math.tanh %599 : vector<2x32xf32>
    %602 = arith.mulf %600, %601 : vector<2x32xf32>
    %c12_134 = arith.constant 12 : index
    %c0_135 = arith.constant 0 : index
    %603 = vector.load %arg16[%c12_134, %c0_135] : memref<16x64xf32, #tpu.memory_space<vmem>>, vector<2x32xf32>
    tpu.vector_store %arg16[%c12_134, %c0_135], %602 {strides = array<i32>} : memref<16x64xf32, #tpu.memory_space<vmem>>, vector<2x32xf32>,
    %604 = vector.extract_strided_slice %339 {offsets = [2, 128], sizes = [2, 128], strides = [1, 1]} : vector<16x256xf32> to vector<2x128xf32>
    %cst_136 = arith.constant dense<0.000000e+00> : vector<2x128xf32>
    %605 = tpu.matmul %582, %334, %cst_136 {dimension_numbers = #tpu.dot_dimension_numbers<[1], [0], [0], [1], [0, 0, 1, 1], [], []>} : vector<2x32xf32>, vector<32x128xf32>, vector<2x128xf32> -> vector<2x128xf32>
    %606 = arith.addf %604, %605 : vector<2x128xf32>
    %607 = vector.extract_strided_slice %606 {offsets = [0, 0], sizes = [2, 96], strides = [1, 1]} : vector<2x128xf32> to vector<2x96xf32>
    %608 = arith.negf %607 : vector<2x96xf32>
    %609 = math.exp %608 : vector<2x96xf32>
    %cst_137 = arith.constant 1.000000e+00 : f32
    %610 = vector.broadcast %cst_137 : f32 to vector<2x96xf32>
    %611 = arith.addf %610, %609 : vector<2x96xf32>
    %612 = arith.divf %610, %611 : vector<2x96xf32>
    %613 = vector.extract_strided_slice %606 {offsets = [0, 96], sizes = [2, 32], strides = [1, 1]} : vector<2x128xf32> to vector<2x32xf32>
    %614 = math.tanh %613 : vector<2x32xf32>
    %615 = vector.extract_strided_slice %612 {offsets = [0, 32], sizes = [2, 32], strides = [1, 1]} : vector<2x96xf32> to vector<2x32xf32>
    %616 = arith.mulf %615, %579 : vector<2x32xf32>
    %617 = vector.extract_strided_slice %612 {offsets = [0, 0], sizes = [2, 32], strides = [1, 1]} : vector<2x96xf32> to vector<2x32xf32>
    %618 = arith.mulf %617, %614 : vector<2x32xf32>
    %619 = arith.addf %616, %618 : vector<2x32xf32>
    %620 = vector.extract_strided_slice %612 {offsets = [0, 64], sizes = [2, 32], strides = [1, 1]} : vector<2x96xf32> to vector<2x32xf32>
    %621 = math.tanh %619 : vector<2x32xf32>
    %622 = arith.mulf %620, %621 : vector<2x32xf32>
    %c2_138 = arith.constant 2 : index
    %c32_139 = arith.constant 32 : index
    %623 = vector.load %arg16[%c2_138, %c32_139] : memref<16x64xf32, #tpu.memory_space<vmem>>, vector<2x32xf32>
    tpu.vector_store %arg16[%c2_138, %c32_139], %622 {strides = array<i32>} : memref<16x64xf32, #tpu.memory_space<vmem>>, vector<2x32xf32>,
    %624 = vector.extract_strided_slice %339 {offsets = [14, 0], sizes = [2, 128], strides = [1, 1]} : vector<16x256xf32> to vector<2x128xf32>
    %cst_140 = arith.constant dense<0.000000e+00> : vector<2x128xf32>
    %625 = tpu.matmul %602, %333, %cst_140 {dimension_numbers = #tpu.dot_dimension_numbers<[1], [0], [0], [1], [0, 0, 1, 1], [], []>} : vector<2x32xf32>, vector<32x128xf32>, vector<2x128xf32> -> vector<2x128xf32>
    %626 = arith.addf %624, %625 : vector<2x128xf32>
    %627 = vector.extract_strided_slice %626 {offsets = [0, 0], sizes = [2, 96], strides = [1, 1]} : vector<2x128xf32> to vector<2x96xf32>
    %628 = arith.negf %627 : vector<2x96xf32>
    %629 = math.exp %628 : vector<2x96xf32>
    %cst_141 = arith.constant 1.000000e+00 : f32
    %630 = vector.broadcast %cst_141 : f32 to vector<2x96xf32>
    %631 = arith.addf %630, %629 : vector<2x96xf32>
    %632 = arith.divf %630, %631 : vector<2x96xf32>
    %633 = vector.extract_strided_slice %626 {offsets = [0, 96], sizes = [2, 32], strides = [1, 1]} : vector<2x128xf32> to vector<2x32xf32>
    %634 = math.tanh %633 : vector<2x32xf32>
    %635 = vector.extract_strided_slice %632 {offsets = [0, 32], sizes = [2, 32], strides = [1, 1]} : vector<2x96xf32> to vector<2x32xf32>
    %636 = arith.mulf %635, %599 : vector<2x32xf32>
    %637 = vector.extract_strided_slice %632 {offsets = [0, 0], sizes = [2, 32], strides = [1, 1]} : vector<2x96xf32> to vector<2x32xf32>
    %638 = arith.mulf %637, %634 : vector<2x32xf32>
    %639 = arith.addf %636, %638 : vector<2x32xf32>
    %640 = vector.extract_strided_slice %632 {offsets = [0, 64], sizes = [2, 32], strides = [1, 1]} : vector<2x96xf32> to vector<2x32xf32>
    %641 = math.tanh %639 : vector<2x32xf32>
    %642 = arith.mulf %640, %641 : vector<2x32xf32>
    %c14_142 = arith.constant 14 : index
    %c0_143 = arith.constant 0 : index
    %643 = vector.load %arg16[%c14_142, %c0_143] : memref<16x64xf32, #tpu.memory_space<vmem>>, vector<2x32xf32>
    tpu.vector_store %arg16[%c14_142, %c0_143], %642 {strides = array<i32>} : memref<16x64xf32, #tpu.memory_space<vmem>>, vector<2x32xf32>,
    %644 = vector.extract_strided_slice %339 {offsets = [0, 128], sizes = [2, 128], strides = [1, 1]} : vector<16x256xf32> to vector<2x128xf32>
    %cst_144 = arith.constant dense<0.000000e+00> : vector<2x128xf32>
    %645 = tpu.matmul %622, %334, %cst_144 {dimension_numbers = #tpu.dot_dimension_numbers<[1], [0], [0], [1], [0, 0, 1, 1], [], []>} : vector<2x32xf32>, vector<32x128xf32>, vector<2x128xf32> -> vector<2x128xf32>
    %646 = arith.addf %644, %645 : vector<2x128xf32>
    %647 = vector.extract_strided_slice %646 {offsets = [0, 0], sizes = [2, 96], strides = [1, 1]} : vector<2x128xf32> to vector<2x96xf32>
    %648 = arith.negf %647 : vector<2x96xf32>
    %649 = math.exp %648 : vector<2x96xf32>
    %cst_145 = arith.constant 1.000000e+00 : f32
    %650 = vector.broadcast %cst_145 : f32 to vector<2x96xf32>
    %651 = arith.addf %650, %649 : vector<2x96xf32>
    %652 = arith.divf %650, %651 : vector<2x96xf32>
    %653 = vector.extract_strided_slice %646 {offsets = [0, 96], sizes = [2, 32], strides = [1, 1]} : vector<2x128xf32> to vector<2x32xf32>
    %654 = math.tanh %653 : vector<2x32xf32>
    %655 = vector.extract_strided_slice %652 {offsets = [0, 32], sizes = [2, 32], strides = [1, 1]} : vector<2x96xf32> to vector<2x32xf32>
    %656 = arith.mulf %655, %619 : vector<2x32xf32>
    %657 = vector.extract_strided_slice %652 {offsets = [0, 0], sizes = [2, 32], strides = [1, 1]} : vector<2x96xf32> to vector<2x32xf32>
    %658 = arith.mulf %657, %654 : vector<2x32xf32>
    %659 = arith.addf %656, %658 : vector<2x32xf32>
    %660 = vector.extract_strided_slice %652 {offsets = [0, 64], sizes = [2, 32], strides = [1, 1]} : vector<2x96xf32> to vector<2x32xf32>
    %661 = math.tanh %659 : vector<2x32xf32>
    %662 = arith.mulf %660, %661 : vector<2x32xf32>
    %c0_146 = arith.constant 0 : index
    %c32_147 = arith.constant 32 : index
    %663 = vector.load %arg16[%c0_146, %c32_147] : memref<16x64xf32, #tpu.memory_space<vmem>>, vector<2x32xf32>
    tpu.vector_store %arg16[%c0_146, %c32_147], %662 {strides = array<i32>} : memref<16x64xf32, #tpu.memory_space<vmem>>, vector<2x32xf32>,
    %c0_148 = arith.constant 0 : index
    %c0_149 = arith.constant 0 : index
    %664 = vector.load %arg16[%c0_148, %c0_149] : memref<16x64xf32, #tpu.memory_space<vmem>>, vector<16x64xf32>
    %c0_150 = arith.constant 0 : index
    %c0_151 = arith.constant 0 : index
    %665 = vector.load %arg10[%c0_150, %c0_151] : memref<32x128xf32, #tpu.memory_space<vmem>>, vector<32x128xf32>
    %c0_152 = arith.constant 0 : index
    %c0_153 = arith.constant 0 : index
    %666 = vector.load %arg11[%c0_152, %c0_153] : memref<32x128xf32, #tpu.memory_space<vmem>>, vector<32x128xf32>
    %c0_154 = arith.constant 0 : index
    %c0_155 = arith.constant 0 : index
    %667 = vector.load %arg9[%c0_154, %c0_155] : memref<64x256xf32, #tpu.memory_space<vmem>>, vector<64x256xf32>
    %cst_156 = arith.constant dense<0.000000e+00> : vector<16x256xf32>
    %668 = tpu.matmul %664, %667, %cst_156 {dimension_numbers = #tpu.dot_dimension_numbers<[1], [0], [0], [1], [0, 0, 1, 1], [], []>} : vector<16x64xf32>, vector<64x256xf32>, vector<16x256xf32> -> vector<16x256xf32>
    %c0_157 = arith.constant 0 : index
    %c0_158 = arith.constant 0 : index
    %669 = vector.load %arg12[%c0_157, %c0_158] : memref<1x256xf32, #tpu.memory_space<vmem>>, vector<1x256xf32>
    %670 = vector.broadcast %669 : vector<1x256xf32> to vector<16x256xf32>
    %671 = arith.addf %668, %670 : vector<16x256xf32>
    %cst_159 = arith.constant 0.000000e+00 : f32
    %672 = vector.broadcast %cst_159 : f32 to vector<2x32xf32>
    %cst_160 = arith.constant 0.000000e+00 : f32
    %673 = vector.broadcast %cst_160 : f32 to vector<2x32xf32>
    %cst_161 = arith.constant 0.000000e+00 : f32
    %674 = vector.broadcast %cst_161 : f32 to vector<2x32xf32>
    %cst_162 = arith.constant 0.000000e+00 : f32
    %675 = vector.broadcast %cst_162 : f32 to vector<2x32xf32>
    %676 = vector.extract_strided_slice %671 {offsets = [0, 0], sizes = [2, 128], strides = [1, 1]} : vector<16x256xf32> to vector<2x128xf32>
    %cst_163 = arith.constant dense<0.000000e+00> : vector<2x128xf32>
    %677 = tpu.matmul %672, %665, %cst_163 {dimension_numbers = #tpu.dot_dimension_numbers<[1], [0], [0], [1], [0, 0, 1, 1], [], []>} : vector<2x32xf32>, vector<32x128xf32>, vector<2x128xf32> -> vector<2x128xf32>
    %678 = arith.addf %676, %677 : vector<2x128xf32>
    %679 = vector.extract_strided_slice %678 {offsets = [0, 0], sizes = [2, 96], strides = [1, 1]} : vector<2x128xf32> to vector<2x96xf32>
    %680 = arith.negf %679 : vector<2x96xf32>
    %681 = math.exp %680 : vector<2x96xf32>
    %cst_164 = arith.constant 1.000000e+00 : f32
    %682 = vector.broadcast %cst_164 : f32 to vector<2x96xf32>
    %683 = arith.addf %682, %681 : vector<2x96xf32>
    %684 = arith.divf %682, %683 : vector<2x96xf32>
    %685 = vector.extract_strided_slice %678 {offsets = [0, 96], sizes = [2, 32], strides = [1, 1]} : vector<2x128xf32> to vector<2x32xf32>
    %686 = math.tanh %685 : vector<2x32xf32>
    %687 = vector.extract_strided_slice %684 {offsets = [0, 32], sizes = [2, 32], strides = [1, 1]} : vector<2x96xf32> to vector<2x32xf32>
    %688 = arith.mulf %687, %673 : vector<2x32xf32>
    %689 = vector.extract_strided_slice %684 {offsets = [0, 0], sizes = [2, 32], strides = [1, 1]} : vector<2x96xf32> to vector<2x32xf32>
    %690 = arith.mulf %689, %686 : vector<2x32xf32>
    %691 = arith.addf %688, %690 : vector<2x32xf32>
    %692 = vector.extract_strided_slice %684 {offsets = [0, 64], sizes = [2, 32], strides = [1, 1]} : vector<2x96xf32> to vector<2x32xf32>
    %693 = math.tanh %691 : vector<2x32xf32>
    %694 = arith.mulf %692, %693 : vector<2x32xf32>
    %c0_165 = arith.constant 0 : index
    %c0_166 = arith.constant 0 : index
    %695 = vector.load %arg16[%c0_165, %c0_166] : memref<16x64xf32, #tpu.memory_space<vmem>>, vector<2x32xf32>
    tpu.vector_store %arg16[%c0_165, %c0_166], %694 {strides = array<i32>} : memref<16x64xf32, #tpu.memory_space<vmem>>, vector<2x32xf32>,
    %696 = vector.extract_strided_slice %671 {offsets = [14, 128], sizes = [2, 128], strides = [1, 1]} : vector<16x256xf32> to vector<2x128xf32>
    %cst_167 = arith.constant dense<0.000000e+00> : vector<2x128xf32>
    %697 = tpu.matmul %674, %666, %cst_167 {dimension_numbers = #tpu.dot_dimension_numbers<[1], [0], [0], [1], [0, 0, 1, 1], [], []>} : vector<2x32xf32>, vector<32x128xf32>, vector<2x128xf32> -> vector<2x128xf32>
    %698 = arith.addf %696, %697 : vector<2x128xf32>
    %699 = vector.extract_strided_slice %698 {offsets = [0, 0], sizes = [2, 96], strides = [1, 1]} : vector<2x128xf32> to vector<2x96xf32>
    %700 = arith.negf %699 : vector<2x96xf32>
    %701 = math.exp %700 : vector<2x96xf32>
    %cst_168 = arith.constant 1.000000e+00 : f32
    %702 = vector.broadcast %cst_168 : f32 to vector<2x96xf32>
    %703 = arith.addf %702, %701 : vector<2x96xf32>
    %704 = arith.divf %702, %703 : vector<2x96xf32>
    %705 = vector.extract_strided_slice %698 {offsets = [0, 96], sizes = [2, 32], strides = [1, 1]} : vector<2x128xf32> to vector<2x32xf32>
    %706 = math.tanh %705 : vector<2x32xf32>
    %707 = vector.extract_strided_slice %704 {offsets = [0, 32], sizes = [2, 32], strides = [1, 1]} : vector<2x96xf32> to vector<2x32xf32>
    %708 = arith.mulf %707, %675 : vector<2x32xf32>
    %709 = vector.extract_strided_slice %704 {offsets = [0, 0], sizes = [2, 32], strides = [1, 1]} : vector<2x96xf32> to vector<2x32xf32>
    %710 = arith.mulf %709, %706 : vector<2x32xf32>
    %711 = arith.addf %708, %710 : vector<2x32xf32>
    %712 = vector.extract_strided_slice %704 {offsets = [0, 64], sizes = [2, 32], strides = [1, 1]} : vector<2x96xf32> to vector<2x32xf32>
    %713 = math.tanh %711 : vector<2x32xf32>
    %714 = arith.mulf %712, %713 : vector<2x32xf32>
    %c14_169 = arith.constant 14 : index
    %c32_170 = arith.constant 32 : index
    %715 = vector.load %arg16[%c14_169, %c32_170] : memref<16x64xf32, #tpu.memory_space<vmem>>, vector<2x32xf32>
    tpu.vector_store %arg16[%c14_169, %c32_170], %714 {strides = array<i32>} : memref<16x64xf32, #tpu.memory_space<vmem>>, vector<2x32xf32>,
    %716 = vector.extract_strided_slice %671 {offsets = [2, 0], sizes = [2, 128], strides = [1, 1]} : vector<16x256xf32> to vector<2x128xf32>
    %cst_171 = arith.constant dense<0.000000e+00> : vector<2x128xf32>
    %717 = tpu.matmul %694, %665, %cst_171 {dimension_numbers = #tpu.dot_dimension_numbers<[1], [0], [0], [1], [0, 0, 1, 1], [], []>} : vector<2x32xf32>, vector<32x128xf32>, vector<2x128xf32> -> vector<2x128xf32>
    %718 = arith.addf %716, %717 : vector<2x128xf32>
    %719 = vector.extract_strided_slice %718 {offsets = [0, 0], sizes = [2, 96], strides = [1, 1]} : vector<2x128xf32> to vector<2x96xf32>
    %720 = arith.negf %719 : vector<2x96xf32>
    %721 = math.exp %720 : vector<2x96xf32>
    %cst_172 = arith.constant 1.000000e+00 : f32
    %722 = vector.broadcast %cst_172 : f32 to vector<2x96xf32>
    %723 = arith.addf %722, %721 : vector<2x96xf32>
    %724 = arith.divf %722, %723 : vector<2x96xf32>
    %725 = vector.extract_strided_slice %718 {offsets = [0, 96], sizes = [2, 32], strides = [1, 1]} : vector<2x128xf32> to vector<2x32xf32>
    %726 = math.tanh %725 : vector<2x32xf32>
    %727 = vector.extract_strided_slice %724 {offsets = [0, 32], sizes = [2, 32], strides = [1, 1]} : vector<2x96xf32> to vector<2x32xf32>
    %728 = arith.mulf %727, %691 : vector<2x32xf32>
    %729 = vector.extract_strided_slice %724 {offsets = [0, 0], sizes = [2, 32], strides = [1, 1]} : vector<2x96xf32> to vector<2x32xf32>
    %730 = arith.mulf %729, %726 : vector<2x32xf32>
    %731 = arith.addf %728, %730 : vector<2x32xf32>
    %732 = vector.extract_strided_slice %724 {offsets = [0, 64], sizes = [2, 32], strides = [1, 1]} : vector<2x96xf32> to vector<2x32xf32>
    %733 = math.tanh %731 : vector<2x32xf32>
    %734 = arith.mulf %732, %733 : vector<2x32xf32>
    %c2_173 = arith.constant 2 : index
    %c0_174 = arith.constant 0 : index
    %735 = vector.load %arg16[%c2_173, %c0_174] : memref<16x64xf32, #tpu.memory_space<vmem>>, vector<2x32xf32>
    tpu.vector_store %arg16[%c2_173, %c0_174], %734 {strides = array<i32>} : memref<16x64xf32, #tpu.memory_space<vmem>>, vector<2x32xf32>,
    %736 = vector.extract_strided_slice %671 {offsets = [12, 128], sizes = [2, 128], strides = [1, 1]} : vector<16x256xf32> to vector<2x128xf32>
    %cst_175 = arith.constant dense<0.000000e+00> : vector<2x128xf32>
    %737 = tpu.matmul %714, %666, %cst_175 {dimension_numbers = #tpu.dot_dimension_numbers<[1], [0], [0], [1], [0, 0, 1, 1], [], []>} : vector<2x32xf32>, vector<32x128xf32>, vector<2x128xf32> -> vector<2x128xf32>
    %738 = arith.addf %736, %737 : vector<2x128xf32>
    %739 = vector.extract_strided_slice %738 {offsets = [0, 0], sizes = [2, 96], strides = [1, 1]} : vector<2x128xf32> to vector<2x96xf32>
    %740 = arith.negf %739 : vector<2x96xf32>
    %741 = math.exp %740 : vector<2x96xf32>
    %cst_176 = arith.constant 1.000000e+00 : f32
    %742 = vector.broadcast %cst_176 : f32 to vector<2x96xf32>
    %743 = arith.addf %742, %741 : vector<2x96xf32>
    %744 = arith.divf %742, %743 : vector<2x96xf32>
    %745 = vector.extract_strided_slice %738 {offsets = [0, 96], sizes = [2, 32], strides = [1, 1]} : vector<2x128xf32> to vector<2x32xf32>
    %746 = math.tanh %745 : vector<2x32xf32>
    %747 = vector.extract_strided_slice %744 {offsets = [0, 32], sizes = [2, 32], strides = [1, 1]} : vector<2x96xf32> to vector<2x32xf32>
    %748 = arith.mulf %747, %711 : vector<2x32xf32>
    %749 = vector.extract_strided_slice %744 {offsets = [0, 0], sizes = [2, 32], strides = [1, 1]} : vector<2x96xf32> to vector<2x32xf32>
    %750 = arith.mulf %749, %746 : vector<2x32xf32>
    %751 = arith.addf %748, %750 : vector<2x32xf32>
    %752 = vector.extract_strided_slice %744 {offsets = [0, 64], sizes = [2, 32], strides = [1, 1]} : vector<2x96xf32> to vector<2x32xf32>
    %753 = math.tanh %751 : vector<2x32xf32>
    %754 = arith.mulf %752, %753 : vector<2x32xf32>
    %c12_177 = arith.constant 12 : index
    %c32_178 = arith.constant 32 : index
    %755 = vector.load %arg16[%c12_177, %c32_178] : memref<16x64xf32, #tpu.memory_space<vmem>>, vector<2x32xf32>
    tpu.vector_store %arg16[%c12_177, %c32_178], %754 {strides = array<i32>} : memref<16x64xf32, #tpu.memory_space<vmem>>, vector<2x32xf32>,
    %756 = vector.extract_strided_slice %671 {offsets = [4, 0], sizes = [2, 128], strides = [1, 1]} : vector<16x256xf32> to vector<2x128xf32>
    %cst_179 = arith.constant dense<0.000000e+00> : vector<2x128xf32>
    %757 = tpu.matmul %734, %665, %cst_179 {dimension_numbers = #tpu.dot_dimension_numbers<[1], [0], [0], [1], [0, 0, 1, 1], [], []>} : vector<2x32xf32>, vector<32x128xf32>, vector<2x128xf32> -> vector<2x128xf32>
    %758 = arith.addf %756, %757 : vector<2x128xf32>
    %759 = vector.extract_strided_slice %758 {offsets = [0, 0], sizes = [2, 96], strides = [1, 1]} : vector<2x128xf32> to vector<2x96xf32>
    %760 = arith.negf %759 : vector<2x96xf32>
    %761 = math.exp %760 : vector<2x96xf32>
    %cst_180 = arith.constant 1.000000e+00 : f32
    %762 = vector.broadcast %cst_180 : f32 to vector<2x96xf32>
    %763 = arith.addf %762, %761 : vector<2x96xf32>
    %764 = arith.divf %762, %763 : vector<2x96xf32>
    %765 = vector.extract_strided_slice %758 {offsets = [0, 96], sizes = [2, 32], strides = [1, 1]} : vector<2x128xf32> to vector<2x32xf32>
    %766 = math.tanh %765 : vector<2x32xf32>
    %767 = vector.extract_strided_slice %764 {offsets = [0, 32], sizes = [2, 32], strides = [1, 1]} : vector<2x96xf32> to vector<2x32xf32>
    %768 = arith.mulf %767, %731 : vector<2x32xf32>
    %769 = vector.extract_strided_slice %764 {offsets = [0, 0], sizes = [2, 32], strides = [1, 1]} : vector<2x96xf32> to vector<2x32xf32>
    %770 = arith.mulf %769, %766 : vector<2x32xf32>
    %771 = arith.addf %768, %770 : vector<2x32xf32>
    %772 = vector.extract_strided_slice %764 {offsets = [0, 64], sizes = [2, 32], strides = [1, 1]} : vector<2x96xf32> to vector<2x32xf32>
    %773 = math.tanh %771 : vector<2x32xf32>
    %774 = arith.mulf %772, %773 : vector<2x32xf32>
    %c4_181 = arith.constant 4 : index
    %c0_182 = arith.constant 0 : index
    %775 = vector.load %arg16[%c4_181, %c0_182] : memref<16x64xf32, #tpu.memory_space<vmem>>, vector<2x32xf32>
    tpu.vector_store %arg16[%c4_181, %c0_182], %774 {strides = array<i32>} : memref<16x64xf32, #tpu.memory_space<vmem>>, vector<2x32xf32>,
    %776 = vector.extract_strided_slice %671 {offsets = [10, 128], sizes = [2, 128], strides = [1, 1]} : vector<16x256xf32> to vector<2x128xf32>
    %cst_183 = arith.constant dense<0.000000e+00> : vector<2x128xf32>
    %777 = tpu.matmul %754, %666, %cst_183 {dimension_numbers = #tpu.dot_dimension_numbers<[1], [0], [0], [1], [0, 0, 1, 1], [], []>} : vector<2x32xf32>, vector<32x128xf32>, vector<2x128xf32> -> vector<2x128xf32>
    %778 = arith.addf %776, %777 : vector<2x128xf32>
    %779 = vector.extract_strided_slice %778 {offsets = [0, 0], sizes = [2, 96], strides = [1, 1]} : vector<2x128xf32> to vector<2x96xf32>
    %780 = arith.negf %779 : vector<2x96xf32>
    %781 = math.exp %780 : vector<2x96xf32>
    %cst_184 = arith.constant 1.000000e+00 : f32
    %782 = vector.broadcast %cst_184 : f32 to vector<2x96xf32>
    %783 = arith.addf %782, %781 : vector<2x96xf32>
    %784 = arith.divf %782, %783 : vector<2x96xf32>
    %785 = vector.extract_strided_slice %778 {offsets = [0, 96], sizes = [2, 32], strides = [1, 1]} : vector<2x128xf32> to vector<2x32xf32>
    %786 = math.tanh %785 : vector<2x32xf32>
    %787 = vector.extract_strided_slice %784 {offsets = [0, 32], sizes = [2, 32], strides = [1, 1]} : vector<2x96xf32> to vector<2x32xf32>
    %788 = arith.mulf %787, %751 : vector<2x32xf32>
    %789 = vector.extract_strided_slice %784 {offsets = [0, 0], sizes = [2, 32], strides = [1, 1]} : vector<2x96xf32> to vector<2x32xf32>
    %790 = arith.mulf %789, %786 : vector<2x32xf32>
    %791 = arith.addf %788, %790 : vector<2x32xf32>
    %792 = vector.extract_strided_slice %784 {offsets = [0, 64], sizes = [2, 32], strides = [1, 1]} : vector<2x96xf32> to vector<2x32xf32>
    %793 = math.tanh %791 : vector<2x32xf32>
    %794 = arith.mulf %792, %793 : vector<2x32xf32>
    %c10_185 = arith.constant 10 : index
    %c32_186 = arith.constant 32 : index
    %795 = vector.load %arg16[%c10_185, %c32_186] : memref<16x64xf32, #tpu.memory_space<vmem>>, vector<2x32xf32>
    tpu.vector_store %arg16[%c10_185, %c32_186], %794 {strides = array<i32>} : memref<16x64xf32, #tpu.memory_space<vmem>>, vector<2x32xf32>,
    %796 = vector.extract_strided_slice %671 {offsets = [6, 0], sizes = [2, 128], strides = [1, 1]} : vector<16x256xf32> to vector<2x128xf32>
    %cst_187 = arith.constant dense<0.000000e+00> : vector<2x128xf32>
    %797 = tpu.matmul %774, %665, %cst_187 {dimension_numbers = #tpu.dot_dimension_numbers<[1], [0], [0], [1], [0, 0, 1, 1], [], []>} : vector<2x32xf32>, vector<32x128xf32>, vector<2x128xf32> -> vector<2x128xf32>
    %798 = arith.addf %796, %797 : vector<2x128xf32>
    %799 = vector.extract_strided_slice %798 {offsets = [0, 0], sizes = [2, 96], strides = [1, 1]} : vector<2x128xf32> to vector<2x96xf32>
    %800 = arith.negf %799 : vector<2x96xf32>
    %801 = math.exp %800 : vector<2x96xf32>
    %cst_188 = arith.constant 1.000000e+00 : f32
    %802 = vector.broadcast %cst_188 : f32 to vector<2x96xf32>
    %803 = arith.addf %802, %801 : vector<2x96xf32>
    %804 = arith.divf %802, %803 : vector<2x96xf32>
    %805 = vector.extract_strided_slice %798 {offsets = [0, 96], sizes = [2, 32], strides = [1, 1]} : vector<2x128xf32> to vector<2x32xf32>
    %806 = math.tanh %805 : vector<2x32xf32>
    %807 = vector.extract_strided_slice %804 {offsets = [0, 32], sizes = [2, 32], strides = [1, 1]} : vector<2x96xf32> to vector<2x32xf32>
    %808 = arith.mulf %807, %771 : vector<2x32xf32>
    %809 = vector.extract_strided_slice %804 {offsets = [0, 0], sizes = [2, 32], strides = [1, 1]} : vector<2x96xf32> to vector<2x32xf32>
    %810 = arith.mulf %809, %806 : vector<2x32xf32>
    %811 = arith.addf %808, %810 : vector<2x32xf32>
    %812 = vector.extract_strided_slice %804 {offsets = [0, 64], sizes = [2, 32], strides = [1, 1]} : vector<2x96xf32> to vector<2x32xf32>
    %813 = math.tanh %811 : vector<2x32xf32>
    %814 = arith.mulf %812, %813 : vector<2x32xf32>
    %c6_189 = arith.constant 6 : index
    %c0_190 = arith.constant 0 : index
    %815 = vector.load %arg16[%c6_189, %c0_190] : memref<16x64xf32, #tpu.memory_space<vmem>>, vector<2x32xf32>
    tpu.vector_store %arg16[%c6_189, %c0_190], %814 {strides = array<i32>} : memref<16x64xf32, #tpu.memory_space<vmem>>, vector<2x32xf32>,
    %816 = vector.extract_strided_slice %671 {offsets = [8, 128], sizes = [2, 128], strides = [1, 1]} : vector<16x256xf32> to vector<2x128xf32>
    %cst_191 = arith.constant dense<0.000000e+00> : vector<2x128xf32>
    %817 = tpu.matmul %794, %666, %cst_191 {dimension_numbers = #tpu.dot_dimension_numbers<[1], [0], [0], [1], [0, 0, 1, 1], [], []>} : vector<2x32xf32>, vector<32x128xf32>, vector<2x128xf32> -> vector<2x128xf32>
    %818 = arith.addf %816, %817 : vector<2x128xf32>
    %819 = vector.extract_strided_slice %818 {offsets = [0, 0], sizes = [2, 96], strides = [1, 1]} : vector<2x128xf32> to vector<2x96xf32>
    %820 = arith.negf %819 : vector<2x96xf32>
    %821 = math.exp %820 : vector<2x96xf32>
    %cst_192 = arith.constant 1.000000e+00 : f32
    %822 = vector.broadcast %cst_192 : f32 to vector<2x96xf32>
    %823 = arith.addf %822, %821 : vector<2x96xf32>
    %824 = arith.divf %822, %823 : vector<2x96xf32>
    %825 = vector.extract_strided_slice %818 {offsets = [0, 96], sizes = [2, 32], strides = [1, 1]} : vector<2x128xf32> to vector<2x32xf32>
    %826 = math.tanh %825 : vector<2x32xf32>
    %827 = vector.extract_strided_slice %824 {offsets = [0, 32], sizes = [2, 32], strides = [1, 1]} : vector<2x96xf32> to vector<2x32xf32>
    %828 = arith.mulf %827, %791 : vector<2x32xf32>
    %829 = vector.extract_strided_slice %824 {offsets = [0, 0], sizes = [2, 32], strides = [1, 1]} : vector<2x96xf32> to vector<2x32xf32>
    %830 = arith.mulf %829, %826 : vector<2x32xf32>
    %831 = arith.addf %828, %830 : vector<2x32xf32>
    %832 = vector.extract_strided_slice %824 {offsets = [0, 64], sizes = [2, 32], strides = [1, 1]} : vector<2x96xf32> to vector<2x32xf32>
    %833 = math.tanh %831 : vector<2x32xf32>
    %834 = arith.mulf %832, %833 : vector<2x32xf32>
    %c8_193 = arith.constant 8 : index
    %c32_194 = arith.constant 32 : index
    %835 = vector.load %arg16[%c8_193, %c32_194] : memref<16x64xf32, #tpu.memory_space<vmem>>, vector<2x32xf32>
    tpu.vector_store %arg16[%c8_193, %c32_194], %834 {strides = array<i32>} : memref<16x64xf32, #tpu.memory_space<vmem>>, vector<2x32xf32>,
    %836 = vector.extract_strided_slice %671 {offsets = [8, 0], sizes = [2, 128], strides = [1, 1]} : vector<16x256xf32> to vector<2x128xf32>
    %cst_195 = arith.constant dense<0.000000e+00> : vector<2x128xf32>
    %837 = tpu.matmul %814, %665, %cst_195 {dimension_numbers = #tpu.dot_dimension_numbers<[1], [0], [0], [1], [0, 0, 1, 1], [], []>} : vector<2x32xf32>, vector<32x128xf32>, vector<2x128xf32> -> vector<2x128xf32>
    %838 = arith.addf %836, %837 : vector<2x128xf32>
    %839 = vector.extract_strided_slice %838 {offsets = [0, 0], sizes = [2, 96], strides = [1, 1]} : vector<2x128xf32> to vector<2x96xf32>
    %840 = arith.negf %839 : vector<2x96xf32>
    %841 = math.exp %840 : vector<2x96xf32>
    %cst_196 = arith.constant 1.000000e+00 : f32
    %842 = vector.broadcast %cst_196 : f32 to vector<2x96xf32>
    %843 = arith.addf %842, %841 : vector<2x96xf32>
    %844 = arith.divf %842, %843 : vector<2x96xf32>
    %845 = vector.extract_strided_slice %838 {offsets = [0, 96], sizes = [2, 32], strides = [1, 1]} : vector<2x128xf32> to vector<2x32xf32>
    %846 = math.tanh %845 : vector<2x32xf32>
    %847 = vector.extract_strided_slice %844 {offsets = [0, 32], sizes = [2, 32], strides = [1, 1]} : vector<2x96xf32> to vector<2x32xf32>
    %848 = arith.mulf %847, %811 : vector<2x32xf32>
    %849 = vector.extract_strided_slice %844 {offsets = [0, 0], sizes = [2, 32], strides = [1, 1]} : vector<2x96xf32> to vector<2x32xf32>
    %850 = arith.mulf %849, %846 : vector<2x32xf32>
    %851 = arith.addf %848, %850 : vector<2x32xf32>
    %852 = vector.extract_strided_slice %844 {offsets = [0, 64], sizes = [2, 32], strides = [1, 1]} : vector<2x96xf32> to vector<2x32xf32>
    %853 = math.tanh %851 : vector<2x32xf32>
    %854 = arith.mulf %852, %853 : vector<2x32xf32>
    %c8_197 = arith.constant 8 : index
    %c0_198 = arith.constant 0 : index
    %855 = vector.load %arg16[%c8_197, %c0_198] : memref<16x64xf32, #tpu.memory_space<vmem>>, vector<2x32xf32>
    tpu.vector_store %arg16[%c8_197, %c0_198], %854 {strides = array<i32>} : memref<16x64xf32, #tpu.memory_space<vmem>>, vector<2x32xf32>,
    %856 = vector.extract_strided_slice %671 {offsets = [6, 128], sizes = [2, 128], strides = [1, 1]} : vector<16x256xf32> to vector<2x128xf32>
    %cst_199 = arith.constant dense<0.000000e+00> : vector<2x128xf32>
    %857 = tpu.matmul %834, %666, %cst_199 {dimension_numbers = #tpu.dot_dimension_numbers<[1], [0], [0], [1], [0, 0, 1, 1], [], []>} : vector<2x32xf32>, vector<32x128xf32>, vector<2x128xf32> -> vector<2x128xf32>
    %858 = arith.addf %856, %857 : vector<2x128xf32>
    %859 = vector.extract_strided_slice %858 {offsets = [0, 0], sizes = [2, 96], strides = [1, 1]} : vector<2x128xf32> to vector<2x96xf32>
    %860 = arith.negf %859 : vector<2x96xf32>
    %861 = math.exp %860 : vector<2x96xf32>
    %cst_200 = arith.constant 1.000000e+00 : f32
    %862 = vector.broadcast %cst_200 : f32 to vector<2x96xf32>
    %863 = arith.addf %862, %861 : vector<2x96xf32>
    %864 = arith.divf %862, %863 : vector<2x96xf32>
    %865 = vector.extract_strided_slice %858 {offsets = [0, 96], sizes = [2, 32], strides = [1, 1]} : vector<2x128xf32> to vector<2x32xf32>
    %866 = math.tanh %865 : vector<2x32xf32>
    %867 = vector.extract_strided_slice %864 {offsets = [0, 32], sizes = [2, 32], strides = [1, 1]} : vector<2x96xf32> to vector<2x32xf32>
    %868 = arith.mulf %867, %831 : vector<2x32xf32>
    %869 = vector.extract_strided_slice %864 {offsets = [0, 0], sizes = [2, 32], strides = [1, 1]} : vector<2x96xf32> to vector<2x32xf32>
    %870 = arith.mulf %869, %866 : vector<2x32xf32>
    %871 = arith.addf %868, %870 : vector<2x32xf32>
    %872 = vector.extract_strided_slice %864 {offsets = [0, 64], sizes = [2, 32], strides = [1, 1]} : vector<2x96xf32> to vector<2x32xf32>
    %873 = math.tanh %871 : vector<2x32xf32>
    %874 = arith.mulf %872, %873 : vector<2x32xf32>
    %c6_201 = arith.constant 6 : index
    %c32_202 = arith.constant 32 : index
    %875 = vector.load %arg16[%c6_201, %c32_202] : memref<16x64xf32, #tpu.memory_space<vmem>>, vector<2x32xf32>
    tpu.vector_store %arg16[%c6_201, %c32_202], %874 {strides = array<i32>} : memref<16x64xf32, #tpu.memory_space<vmem>>, vector<2x32xf32>,
    %876 = vector.extract_strided_slice %671 {offsets = [10, 0], sizes = [2, 128], strides = [1, 1]} : vector<16x256xf32> to vector<2x128xf32>
    %cst_203 = arith.constant dense<0.000000e+00> : vector<2x128xf32>
    %877 = tpu.matmul %854, %665, %cst_203 {dimension_numbers = #tpu.dot_dimension_numbers<[1], [0], [0], [1], [0, 0, 1, 1], [], []>} : vector<2x32xf32>, vector<32x128xf32>, vector<2x128xf32> -> vector<2x128xf32>
    %878 = arith.addf %876, %877 : vector<2x128xf32>
    %879 = vector.extract_strided_slice %878 {offsets = [0, 0], sizes = [2, 96], strides = [1, 1]} : vector<2x128xf32> to vector<2x96xf32>
    %880 = arith.negf %879 : vector<2x96xf32>
    %881 = math.exp %880 : vector<2x96xf32>
    %cst_204 = arith.constant 1.000000e+00 : f32
    %882 = vector.broadcast %cst_204 : f32 to vector<2x96xf32>
    %883 = arith.addf %882, %881 : vector<2x96xf32>
    %884 = arith.divf %882, %883 : vector<2x96xf32>
    %885 = vector.extract_strided_slice %878 {offsets = [0, 96], sizes = [2, 32], strides = [1, 1]} : vector<2x128xf32> to vector<2x32xf32>
    %886 = math.tanh %885 : vector<2x32xf32>
    %887 = vector.extract_strided_slice %884 {offsets = [0, 32], sizes = [2, 32], strides = [1, 1]} : vector<2x96xf32> to vector<2x32xf32>
    %888 = arith.mulf %887, %851 : vector<2x32xf32>
    %889 = vector.extract_strided_slice %884 {offsets = [0, 0], sizes = [2, 32], strides = [1, 1]} : vector<2x96xf32> to vector<2x32xf32>
    %890 = arith.mulf %889, %886 : vector<2x32xf32>
    %891 = arith.addf %888, %890 : vector<2x32xf32>
    %892 = vector.extract_strided_slice %884 {offsets = [0, 64], sizes = [2, 32], strides = [1, 1]} : vector<2x96xf32> to vector<2x32xf32>
    %893 = math.tanh %891 : vector<2x32xf32>
    %894 = arith.mulf %892, %893 : vector<2x32xf32>
    %c10_205 = arith.constant 10 : index
    %c0_206 = arith.constant 0 : index
    %895 = vector.load %arg16[%c10_205, %c0_206] : memref<16x64xf32, #tpu.memory_space<vmem>>, vector<2x32xf32>
    tpu.vector_store %arg16[%c10_205, %c0_206], %894 {strides = array<i32>} : memref<16x64xf32, #tpu.memory_space<vmem>>, vector<2x32xf32>,
    %896 = vector.extract_strided_slice %671 {offsets = [4, 128], sizes = [2, 128], strides = [1, 1]} : vector<16x256xf32> to vector<2x128xf32>
    %cst_207 = arith.constant dense<0.000000e+00> : vector<2x128xf32>
    %897 = tpu.matmul %874, %666, %cst_207 {dimension_numbers = #tpu.dot_dimension_numbers<[1], [0], [0], [1], [0, 0, 1, 1], [], []>} : vector<2x32xf32>, vector<32x128xf32>, vector<2x128xf32> -> vector<2x128xf32>
    %898 = arith.addf %896, %897 : vector<2x128xf32>
    %899 = vector.extract_strided_slice %898 {offsets = [0, 0], sizes = [2, 96], strides = [1, 1]} : vector<2x128xf32> to vector<2x96xf32>
    %900 = arith.negf %899 : vector<2x96xf32>
    %901 = math.exp %900 : vector<2x96xf32>
    %cst_208 = arith.constant 1.000000e+00 : f32
    %902 = vector.broadcast %cst_208 : f32 to vector<2x96xf32>
    %903 = arith.addf %902, %901 : vector<2x96xf32>
    %904 = arith.divf %902, %903 : vector<2x96xf32>
    %905 = vector.extract_strided_slice %898 {offsets = [0, 96], sizes = [2, 32], strides = [1, 1]} : vector<2x128xf32> to vector<2x32xf32>
    %906 = math.tanh %905 : vector<2x32xf32>
    %907 = vector.extract_strided_slice %904 {offsets = [0, 32], sizes = [2, 32], strides = [1, 1]} : vector<2x96xf32> to vector<2x32xf32>
    %908 = arith.mulf %907, %871 : vector<2x32xf32>
    %909 = vector.extract_strided_slice %904 {offsets = [0, 0], sizes = [2, 32], strides = [1, 1]} : vector<2x96xf32> to vector<2x32xf32>
    %910 = arith.mulf %909, %906 : vector<2x32xf32>
    %911 = arith.addf %908, %910 : vector<2x32xf32>
    %912 = vector.extract_strided_slice %904 {offsets = [0, 64], sizes = [2, 32], strides = [1, 1]} : vector<2x96xf32> to vector<2x32xf32>
    %913 = math.tanh %911 : vector<2x32xf32>
    %914 = arith.mulf %912, %913 : vector<2x32xf32>
    %c4_209 = arith.constant 4 : index
    %c32_210 = arith.constant 32 : index
    %915 = vector.load %arg16[%c4_209, %c32_210] : memref<16x64xf32, #tpu.memory_space<vmem>>, vector<2x32xf32>
    tpu.vector_store %arg16[%c4_209, %c32_210], %914 {strides = array<i32>} : memref<16x64xf32, #tpu.memory_space<vmem>>, vector<2x32xf32>,
    %916 = vector.extract_strided_slice %671 {offsets = [12, 0], sizes = [2, 128], strides = [1, 1]} : vector<16x256xf32> to vector<2x128xf32>
    %cst_211 = arith.constant dense<0.000000e+00> : vector<2x128xf32>
    %917 = tpu.matmul %894, %665, %cst_211 {dimension_numbers = #tpu.dot_dimension_numbers<[1], [0], [0], [1], [0, 0, 1, 1], [], []>} : vector<2x32xf32>, vector<32x128xf32>, vector<2x128xf32> -> vector<2x128xf32>
    %918 = arith.addf %916, %917 : vector<2x128xf32>
    %919 = vector.extract_strided_slice %918 {offsets = [0, 0], sizes = [2, 96], strides = [1, 1]} : vector<2x128xf32> to vector<2x96xf32>
    %920 = arith.negf %919 : vector<2x96xf32>
    %921 = math.exp %920 : vector<2x96xf32>
    %cst_212 = arith.constant 1.000000e+00 : f32
    %922 = vector.broadcast %cst_212 : f32 to vector<2x96xf32>
    %923 = arith.addf %922, %921 : vector<2x96xf32>
    %924 = arith.divf %922, %923 : vector<2x96xf32>
    %925 = vector.extract_strided_slice %918 {offsets = [0, 96], sizes = [2, 32], strides = [1, 1]} : vector<2x128xf32> to vector<2x32xf32>
    %926 = math.tanh %925 : vector<2x32xf32>
    %927 = vector.extract_strided_slice %924 {offsets = [0, 32], sizes = [2, 32], strides = [1, 1]} : vector<2x96xf32> to vector<2x32xf32>
    %928 = arith.mulf %927, %891 : vector<2x32xf32>
    %929 = vector.extract_strided_slice %924 {offsets = [0, 0], sizes = [2, 32], strides = [1, 1]} : vector<2x96xf32> to vector<2x32xf32>
    %930 = arith.mulf %929, %926 : vector<2x32xf32>
    %931 = arith.addf %928, %930 : vector<2x32xf32>
    %932 = vector.extract_strided_slice %924 {offsets = [0, 64], sizes = [2, 32], strides = [1, 1]} : vector<2x96xf32> to vector<2x32xf32>
    %933 = math.tanh %931 : vector<2x32xf32>
    %934 = arith.mulf %932, %933 : vector<2x32xf32>
    %c12_213 = arith.constant 12 : index
    %c0_214 = arith.constant 0 : index
    %935 = vector.load %arg16[%c12_213, %c0_214] : memref<16x64xf32, #tpu.memory_space<vmem>>, vector<2x32xf32>
    tpu.vector_store %arg16[%c12_213, %c0_214], %934 {strides = array<i32>} : memref<16x64xf32, #tpu.memory_space<vmem>>, vector<2x32xf32>,
    %936 = vector.extract_strided_slice %671 {offsets = [2, 128], sizes = [2, 128], strides = [1, 1]} : vector<16x256xf32> to vector<2x128xf32>
    %cst_215 = arith.constant dense<0.000000e+00> : vector<2x128xf32>
    %937 = tpu.matmul %914, %666, %cst_215 {dimension_numbers = #tpu.dot_dimension_numbers<[1], [0], [0], [1], [0, 0, 1, 1], [], []>} : vector<2x32xf32>, vector<32x128xf32>, vector<2x128xf32> -> vector<2x128xf32>
    %938 = arith.addf %936, %937 : vector<2x128xf32>
    %939 = vector.extract_strided_slice %938 {offsets = [0, 0], sizes = [2, 96], strides = [1, 1]} : vector<2x128xf32> to vector<2x96xf32>
    %940 = arith.negf %939 : vector<2x96xf32>
    %941 = math.exp %940 : vector<2x96xf32>
    %cst_216 = arith.constant 1.000000e+00 : f32
    %942 = vector.broadcast %cst_216 : f32 to vector<2x96xf32>
    %943 = arith.addf %942, %941 : vector<2x96xf32>
    %944 = arith.divf %942, %943 : vector<2x96xf32>
    %945 = vector.extract_strided_slice %938 {offsets = [0, 96], sizes = [2, 32], strides = [1, 1]} : vector<2x128xf32> to vector<2x32xf32>
    %946 = math.tanh %945 : vector<2x32xf32>
    %947 = vector.extract_strided_slice %944 {offsets = [0, 32], sizes = [2, 32], strides = [1, 1]} : vector<2x96xf32> to vector<2x32xf32>
    %948 = arith.mulf %947, %911 : vector<2x32xf32>
    %949 = vector.extract_strided_slice %944 {offsets = [0, 0], sizes = [2, 32], strides = [1, 1]} : vector<2x96xf32> to vector<2x32xf32>
    %950 = arith.mulf %949, %946 : vector<2x32xf32>
    %951 = arith.addf %948, %950 : vector<2x32xf32>
    %952 = vector.extract_strided_slice %944 {offsets = [0, 64], sizes = [2, 32], strides = [1, 1]} : vector<2x96xf32> to vector<2x32xf32>
    %953 = math.tanh %951 : vector<2x32xf32>
    %954 = arith.mulf %952, %953 : vector<2x32xf32>
    %c2_217 = arith.constant 2 : index
    %c32_218 = arith.constant 32 : index
    %955 = vector.load %arg16[%c2_217, %c32_218] : memref<16x64xf32, #tpu.memory_space<vmem>>, vector<2x32xf32>
    tpu.vector_store %arg16[%c2_217, %c32_218], %954 {strides = array<i32>} : memref<16x64xf32, #tpu.memory_space<vmem>>, vector<2x32xf32>,
    %956 = vector.extract_strided_slice %671 {offsets = [14, 0], sizes = [2, 128], strides = [1, 1]} : vector<16x256xf32> to vector<2x128xf32>
    %cst_219 = arith.constant dense<0.000000e+00> : vector<2x128xf32>
    %957 = tpu.matmul %934, %665, %cst_219 {dimension_numbers = #tpu.dot_dimension_numbers<[1], [0], [0], [1], [0, 0, 1, 1], [], []>} : vector<2x32xf32>, vector<32x128xf32>, vector<2x128xf32> -> vector<2x128xf32>
    %958 = arith.addf %956, %957 : vector<2x128xf32>
    %959 = vector.extract_strided_slice %958 {offsets = [0, 0], sizes = [2, 96], strides = [1, 1]} : vector<2x128xf32> to vector<2x96xf32>
    %960 = arith.negf %959 : vector<2x96xf32>
    %961 = math.exp %960 : vector<2x96xf32>
    %cst_220 = arith.constant 1.000000e+00 : f32
    %962 = vector.broadcast %cst_220 : f32 to vector<2x96xf32>
    %963 = arith.addf %962, %961 : vector<2x96xf32>
    %964 = arith.divf %962, %963 : vector<2x96xf32>
    %965 = vector.extract_strided_slice %958 {offsets = [0, 96], sizes = [2, 32], strides = [1, 1]} : vector<2x128xf32> to vector<2x32xf32>
    %966 = math.tanh %965 : vector<2x32xf32>
    %967 = vector.extract_strided_slice %964 {offsets = [0, 32], sizes = [2, 32], strides = [1, 1]} : vector<2x96xf32> to vector<2x32xf32>
    %968 = arith.mulf %967, %931 : vector<2x32xf32>
    %969 = vector.extract_strided_slice %964 {offsets = [0, 0], sizes = [2, 32], strides = [1, 1]} : vector<2x96xf32> to vector<2x32xf32>
    %970 = arith.mulf %969, %966 : vector<2x32xf32>
    %971 = arith.addf %968, %970 : vector<2x32xf32>
    %972 = vector.extract_strided_slice %964 {offsets = [0, 64], sizes = [2, 32], strides = [1, 1]} : vector<2x96xf32> to vector<2x32xf32>
    %973 = math.tanh %971 : vector<2x32xf32>
    %974 = arith.mulf %972, %973 : vector<2x32xf32>
    %c14_221 = arith.constant 14 : index
    %c0_222 = arith.constant 0 : index
    %975 = vector.load %arg16[%c14_221, %c0_222] : memref<16x64xf32, #tpu.memory_space<vmem>>, vector<2x32xf32>
    tpu.vector_store %arg16[%c14_221, %c0_222], %974 {strides = array<i32>} : memref<16x64xf32, #tpu.memory_space<vmem>>, vector<2x32xf32>,
    %976 = vector.extract_strided_slice %671 {offsets = [0, 128], sizes = [2, 128], strides = [1, 1]} : vector<16x256xf32> to vector<2x128xf32>
    %cst_223 = arith.constant dense<0.000000e+00> : vector<2x128xf32>
    %977 = tpu.matmul %954, %666, %cst_223 {dimension_numbers = #tpu.dot_dimension_numbers<[1], [0], [0], [1], [0, 0, 1, 1], [], []>} : vector<2x32xf32>, vector<32x128xf32>, vector<2x128xf32> -> vector<2x128xf32>
    %978 = arith.addf %976, %977 : vector<2x128xf32>
    %979 = vector.extract_strided_slice %978 {offsets = [0, 0], sizes = [2, 96], strides = [1, 1]} : vector<2x128xf32> to vector<2x96xf32>
    %980 = arith.negf %979 : vector<2x96xf32>
    %981 = math.exp %980 : vector<2x96xf32>
    %cst_224 = arith.constant 1.000000e+00 : f32
    %982 = vector.broadcast %cst_224 : f32 to vector<2x96xf32>
    %983 = arith.addf %982, %981 : vector<2x96xf32>
    %984 = arith.divf %982, %983 : vector<2x96xf32>
    %985 = vector.extract_strided_slice %978 {offsets = [0, 96], sizes = [2, 32], strides = [1, 1]} : vector<2x128xf32> to vector<2x32xf32>
    %986 = math.tanh %985 : vector<2x32xf32>
    %987 = vector.extract_strided_slice %984 {offsets = [0, 32], sizes = [2, 32], strides = [1, 1]} : vector<2x96xf32> to vector<2x32xf32>
    %988 = arith.mulf %987, %951 : vector<2x32xf32>
    %989 = vector.extract_strided_slice %984 {offsets = [0, 0], sizes = [2, 32], strides = [1, 1]} : vector<2x96xf32> to vector<2x32xf32>
    %990 = arith.mulf %989, %986 : vector<2x32xf32>
    %991 = arith.addf %988, %990 : vector<2x32xf32>
    %992 = vector.extract_strided_slice %984 {offsets = [0, 64], sizes = [2, 32], strides = [1, 1]} : vector<2x96xf32> to vector<2x32xf32>
    %993 = math.tanh %991 : vector<2x32xf32>
    %994 = arith.mulf %992, %993 : vector<2x32xf32>
    %c0_225 = arith.constant 0 : index
    %c32_226 = arith.constant 32 : index
    %995 = vector.load %arg16[%c0_225, %c32_226] : memref<16x64xf32, #tpu.memory_space<vmem>>, vector<2x32xf32>
    tpu.vector_store %arg16[%c0_225, %c32_226], %994 {strides = array<i32>} : memref<16x64xf32, #tpu.memory_space<vmem>>, vector<2x32xf32>,
    %c0_227 = arith.constant 0 : index
    %c0_228 = arith.constant 0 : index
    %996 = vector.load %arg16[%c0_227, %c0_228] : memref<16x64xf32, #tpu.memory_space<vmem>>, vector<16x64xf32>
    %997 = vector.extract_strided_slice %996 {offsets = [8, 0], sizes = [2, 64], strides = [1, 1]} : vector<16x64xf32> to vector<2x64xf32>
    %c0_229 = arith.constant 0 : index
    %c0_230 = arith.constant 0 : index
    %998 = vector.load %arg13[%c0_229, %c0_230] : memref<64x2xf32, #tpu.memory_space<vmem>>, vector<64x2xf32>
    %cst_231 = arith.constant dense<0.000000e+00> : vector<2x2xf32>
    %999 = tpu.matmul %997, %998, %cst_231 {dimension_numbers = #tpu.dot_dimension_numbers<[1], [0], [0], [1], [0, 0, 1, 1], [], []>} : vector<2x64xf32>, vector<64x2xf32>, vector<2x2xf32> -> vector<2x2xf32>
    %c0_232 = arith.constant 0 : index
    %c0_233 = arith.constant 0 : index
    %1000 = vector.load %arg14[%c0_232, %c0_233] : memref<1x2xf32, #tpu.memory_space<vmem>>, vector<1x2xf32>
    %1001 = vector.broadcast %1000 : vector<1x2xf32> to vector<2x2xf32>
    %1002 = arith.addf %999, %1001 : vector<2x2xf32>
    %c0_234 = arith.constant 0 : index
    %c0_235 = arith.constant 0 : index
    %1003 = vector.load %arg15[%c0_234, %c0_235] : memref<2x2xf32, #tpu.memory_space<vmem>>, vector<2x2xf32>
    tpu.vector_store %arg15[%c0_234, %c0_235], %1002 {strides = array<i32>} : memref<2x2xf32, #tpu.memory_space<vmem>>, vector<2x2xf32>,
    return
  }
}

</mosaic_0001>

<llo_original>
// kernel: birnn_basic_forward.1
$region0: #{birnn_basic_forward.1}
  #allocation0 [shape = 'u32[]', space=smem, size = 0x4, offset = 0x4, fixed_abs, tag = 'smem constant byte address 0x4 - core index']
  #allocation1 [shape = 'u32[144,128]{1,0:T(1,128)}', space=vmem, size = 0x12000, scoped, tag = 'internal scratch']
  #allocation2 [shape = 'f32[16,64]{1,0:T(8,128)}', space=vmem, size = 0x2000, scoped, tag = 'scratch operand']
  %s0 = inlined_call_operand.vmem [shape: f32[16,7], index: 0, kind: input, shape index: {}]
  %s1 = inlined_call_operand.hbm [shape: f32[7,256], index: 1, kind: input, shape index: {}]
  %s2 = inlined_call_operand.hbm [shape: f32[32,128], index: 2, kind: input, shape index: {}]
  %s3 = inlined_call_operand.hbm [shape: f32[32,128], index: 3, kind: input, shape index: {}]
  %s4 = inlined_call_operand.vmem [shape: f32[1,256], index: 4, kind: input, shape index: {}]
  %s5 = inlined_call_operand.vmem [shape: f32[64,256], index: 5, kind: input, shape index: {}]
  %s6 = inlined_call_operand.hbm [shape: f32[32,128], index: 6, kind: input, shape index: {}]
  %s7 = inlined_call_operand.hbm [shape: f32[32,128], index: 7, kind: input, shape index: {}]
  %s8 = inlined_call_operand.vmem [shape: f32[1,256], index: 8, kind: input, shape index: {}]
  %s9 = inlined_call_operand.hbm [shape: f32[64,256], index: 9, kind: input, shape index: {}]
  %s10 = inlined_call_operand.hbm [shape: f32[32,128], index: 10, kind: input, shape index: {}]
  %s11 = inlined_call_operand.hbm [shape: f32[32,128], index: 11, kind: input, shape index: {}]
  %s12 = inlined_call_operand.vmem [shape: f32[1,256], index: 12, kind: input, shape index: {}]
  %s13 = inlined_call_operand.vmem [shape: f32[64,2], index: 13, kind: input, shape index: {}]
  %s14 = inlined_call_operand.hbm [shape: f32[1,2], index: 14, kind: input, shape index: {}]
  %s15 = inlined_call_operand.hbm [shape: f32[2,2], index: 15, kind: output, shape index: {}]
  %s16 = sld [smem:[#allocation0]]
  $region106: #{birnn_basic_forward.1} parent=0
    _
  %s18 = ssub.s32 1, %s16
  %s19 = scalar_select 0, %s18, %s16
  $region1: #{birnn_basic_forward.1} parent=0
    #allocation3 [shape = 'u8[8192]{0}', space=vmem, size = 0x2000, scoped, tag = 'input window, operand 1, single buffered']
    #allocation4 [shape = 's32[1]{0}', space=sflag, size = 0x4, scoped, tag = 'scoped memory for birnn_basic_forward.1']
    #allocation5 [shape = 's32[1]{0}', space=sflag, size = 0x4, scoped, tag = 'scoped memory for birnn_basic_forward.1']
    #allocation6 [shape = 'u8[16384]{0}', space=vmem, size = 0x4000, scoped, tag = 'input window, operand 2, single buffered']
    #allocation7 [shape = 's32[1]{0}', space=sflag, size = 0x4, scoped, tag = 'scoped memory for birnn_basic_forward.1']
    #allocation8 [shape = 'u8[16384]{0}', space=vmem, size = 0x4000, scoped, tag = 'input window, operand 3, single buffered']
    #allocation9 [shape = 'u8[16384]{0}', space=vmem, size = 0x4000, scoped, tag = 'input window, operand 6, single buffered']
    #allocation10 [shape = 's32[1]{0}', space=sflag, size = 0x4, scoped, tag = 'scoped memory for birnn_basic_forward.1']
    #allocation11 [shape = 'u8[16384]{0}', space=vmem, size = 0x4000, scoped, tag = 'input window, operand 7, single buffered']
    #allocation12 [shape = 'u8[65536]{0}', space=vmem, size = 0x10000, scoped, tag = 'input window, operand 9, single buffered']
    #allocation13 [shape = 's32[1]{0}', space=sflag, size = 0x4, scoped, tag = 'scoped memory for birnn_basic_forward.1']
    #allocation14 [shape = 'u8[16384]{0}', space=vmem, size = 0x4000, scoped, tag = 'input window, operand 10, single buffered']
    #allocation15 [shape = 'u8[16384]{0}', space=vmem, size = 0x4000, scoped, tag = 'input window, operand 11, single buffered']
    #allocation16 [shape = 's32[1]{0}', space=sflag, size = 0x4, scoped, tag = 'scoped memory for birnn_basic_forward.1']
    #allocation17 [shape = 'u8[512]{0}', space=vmem, size = 0x400, scoped, tag = 'input window, operand 14, single buffered']
    #allocation18 [shape = 'u8[1024]{0}', space=vmem, size = 0x400, scoped, tag = 'output window, operand 0, single buffered']
    %20 = vsyncpa [#allocation4], 0
    %21 = vsyncpa [#allocation7], 0
    %22 = vsyncpa [#allocation10], 0
    %23 = vsyncpa [#allocation13], 0
    %24 = vsyncpa [#allocation16], 0
    %25 = vsyncpa [#allocation5], 0
    // Predicated region
    $region2: #{birnn_basic_forward.1} parent=1 // pred_check
      _
    $region3: #{birnn_basic_forward.1} parent=1 // pred_check_branch
      %27 = sbr.rel (0) target = $region5
    $region4: #{birnn_basic_forward.1} parent=1 // pred_region
      _
    $region5: #{birnn_basic_forward.1} parent=1 // pred_fallthru
      _
    // Predicated region
    $region6: #{birnn_basic_forward.1} parent=1 // pred_check
      _
    $region7: #{birnn_basic_forward.1} parent=1 // pred_check_branch
      %29 = sbr.rel (0) target = $region9
    $region8: #{birnn_basic_forward.1} parent=1 // pred_region
      %s31 = ssub.s32 256, 256
      %32 = vsyncadd [#allocation4], %s31
      %s34 = sshll.u32 [#allocation3], 4
      %s35 = int_to_ptr.vmem [resolvable:$true] %s34
      %37 = dma.hbm_to_vmem [thread:$0]  %s1, 256, %s35, [#allocation4]
    $region9: #{birnn_basic_forward.1} parent=1 // pred_fallthru
      _
    // Predicated region
    $region10: #{birnn_basic_forward.1} parent=1 // pred_check
      _
    $region11: #{birnn_basic_forward.1} parent=1 // pred_check_branch
      %39 = sbr.rel (0) target = $region13
    $region12: #{birnn_basic_forward.1} parent=1 // pred_region
      %s41 = ssub.s32 512, 512
      %42 = vsyncadd [#allocation7], %s41
      %s43 = sshll.u32 [#allocation6], 4
      %s44 = int_to_ptr.vmem [resolvable:$true] %s43
      %49 = dma.hbm_to_vmem [thread:$0]  %s2, 512, %s44, [#allocation7], 128, 128, 8
    $region13: #{birnn_basic_forward.1} parent=1 // pred_fallthru
      _
    // Predicated region
    $region14: #{birnn_basic_forward.1} parent=1 // pred_check
      _
    $region15: #{birnn_basic_forward.1} parent=1 // pred_check_branch
      %51 = sbr.rel (0) target = $region17
    $region16: #{birnn_basic_forward.1} parent=1 // pred_region
      %s53 = ssub.s32 512, 512
      %54 = vsyncadd [#allocation7], %s53
      %s55 = sshll.u32 [#allocation8], 4
      %s56 = int_to_ptr.vmem [resolvable:$true] %s55
      %61 = dma.hbm_to_vmem [thread:$0]  %s3, 512, %s56, [#allocation7], 128, 128, 8
    $region17: #{birnn_basic_forward.1} parent=1 // pred_fallthru
      _
    // Predicated region
    $region18: #{birnn_basic_forward.1} parent=1 // pred_check
      _
    $region19: #{birnn_basic_forward.1} parent=1 // pred_check_branch
      %63 = sbr.rel (0) target = $region21
    $region20: #{birnn_basic_forward.1} parent=1 // pred_region
      _
    $region21: #{birnn_basic_forward.1} parent=1 // pred_fallthru
      _
    // Predicated region
    $region22: #{birnn_basic_forward.1} parent=1 // pred_check
      _
    $region23: #{birnn_basic_forward.1} parent=1 // pred_check_branch
      %65 = sbr.rel (0) target = $region25
    $region24: #{birnn_basic_forward.1} parent=1 // pred_region
      _
    $region25: #{birnn_basic_forward.1} parent=1 // pred_fallthru
      _
    // Predicated region
    $region26: #{birnn_basic_forward.1} parent=1 // pred_check
      _
    $region27: #{birnn_basic_forward.1} parent=1 // pred_check_branch
      %67 = sbr.rel (0) target = $region29
    $region28: #{birnn_basic_forward.1} parent=1 // pred_region
      %s69 = ssub.s32 512, 512
      %70 = vsyncadd [#allocation10], %s69
      %s71 = sshll.u32 [#allocation9], 4
      %s72 = int_to_ptr.vmem [resolvable:$true] %s71
      %77 = dma.hbm_to_vmem [thread:$0]  %s6, 512, %s72, [#allocation10], 128, 128, 8
    $region29: #{birnn_basic_forward.1} parent=1 // pred_fallthru
      _
    // Predicated region
    $region30: #{birnn_basic_forward.1} parent=1 // pred_check
      _
    $region31: #{birnn_basic_forward.1} parent=1 // pred_check_branch
      %79 = sbr.rel (0) target = $region33
    $region32: #{birnn_basic_forward.1} parent=1 // pred_region
      %s81 = ssub.s32 512, 512
      %82 = vsyncadd [#allocation10], %s81
      %s83 = sshll.u32 [#allocation11], 4
      %s84 = int_to_ptr.vmem [resolvable:$true] %s83
      %89 = dma.hbm_to_vmem [thread:$0]  %s7, 512, %s84, [#allocation10], 128, 128, 8
    $region33: #{birnn_basic_forward.1} parent=1 // pred_fallthru
      _
    // Predicated region
    $region34: #{birnn_basic_forward.1} parent=1 // pred_check
      _
    $region35: #{birnn_basic_forward.1} parent=1 // pred_check_branch
      %91 = sbr.rel (0) target = $region37
    $region36: #{birnn_basic_forward.1} parent=1 // pred_region
      _
    $region37: #{birnn_basic_forward.1} parent=1 // pred_fallthru
      _
    // Predicated region
    $region38: #{birnn_basic_forward.1} parent=1 // pred_check
      _
    $region39: #{birnn_basic_forward.1} parent=1 // pred_check_branch
      %93 = sbr.rel (0) target = $region41
    $region40: #{birnn_basic_forward.1} parent=1 // pred_region
      %s95 = ssub.s32 2048, 2048
      %96 = vsyncadd [#allocation13], %s95
      %s97 = sshll.u32 [#allocation12], 4
      %s98 = int_to_ptr.vmem [resolvable:$true] %s97
      %103 = dma.hbm_to_vmem [thread:$0]  %s9, 2048, %s98, [#allocation13], 256, 256, 16
    $region41: #{birnn_basic_forward.1} parent=1 // pred_fallthru
      _
    // Predicated region
    $region42: #{birnn_basic_forward.1} parent=1 // pred_check
      _
    $region43: #{birnn_basic_forward.1} parent=1 // pred_check_branch
      %105 = sbr.rel (0) target = $region45
    $region44: #{birnn_basic_forward.1} parent=1 // pred_region
      %s107 = ssub.s32 512, 512
      %108 = vsyncadd [#allocation13], %s107
      %s109 = sshll.u32 [#allocation14], 4
      %s110 = int_to_ptr.vmem [resolvable:$true] %s109
      %115 = dma.hbm_to_vmem [thread:$0]  %s10, 512, %s110, [#allocation13], 128, 128, 8
    $region45: #{birnn_basic_forward.1} parent=1 // pred_fallthru
      _
    // Predicated region
    $region46: #{birnn_basic_forward.1} parent=1 // pred_check
      _
    $region47: #{birnn_basic_forward.1} parent=1 // pred_check_branch
      %117 = sbr.rel (0) target = $region49
    $region48: #{birnn_basic_forward.1} parent=1 // pred_region
      %s119 = ssub.s32 512, 512
      %120 = vsyncadd [#allocation16], %s119
      %s121 = sshll.u32 [#allocation15], 4
      %s122 = int_to_ptr.vmem [resolvable:$true] %s121
      %127 = dma.hbm_to_vmem [thread:$0]  %s11, 512, %s122, [#allocation16], 128, 128, 8
    $region49: #{birnn_basic_forward.1} parent=1 // pred_fallthru
      _
    // Predicated region
    $region50: #{birnn_basic_forward.1} parent=1 // pred_check
      _
    $region51: #{birnn_basic_forward.1} parent=1 // pred_check_branch
      %129 = sbr.rel (0) target = $region53
    $region52: #{birnn_basic_forward.1} parent=1 // pred_region
      _
    $region53: #{birnn_basic_forward.1} parent=1 // pred_fallthru
      _
    // Predicated region
    $region54: #{birnn_basic_forward.1} parent=1 // pred_check
      _
    $region55: #{birnn_basic_forward.1} parent=1 // pred_check_branch
      %131 = sbr.rel (0) target = $region57
    $region56: #{birnn_basic_forward.1} parent=1 // pred_region
      _
    $region57: #{birnn_basic_forward.1} parent=1 // pred_fallthru
      _
    // Predicated region
    $region58: #{birnn_basic_forward.1} parent=1 // pred_check
      _
    $region59: #{birnn_basic_forward.1} parent=1 // pred_check_branch
      %133 = sbr.rel (0) target = $region61
    $region60: #{birnn_basic_forward.1} parent=1 // pred_region
      %s135 = ssub.s32 16, 16
      %136 = vsyncadd [#allocation16], %s135
      %s138 = sshll.u32 [#allocation17], 4
      %s139 = int_to_ptr.vmem [resolvable:$true] %s138
      %141 = dma.hbm_to_vmem [thread:$0]  %s14, 16, %s139, [#allocation16]
    $region61: #{birnn_basic_forward.1} parent=1 // pred_fallthru
      _
    // Predicated region
    $region62: #{birnn_basic_forward.1} parent=1 // pred_check
      _
    $region63: #{birnn_basic_forward.1} parent=1 // pred_check_branch
      %143 = sbr.rel (0) target = $region65
    $region64: #{birnn_basic_forward.1} parent=1 // pred_region
      %144 = dma.done [#allocation4], 256
    $region65: #{birnn_basic_forward.1} parent=1 // pred_fallthru
      _
    // Predicated region
    $region66: #{birnn_basic_forward.1} parent=1 // pred_check
      _
    $region67: #{birnn_basic_forward.1} parent=1 // pred_check_branch
      %146 = sbr.rel (0) target = $region69
    $region68: #{birnn_basic_forward.1} parent=1 // pred_region
      %147 = dma.done [#allocation7], 512
    $region69: #{birnn_basic_forward.1} parent=1 // pred_fallthru
      _
    // Predicated region
    $region70: #{birnn_basic_forward.1} parent=1 // pred_check
      _
    $region71: #{birnn_basic_forward.1} parent=1 // pred_check_branch
      %149 = sbr.rel (0) target = $region73
    $region72: #{birnn_basic_forward.1} parent=1 // pred_region
      %150 = dma.done [#allocation7], 512
    $region73: #{birnn_basic_forward.1} parent=1 // pred_fallthru
      _
    // Predicated region
    $region74: #{birnn_basic_forward.1} parent=1 // pred_check
      _
    $region75: #{birnn_basic_forward.1} parent=1 // pred_check_branch
      %152 = sbr.rel (0) target = $region77
    $region76: #{birnn_basic_forward.1} parent=1 // pred_region
      %153 = dma.done [#allocation10], 512
    $region77: #{birnn_basic_forward.1} parent=1 // pred_fallthru
      _
    // Predicated region
    $region78: #{birnn_basic_forward.1} parent=1 // pred_check
      _
    $region79: #{birnn_basic_forward.1} parent=1 // pred_check_branch
      %155 = sbr.rel (0) target = $region81
    $region80: #{birnn_basic_forward.1} parent=1 // pred_region
      %156 = dma.done [#allocation10], 512
    $region81: #{birnn_basic_forward.1} parent=1 // pred_fallthru
      _
    // Predicated region
    $region82: #{birnn_basic_forward.1} parent=1 // pred_check
      _
    $region83: #{birnn_basic_forward.1} parent=1 // pred_check_branch
      %158 = sbr.rel (0) target = $region85
    $region84: #{birnn_basic_forward.1} parent=1 // pred_region
      %159 = dma.done [#allocation13], 2048
    $region85: #{birnn_basic_forward.1} parent=1 // pred_fallthru
      _
    // Predicated region
    $region86: #{birnn_basic_forward.1} parent=1 // pred_check
      _
    $region87: #{birnn_basic_forward.1} parent=1 // pred_check_branch
      %161 = sbr.rel (0) target = $region89
    $region88: #{birnn_basic_forward.1} parent=1 // pred_region
      %162 = dma.done [#allocation13], 512
    $region89: #{birnn_basic_forward.1} parent=1 // pred_fallthru
      _
    // Predicated region
    $region90: #{birnn_basic_forward.1} parent=1 // pred_check
      _
    $region91: #{birnn_basic_forward.1} parent=1 // pred_check_branch
      %164 = sbr.rel (0) target = $region93
    $region92: #{birnn_basic_forward.1} parent=1 // pred_region
      %165 = dma.done [#allocation16], 512
    $region93: #{birnn_basic_forward.1} parent=1 // pred_fallthru
      _
    // Predicated region
    $region94: #{birnn_basic_forward.1} parent=1 // pred_check
      _
    $region95: #{birnn_basic_forward.1} parent=1 // pred_check_branch
      %167 = sbr.rel (0) target = $region97
    $region96: #{birnn_basic_forward.1} parent=1 // pred_region
      %168 = dma.done [#allocation16], 16
    $region97: #{birnn_basic_forward.1} parent=1 // pred_fallthru
      _
    %v169 = vld [vmem:[%s0] sm:$0xff]
    %v170 = vld [vmem:[%s0 + $0x8] sm:$0xff]
    %v171 = vld [vmem:[#allocation6] sm:$0xff]
    %v172 = vld [vmem:[#allocation6 + $0x8] sm:$0xff]
    %v173 = vld [vmem:[#allocation6 + $0x10] sm:$0xff]
    %v174 = vld [vmem:[#allocation6 + $0x18] sm:$0xff]
    %v175 = vld [vmem:[#allocation8] sm:$0xff]
    %v176 = vld [vmem:[#allocation8 + $0x8] sm:$0xff]
    %v177 = vld [vmem:[#allocation8 + $0x10] sm:$0xff]
    %v178 = vld [vmem:[#allocation8 + $0x18] sm:$0xff]
    %v179 = vld [vmem:[#allocation3] sm:$0x7f]
    %v180 = vld [vmem:[#allocation3 + $0x8] sm:$0x7f]
    %v181 = vld [vmem:[%s4] sm:$0x3]
    %v183 = vlaneseq
    %v184 = vshrl.u32 %v183, 7
    %v185 = vsub.s32 0, %v184
    %v186 = vrot.slane %v181, %v185
    %v187 = vlaneseq
    %v188 = vshrl.u32 %v187, 7
    %v189 = vsub.s32 1, %v188
    %v190 = vrot.slane %v181, %v189
    %vm193 = vcmask 56320
    %v195 = vsel %vm193, %v169, 0
    %v198 = vsel %vm193, %v170, 0
    %vm200 = vcmask 1046528
    %v202 = vsel %vm200, %v179, 0
    %v205 = vsel %vm200, %v180, 0
    %207 = vmatprep.subr.mxu0 %v205
    %208 = vmatpush1.msra.mxu0 %v202
    %209 = vmatprep.subr.mxu0 0.0
    %210 = vmatpush1.msra.mxu0 0.0
    %211 = vmatprep.subr.mxu0 0.0
    %212 = vmatpush1.msra.mxu0 0.0
    %213 = vmatprep.subr.mxu0 0.0
    %214 = vmatpush1.msra.mxu0 0.0
    %215 = vmatprep.subr.mxu0 0.0
    %216 = vmatpush1.msra.mxu0 0.0
    %217 = vmatprep.subr.mxu0 0.0
    %218 = vmatpush1.msra.mxu0 0.0
    %219 = vmatprep.subr.mxu0 0.0
    %220 = vmatpush1.msra.mxu0 0.0
    %221 = vmatprep.subr.mxu0 0.0
    %222 = vmatpush1.msra.mxu0 0.0
    %223 = vmatprep.subr.mxu0 0.0
    %224 = vmatpush1.msra.mxu0 0.0
    %225 = vmatprep.subr.mxu0 0.0
    %226 = vmatpush1.msra.mxu0 0.0
    %227 = vmatprep.subr.mxu0 0.0
    %228 = vmatpush1.msra.mxu0 0.0
    %229 = vmatprep.subr.mxu0 0.0
    %230 = vmatpush1.msra.mxu0 0.0
    %231 = vmatprep.subr.mxu0 0.0
    %232 = vmatpush1.msra.mxu0 0.0
    %233 = vmatprep.subr.mxu0 0.0
    %234 = vmatpush1.msra.mxu0 0.0
    %235 = vmatprep.subr.mxu0 0.0
    %236 = vmatpush1.msra.mxu0 0.0
    %237 = vmatprep.subr.mxu0 0.0
    %238 = vmatpush1.msra.mxu0 0.0
    %239 = vmatprep.subr.mxu0 0.0
    %240 = vmatpush1.msra.mxu0 0.0
    %241 = vmatprep.subr.mxu0 0.0
    %242 = vmatpush1.msra.mxu0 0.0
    %243 = vmatprep.subr.mxu0 0.0
    %244 = vmatpush1.msra.mxu0 0.0
    %245 = vmatprep.subr.mxu0 0.0
    %246 = vmatpush1.msra.mxu0 0.0
    %247 = vmatprep.subr.mxu0 0.0
    %248 = vmatpush1.msra.mxu0 0.0
    %249 = vmatprep.subr.mxu0 0.0
    %250 = vmatpush1.msra.mxu0 0.0
    %251 = vmatprep.subr.mxu0 0.0
    %252 = vmatpush1.msra.mxu0 0.0
    %253 = vmatprep.subr.mxu0 0.0
    %254 = vmatpush1.msra.mxu0 0.0
    %255 = vmatprep.subr.mxu0 0.0
    %256 = vmatpush1.msra.mxu0 0.0
    %257 = vmatprep.subr.mxu0 0.0
    %258 = vmatpush1.msra.mxu0 0.0
    %259 = vmatprep.subr.mxu0 0.0
    %260 = vmatpush1.msra.mxu0 0.0
    %261 = vmatprep.subr.mxu0 0.0
    %262 = vmatpush1.msra.mxu0 0.0
    %263 = vmatprep.subr.mxu0 0.0
    %264 = vmatpush1.msra.mxu0 0.0
    %265 = vmatprep.subr.mxu0 0.0
    %266 = vmatpush1.msra.mxu0 0.0
    %267 = vmatprep.subr.mxu0 0.0
    %268 = vmatpush1.msra.mxu0 0.0
    %269 = vmatprep.subr.mxu0 0.0
    %270 = vmatpush1.msra.mxu0 0.0
    %271 = vmatprep.mubr.f32.mxu0 0.0
    %272 = vmatmul.mubr.f32.gmra.mrb[0].mxu0 %v195
    %v273 = vpop.f32.mrb[0].mxu0
    %v274 = vadd.f32 %v186, %v273
    %v275 = vpop.f32.mrb[0].mxu0
    %v276 = vadd.f32 %v190, %v275
    %277 = vmatprep.mubr.f32.mxu0 0.0
    %278 = vmatmul.mubr.f32.gmra.mrb[0].mxu0 %v198
    %v279 = vpop.f32.mrb[0].mxu0
    %v280 = vadd.f32 %v186, %v279
    %v281 = vpop.f32.mrb[0].mxu0
    %v282 = vadd.f32 %v190, %v281
    %283 = vdwg.mxu0
    %vm284 = vcmask 261120
    %v286 = vsel %vm284, 0.0, 0
    %288 = vmatprep.subr.mxu0 0.0
    %289 = vmatpush1.msra.mxu0 %v171
    %290 = vmatprep.subr.mxu0 0.0
    %291 = vmatpush1.msra.mxu0 %v172
    %292 = vmatprep.subr.mxu0 0.0
    %293 = vmatpush1.msra.mxu0 %v173
    %294 = vmatprep.subr.mxu0 0.0
    %295 = vmatpush1.msra.mxu0 %v174
    %296 = vmatprep.subr.mxu0 0.0
    %297 = vmatpush1.msra.mxu0 0.0
    %298 = vmatprep.subr.mxu0 0.0
    %299 = vmatpush1.msra.mxu0 0.0
    %300 = vmatprep.subr.mxu0 0.0
    %301 = vmatpush1.msra.mxu0 0.0
    %302 = vmatprep.subr.mxu0 0.0
    %303 = vmatpush1.msra.mxu0 0.0
    %304 = vmatprep.subr.mxu0 0.0
    %305 = vmatpush1.msra.mxu0 0.0
    %306 = vmatprep.subr.mxu0 0.0
    %307 = vmatpush1.msra.mxu0 0.0
    %308 = vmatprep.subr.mxu0 0.0
    %309 = vmatpush1.msra.mxu0 0.0
    %310 = vmatprep.subr.mxu0 0.0
    %311 = vmatpush1.msra.mxu0 0.0
    %312 = vmatprep.subr.mxu0 0.0
    %313 = vmatpush1.msra.mxu0 0.0
    %314 = vmatprep.subr.mxu0 0.0
    %315 = vmatpush1.msra.mxu0 0.0
    %316 = vmatprep.subr.mxu0 0.0
    %317 = vmatpush1.msra.mxu0 0.0
    %318 = vmatprep.subr.mxu0 0.0
    %319 = vmatpush1.msra.mxu0 0.0
    %320 = vmatprep.subr.mxu0 0.0
    %321 = vmatpush1.msra.mxu0 0.0
    %322 = vmatprep.subr.mxu0 0.0
    %323 = vmatpush1.msra.mxu0 0.0
    %324 = vmatprep.subr.mxu0 0.0
    %325 = vmatpush1.msra.mxu0 0.0
    %326 = vmatprep.subr.mxu0 0.0
    %327 = vmatpush1.msra.mxu0 0.0
    %328 = vmatprep.subr.mxu0 0.0
    %329 = vmatpush1.msra.mxu0 0.0
    %330 = vmatprep.subr.mxu0 0.0
    %331 = vmatpush1.msra.mxu0 0.0
    %332 = vmatprep.subr.mxu0 0.0
    %333 = vmatpush1.msra.mxu0 0.0
    %334 = vmatprep.subr.mxu0 0.0
    %335 = vmatpush1.msra.mxu0 0.0
    %336 = vmatprep.subr.mxu0 0.0
    %337 = vmatpush1.msra.mxu0 0.0
    %338 = vmatprep.subr.mxu0 0.0
    %339 = vmatpush1.msra.mxu0 0.0
    %340 = vmatprep.subr.mxu0 0.0
    %341 = vmatpush1.msra.mxu0 0.0
    %342 = vmatprep.subr.mxu0 0.0
    %343 = vmatpush1.msra.mxu0 0.0
    %344 = vmatprep.subr.mxu0 0.0
    %345 = vmatpush1.msra.mxu0 0.0
    %346 = vmatprep.subr.mxu0 0.0
    %347 = vmatpush1.msra.mxu0 0.0
    %348 = vmatprep.subr.mxu0 0.0
    %349 = vmatpush1.msra.mxu0 0.0
    %350 = vmatprep.subr.mxu0 0.0
    %351 = vmatpush1.msra.mxu0 0.0
    %352 = vmatprep.mubr.f32.mxu0 0.0
    %353 = vmatmul.mubr.f32.gmra.mrb[0].mxu0 %v286
    %v354 = vpop.f32.mrb[0].mxu0
    %v355 = vadd.f32 0.0, %v354
    %v356 = vpop.f32.mrb[0].mxu0
    %357 = vdwg.mxu0
    %v358 = vadd.f32 %v274, %v355
    %v359 = vxor.u32 %v358, 2147483648
    %v360 = vmul.f32 %v359, 1.442695
    %v361 = vpow.pop %v360
    %v362 = vadd.f32 %v361, 1.0
    %v363 = vrcp.pop %v362
    %v364 = vmul.f32 1.0, %v363
    %v365 = vtanh.pop %v358
    %v366 = vmul.f32 %v364, 0.0
    %368 = vrot.lane.b32.xlu0 %v365, 32
    %v369 = vpop.permute.xlu0 %368
    %v371 = vmul.f32 %v364, %v369
    %373 = vrot.lane.b32.xlu0 %v371, 32
    %v374 = vpop.permute.xlu0 %373
    %v376 = vadd.f32 %v366, %v374
    %v377 = vtanh.pop %v376
    %379 = vrot.lane.b32.xlu0 %v377, 32
    %v380 = vpop.permute.xlu0 %379
    %v382 = vmul.f32 %v364, %v380
    %384 = vrot.lane.b32.xlu0 %v382, 64
    %v385 = vpop.permute.xlu0 %384
    %vm387 = vcmask 254976
    %388 = vst.msk [vmem:[#allocation2] sm:$0x3] %vm387, %v385
    %389 = vmatprep.subr.mxu0 0.0
    %390 = vmatpush1.msra.mxu0 %v175
    %391 = vmatprep.subr.mxu0 0.0
    %392 = vmatpush1.msra.mxu0 %v176
    %393 = vmatprep.subr.mxu0 0.0
    %394 = vmatpush1.msra.mxu0 %v177
    %395 = vmatprep.subr.mxu0 0.0
    %396 = vmatpush1.msra.mxu0 %v178
    %397 = vmatprep.subr.mxu0 0.0
    %398 = vmatpush1.msra.mxu0 0.0
    %399 = vmatprep.subr.mxu0 0.0
    %400 = vmatpush1.msra.mxu0 0.0
    %401 = vmatprep.subr.mxu0 0.0
    %402 = vmatpush1.msra.mxu0 0.0
    %403 = vmatprep.subr.mxu0 0.0
    %404 = vmatpush1.msra.mxu0 0.0
    %405 = vmatprep.subr.mxu0 0.0
    %406 = vmatpush1.msra.mxu0 0.0
    %407 = vmatprep.subr.mxu0 0.0
    %408 = vmatpush1.msra.mxu0 0.0
    %409 = vmatprep.subr.mxu0 0.0
    %410 = vmatpush1.msra.mxu0 0.0
    %411 = vmatprep.subr.mxu0 0.0
    %412 = vmatpush1.msra.mxu0 0.0
    %413 = vmatprep.subr.mxu0 0.0
    %414 = vmatpush1.msra.mxu0 0.0
    %415 = vmatprep.subr.mxu0 0.0
    %416 = vmatpush1.msra.mxu0 0.0
    %417 = vmatprep.subr.mxu0 0.0
    %418 = vmatpush1.msra.mxu0 0.0
    %419 = vmatprep.subr.mxu0 0.0
    %420 = vmatpush1.msra.mxu0 0.0
    %421 = vmatprep.subr.mxu0 0.0
    %422 = vmatpush1.msra.mxu0 0.0
    %423 = vmatprep.subr.mxu0 0.0
    %424 = vmatpush1.msra.mxu0 0.0
    %425 = vmatprep.subr.mxu0 0.0
    %426 = vmatpush1.msra.mxu0 0.0
    %427 = vmatprep.subr.mxu0 0.0
    %428 = vmatpush1.msra.mxu0 0.0
    %429 = vmatprep.subr.mxu0 0.0
    %430 = vmatpush1.msra.mxu0 0.0
    %431 = vmatprep.subr.mxu0 0.0
    %432 = vmatpush1.msra.mxu0 0.0
    %433 = vmatprep.subr.mxu0 0.0
    %434 = vmatpush1.msra.mxu0 0.0
    %435 = vmatprep.subr.mxu0 0.0
    %436 = vmatpush1.msra.mxu0 0.0
    %437 = vmatprep.subr.mxu0 0.0
    %438 = vmatpush1.msra.mxu0 0.0
    %439 = vmatprep.subr.mxu0 0.0
    %440 = vmatpush1.msra.mxu0 0.0
    %441 = vmatprep.subr.mxu0 0.0
    %442 = vmatpush1.msra.mxu0 0.0
    %443 = vmatprep.subr.mxu0 0.0
    %444 = vmatpush1.msra.mxu0 0.0
    %445 = vmatprep.subr.mxu0 0.0
    %446 = vmatpush1.msra.mxu0 0.0
    %447 = vmatprep.subr.mxu0 0.0
    %448 = vmatpush1.msra.mxu0 0.0
    %449 = vmatprep.subr.mxu0 0.0
    %450 = vmatpush1.msra.mxu0 0.0
    %451 = vmatprep.subr.mxu0 0.0
    %452 = vmatpush1.msra.mxu0 0.0
    %453 = vmatprep.mubr.f32.mxu0 0.0
    %454 = vmatmul.mubr.f32.gmra.mrb[0].mxu0 %v286
    %v455 = vpop.f32.mrb[0].mxu0
    %v456 = vadd.f32 0.0, %v455
    %v457 = vpop.f32.mrb[0].mxu0
    %458 = vdwg.mxu0
    %v460 = vrot.slane %v456, 2
    %v462 = vadd.f32 %v282, %v460
    %v463 = vxor.u32 %v462, 2147483648
    %v464 = vmul.f32 %v463, 1.442695
    %v465 = vpow.pop %v464
    %v466 = vadd.f32 %v465, 1.0
    %v467 = vrcp.pop %v466
    %v468 = vmul.f32 1.0, %v467
    %v469 = vtanh.pop %v462
    %v470 = vmul.f32 %v468, 0.0
    %472 = vrot.lane.b32.xlu0 %v469, 32
    %v473 = vpop.permute.xlu0 %472
    %v475 = vmul.f32 %v468, %v473
    %477 = vrot.lane.b32.xlu0 %v475, 32
    %v478 = vpop.permute.xlu0 %477
    %v480 = vadd.f32 %v470, %v478
    %v481 = vtanh.pop %v480
    %483 = vrot.lane.b32.xlu0 %v481, 32
    %v484 = vpop.permute.xlu0 %483
    %v486 = vmul.f32 %v468, %v484
    %488 = vrot.lane.b32.xlu0 %v486, 96
    %v489 = vpop.permute.xlu0 %488
    %vm491 = vcmask 523526
    %492 = vst.msk [vmem:[#allocation2 + $0x8] sm:$0xc0] %vm491, %v489
    %v493 = vsel %vm284, %v385, 0
    %495 = vmatprep.subr.mxu0 0.0
    %496 = vmatpush1.msra.mxu0 %v171
    %497 = vmatprep.subr.mxu0 0.0
    %498 = vmatpush1.msra.mxu0 %v172
    %499 = vmatprep.subr.mxu0 0.0
    %500 = vmatpush1.msra.mxu0 %v173
    %501 = vmatprep.subr.mxu0 0.0
    %502 = vmatpush1.msra.mxu0 %v174
    %503 = vmatprep.subr.mxu0 0.0
    %504 = vmatpush1.msra.mxu0 0.0
    %505 = vmatprep.subr.mxu0 0.0
    %506 = vmatpush1.msra.mxu0 0.0
    %507 = vmatprep.subr.mxu0 0.0
    %508 = vmatpush1.msra.mxu0 0.0
    %509 = vmatprep.subr.mxu0 0.0
    %510 = vmatpush1.msra.mxu0 0.0
    %511 = vmatprep.subr.mxu0 0.0
    %512 = vmatpush1.msra.mxu0 0.0
    %513 = vmatprep.subr.mxu0 0.0
    %514 = vmatpush1.msra.mxu0 0.0
    %515 = vmatprep.subr.mxu0 0.0
    %516 = vmatpush1.msra.mxu0 0.0
    %517 = vmatprep.subr.mxu0 0.0
    %518 = vmatpush1.msra.mxu0 0.0
    %519 = vmatprep.subr.mxu0 0.0
    %520 = vmatpush1.msra.mxu0 0.0
    %521 = vmatprep.subr.mxu0 0.0
    %522 = vmatpush1.msra.mxu0 0.0
    %523 = vmatprep.subr.mxu0 0.0
    %524 = vmatpush1.msra.mxu0 0.0
    %525 = vmatprep.subr.mxu0 0.0
    %526 = vmatpush1.msra.mxu0 0.0
    %527 = vmatprep.subr.mxu0 0.0
    %528 = vmatpush1.msra.mxu0 0.0
    %529 = vmatprep.subr.mxu0 0.0
    %530 = vmatpush1.msra.mxu0 0.0
    %531 = vmatprep.subr.mxu0 0.0
    %532 = vmatpush1.msra.mxu0 0.0
    %533 = vmatprep.subr.mxu0 0.0
    %534 = vmatpush1.msra.mxu0 0.0
    %535 = vmatprep.subr.mxu0 0.0
    %536 = vmatpush1.msra.mxu0 0.0
    %537 = vmatprep.subr.mxu0 0.0
    %538 = vmatpush1.msra.mxu0 0.0
    %539 = vmatprep.subr.mxu0 0.0
    %540 = vmatpush1.msra.mxu0 0.0
    %541 = vmatprep.subr.mxu0 0.0
    %542 = vmatpush1.msra.mxu0 0.0
    %543 = vmatprep.subr.mxu0 0.0
    %544 = vmatpush1.msra.mxu0 0.0
    %545 = vmatprep.subr.mxu0 0.0
    %546 = vmatpush1.msra.mxu0 0.0
    %547 = vmatprep.subr.mxu0 0.0
    %548 = vmatpush1.msra.mxu0 0.0
    %549 = vmatprep.subr.mxu0 0.0
    %550 = vmatpush1.msra.mxu0 0.0
    %551 = vmatprep.subr.mxu0 0.0
    %552 = vmatpush1.msra.mxu0 0.0
    %553 = vmatprep.subr.mxu0 0.0
    %554 = vmatpush1.msra.mxu0 0.0
    %555 = vmatprep.subr.mxu0 0.0
    %556 = vmatpush1.msra.mxu0 0.0
    %557 = vmatprep.subr.mxu0 0.0
    %558 = vmatpush1.msra.mxu0 0.0
    %559 = vmatprep.mubr.f32.mxu0 0.0
    %560 = vmatmul.mubr.f32.gmra.mrb[0].mxu0 %v493
    %v561 = vpop.f32.mrb[0].mxu0
    %v562 = vadd.f32 0.0, %v561
    %v563 = vpop.f32.mrb[0].mxu0
    %564 = vdwg.mxu0
    %v566 = vrot.slane %v562, 6
    %v568 = vadd.f32 %v274, %v566
    %v569 = vxor.u32 %v568, 2147483648
    %v570 = vmul.f32 %v569, 1.442695
    %v571 = vpow.pop %v570
    %v572 = vadd.f32 %v571, 1.0
    %v573 = vrcp.pop %v572
    %v574 = vmul.f32 1.0, %v573
    %v575 = vtanh.pop %v568
    %v577 = vrot.slane %v376, 6
    %v579 = vmul.f32 %v574, %v577
    %581 = vrot.lane.b32.xlu0 %v575, 32
    %v582 = vpop.permute.xlu0 %581
    %v584 = vmul.f32 %v574, %v582
    %586 = vrot.lane.b32.xlu0 %v584, 32
    %v587 = vpop.permute.xlu0 %586
    %v589 = vadd.f32 %v579, %v587
    %v590 = vtanh.pop %v589
    %592 = vrot.lane.b32.xlu0 %v590, 32
    %v593 = vpop.permute.xlu0 %592
    %v595 = vmul.f32 %v574, %v593
    %597 = vrot.lane.b32.xlu0 %v595, 64
    %v598 = vpop.permute.xlu0 %597
    %vm600 = vcmask 257026
    %601 = vst.msk [vmem:[#allocation2] sm:$0xc] %vm600, %v598
    %v602 = vrot.slane %v486, 6
    %603 = vrot.lane.b32.xlu0 %v602, 64
    %v604 = vpop.permute.xlu0 %603
    %v605 = vsel %vm284, %v604, 0
    %607 = vmatprep.subr.mxu0 0.0
    %608 = vmatpush1.msra.mxu0 %v175
    %609 = vmatprep.subr.mxu0 0.0
    %610 = vmatpush1.msra.mxu0 %v176
    %611 = vmatprep.subr.mxu0 0.0
    %612 = vmatpush1.msra.mxu0 %v177
    %613 = vmatprep.subr.mxu0 0.0
    %614 = vmatpush1.msra.mxu0 %v178
    %615 = vmatprep.subr.mxu0 0.0
    %616 = vmatpush1.msra.mxu0 0.0
    %617 = vmatprep.subr.mxu0 0.0
    %618 = vmatpush1.msra.mxu0 0.0
    %619 = vmatprep.subr.mxu0 0.0
    %620 = vmatpush1.msra.mxu0 0.0
    %621 = vmatprep.subr.mxu0 0.0
    %622 = vmatpush1.msra.mxu0 0.0
    %623 = vmatprep.subr.mxu0 0.0
    %624 = vmatpush1.msra.mxu0 0.0
    %625 = vmatprep.subr.mxu0 0.0
    %626 = vmatpush1.msra.mxu0 0.0
    %627 = vmatprep.subr.mxu0 0.0
    %628 = vmatpush1.msra.mxu0 0.0
    %629 = vmatprep.subr.mxu0 0.0
    %630 = vmatpush1.msra.mxu0 0.0
    %631 = vmatprep.subr.mxu0 0.0
    %632 = vmatpush1.msra.mxu0 0.0
    %633 = vmatprep.subr.mxu0 0.0
    %634 = vmatpush1.msra.mxu0 0.0
    %635 = vmatprep.subr.mxu0 0.0
    %636 = vmatpush1.msra.mxu0 0.0
    %637 = vmatprep.subr.mxu0 0.0
    %638 = vmatpush1.msra.mxu0 0.0
    %639 = vmatprep.subr.mxu0 0.0
    %640 = vmatpush1.msra.mxu0 0.0
    %641 = vmatprep.subr.mxu0 0.0
    %642 = vmatpush1.msra.mxu0 0.0
    %643 = vmatprep.subr.mxu0 0.0
    %644 = vmatpush1.msra.mxu0 0.0
    %645 = vmatprep.subr.mxu0 0.0
    %646 = vmatpush1.msra.mxu0 0.0
    %647 = vmatprep.subr.mxu0 0.0
    %648 = vmatpush1.msra.mxu0 0.0
    %649 = vmatprep.subr.mxu0 0.0
    %650 = vmatpush1.msra.mxu0 0.0
    %651 = vmatprep.subr.mxu0 0.0
    %652 = vmatpush1.msra.mxu0 0.0
    %653 = vmatprep.subr.mxu0 0.0
    %654 = vmatpush1.msra.mxu0 0.0
    %655 = vmatprep.subr.mxu0 0.0
    %656 = vmatpush1.msra.mxu0 0.0
    %657 = vmatprep.subr.mxu0 0.0
    %658 = vmatpush1.msra.mxu0 0.0
    %659 = vmatprep.subr.mxu0 0.0
    %660 = vmatpush1.msra.mxu0 0.0
    %661 = vmatprep.subr.mxu0 0.0
    %662 = vmatpush1.msra.mxu0 0.0
    %663 = vmatprep.subr.mxu0 0.0
    %664 = vmatpush1.msra.mxu0 0.0
    %665 = vmatprep.subr.mxu0 0.0
    %666 = vmatpush1.msra.mxu0 0.0
    %667 = vmatprep.subr.mxu0 0.0
    %668 = vmatpush1.msra.mxu0 0.0
    %669 = vmatprep.subr.mxu0 0.0
    %670 = vmatpush1.msra.mxu0 0.0
    %671 = vmatprep.mubr.f32.mxu0 0.0
    %672 = vmatmul.mubr.f32.gmra.mrb[0].mxu0 %v605
    %v673 = vpop.f32.mrb[0].mxu0
    %v674 = vadd.f32 0.0, %v673
    %v675 = vpop.f32.mrb[0].mxu0
    %676 = vdwg.mxu0
    %v678 = vrot.slane %v674, 4
    %v680 = vadd.f32 %v282, %v678
    %v681 = vxor.u32 %v680, 2147483648
    %v682 = vmul.f32 %v681, 1.442695
    %v683 = vpow.pop %v682
    %v684 = vadd.f32 %v683, 1.0
    %v685 = vrcp.pop %v684
    %v686 = vmul.f32 1.0, %v685
    %v687 = vtanh.pop %v680
    %v689 = vrot.slane %v480, 2
    %v691 = vmul.f32 %v686, %v689
    %693 = vrot.lane.b32.xlu0 %v687, 32
    %v694 = vpop.permute.xlu0 %693
    %v696 = vmul.f32 %v686, %v694
    %698 = vrot.lane.b32.xlu0 %v696, 32
    %v699 = vpop.permute.xlu0 %698
    %v701 = vadd.f32 %v691, %v699
    %v702 = vtanh.pop %v701
    %704 = vrot.lane.b32.xlu0 %v702, 32
    %v705 = vpop.permute.xlu0 %704
    %v707 = vmul.f32 %v686, %v705
    %709 = vrot.lane.b32.xlu0 %v707, 96
    %v710 = vpop.permute.xlu0 %709
    %vm712 = vcmask 521476
    %713 = vst.msk [vmem:[#allocation2 + $0x8] sm:$0x30] %vm712, %v710
    %v714 = vrot.slane %v595, 2
    %715 = vrot.lane.b32.xlu0 %v714, 64
    %v716 = vpop.permute.xlu0 %715
    %v717 = vsel %vm284, %v716, 0
    %719 = vmatprep.subr.mxu0 0.0
    %720 = vmatpush1.msra.mxu0 %v171
    %721 = vmatprep.subr.mxu0 0.0
    %722 = vmatpush1.msra.mxu0 %v172
    %723 = vmatprep.subr.mxu0 0.0
    %724 = vmatpush1.msra.mxu0 %v173
    %725 = vmatprep.subr.mxu0 0.0
    %726 = vmatpush1.msra.mxu0 %v174
    %727 = vmatprep.subr.mxu0 0.0
    %728 = vmatpush1.msra.mxu0 0.0
    %729 = vmatprep.subr.mxu0 0.0
    %730 = vmatpush1.msra.mxu0 0.0
    %731 = vmatprep.subr.mxu0 0.0
    %732 = vmatpush1.msra.mxu0 0.0
    %733 = vmatprep.subr.mxu0 0.0
    %734 = vmatpush1.msra.mxu0 0.0
    %735 = vmatprep.subr.mxu0 0.0
    %736 = vmatpush1.msra.mxu0 0.0
    %737 = vmatprep.subr.mxu0 0.0
    %738 = vmatpush1.msra.mxu0 0.0
    %739 = vmatprep.subr.mxu0 0.0
    %740 = vmatpush1.msra.mxu0 0.0
    %741 = vmatprep.subr.mxu0 0.0
    %742 = vmatpush1.msra.mxu0 0.0
    %743 = vmatprep.subr.mxu0 0.0
    %744 = vmatpush1.msra.mxu0 0.0
    %745 = vmatprep.subr.mxu0 0.0
    %746 = vmatpush1.msra.mxu0 0.0
    %747 = vmatprep.subr.mxu0 0.0
    %748 = vmatpush1.msra.mxu0 0.0
    %749 = vmatprep.subr.mxu0 0.0
    %750 = vmatpush1.msra.mxu0 0.0
    %751 = vmatprep.subr.mxu0 0.0
    %752 = vmatpush1.msra.mxu0 0.0
    %753 = vmatprep.subr.mxu0 0.0
    %754 = vmatpush1.msra.mxu0 0.0
    %755 = vmatprep.subr.mxu0 0.0
    %756 = vmatpush1.msra.mxu0 0.0
    %757 = vmatprep.subr.mxu0 0.0
    %758 = vmatpush1.msra.mxu0 0.0
    %759 = vmatprep.subr.mxu0 0.0
    %760 = vmatpush1.msra.mxu0 0.0
    %761 = vmatprep.subr.mxu0 0.0
    %762 = vmatpush1.msra.mxu0 0.0
    %763 = vmatprep.subr.mxu0 0.0
    %764 = vmatpush1.msra.mxu0 0.0
    %765 = vmatprep.subr.mxu0 0.0
    %766 = vmatpush1.msra.mxu0 0.0
    %767 = vmatprep.subr.mxu0 0.0
    %768 = vmatpush1.msra.mxu0 0.0
    %769 = vmatprep.subr.mxu0 0.0
    %770 = vmatpush1.msra.mxu0 0.0
    %771 = vmatprep.subr.mxu0 0.0
    %772 = vmatpush1.msra.mxu0 0.0
    %773 = vmatprep.subr.mxu0 0.0
    %774 = vmatpush1.msra.mxu0 0.0
    %775 = vmatprep.subr.mxu0 0.0
    %776 = vmatpush1.msra.mxu0 0.0
    %777 = vmatprep.subr.mxu0 0.0
    %778 = vmatpush1.msra.mxu0 0.0
    %779 = vmatprep.subr.mxu0 0.0
    %780 = vmatpush1.msra.mxu0 0.0
    %781 = vmatprep.subr.mxu0 0.0
    %782 = vmatpush1.msra.mxu0 0.0
    %783 = vmatprep.mubr.f32.mxu0 0.0
    %784 = vmatmul.mubr.f32.gmra.mrb[0].mxu0 %v717
    %v785 = vpop.f32.mrb[0].mxu0
    %v786 = vadd.f32 0.0, %v785
    %v787 = vpop.f32.mrb[0].mxu0
    %788 = vdwg.mxu0
    %v790 = vrot.slane %v786, 4
    %v792 = vadd.f32 %v274, %v790
    %v793 = vxor.u32 %v792, 2147483648
    %v794 = vmul.f32 %v793, 1.442695
    %v795 = vpow.pop %v794
    %v796 = vadd.f32 %v795, 1.0
    %v797 = vrcp.pop %v796
    %v798 = vmul.f32 1.0, %v797
    %v799 = vtanh.pop %v792
    %v801 = vrot.slane %v589, 6
    %v803 = vmul.f32 %v798, %v801
    %805 = vrot.lane.b32.xlu0 %v799, 32
    %v806 = vpop.permute.xlu0 %805
    %v808 = vmul.f32 %v798, %v806
    %810 = vrot.lane.b32.xlu0 %v808, 32
    %v811 = vpop.permute.xlu0 %810
    %v813 = vadd.f32 %v803, %v811
    %v814 = vtanh.pop %v813
    %816 = vrot.lane.b32.xlu0 %v814, 32
    %v817 = vpop.permute.xlu0 %816
    %v819 = vmul.f32 %v798, %v817
    %821 = vrot.lane.b32.xlu0 %v819, 64
    %v822 = vpop.permute.xlu0 %821
    %vm824 = vcmask 259076
    %825 = vst.msk [vmem:[#allocation2] sm:$0x30] %vm824, %v822
    %v826 = vrot.slane %v707, 4
    %827 = vrot.lane.b32.xlu0 %v826, 64
    %v828 = vpop.permute.xlu0 %827
    %v829 = vsel %vm284, %v828, 0
    %831 = vmatprep.subr.mxu0 0.0
    %832 = vmatpush1.msra.mxu0 %v175
    %833 = vmatprep.subr.mxu0 0.0
    %834 = vmatpush1.msra.mxu0 %v176
    %835 = vmatprep.subr.mxu0 0.0
    %836 = vmatpush1.msra.mxu0 %v177
    %837 = vmatprep.subr.mxu0 0.0
    %838 = vmatpush1.msra.mxu0 %v178
    %839 = vmatprep.subr.mxu0 0.0
    %840 = vmatpush1.msra.mxu0 0.0
    %841 = vmatprep.subr.mxu0 0.0
    %842 = vmatpush1.msra.mxu0 0.0
    %843 = vmatprep.subr.mxu0 0.0
    %844 = vmatpush1.msra.mxu0 0.0
    %845 = vmatprep.subr.mxu0 0.0
    %846 = vmatpush1.msra.mxu0 0.0
    %847 = vmatprep.subr.mxu0 0.0
    %848 = vmatpush1.msra.mxu0 0.0
    %849 = vmatprep.subr.mxu0 0.0
    %850 = vmatpush1.msra.mxu0 0.0
    %851 = vmatprep.subr.mxu0 0.0
    %852 = vmatpush1.msra.mxu0 0.0
    %853 = vmatprep.subr.mxu0 0.0
    %854 = vmatpush1.msra.mxu0 0.0
    %855 = vmatprep.subr.mxu0 0.0
    %856 = vmatpush1.msra.mxu0 0.0
    %857 = vmatprep.subr.mxu0 0.0
    %858 = vmatpush1.msra.mxu0 0.0
    %859 = vmatprep.subr.mxu0 0.0
    %860 = vmatpush1.msra.mxu0 0.0
    %861 = vmatprep.subr.mxu0 0.0
    %862 = vmatpush1.msra.mxu0 0.0
    %863 = vmatprep.subr.mxu0 0.0
    %864 = vmatpush1.msra.mxu0 0.0
    %865 = vmatprep.subr.mxu0 0.0
    %866 = vmatpush1.msra.mxu0 0.0
    %867 = vmatprep.subr.mxu0 0.0
    %868 = vmatpush1.msra.mxu0 0.0
    %869 = vmatprep.subr.mxu0 0.0
    %870 = vmatpush1.msra.mxu0 0.0
    %871 = vmatprep.subr.mxu0 0.0
    %872 = vmatpush1.msra.mxu0 0.0
    %873 = vmatprep.subr.mxu0 0.0
    %874 = vmatpush1.msra.mxu0 0.0
    %875 = vmatprep.subr.mxu0 0.0
    %876 = vmatpush1.msra.mxu0 0.0
    %877 = vmatprep.subr.mxu0 0.0
    %878 = vmatpush1.msra.mxu0 0.0
    %879 = vmatprep.subr.mxu0 0.0
    %880 = vmatpush1.msra.mxu0 0.0
    %881 = vmatprep.subr.mxu0 0.0
    %882 = vmatpush1.msra.mxu0 0.0
    %883 = vmatprep.subr.mxu0 0.0
    %884 = vmatpush1.msra.mxu0 0.0
    %885 = vmatprep.subr.mxu0 0.0
    %886 = vmatpush1.msra.mxu0 0.0
    %887 = vmatprep.subr.mxu0 0.0
    %888 = vmatpush1.msra.mxu0 0.0
    %889 = vmatprep.subr.mxu0 0.0
    %890 = vmatpush1.msra.mxu0 0.0
    %891 = vmatprep.subr.mxu0 0.0
    %892 = vmatpush1.msra.mxu0 0.0
    %893 = vmatprep.subr.mxu0 0.0
    %894 = vmatpush1.msra.mxu0 0.0
    %895 = vmatprep.mubr.f32.mxu0 0.0
    %896 = vmatmul.mubr.f32.gmra.mrb[0].mxu0 %v829
    %v897 = vpop.f32.mrb[0].mxu0
    %v898 = vadd.f32 0.0, %v897
    %v899 = vpop.f32.mrb[0].mxu0
    %900 = vdwg.mxu0
    %v902 = vrot.slane %v898, 6
    %v904 = vadd.f32 %v282, %v902
    %v905 = vxor.u32 %v904, 2147483648
    %v906 = vmul.f32 %v905, 1.442695
    %v907 = vpow.pop %v906
    %v908 = vadd.f32 %v907, 1.0
    %v909 = vrcp.pop %v908
    %v910 = vmul.f32 1.0, %v909
    %v911 = vtanh.pop %v904
    %v913 = vrot.slane %v701, 2
    %v915 = vmul.f32 %v910, %v913
    %917 = vrot.lane.b32.xlu0 %v911, 32
    %v918 = vpop.permute.xlu0 %917
    %v920 = vmul.f32 %v910, %v918
    %922 = vrot.lane.b32.xlu0 %v920, 32
    %v923 = vpop.permute.xlu0 %922
    %v925 = vadd.f32 %v915, %v923
    %v926 = vtanh.pop %v925
    %928 = vrot.lane.b32.xlu0 %v926, 32
    %v929 = vpop.permute.xlu0 %928
    %v931 = vmul.f32 %v910, %v929
    %933 = vrot.lane.b32.xlu0 %v931, 96
    %v934 = vpop.permute.xlu0 %933
    %vm936 = vcmask 519426
    %937 = vst.msk [vmem:[#allocation2 + $0x8] sm:$0xc] %vm936, %v934
    %v938 = vrot.slane %v819, 4
    %939 = vrot.lane.b32.xlu0 %v938, 64
    %v940 = vpop.permute.xlu0 %939
    %v941 = vsel %vm284, %v940, 0
    %943 = vmatprep.subr.mxu0 0.0
    %944 = vmatpush1.msra.mxu0 %v171
    %945 = vmatprep.subr.mxu0 0.0
    %946 = vmatpush1.msra.mxu0 %v172
    %947 = vmatprep.subr.mxu0 0.0
    %948 = vmatpush1.msra.mxu0 %v173
    %949 = vmatprep.subr.mxu0 0.0
    %950 = vmatpush1.msra.mxu0 %v174
    %951 = vmatprep.subr.mxu0 0.0
    %952 = vmatpush1.msra.mxu0 0.0
    %953 = vmatprep.subr.mxu0 0.0
    %954 = vmatpush1.msra.mxu0 0.0
    %955 = vmatprep.subr.mxu0 0.0
    %956 = vmatpush1.msra.mxu0 0.0
    %957 = vmatprep.subr.mxu0 0.0
    %958 = vmatpush1.msra.mxu0 0.0
    %959 = vmatprep.subr.mxu0 0.0
    %960 = vmatpush1.msra.mxu0 0.0
    %961 = vmatprep.subr.mxu0 0.0
    %962 = vmatpush1.msra.mxu0 0.0
    %963 = vmatprep.subr.mxu0 0.0
    %964 = vmatpush1.msra.mxu0 0.0
    %965 = vmatprep.subr.mxu0 0.0
    %966 = vmatpush1.msra.mxu0 0.0
    %967 = vmatprep.subr.mxu0 0.0
    %968 = vmatpush1.msra.mxu0 0.0
    %969 = vmatprep.subr.mxu0 0.0
    %970 = vmatpush1.msra.mxu0 0.0
    %971 = vmatprep.subr.mxu0 0.0
    %972 = vmatpush1.msra.mxu0 0.0
    %973 = vmatprep.subr.mxu0 0.0
    %974 = vmatpush1.msra.mxu0 0.0
    %975 = vmatprep.subr.mxu0 0.0
    %976 = vmatpush1.msra.mxu0 0.0
    %977 = vmatprep.subr.mxu0 0.0
    %978 = vmatpush1.msra.mxu0 0.0
    %979 = vmatprep.subr.mxu0 0.0
    %980 = vmatpush1.msra.mxu0 0.0
    %981 = vmatprep.subr.mxu0 0.0
    %982 = vmatpush1.msra.mxu0 0.0
    %983 = vmatprep.subr.mxu0 0.0
    %984 = vmatpush1.msra.mxu0 0.0
    %985 = vmatprep.subr.mxu0 0.0
    %986 = vmatpush1.msra.mxu0 0.0
    %987 = vmatprep.subr.mxu0 0.0
    %988 = vmatpush1.msra.mxu0 0.0
    %989 = vmatprep.subr.mxu0 0.0
    %990 = vmatpush1.msra.mxu0 0.0
    %991 = vmatprep.subr.mxu0 0.0
    %992 = vmatpush1.msra.mxu0 0.0
    %993 = vmatprep.subr.mxu0 0.0
    %994 = vmatpush1.msra.mxu0 0.0
    %995 = vmatprep.subr.mxu0 0.0
    %996 = vmatpush1.msra.mxu0 0.0
    %997 = vmatprep.subr.mxu0 0.0
    %998 = vmatpush1.msra.mxu0 0.0
    %999 = vmatprep.subr.mxu0 0.0
    %1000 = vmatpush1.msra.mxu0 0.0
    %1001 = vmatprep.subr.mxu0 0.0
    %1002 = vmatpush1.msra.mxu0 0.0
    %1003 = vmatprep.subr.mxu0 0.0
    %1004 = vmatpush1.msra.mxu0 0.0
    %1005 = vmatprep.subr.mxu0 0.0
    %1006 = vmatpush1.msra.mxu0 0.0
    %1007 = vmatprep.mubr.f32.mxu0 0.0
    %1008 = vmatmul.mubr.f32.gmra.mrb[0].mxu0 %v941
    %v1009 = vpop.f32.mrb[0].mxu0
    %v1010 = vadd.f32 0.0, %v1009
    %v1011 = vpop.f32.mrb[0].mxu0
    %1012 = vdwg.mxu0
    %v1014 = vrot.slane %v1010, 2
    %v1016 = vadd.f32 %v274, %v1014
    %v1017 = vxor.u32 %v1016, 2147483648
    %v1018 = vmul.f32 %v1017, 1.442695
    %v1019 = vpow.pop %v1018
    %v1020 = vadd.f32 %v1019, 1.0
    %v1021 = vrcp.pop %v1020
    %v1022 = vmul.f32 1.0, %v1021
    %v1023 = vtanh.pop %v1016
    %v1025 = vrot.slane %v813, 6
    %v1027 = vmul.f32 %v1022, %v1025
    %1029 = vrot.lane.b32.xlu0 %v1023, 32
    %v1030 = vpop.permute.xlu0 %1029
    %v1032 = vmul.f32 %v1022, %v1030
    %1034 = vrot.lane.b32.xlu0 %v1032, 32
    %v1035 = vpop.permute.xlu0 %1034
    %v1037 = vadd.f32 %v1027, %v1035
    %v1038 = vtanh.pop %v1037
    %1040 = vrot.lane.b32.xlu0 %v1038, 32
    %v1041 = vpop.permute.xlu0 %1040
    %v1043 = vmul.f32 %v1022, %v1041
    %1045 = vrot.lane.b32.xlu0 %v1043, 64
    %v1046 = vpop.permute.xlu0 %1045
    %vm1048 = vcmask 261126
    %1049 = vst.msk [vmem:[#allocation2] sm:$0xc0] %vm1048, %v1046
    %v1050 = vrot.slane %v931, 2
    %1051 = vrot.lane.b32.xlu0 %v1050, 64
    %v1052 = vpop.permute.xlu0 %1051
    %v1053 = vsel %vm284, %v1052, 0
    %1055 = vmatprep.subr.mxu0 0.0
    %1056 = vmatpush1.msra.mxu0 %v175
    %1057 = vmatprep.subr.mxu0 0.0
    %1058 = vmatpush1.msra.mxu0 %v176
    %1059 = vmatprep.subr.mxu0 0.0
    %1060 = vmatpush1.msra.mxu0 %v177
    %1061 = vmatprep.subr.mxu0 0.0
    %1062 = vmatpush1.msra.mxu0 %v178
    %1063 = vmatprep.subr.mxu0 0.0
    %1064 = vmatpush1.msra.mxu0 0.0
    %1065 = vmatprep.subr.mxu0 0.0
    %1066 = vmatpush1.msra.mxu0 0.0
    %1067 = vmatprep.subr.mxu0 0.0
    %1068 = vmatpush1.msra.mxu0 0.0
    %1069 = vmatprep.subr.mxu0 0.0
    %1070 = vmatpush1.msra.mxu0 0.0
    %1071 = vmatprep.subr.mxu0 0.0
    %1072 = vmatpush1.msra.mxu0 0.0
    %1073 = vmatprep.subr.mxu0 0.0
    %1074 = vmatpush1.msra.mxu0 0.0
    %1075 = vmatprep.subr.mxu0 0.0
    %1076 = vmatpush1.msra.mxu0 0.0
    %1077 = vmatprep.subr.mxu0 0.0
    %1078 = vmatpush1.msra.mxu0 0.0
    %1079 = vmatprep.subr.mxu0 0.0
    %1080 = vmatpush1.msra.mxu0 0.0
    %1081 = vmatprep.subr.mxu0 0.0
    %1082 = vmatpush1.msra.mxu0 0.0
    %1083 = vmatprep.subr.mxu0 0.0
    %1084 = vmatpush1.msra.mxu0 0.0
    %1085 = vmatprep.subr.mxu0 0.0
    %1086 = vmatpush1.msra.mxu0 0.0
    %1087 = vmatprep.subr.mxu0 0.0
    %1088 = vmatpush1.msra.mxu0 0.0
    %1089 = vmatprep.subr.mxu0 0.0
    %1090 = vmatpush1.msra.mxu0 0.0
    %1091 = vmatprep.subr.mxu0 0.0
    %1092 = vmatpush1.msra.mxu0 0.0
    %1093 = vmatprep.subr.mxu0 0.0
    %1094 = vmatpush1.msra.mxu0 0.0
    %1095 = vmatprep.subr.mxu0 0.0
    %1096 = vmatpush1.msra.mxu0 0.0
    %1097 = vmatprep.subr.mxu0 0.0
    %1098 = vmatpush1.msra.mxu0 0.0
    %1099 = vmatprep.subr.mxu0 0.0
    %1100 = vmatpush1.msra.mxu0 0.0
    %1101 = vmatprep.subr.mxu0 0.0
    %1102 = vmatpush1.msra.mxu0 0.0
    %1103 = vmatprep.subr.mxu0 0.0
    %1104 = vmatpush1.msra.mxu0 0.0
    %1105 = vmatprep.subr.mxu0 0.0
    %1106 = vmatpush1.msra.mxu0 0.0
    %1107 = vmatprep.subr.mxu0 0.0
    %1108 = vmatpush1.msra.mxu0 0.0
    %1109 = vmatprep.subr.mxu0 0.0
    %1110 = vmatpush1.msra.mxu0 0.0
    %1111 = vmatprep.subr.mxu0 0.0
    %1112 = vmatpush1.msra.mxu0 0.0
    %1113 = vmatprep.subr.mxu0 0.0
    %1114 = vmatpush1.msra.mxu0 0.0
    %1115 = vmatprep.subr.mxu0 0.0
    %1116 = vmatpush1.msra.mxu0 0.0
    %1117 = vmatprep.subr.mxu0 0.0
    %1118 = vmatpush1.msra.mxu0 0.0
    %1119 = vmatprep.mubr.f32.mxu0 0.0
    %1120 = vmatmul.mubr.f32.gmra.mrb[0].mxu0 %v1053
    %v1121 = vpop.f32.mrb[0].mxu0
    %v1122 = vadd.f32 0.0, %v1121
    %v1123 = vpop.f32.mrb[0].mxu0
    %1124 = vdwg.mxu0
    %v1125 = vadd.f32 %v282, %v1122
    %v1126 = vxor.u32 %v1125, 2147483648
    %v1127 = vmul.f32 %v1126, 1.442695
    %v1128 = vpow.pop %v1127
    %v1129 = vadd.f32 %v1128, 1.0
    %v1130 = vrcp.pop %v1129
    %v1131 = vmul.f32 1.0, %v1130
    %v1132 = vtanh.pop %v1125
    %v1134 = vrot.slane %v925, 2
    %v1136 = vmul.f32 %v1131, %v1134
    %1138 = vrot.lane.b32.xlu0 %v1132, 32
    %v1139 = vpop.permute.xlu0 %1138
    %v1141 = vmul.f32 %v1131, %v1139
    %1143 = vrot.lane.b32.xlu0 %v1141, 32
    %v1144 = vpop.permute.xlu0 %1143
    %v1146 = vadd.f32 %v1136, %v1144
    %v1147 = vtanh.pop %v1146
    %1149 = vrot.lane.b32.xlu0 %v1147, 32
    %v1150 = vpop.permute.xlu0 %1149
    %v1152 = vmul.f32 %v1131, %v1150
    %1154 = vrot.lane.b32.xlu0 %v1152, 96
    %v1155 = vpop.permute.xlu0 %1154
    %vm1157 = vcmask 517376
    %1158 = vst.msk [vmem:[#allocation2 + $0x8] sm:$0x3] %vm1157, %v1155
    %v1159 = vrot.slane %v1043, 6
    %1160 = vrot.lane.b32.xlu0 %v1159, 64
    %v1161 = vpop.permute.xlu0 %1160
    %v1162 = vsel %vm284, %v1161, 0
    %1164 = vmatprep.subr.mxu0 0.0
    %1165 = vmatpush1.msra.mxu0 %v171
    %1166 = vmatprep.subr.mxu0 0.0
    %1167 = vmatpush1.msra.mxu0 %v172
    %1168 = vmatprep.subr.mxu0 0.0
    %1169 = vmatpush1.msra.mxu0 %v173
    %1170 = vmatprep.subr.mxu0 0.0
    %1171 = vmatpush1.msra.mxu0 %v174
    %1172 = vmatprep.subr.mxu0 0.0
    %1173 = vmatpush1.msra.mxu0 0.0
    %1174 = vmatprep.subr.mxu0 0.0
    %1175 = vmatpush1.msra.mxu0 0.0
    %1176 = vmatprep.subr.mxu0 0.0
    %1177 = vmatpush1.msra.mxu0 0.0
    %1178 = vmatprep.subr.mxu0 0.0
    %1179 = vmatpush1.msra.mxu0 0.0
    %1180 = vmatprep.subr.mxu0 0.0
    %1181 = vmatpush1.msra.mxu0 0.0
    %1182 = vmatprep.subr.mxu0 0.0
    %1183 = vmatpush1.msra.mxu0 0.0
    %1184 = vmatprep.subr.mxu0 0.0
    %1185 = vmatpush1.msra.mxu0 0.0
    %1186 = vmatprep.subr.mxu0 0.0
    %1187 = vmatpush1.msra.mxu0 0.0
    %1188 = vmatprep.subr.mxu0 0.0
    %1189 = vmatpush1.msra.mxu0 0.0
    %1190 = vmatprep.subr.mxu0 0.0
    %1191 = vmatpush1.msra.mxu0 0.0
    %1192 = vmatprep.subr.mxu0 0.0
    %1193 = vmatpush1.msra.mxu0 0.0
    %1194 = vmatprep.subr.mxu0 0.0
    %1195 = vmatpush1.msra.mxu0 0.0
    %1196 = vmatprep.subr.mxu0 0.0
    %1197 = vmatpush1.msra.mxu0 0.0
    %1198 = vmatprep.subr.mxu0 0.0
    %1199 = vmatpush1.msra.mxu0 0.0
    %1200 = vmatprep.subr.mxu0 0.0
    %1201 = vmatpush1.msra.mxu0 0.0
    %1202 = vmatprep.subr.mxu0 0.0
    %1203 = vmatpush1.msra.mxu0 0.0
    %1204 = vmatprep.subr.mxu0 0.0
    %1205 = vmatpush1.msra.mxu0 0.0
    %1206 = vmatprep.subr.mxu0 0.0
    %1207 = vmatpush1.msra.mxu0 0.0
    %1208 = vmatprep.subr.mxu0 0.0
    %1209 = vmatpush1.msra.mxu0 0.0
    %1210 = vmatprep.subr.mxu0 0.0
    %1211 = vmatpush1.msra.mxu0 0.0
    %1212 = vmatprep.subr.mxu0 0.0
    %1213 = vmatpush1.msra.mxu0 0.0
    %1214 = vmatprep.subr.mxu0 0.0
    %1215 = vmatpush1.msra.mxu0 0.0
    %1216 = vmatprep.subr.mxu0 0.0
    %1217 = vmatpush1.msra.mxu0 0.0
    %1218 = vmatprep.subr.mxu0 0.0
    %1219 = vmatpush1.msra.mxu0 0.0
    %1220 = vmatprep.subr.mxu0 0.0
    %1221 = vmatpush1.msra.mxu0 0.0
    %1222 = vmatprep.subr.mxu0 0.0
    %1223 = vmatpush1.msra.mxu0 0.0
    %1224 = vmatprep.subr.mxu0 0.0
    %1225 = vmatpush1.msra.mxu0 0.0
    %1226 = vmatprep.subr.mxu0 0.0
    %1227 = vmatpush1.msra.mxu0 0.0
    %1228 = vmatprep.mubr.f32.mxu0 0.0
    %1229 = vmatmul.mubr.f32.gmra.mrb[0].mxu0 %v1162
    %v1230 = vpop.f32.mrb[0].mxu0
    %v1231 = vadd.f32 0.0, %v1230
    %v1232 = vpop.f32.mrb[0].mxu0
    %1233 = vdwg.mxu0
    %v1234 = vadd.f32 %v280, %v1231
    %v1235 = vxor.u32 %v1234, 2147483648
    %v1236 = vmul.f32 %v1235, 1.442695
    %v1237 = vpow.pop %v1236
    %v1238 = vadd.f32 %v1237, 1.0
    %v1239 = vrcp.pop %v1238
    %v1240 = vmul.f32 1.0, %v1239
    %v1241 = vtanh.pop %v1234
    %v1243 = vrot.slane %v1037, 6
    %v1245 = vmul.f32 %v1240, %v1243
    %1247 = vrot.lane.b32.xlu0 %v1241, 32
    %v1248 = vpop.permute.xlu0 %1247
    %v1250 = vmul.f32 %v1240, %v1248
    %1252 = vrot.lane.b32.xlu0 %v1250, 32
    %v1253 = vpop.permute.xlu0 %1252
    %v1255 = vadd.f32 %v1245, %v1253
    %v1256 = vtanh.pop %v1255
    %1258 = vrot.lane.b32.xlu0 %v1256, 32
    %v1259 = vpop.permute.xlu0 %1258
    %v1261 = vmul.f32 %v1240, %v1259
    %1263 = vrot.lane.b32.xlu0 %v1261, 64
    %v1264 = vpop.permute.xlu0 %1263
    %1266 = vst.msk [vmem:[#allocation2 + $0x8] sm:$0x3] %vm387, %v1264
    %1267 = vrot.lane.b32.xlu0 %v1152, 64
    %v1268 = vpop.permute.xlu0 %1267
    %v1269 = vsel %vm284, %v1268, 0
    %1271 = vmatprep.subr.mxu0 0.0
    %1272 = vmatpush1.msra.mxu0 %v175
    %1273 = vmatprep.subr.mxu0 0.0
    %1274 = vmatpush1.msra.mxu0 %v176
    %1275 = vmatprep.subr.mxu0 0.0
    %1276 = vmatpush1.msra.mxu0 %v177
    %1277 = vmatprep.subr.mxu0 0.0
    %1278 = vmatpush1.msra.mxu0 %v178
    %1279 = vmatprep.subr.mxu0 0.0
    %1280 = vmatpush1.msra.mxu0 0.0
    %1281 = vmatprep.subr.mxu0 0.0
    %1282 = vmatpush1.msra.mxu0 0.0
    %1283 = vmatprep.subr.mxu0 0.0
    %1284 = vmatpush1.msra.mxu0 0.0
    %1285 = vmatprep.subr.mxu0 0.0
    %1286 = vmatpush1.msra.mxu0 0.0
    %1287 = vmatprep.subr.mxu0 0.0
    %1288 = vmatpush1.msra.mxu0 0.0
    %1289 = vmatprep.subr.mxu0 0.0
    %1290 = vmatpush1.msra.mxu0 0.0
    %1291 = vmatprep.subr.mxu0 0.0
    %1292 = vmatpush1.msra.mxu0 0.0
    %1293 = vmatprep.subr.mxu0 0.0
    %1294 = vmatpush1.msra.mxu0 0.0
    %1295 = vmatprep.subr.mxu0 0.0
    %1296 = vmatpush1.msra.mxu0 0.0
    %1297 = vmatprep.subr.mxu0 0.0
    %1298 = vmatpush1.msra.mxu0 0.0
    %1299 = vmatprep.subr.mxu0 0.0
    %1300 = vmatpush1.msra.mxu0 0.0
    %1301 = vmatprep.subr.mxu0 0.0
    %1302 = vmatpush1.msra.mxu0 0.0
    %1303 = vmatprep.subr.mxu0 0.0
    %1304 = vmatpush1.msra.mxu0 0.0
    %1305 = vmatprep.subr.mxu0 0.0
    %1306 = vmatpush1.msra.mxu0 0.0
    %1307 = vmatprep.subr.mxu0 0.0
    %1308 = vmatpush1.msra.mxu0 0.0
    %1309 = vmatprep.subr.mxu0 0.0
    %1310 = vmatpush1.msra.mxu0 0.0
    %1311 = vmatprep.subr.mxu0 0.0
    %1312 = vmatpush1.msra.mxu0 0.0
    %1313 = vmatprep.subr.mxu0 0.0
    %1314 = vmatpush1.msra.mxu0 0.0
    %1315 = vmatprep.subr.mxu0 0.0
    %1316 = vmatpush1.msra.mxu0 0.0
    %1317 = vmatprep.subr.mxu0 0.0
    %1318 = vmatpush1.msra.mxu0 0.0
    %1319 = vmatprep.subr.mxu0 0.0
    %1320 = vmatpush1.msra.mxu0 0.0
    %1321 = vmatprep.subr.mxu0 0.0
    %1322 = vmatpush1.msra.mxu0 0.0
    %1323 = vmatprep.subr.mxu0 0.0
    %1324 = vmatpush1.msra.mxu0 0.0
    %1325 = vmatprep.subr.mxu0 0.0
    %1326 = vmatpush1.msra.mxu0 0.0
    %1327 = vmatprep.subr.mxu0 0.0
    %1328 = vmatpush1.msra.mxu0 0.0
    %1329 = vmatprep.subr.mxu0 0.0
    %1330 = vmatpush1.msra.mxu0 0.0
    %1331 = vmatprep.subr.mxu0 0.0
    %1332 = vmatpush1.msra.mxu0 0.0
    %1333 = vmatprep.subr.mxu0 0.0
    %1334 = vmatpush1.msra.mxu0 0.0
    %1335 = vmatprep.mubr.f32.mxu0 0.0
    %1336 = vmatmul.mubr.f32.gmra.mrb[0].mxu0 %v1269
    %v1337 = vpop.f32.mrb[0].mxu0
    %v1338 = vadd.f32 0.0, %v1337
    %v1339 = vpop.f32.mrb[0].mxu0
    %1340 = vdwg.mxu0
    %v1342 = vrot.slane %v1338, 2
    %v1344 = vadd.f32 %v276, %v1342
    %v1345 = vxor.u32 %v1344, 2147483648
    %v1346 = vmul.f32 %v1345, 1.442695
    %v1347 = vpow.pop %v1346
    %v1348 = vadd.f32 %v1347, 1.0
    %v1349 = vrcp.pop %v1348
    %v1350 = vmul.f32 1.0, %v1349
    %v1351 = vtanh.pop %v1344
    %v1353 = vrot.slane %v1146, 2
    %v1355 = vmul.f32 %v1350, %v1353
    %1357 = vrot.lane.b32.xlu0 %v1351, 32
    %v1358 = vpop.permute.xlu0 %1357
    %v1360 = vmul.f32 %v1350, %v1358
    %1362 = vrot.lane.b32.xlu0 %v1360, 32
    %v1363 = vpop.permute.xlu0 %1362
    %v1365 = vadd.f32 %v1355, %v1363
    %v1366 = vtanh.pop %v1365
    %1368 = vrot.lane.b32.xlu0 %v1366, 32
    %v1369 = vpop.permute.xlu0 %1368
    %v1371 = vmul.f32 %v1350, %v1369
    %1373 = vrot.lane.b32.xlu0 %v1371, 96
    %v1374 = vpop.permute.xlu0 %1373
    %1376 = vst.msk [vmem:[#allocation2] sm:$0xc0] %vm491, %v1374
    %v1377 = vsel %vm284, %v1264, 0
    %1379 = vmatprep.subr.mxu0 0.0
    %1380 = vmatpush1.msra.mxu0 %v171
    %1381 = vmatprep.subr.mxu0 0.0
    %1382 = vmatpush1.msra.mxu0 %v172
    %1383 = vmatprep.subr.mxu0 0.0
    %1384 = vmatpush1.msra.mxu0 %v173
    %1385 = vmatprep.subr.mxu0 0.0
    %1386 = vmatpush1.msra.mxu0 %v174
    %1387 = vmatprep.subr.mxu0 0.0
    %1388 = vmatpush1.msra.mxu0 0.0
    %1389 = vmatprep.subr.mxu0 0.0
    %1390 = vmatpush1.msra.mxu0 0.0
    %1391 = vmatprep.subr.mxu0 0.0
    %1392 = vmatpush1.msra.mxu0 0.0
    %1393 = vmatprep.subr.mxu0 0.0
    %1394 = vmatpush1.msra.mxu0 0.0
    %1395 = vmatprep.subr.mxu0 0.0
    %1396 = vmatpush1.msra.mxu0 0.0
    %1397 = vmatprep.subr.mxu0 0.0
    %1398 = vmatpush1.msra.mxu0 0.0
    %1399 = vmatprep.subr.mxu0 0.0
    %1400 = vmatpush1.msra.mxu0 0.0
    %1401 = vmatprep.subr.mxu0 0.0
    %1402 = vmatpush1.msra.mxu0 0.0
    %1403 = vmatprep.subr.mxu0 0.0
    %1404 = vmatpush1.msra.mxu0 0.0
    %1405 = vmatprep.subr.mxu0 0.0
    %1406 = vmatpush1.msra.mxu0 0.0
    %1407 = vmatprep.subr.mxu0 0.0
    %1408 = vmatpush1.msra.mxu0 0.0
    %1409 = vmatprep.subr.mxu0 0.0
    %1410 = vmatpush1.msra.mxu0 0.0
    %1411 = vmatprep.subr.mxu0 0.0
    %1412 = vmatpush1.msra.mxu0 0.0
    %1413 = vmatprep.subr.mxu0 0.0
    %1414 = vmatpush1.msra.mxu0 0.0
    %1415 = vmatprep.subr.mxu0 0.0
    %1416 = vmatpush1.msra.mxu0 0.0
    %1417 = vmatprep.subr.mxu0 0.0
    %1418 = vmatpush1.msra.mxu0 0.0
    %1419 = vmatprep.subr.mxu0 0.0
    %1420 = vmatpush1.msra.mxu0 0.0
    %1421 = vmatprep.subr.mxu0 0.0
    %1422 = vmatpush1.msra.mxu0 0.0
    %1423 = vmatprep.subr.mxu0 0.0
    %1424 = vmatpush1.msra.mxu0 0.0
    %1425 = vmatprep.subr.mxu0 0.0
    %1426 = vmatpush1.msra.mxu0 0.0
    %1427 = vmatprep.subr.mxu0 0.0
    %1428 = vmatpush1.msra.mxu0 0.0
    %1429 = vmatprep.subr.mxu0 0.0
    %1430 = vmatpush1.msra.mxu0 0.0
    %1431 = vmatprep.subr.mxu0 0.0
    %1432 = vmatpush1.msra.mxu0 0.0
    %1433 = vmatprep.subr.mxu0 0.0
    %1434 = vmatpush1.msra.mxu0 0.0
    %1435 = vmatprep.subr.mxu0 0.0
    %1436 = vmatpush1.msra.mxu0 0.0
    %1437 = vmatprep.subr.mxu0 0.0
    %1438 = vmatpush1.msra.mxu0 0.0
    %1439 = vmatprep.subr.mxu0 0.0
    %1440 = vmatpush1.msra.mxu0 0.0
    %1441 = vmatprep.subr.mxu0 0.0
    %1442 = vmatpush1.msra.mxu0 0.0
    %1443 = vmatprep.mubr.f32.mxu0 0.0
    %1444 = vmatmul.mubr.f32.gmra.mrb[0].mxu0 %v1377
    %v1445 = vpop.f32.mrb[0].mxu0
    %v1446 = vadd.f32 0.0, %v1445
    %v1447 = vpop.f32.mrb[0].mxu0
    %1448 = vdwg.mxu0
    %v1450 = vrot.slane %v1446, 6
    %v1452 = vadd.f32 %v280, %v1450
    %v1453 = vxor.u32 %v1452, 2147483648
    %v1454 = vmul.f32 %v1453, 1.442695
    %v1455 = vpow.pop %v1454
    %v1456 = vadd.f32 %v1455, 1.0
    %v1457 = vrcp.pop %v1456
    %v1458 = vmul.f32 1.0, %v1457
    %v1459 = vtanh.pop %v1452
    %v1461 = vrot.slane %v1255, 6
    %v1463 = vmul.f32 %v1458, %v1461
    %1465 = vrot.lane.b32.xlu0 %v1459, 32
    %v1466 = vpop.permute.xlu0 %1465
    %v1468 = vmul.f32 %v1458, %v1466
    %1470 = vrot.lane.b32.xlu0 %v1468, 32
    %v1471 = vpop.permute.xlu0 %1470
    %v1473 = vadd.f32 %v1463, %v1471
    %v1474 = vtanh.pop %v1473
    %1476 = vrot.lane.b32.xlu0 %v1474, 32
    %v1477 = vpop.permute.xlu0 %1476
    %v1479 = vmul.f32 %v1458, %v1477
    %1481 = vrot.lane.b32.xlu0 %v1479, 64
    %v1482 = vpop.permute.xlu0 %1481
    %1484 = vst.msk [vmem:[#allocation2 + $0x8] sm:$0xc] %vm600, %v1482
    %v1485 = vrot.slane %v1371, 6
    %1486 = vrot.lane.b32.xlu0 %v1485, 64
    %v1487 = vpop.permute.xlu0 %1486
    %v1488 = vsel %vm284, %v1487, 0
    %1490 = vmatprep.subr.mxu0 0.0
    %1491 = vmatpush1.msra.mxu0 %v175
    %1492 = vmatprep.subr.mxu0 0.0
    %1493 = vmatpush1.msra.mxu0 %v176
    %1494 = vmatprep.subr.mxu0 0.0
    %1495 = vmatpush1.msra.mxu0 %v177
    %1496 = vmatprep.subr.mxu0 0.0
    %1497 = vmatpush1.msra.mxu0 %v178
    %1498 = vmatprep.subr.mxu0 0.0
    %1499 = vmatpush1.msra.mxu0 0.0
    %1500 = vmatprep.subr.mxu0 0.0
    %1501 = vmatpush1.msra.mxu0 0.0
    %1502 = vmatprep.subr.mxu0 0.0
    %1503 = vmatpush1.msra.mxu0 0.0
    %1504 = vmatprep.subr.mxu0 0.0
    %1505 = vmatpush1.msra.mxu0 0.0
    %1506 = vmatprep.subr.mxu0 0.0
    %1507 = vmatpush1.msra.mxu0 0.0
    %1508 = vmatprep.subr.mxu0 0.0
    %1509 = vmatpush1.msra.mxu0 0.0
    %1510 = vmatprep.subr.mxu0 0.0
    %1511 = vmatpush1.msra.mxu0 0.0
    %1512 = vmatprep.subr.mxu0 0.0
    %1513 = vmatpush1.msra.mxu0 0.0
    %1514 = vmatprep.subr.mxu0 0.0
    %1515 = vmatpush1.msra.mxu0 0.0
    %1516 = vmatprep.subr.mxu0 0.0
    %1517 = vmatpush1.msra.mxu0 0.0
    %1518 = vmatprep.subr.mxu0 0.0
    %1519 = vmatpush1.msra.mxu0 0.0
    %1520 = vmatprep.subr.mxu0 0.0
    %1521 = vmatpush1.msra.mxu0 0.0
    %1522 = vmatprep.subr.mxu0 0.0
    %1523 = vmatpush1.msra.mxu0 0.0
    %1524 = vmatprep.subr.mxu0 0.0
    %1525 = vmatpush1.msra.mxu0 0.0
    %1526 = vmatprep.subr.mxu0 0.0
    %1527 = vmatpush1.msra.mxu0 0.0
    %1528 = vmatprep.subr.mxu0 0.0
    %1529 = vmatpush1.msra.mxu0 0.0
    %1530 = vmatprep.subr.mxu0 0.0
    %1531 = vmatpush1.msra.mxu0 0.0
    %1532 = vmatprep.subr.mxu0 0.0
    %1533 = vmatpush1.msra.mxu0 0.0
    %1534 = vmatprep.subr.mxu0 0.0
    %1535 = vmatpush1.msra.mxu0 0.0
    %1536 = vmatprep.subr.mxu0 0.0
    %1537 = vmatpush1.msra.mxu0 0.0
    %1538 = vmatprep.subr.mxu0 0.0
    %1539 = vmatpush1.msra.mxu0 0.0
    %1540 = vmatprep.subr.mxu0 0.0
    %1541 = vmatpush1.msra.mxu0 0.0
    %1542 = vmatprep.subr.mxu0 0.0
    %1543 = vmatpush1.msra.mxu0 0.0
    %1544 = vmatprep.subr.mxu0 0.0
    %1545 = vmatpush1.msra.mxu0 0.0
    %1546 = vmatprep.subr.mxu0 0.0
    %1547 = vmatpush1.msra.mxu0 0.0
    %1548 = vmatprep.subr.mxu0 0.0
    %1549 = vmatpush1.msra.mxu0 0.0
    %1550 = vmatprep.subr.mxu0 0.0
    %1551 = vmatpush1.msra.mxu0 0.0
    %1552 = vmatprep.subr.mxu0 0.0
    %1553 = vmatpush1.msra.mxu0 0.0
    %1554 = vmatprep.mubr.f32.mxu0 0.0
    %1555 = vmatmul.mubr.f32.gmra.mrb[0].mxu0 %v1488
    %v1556 = vpop.f32.mrb[0].mxu0
    %v1557 = vadd.f32 0.0, %v1556
    %v1558 = vpop.f32.mrb[0].mxu0
    %1559 = vdwg.mxu0
    %v1561 = vrot.slane %v1557, 4
    %v1563 = vadd.f32 %v276, %v1561
    %v1564 = vxor.u32 %v1563, 2147483648
    %v1565 = vmul.f32 %v1564, 1.442695
    %v1566 = vpow.pop %v1565
    %v1567 = vadd.f32 %v1566, 1.0
    %v1568 = vrcp.pop %v1567
    %v1569 = vmul.f32 1.0, %v1568
    %v1570 = vtanh.pop %v1563
    %v1572 = vrot.slane %v1365, 2
    %v1574 = vmul.f32 %v1569, %v1572
    %1576 = vrot.lane.b32.xlu0 %v1570, 32
    %v1577 = vpop.permute.xlu0 %1576
    %v1579 = vmul.f32 %v1569, %v1577
    %1581 = vrot.lane.b32.xlu0 %v1579, 32
    %v1582 = vpop.permute.xlu0 %1581
    %v1584 = vadd.f32 %v1574, %v1582
    %v1585 = vtanh.pop %v1584
    %1587 = vrot.lane.b32.xlu0 %v1585, 32
    %v1588 = vpop.permute.xlu0 %1587
    %v1590 = vmul.f32 %v1569, %v1588
    %1592 = vrot.lane.b32.xlu0 %v1590, 96
    %v1593 = vpop.permute.xlu0 %1592
    %1595 = vst.msk [vmem:[#allocation2] sm:$0x30] %vm712, %v1593
    %v1596 = vrot.slane %v1479, 2
    %1597 = vrot.lane.b32.xlu0 %v1596, 64
    %v1598 = vpop.permute.xlu0 %1597
    %v1599 = vsel %vm284, %v1598, 0
    %1601 = vmatprep.subr.mxu0 0.0
    %1602 = vmatpush1.msra.mxu0 %v171
    %1603 = vmatprep.subr.mxu0 0.0
    %1604 = vmatpush1.msra.mxu0 %v172
    %1605 = vmatprep.subr.mxu0 0.0
    %1606 = vmatpush1.msra.mxu0 %v173
    %1607 = vmatprep.subr.mxu0 0.0
    %1608 = vmatpush1.msra.mxu0 %v174
    %1609 = vmatprep.subr.mxu0 0.0
    %1610 = vmatpush1.msra.mxu0 0.0
    %1611 = vmatprep.subr.mxu0 0.0
    %1612 = vmatpush1.msra.mxu0 0.0
    %1613 = vmatprep.subr.mxu0 0.0
    %1614 = vmatpush1.msra.mxu0 0.0
    %1615 = vmatprep.subr.mxu0 0.0
    %1616 = vmatpush1.msra.mxu0 0.0
    %1617 = vmatprep.subr.mxu0 0.0
    %1618 = vmatpush1.msra.mxu0 0.0
    %1619 = vmatprep.subr.mxu0 0.0
    %1620 = vmatpush1.msra.mxu0 0.0
    %1621 = vmatprep.subr.mxu0 0.0
    %1622 = vmatpush1.msra.mxu0 0.0
    %1623 = vmatprep.subr.mxu0 0.0
    %1624 = vmatpush1.msra.mxu0 0.0
    %1625 = vmatprep.subr.mxu0 0.0
    %1626 = vmatpush1.msra.mxu0 0.0
    %1627 = vmatprep.subr.mxu0 0.0
    %1628 = vmatpush1.msra.mxu0 0.0
    %1629 = vmatprep.subr.mxu0 0.0
    %1630 = vmatpush1.msra.mxu0 0.0
    %1631 = vmatprep.subr.mxu0 0.0
    %1632 = vmatpush1.msra.mxu0 0.0
    %1633 = vmatprep.subr.mxu0 0.0
    %1634 = vmatpush1.msra.mxu0 0.0
    %1635 = vmatprep.subr.mxu0 0.0
    %1636 = vmatpush1.msra.mxu0 0.0
    %1637 = vmatprep.subr.mxu0 0.0
    %1638 = vmatpush1.msra.mxu0 0.0
    %1639 = vmatprep.subr.mxu0 0.0
    %1640 = vmatpush1.msra.mxu0 0.0
    %1641 = vmatprep.subr.mxu0 0.0
    %1642 = vmatpush1.msra.mxu0 0.0
    %1643 = vmatprep.subr.mxu0 0.0
    %1644 = vmatpush1.msra.mxu0 0.0
    %1645 = vmatprep.subr.mxu0 0.0
    %1646 = vmatpush1.msra.mxu0 0.0
    %1647 = vmatprep.subr.mxu0 0.0
    %1648 = vmatpush1.msra.mxu0 0.0
    %1649 = vmatprep.subr.mxu0 0.0
    %1650 = vmatpush1.msra.mxu0 0.0
    %1651 = vmatprep.subr.mxu0 0.0
    %1652 = vmatpush1.msra.mxu0 0.0
    %1653 = vmatprep.subr.mxu0 0.0
    %1654 = vmatpush1.msra.mxu0 0.0
    %1655 = vmatprep.subr.mxu0 0.0
    %1656 = vmatpush1.msra.mxu0 0.0
    %1657 = vmatprep.subr.mxu0 0.0
    %1658 = vmatpush1.msra.mxu0 0.0
    %1659 = vmatprep.subr.mxu0 0.0
    %1660 = vmatpush1.msra.mxu0 0.0
    %1661 = vmatprep.subr.mxu0 0.0
    %1662 = vmatpush1.msra.mxu0 0.0
    %1663 = vmatprep.subr.mxu0 0.0
    %1664 = vmatpush1.msra.mxu0 0.0
    %1665 = vmatprep.mubr.f32.mxu0 0.0
    %1666 = vmatmul.mubr.f32.gmra.mrb[0].mxu0 %v1599
    %v1667 = vpop.f32.mrb[0].mxu0
    %v1668 = vadd.f32 0.0, %v1667
    %v1669 = vpop.f32.mrb[0].mxu0
    %1670 = vdwg.mxu0
    %v1672 = vrot.slane %v1668, 4
    %v1674 = vadd.f32 %v280, %v1672
    %v1675 = vxor.u32 %v1674, 2147483648
    %v1676 = vmul.f32 %v1675, 1.442695
    %v1677 = vpow.pop %v1676
    %v1678 = vadd.f32 %v1677, 1.0
    %v1679 = vrcp.pop %v1678
    %v1680 = vmul.f32 1.0, %v1679
    %v1681 = vtanh.pop %v1674
    %v1683 = vrot.slane %v1473, 6
    %v1685 = vmul.f32 %v1680, %v1683
    %1687 = vrot.lane.b32.xlu0 %v1681, 32
    %v1688 = vpop.permute.xlu0 %1687
    %v1690 = vmul.f32 %v1680, %v1688
    %1692 = vrot.lane.b32.xlu0 %v1690, 32
    %v1693 = vpop.permute.xlu0 %1692
    %v1695 = vadd.f32 %v1685, %v1693
    %v1696 = vtanh.pop %v1695
    %1698 = vrot.lane.b32.xlu0 %v1696, 32
    %v1699 = vpop.permute.xlu0 %1698
    %v1701 = vmul.f32 %v1680, %v1699
    %1703 = vrot.lane.b32.xlu0 %v1701, 64
    %v1704 = vpop.permute.xlu0 %1703
    %1706 = vst.msk [vmem:[#allocation2 + $0x8] sm:$0x30] %vm824, %v1704
    %v1707 = vrot.slane %v1590, 4
    %1708 = vrot.lane.b32.xlu0 %v1707, 64
    %v1709 = vpop.permute.xlu0 %1708
    %v1710 = vsel %vm284, %v1709, 0
    %1712 = vmatprep.subr.mxu0 0.0
    %1713 = vmatpush1.msra.mxu0 %v175
    %1714 = vmatprep.subr.mxu0 0.0
    %1715 = vmatpush1.msra.mxu0 %v176
    %1716 = vmatprep.subr.mxu0 0.0
    %1717 = vmatpush1.msra.mxu0 %v177
    %1718 = vmatprep.subr.mxu0 0.0
    %1719 = vmatpush1.msra.mxu0 %v178
    %1720 = vmatprep.subr.mxu0 0.0
    %1721 = vmatpush1.msra.mxu0 0.0
    %1722 = vmatprep.subr.mxu0 0.0
    %1723 = vmatpush1.msra.mxu0 0.0
    %1724 = vmatprep.subr.mxu0 0.0
    %1725 = vmatpush1.msra.mxu0 0.0
    %1726 = vmatprep.subr.mxu0 0.0
    %1727 = vmatpush1.msra.mxu0 0.0
    %1728 = vmatprep.subr.mxu0 0.0
    %1729 = vmatpush1.msra.mxu0 0.0
    %1730 = vmatprep.subr.mxu0 0.0
    %1731 = vmatpush1.msra.mxu0 0.0
    %1732 = vmatprep.subr.mxu0 0.0
    %1733 = vmatpush1.msra.mxu0 0.0
    %1734 = vmatprep.subr.mxu0 0.0
    %1735 = vmatpush1.msra.mxu0 0.0
    %1736 = vmatprep.subr.mxu0 0.0
    %1737 = vmatpush1.msra.mxu0 0.0
    %1738 = vmatprep.subr.mxu0 0.0
    %1739 = vmatpush1.msra.mxu0 0.0
    %1740 = vmatprep.subr.mxu0 0.0
    %1741 = vmatpush1.msra.mxu0 0.0
    %1742 = vmatprep.subr.mxu0 0.0
    %1743 = vmatpush1.msra.mxu0 0.0
    %1744 = vmatprep.subr.mxu0 0.0
    %1745 = vmatpush1.msra.mxu0 0.0
    %1746 = vmatprep.subr.mxu0 0.0
    %1747 = vmatpush1.msra.mxu0 0.0
    %1748 = vmatprep.subr.mxu0 0.0
    %1749 = vmatpush1.msra.mxu0 0.0
    %1750 = vmatprep.subr.mxu0 0.0
    %1751 = vmatpush1.msra.mxu0 0.0
    %1752 = vmatprep.subr.mxu0 0.0
    %1753 = vmatpush1.msra.mxu0 0.0
    %1754 = vmatprep.subr.mxu0 0.0
    %1755 = vmatpush1.msra.mxu0 0.0
    %1756 = vmatprep.subr.mxu0 0.0
    %1757 = vmatpush1.msra.mxu0 0.0
    %1758 = vmatprep.subr.mxu0 0.0
    %1759 = vmatpush1.msra.mxu0 0.0
    %1760 = vmatprep.subr.mxu0 0.0
    %1761 = vmatpush1.msra.mxu0 0.0
    %1762 = vmatprep.subr.mxu0 0.0
    %1763 = vmatpush1.msra.mxu0 0.0
    %1764 = vmatprep.subr.mxu0 0.0
    %1765 = vmatpush1.msra.mxu0 0.0
    %1766 = vmatprep.subr.mxu0 0.0
    %1767 = vmatpush1.msra.mxu0 0.0
    %1768 = vmatprep.subr.mxu0 0.0
    %1769 = vmatpush1.msra.mxu0 0.0
    %1770 = vmatprep.subr.mxu0 0.0
    %1771 = vmatpush1.msra.mxu0 0.0
    %1772 = vmatprep.subr.mxu0 0.0
    %1773 = vmatpush1.msra.mxu0 0.0
    %1774 = vmatprep.subr.mxu0 0.0
    %1775 = vmatpush1.msra.mxu0 0.0
    %1776 = vmatprep.mubr.f32.mxu0 0.0
    %1777 = vmatmul.mubr.f32.gmra.mrb[0].mxu0 %v1710
    %v1778 = vpop.f32.mrb[0].mxu0
    %v1779 = vadd.f32 0.0, %v1778
    %v1780 = vpop.f32.mrb[0].mxu0
    %1781 = vdwg.mxu0
    %v1783 = vrot.slane %v1779, 6
    %v1785 = vadd.f32 %v276, %v1783
    %v1786 = vxor.u32 %v1785, 2147483648
    %v1787 = vmul.f32 %v1786, 1.442695
    %v1788 = vpow.pop %v1787
    %v1789 = vadd.f32 %v1788, 1.0
    %v1790 = vrcp.pop %v1789
    %v1791 = vmul.f32 1.0, %v1790
    %v1792 = vtanh.pop %v1785
    %v1794 = vrot.slane %v1584, 2
    %v1796 = vmul.f32 %v1791, %v1794
    %1798 = vrot.lane.b32.xlu0 %v1792, 32
    %v1799 = vpop.permute.xlu0 %1798
    %v1801 = vmul.f32 %v1791, %v1799
    %1803 = vrot.lane.b32.xlu0 %v1801, 32
    %v1804 = vpop.permute.xlu0 %1803
    %v1806 = vadd.f32 %v1796, %v1804
    %v1807 = vtanh.pop %v1806
    %1809 = vrot.lane.b32.xlu0 %v1807, 32
    %v1810 = vpop.permute.xlu0 %1809
    %v1812 = vmul.f32 %v1791, %v1810
    %1814 = vrot.lane.b32.xlu0 %v1812, 96
    %v1815 = vpop.permute.xlu0 %1814
    %1817 = vst.msk [vmem:[#allocation2] sm:$0xc] %vm936, %v1815
    %v1818 = vrot.slane %v1701, 4
    %1819 = vrot.lane.b32.xlu0 %v1818, 64
    %v1820 = vpop.permute.xlu0 %1819
    %v1821 = vsel %vm284, %v1820, 0
    %1823 = vmatprep.subr.mxu0 0.0
    %1824 = vmatpush1.msra.mxu0 %v171
    %1825 = vmatprep.subr.mxu0 0.0
    %1826 = vmatpush1.msra.mxu0 %v172
    %1827 = vmatprep.subr.mxu0 0.0
    %1828 = vmatpush1.msra.mxu0 %v173
    %1829 = vmatprep.subr.mxu0 0.0
    %1830 = vmatpush1.msra.mxu0 %v174
    %1831 = vmatprep.subr.mxu0 0.0
    %1832 = vmatpush1.msra.mxu0 0.0
    %1833 = vmatprep.subr.mxu0 0.0
    %1834 = vmatpush1.msra.mxu0 0.0
    %1835 = vmatprep.subr.mxu0 0.0
    %1836 = vmatpush1.msra.mxu0 0.0
    %1837 = vmatprep.subr.mxu0 0.0
    %1838 = vmatpush1.msra.mxu0 0.0
    %1839 = vmatprep.subr.mxu0 0.0
    %1840 = vmatpush1.msra.mxu0 0.0
    %1841 = vmatprep.subr.mxu0 0.0
    %1842 = vmatpush1.msra.mxu0 0.0
    %1843 = vmatprep.subr.mxu0 0.0
    %1844 = vmatpush1.msra.mxu0 0.0
    %1845 = vmatprep.subr.mxu0 0.0
    %1846 = vmatpush1.msra.mxu0 0.0
    %1847 = vmatprep.subr.mxu0 0.0
    %1848 = vmatpush1.msra.mxu0 0.0
    %1849 = vmatprep.subr.mxu0 0.0
    %1850 = vmatpush1.msra.mxu0 0.0
    %1851 = vmatprep.subr.mxu0 0.0
    %1852 = vmatpush1.msra.mxu0 0.0
    %1853 = vmatprep.subr.mxu0 0.0
    %1854 = vmatpush1.msra.mxu0 0.0
    %1855 = vmatprep.subr.mxu0 0.0
    %1856 = vmatpush1.msra.mxu0 0.0
    %1857 = vmatprep.subr.mxu0 0.0
    %1858 = vmatpush1.msra.mxu0 0.0
    %1859 = vmatprep.subr.mxu0 0.0
    %1860 = vmatpush1.msra.mxu0 0.0
    %1861 = vmatprep.subr.mxu0 0.0
    %1862 = vmatpush1.msra.mxu0 0.0
    %1863 = vmatprep.subr.mxu0 0.0
    %1864 = vmatpush1.msra.mxu0 0.0
    %1865 = vmatprep.subr.mxu0 0.0
    %1866 = vmatpush1.msra.mxu0 0.0
    %1867 = vmatprep.subr.mxu0 0.0
    %1868 = vmatpush1.msra.mxu0 0.0
    %1869 = vmatprep.subr.mxu0 0.0
    %1870 = vmatpush1.msra.mxu0 0.0
    %1871 = vmatprep.subr.mxu0 0.0
    %1872 = vmatpush1.msra.mxu0 0.0
    %1873 = vmatprep.subr.mxu0 0.0
    %1874 = vmatpush1.msra.mxu0 0.0
    %1875 = vmatprep.subr.mxu0 0.0
    %1876 = vmatpush1.msra.mxu0 0.0
    %1877 = vmatprep.subr.mxu0 0.0
    %1878 = vmatpush1.msra.mxu0 0.0
    %1879 = vmatprep.subr.mxu0 0.0
    %1880 = vmatpush1.msra.mxu0 0.0
    %1881 = vmatprep.subr.mxu0 0.0
    %1882 = vmatpush1.msra.mxu0 0.0
    %1883 = vmatprep.subr.mxu0 0.0
    %1884 = vmatpush1.msra.mxu0 0.0
    %1885 = vmatprep.subr.mxu0 0.0
    %1886 = vmatpush1.msra.mxu0 0.0
    %1887 = vmatprep.mubr.f32.mxu0 0.0
    %1888 = vmatmul.mubr.f32.gmra.mrb[0].mxu0 %v1821
    %v1889 = vpop.f32.mrb[0].mxu0
    %v1890 = vadd.f32 0.0, %v1889
    %v1891 = vpop.f32.mrb[0].mxu0
    %1892 = vdwg.mxu0
    %v1894 = vrot.slane %v1890, 2
    %v1896 = vadd.f32 %v280, %v1894
    %v1897 = vxor.u32 %v1896, 2147483648
    %v1898 = vmul.f32 %v1897, 1.442695
    %v1899 = vpow.pop %v1898
    %v1900 = vadd.f32 %v1899, 1.0
    %v1901 = vrcp.pop %v1900
    %v1902 = vmul.f32 1.0, %v1901
    %v1903 = vtanh.pop %v1896
    %v1905 = vrot.slane %v1695, 6
    %v1907 = vmul.f32 %v1902, %v1905
    %1909 = vrot.lane.b32.xlu0 %v1903, 32
    %v1910 = vpop.permute.xlu0 %1909
    %v1912 = vmul.f32 %v1902, %v1910
    %1914 = vrot.lane.b32.xlu0 %v1912, 32
    %v1915 = vpop.permute.xlu0 %1914
    %v1917 = vadd.f32 %v1907, %v1915
    %v1918 = vtanh.pop %v1917
    %1920 = vrot.lane.b32.xlu0 %v1918, 32
    %v1921 = vpop.permute.xlu0 %1920
    %v1923 = vmul.f32 %v1902, %v1921
    %1925 = vrot.lane.b32.xlu0 %v1923, 64
    %v1926 = vpop.permute.xlu0 %1925
    %1928 = vst.msk [vmem:[#allocation2 + $0x8] sm:$0xc0] %vm1048, %v1926
    %v1929 = vrot.slane %v1812, 2
    %1930 = vrot.lane.b32.xlu0 %v1929, 64
    %v1931 = vpop.permute.xlu0 %1930
    %v1932 = vsel %vm284, %v1931, 0
    %1934 = vmatprep.subr.mxu0 0.0
    %1935 = vmatpush1.msra.mxu0 %v175
    %1936 = vmatprep.subr.mxu0 0.0
    %1937 = vmatpush1.msra.mxu0 %v176
    %1938 = vmatprep.subr.mxu0 0.0
    %1939 = vmatpush1.msra.mxu0 %v177
    %1940 = vmatprep.subr.mxu0 0.0
    %1941 = vmatpush1.msra.mxu0 %v178
    %1942 = vmatprep.subr.mxu0 0.0
    %1943 = vmatpush1.msra.mxu0 0.0
    %1944 = vmatprep.subr.mxu0 0.0
    %1945 = vmatpush1.msra.mxu0 0.0
    %1946 = vmatprep.subr.mxu0 0.0
    %1947 = vmatpush1.msra.mxu0 0.0
    %1948 = vmatprep.subr.mxu0 0.0
    %1949 = vmatpush1.msra.mxu0 0.0
    %1950 = vmatprep.subr.mxu0 0.0
    %1951 = vmatpush1.msra.mxu0 0.0
    %1952 = vmatprep.subr.mxu0 0.0
    %1953 = vmatpush1.msra.mxu0 0.0
    %1954 = vmatprep.subr.mxu0 0.0
    %1955 = vmatpush1.msra.mxu0 0.0
    %1956 = vmatprep.subr.mxu0 0.0
    %1957 = vmatpush1.msra.mxu0 0.0
    %1958 = vmatprep.subr.mxu0 0.0
    %1959 = vmatpush1.msra.mxu0 0.0
    %1960 = vmatprep.subr.mxu0 0.0
    %1961 = vmatpush1.msra.mxu0 0.0
    %1962 = vmatprep.subr.mxu0 0.0
    %1963 = vmatpush1.msra.mxu0 0.0
    %1964 = vmatprep.subr.mxu0 0.0
    %1965 = vmatpush1.msra.mxu0 0.0
    %1966 = vmatprep.subr.mxu0 0.0
    %1967 = vmatpush1.msra.mxu0 0.0
    %1968 = vmatprep.subr.mxu0 0.0
    %1969 = vmatpush1.msra.mxu0 0.0
    %1970 = vmatprep.subr.mxu0 0.0
    %1971 = vmatpush1.msra.mxu0 0.0
    %1972 = vmatprep.subr.mxu0 0.0
    %1973 = vmatpush1.msra.mxu0 0.0
    %1974 = vmatprep.subr.mxu0 0.0
    %1975 = vmatpush1.msra.mxu0 0.0
    %1976 = vmatprep.subr.mxu0 0.0
    %1977 = vmatpush1.msra.mxu0 0.0
    %1978 = vmatprep.subr.mxu0 0.0
    %1979 = vmatpush1.msra.mxu0 0.0
    %1980 = vmatprep.subr.mxu0 0.0
    %1981 = vmatpush1.msra.mxu0 0.0
    %1982 = vmatprep.subr.mxu0 0.0
    %1983 = vmatpush1.msra.mxu0 0.0
    %1984 = vmatprep.subr.mxu0 0.0
    %1985 = vmatpush1.msra.mxu0 0.0
    %1986 = vmatprep.subr.mxu0 0.0
    %1987 = vmatpush1.msra.mxu0 0.0
    %1988 = vmatprep.subr.mxu0 0.0
    %1989 = vmatpush1.msra.mxu0 0.0
    %1990 = vmatprep.subr.mxu0 0.0
    %1991 = vmatpush1.msra.mxu0 0.0
    %1992 = vmatprep.subr.mxu0 0.0
    %1993 = vmatpush1.msra.mxu0 0.0
    %1994 = vmatprep.subr.mxu0 0.0
    %1995 = vmatpush1.msra.mxu0 0.0
    %1996 = vmatprep.subr.mxu0 0.0
    %1997 = vmatpush1.msra.mxu0 0.0
    %1998 = vmatprep.mubr.f32.mxu0 0.0
    %1999 = vmatmul.mubr.f32.gmra.mrb[0].mxu0 %v1932
    %v2000 = vpop.f32.mrb[0].mxu0
    %v2001 = vadd.f32 0.0, %v2000
    %v2002 = vpop.f32.mrb[0].mxu0
    %2003 = vdwg.mxu0
    %v2004 = vadd.f32 %v276, %v2001
    %v2005 = vxor.u32 %v2004, 2147483648
    %v2006 = vmul.f32 %v2005, 1.442695
    %v2007 = vpow.pop %v2006
    %v2008 = vadd.f32 %v2007, 1.0
    %v2009 = vrcp.pop %v2008
    %v2010 = vmul.f32 1.0, %v2009
    %v2011 = vtanh.pop %v2004
    %v2013 = vrot.slane %v1806, 2
    %v2015 = vmul.f32 %v2010, %v2013
    %2017 = vrot.lane.b32.xlu0 %v2011, 32
    %v2018 = vpop.permute.xlu0 %2017
    %v2020 = vmul.f32 %v2010, %v2018
    %2022 = vrot.lane.b32.xlu0 %v2020, 32
    %v2023 = vpop.permute.xlu0 %2022
    %v2025 = vadd.f32 %v2015, %v2023
    %v2026 = vtanh.pop %v2025
    %2028 = vrot.lane.b32.xlu0 %v2026, 32
    %v2029 = vpop.permute.xlu0 %2028
    %v2031 = vmul.f32 %v2010, %v2029
    %2033 = vrot.lane.b32.xlu0 %v2031, 96
    %v2034 = vpop.permute.xlu0 %2033
    %2036 = vst.msk [vmem:[#allocation2] sm:$0x3] %vm1157, %v2034
    %v2037 = vld [vmem:[#allocation2] sm:$0xff]
    %v2038 = vld [vmem:[#allocation2 + $0x8] sm:$0xff]
    %v2039 = vld [vmem:[#allocation9] sm:$0xff]
    %v2040 = vld [vmem:[#allocation9 + $0x8] sm:$0xff]
    %v2041 = vld [vmem:[#allocation9 + $0x10] sm:$0xff]
    %v2042 = vld [vmem:[#allocation9 + $0x18] sm:$0xff]
    %v2043 = vld [vmem:[#allocation11] sm:$0xff]
    %v2044 = vld [vmem:[#allocation11 + $0x8] sm:$0xff]
    %v2045 = vld [vmem:[#allocation11 + $0x10] sm:$0xff]
    %v2046 = vld [vmem:[#allocation11 + $0x18] sm:$0xff]
    %v2047 = vld [vmem:[%s5] sm:$0xff]
    %v2048 = vld [vmem:[%s5 + $0x8] sm:$0xff]
    %v2049 = vld [vmem:[%s5 + $0x10] sm:$0xff]
    %v2050 = vld [vmem:[%s5 + $0x18] sm:$0xff]
    %v2051 = vld [vmem:[%s5 + $0x20] sm:$0xff]
    %v2052 = vld [vmem:[%s5 + $0x28] sm:$0xff]
    %v2053 = vld [vmem:[%s5 + $0x30] sm:$0xff]
    %v2054 = vld [vmem:[%s5 + $0x38] sm:$0xff]
    %v2055 = vld [vmem:[%s5 + $0x40] sm:$0xff]
    %v2056 = vld [vmem:[%s5 + $0x48] sm:$0xff]
    %v2057 = vld [vmem:[%s5 + $0x50] sm:$0xff]
    %v2058 = vld [vmem:[%s5 + $0x58] sm:$0xff]
    %v2059 = vld [vmem:[%s5 + $0x60] sm:$0xff]
    %v2060 = vld [vmem:[%s5 + $0x68] sm:$0xff]
    %v2061 = vld [vmem:[%s5 + $0x70] sm:$0xff]
    %v2062 = vld [vmem:[%s5 + $0x78] sm:$0xff]
    %v2063 = vld [vmem:[%s8] sm:$0x3]
    %v2065 = vlaneseq
    %v2066 = vshrl.u32 %v2065, 7
    %v2067 = vsub.s32 0, %v2066
    %v2068 = vrot.slane %v2063, %v2067
    %v2069 = vlaneseq
    %v2070 = vshrl.u32 %v2069, 7
    %v2071 = vsub.s32 1, %v2070
    %v2072 = vrot.slane %v2063, %v2071
    %vm2075 = vcmask 523264
    %v2077 = vsel %vm2075, %v2037, 0
    %v2080 = vsel %vm2075, %v2038, 0
    %2082 = vmatprep.subr.mxu0 %v2048
    %2083 = vmatpush1.msra.mxu0 %v2047
    %2084 = vmatprep.subr.mxu0 %v2050
    %2085 = vmatpush1.msra.mxu0 %v2049
    %2086 = vmatprep.subr.mxu0 %v2052
    %2087 = vmatpush1.msra.mxu0 %v2051
    %2088 = vmatprep.subr.mxu0 %v2054
    %2089 = vmatpush1.msra.mxu0 %v2053
    %2090 = vmatprep.subr.mxu0 %v2056
    %2091 = vmatpush1.msra.mxu0 %v2055
    %2092 = vmatprep.subr.mxu0 %v2058
    %2093 = vmatpush1.msra.mxu0 %v2057
    %2094 = vmatprep.subr.mxu0 %v2060
    %2095 = vmatpush1.msra.mxu0 %v2059
    %2096 = vmatprep.subr.mxu0 %v2062
    %2097 = vmatpush1.msra.mxu0 %v2061
    %2098 = vmatprep.subr.mxu0 0.0
    %2099 = vmatpush1.msra.mxu0 0.0
    %2100 = vmatprep.subr.mxu0 0.0
    %2101 = vmatpush1.msra.mxu0 0.0
    %2102 = vmatprep.subr.mxu0 0.0
    %2103 = vmatpush1.msra.mxu0 0.0
    %2104 = vmatprep.subr.mxu0 0.0
    %2105 = vmatpush1.msra.mxu0 0.0
    %2106 = vmatprep.subr.mxu0 0.0
    %2107 = vmatpush1.msra.mxu0 0.0
    %2108 = vmatprep.subr.mxu0 0.0
    %2109 = vmatpush1.msra.mxu0 0.0
    %2110 = vmatprep.subr.mxu0 0.0
    %2111 = vmatpush1.msra.mxu0 0.0
    %2112 = vmatprep.subr.mxu0 0.0
    %2113 = vmatpush1.msra.mxu0 0.0
    %2114 = vmatprep.subr.mxu0 0.0
    %2115 = vmatpush1.msra.mxu0 0.0
    %2116 = vmatprep.subr.mxu0 0.0
    %2117 = vmatpush1.msra.mxu0 0.0
    %2118 = vmatprep.subr.mxu0 0.0
    %2119 = vmatpush1.msra.mxu0 0.0
    %2120 = vmatprep.subr.mxu0 0.0
    %2121 = vmatpush1.msra.mxu0 0.0
    %2122 = vmatprep.subr.mxu0 0.0
    %2123 = vmatpush1.msra.mxu0 0.0
    %2124 = vmatprep.subr.mxu0 0.0
    %2125 = vmatpush1.msra.mxu0 0.0
    %2126 = vmatprep.subr.mxu0 0.0
    %2127 = vmatpush1.msra.mxu0 0.0
    %2128 = vmatprep.subr.mxu0 0.0
    %2129 = vmatpush1.msra.mxu0 0.0
    %2130 = vmatprep.subr.mxu0 0.0
    %2131 = vmatpush1.msra.mxu0 0.0
    %2132 = vmatprep.subr.mxu0 0.0
    %2133 = vmatpush1.msra.mxu0 0.0
    %2134 = vmatprep.subr.mxu0 0.0
    %2135 = vmatpush1.msra.mxu0 0.0
    %2136 = vmatprep.subr.mxu0 0.0
    %2137 = vmatpush1.msra.mxu0 0.0
    %2138 = vmatprep.subr.mxu0 0.0
    %2139 = vmatpush1.msra.mxu0 0.0
    %2140 = vmatprep.subr.mxu0 0.0
    %2141 = vmatpush1.msra.mxu0 0.0
    %2142 = vmatprep.subr.mxu0 0.0
    %2143 = vmatpush1.msra.mxu0 0.0
    %2144 = vmatprep.subr.mxu0 0.0
    %2145 = vmatpush1.msra.mxu0 0.0
    %2146 = vmatprep.mubr.f32.mxu0 0.0
    %2147 = vmatmul.mubr.f32.gmra.mrb[0].mxu0 %v2077
    %v2148 = vpop.f32.mrb[0].mxu0
    %v2149 = vadd.f32 %v2068, %v2148
    %v2150 = vpop.f32.mrb[0].mxu0
    %v2151 = vadd.f32 %v2072, %v2150
    %2152 = vmatprep.mubr.f32.mxu0 0.0
    %2153 = vmatmul.mubr.f32.gmra.mrb[0].mxu0 %v2080
    %v2154 = vpop.f32.mrb[0].mxu0
    %v2155 = vadd.f32 %v2068, %v2154
    %v2156 = vpop.f32.mrb[0].mxu0
    %v2157 = vadd.f32 %v2072, %v2156
    %2158 = vdwg.mxu0
    %2159 = vmatprep.subr.mxu0 0.0
    %2160 = vmatpush1.msra.mxu0 %v2039
    %2161 = vmatprep.subr.mxu0 0.0
    %2162 = vmatpush1.msra.mxu0 %v2040
    %2163 = vmatprep.subr.mxu0 0.0
    %2164 = vmatpush1.msra.mxu0 %v2041
    %2165 = vmatprep.subr.mxu0 0.0
    %2166 = vmatpush1.msra.mxu0 %v2042
    %2167 = vmatprep.subr.mxu0 0.0
    %2168 = vmatpush1.msra.mxu0 0.0
    %2169 = vmatprep.subr.mxu0 0.0
    %2170 = vmatpush1.msra.mxu0 0.0
    %2171 = vmatprep.subr.mxu0 0.0
    %2172 = vmatpush1.msra.mxu0 0.0
    %2173 = vmatprep.subr.mxu0 0.0
    %2174 = vmatpush1.msra.mxu0 0.0
    %2175 = vmatprep.subr.mxu0 0.0
    %2176 = vmatpush1.msra.mxu0 0.0
    %2177 = vmatprep.subr.mxu0 0.0
    %2178 = vmatpush1.msra.mxu0 0.0
    %2179 = vmatprep.subr.mxu0 0.0
    %2180 = vmatpush1.msra.mxu0 0.0
    %2181 = vmatprep.subr.mxu0 0.0
    %2182 = vmatpush1.msra.mxu0 0.0
    %2183 = vmatprep.subr.mxu0 0.0
    %2184 = vmatpush1.msra.mxu0 0.0
    %2185 = vmatprep.subr.mxu0 0.0
    %2186 = vmatpush1.msra.mxu0 0.0
    %2187 = vmatprep.subr.mxu0 0.0
    %2188 = vmatpush1.msra.mxu0 0.0
    %2189 = vmatprep.subr.mxu0 0.0
    %2190 = vmatpush1.msra.mxu0 0.0
    %2191 = vmatprep.subr.mxu0 0.0
    %2192 = vmatpush1.msra.mxu0 0.0
    %2193 = vmatprep.subr.mxu0 0.0
    %2194 = vmatpush1.msra.mxu0 0.0
    %2195 = vmatprep.subr.mxu0 0.0
    %2196 = vmatpush1.msra.mxu0 0.0
    %2197 = vmatprep.subr.mxu0 0.0
    %2198 = vmatpush1.msra.mxu0 0.0
    %2199 = vmatprep.subr.mxu0 0.0
    %2200 = vmatpush1.msra.mxu0 0.0
    %2201 = vmatprep.subr.mxu0 0.0
    %2202 = vmatpush1.msra.mxu0 0.0
    %2203 = vmatprep.subr.mxu0 0.0
    %2204 = vmatpush1.msra.mxu0 0.0
    %2205 = vmatprep.subr.mxu0 0.0
    %2206 = vmatpush1.msra.mxu0 0.0
    %2207 = vmatprep.subr.mxu0 0.0
    %2208 = vmatpush1.msra.mxu0 0.0
    %2209 = vmatprep.subr.mxu0 0.0
    %2210 = vmatpush1.msra.mxu0 0.0
    %2211 = vmatprep.subr.mxu0 0.0
    %2212 = vmatpush1.msra.mxu0 0.0
    %2213 = vmatprep.subr.mxu0 0.0
    %2214 = vmatpush1.msra.mxu0 0.0
    %2215 = vmatprep.subr.mxu0 0.0
    %2216 = vmatpush1.msra.mxu0 0.0
    %2217 = vmatprep.subr.mxu0 0.0
    %2218 = vmatpush1.msra.mxu0 0.0
    %2219 = vmatprep.subr.mxu0 0.0
    %2220 = vmatpush1.msra.mxu0 0.0
    %2221 = vmatprep.subr.mxu0 0.0
    %2222 = vmatpush1.msra.mxu0 0.0
    %2223 = vmatprep.mubr.f32.mxu0 0.0
    %2224 = vmatmul.mubr.f32.gmra.mrb[0].mxu0 %v286
    %v2225 = vpop.f32.mrb[0].mxu0
    %v2226 = vadd.f32 0.0, %v2225
    %v2227 = vpop.f32.mrb[0].mxu0
    %2228 = vdwg.mxu0
    %v2229 = vadd.f32 %v2149, %v2226
    %v2230 = vxor.u32 %v2229, 2147483648
    %v2231 = vmul.f32 %v2230, 1.442695
    %v2232 = vpow.pop %v2231
    %v2233 = vadd.f32 %v2232, 1.0
    %v2234 = vrcp.pop %v2233
    %v2235 = vmul.f32 1.0, %v2234
    %v2236 = vtanh.pop %v2229
    %v2237 = vmul.f32 %v2235, 0.0
    %2239 = vrot.lane.b32.xlu0 %v2236, 32
    %v2240 = vpop.permute.xlu0 %2239
    %v2242 = vmul.f32 %v2235, %v2240
    %2244 = vrot.lane.b32.xlu0 %v2242, 32
    %v2245 = vpop.permute.xlu0 %2244
    %v2247 = vadd.f32 %v2237, %v2245
    %v2248 = vtanh.pop %v2247
    %2250 = vrot.lane.b32.xlu0 %v2248, 32
    %v2251 = vpop.permute.xlu0 %2250
    %v2253 = vmul.f32 %v2235, %v2251
    %2255 = vrot.lane.b32.xlu0 %v2253, 64
    %v2256 = vpop.permute.xlu0 %2255
    %2258 = vst.msk [vmem:[#allocation2] sm:$0x3] %vm387, %v2256
    %2259 = vmatprep.subr.mxu0 0.0
    %2260 = vmatpush1.msra.mxu0 %v2043
    %2261 = vmatprep.subr.mxu0 0.0
    %2262 = vmatpush1.msra.mxu0 %v2044
    %2263 = vmatprep.subr.mxu0 0.0
    %2264 = vmatpush1.msra.mxu0 %v2045
    %2265 = vmatprep.subr.mxu0 0.0
    %2266 = vmatpush1.msra.mxu0 %v2046
    %2267 = vmatprep.subr.mxu0 0.0
    %2268 = vmatpush1.msra.mxu0 0.0
    %2269 = vmatprep.subr.mxu0 0.0
    %2270 = vmatpush1.msra.mxu0 0.0
    %2271 = vmatprep.subr.mxu0 0.0
    %2272 = vmatpush1.msra.mxu0 0.0
    %2273 = vmatprep.subr.mxu0 0.0
    %2274 = vmatpush1.msra.mxu0 0.0
    %2275 = vmatprep.subr.mxu0 0.0
    %2276 = vmatpush1.msra.mxu0 0.0
    %2277 = vmatprep.subr.mxu0 0.0
    %2278 = vmatpush1.msra.mxu0 0.0
    %2279 = vmatprep.subr.mxu0 0.0
    %2280 = vmatpush1.msra.mxu0 0.0
    %2281 = vmatprep.subr.mxu0 0.0
    %2282 = vmatpush1.msra.mxu0 0.0
    %2283 = vmatprep.subr.mxu0 0.0
    %2284 = vmatpush1.msra.mxu0 0.0
    %2285 = vmatprep.subr.mxu0 0.0
    %2286 = vmatpush1.msra.mxu0 0.0
    %2287 = vmatprep.subr.mxu0 0.0
    %2288 = vmatpush1.msra.mxu0 0.0
    %2289 = vmatprep.subr.mxu0 0.0
    %2290 = vmatpush1.msra.mxu0 0.0
    %2291 = vmatprep.subr.mxu0 0.0
    %2292 = vmatpush1.msra.mxu0 0.0
    %2293 = vmatprep.subr.mxu0 0.0
    %2294 = vmatpush1.msra.mxu0 0.0
    %2295 = vmatprep.subr.mxu0 0.0
    %2296 = vmatpush1.msra.mxu0 0.0
    %2297 = vmatprep.subr.mxu0 0.0
    %2298 = vmatpush1.msra.mxu0 0.0
    %2299 = vmatprep.subr.mxu0 0.0
    %2300 = vmatpush1.msra.mxu0 0.0
    %2301 = vmatprep.subr.mxu0 0.0
    %2302 = vmatpush1.msra.mxu0 0.0
    %2303 = vmatprep.subr.mxu0 0.0
    %2304 = vmatpush1.msra.mxu0 0.0
    %2305 = vmatprep.subr.mxu0 0.0
    %2306 = vmatpush1.msra.mxu0 0.0
    %2307 = vmatprep.subr.mxu0 0.0
    %2308 = vmatpush1.msra.mxu0 0.0
    %2309 = vmatprep.subr.mxu0 0.0
    %2310 = vmatpush1.msra.mxu0 0.0
    %2311 = vmatprep.subr.mxu0 0.0
    %2312 = vmatpush1.msra.mxu0 0.0
    %2313 = vmatprep.subr.mxu0 0.0
    %2314 = vmatpush1.msra.mxu0 0.0
    %2315 = vmatprep.subr.mxu0 0.0
    %2316 = vmatpush1.msra.mxu0 0.0
    %2317 = vmatprep.subr.mxu0 0.0
    %2318 = vmatpush1.msra.mxu0 0.0
    %2319 = vmatprep.subr.mxu0 0.0
    %2320 = vmatpush1.msra.mxu0 0.0
    %2321 = vmatprep.subr.mxu0 0.0
    %2322 = vmatpush1.msra.mxu0 0.0
    %2323 = vmatprep.mubr.f32.mxu0 0.0
    %2324 = vmatmul.mubr.f32.gmra.mrb[0].mxu0 %v286
    %v2325 = vpop.f32.mrb[0].mxu0
    %v2326 = vadd.f32 0.0, %v2325
    %v2327 = vpop.f32.mrb[0].mxu0
    %2328 = vdwg.mxu0
    %v2330 = vrot.slane %v2326, 2
    %v2332 = vadd.f32 %v2157, %v2330
    %v2333 = vxor.u32 %v2332, 2147483648
    %v2334 = vmul.f32 %v2333, 1.442695
    %v2335 = vpow.pop %v2334
    %v2336 = vadd.f32 %v2335, 1.0
    %v2337 = vrcp.pop %v2336
    %v2338 = vmul.f32 1.0, %v2337
    %v2339 = vtanh.pop %v2332
    %v2340 = vmul.f32 %v2338, 0.0
    %2342 = vrot.lane.b32.xlu0 %v2339, 32
    %v2343 = vpop.permute.xlu0 %2342
    %v2345 = vmul.f32 %v2338, %v2343
    %2347 = vrot.lane.b32.xlu0 %v2345, 32
    %v2348 = vpop.permute.xlu0 %2347
    %v2350 = vadd.f32 %v2340, %v2348
    %v2351 = vtanh.pop %v2350
    %2353 = vrot.lane.b32.xlu0 %v2351, 32
    %v2354 = vpop.permute.xlu0 %2353
    %v2356 = vmul.f32 %v2338, %v2354
    %2358 = vrot.lane.b32.xlu0 %v2356, 96
    %v2359 = vpop.permute.xlu0 %2358
    %2361 = vst.msk [vmem:[#allocation2 + $0x8] sm:$0xc0] %vm491, %v2359
    %v2362 = vsel %vm284, %v2256, 0
    %2364 = vmatprep.subr.mxu0 0.0
    %2365 = vmatpush1.msra.mxu0 %v2039
    %2366 = vmatprep.subr.mxu0 0.0
    %2367 = vmatpush1.msra.mxu0 %v2040
    %2368 = vmatprep.subr.mxu0 0.0
    %2369 = vmatpush1.msra.mxu0 %v2041
    %2370 = vmatprep.subr.mxu0 0.0
    %2371 = vmatpush1.msra.mxu0 %v2042
    %2372 = vmatprep.subr.mxu0 0.0
    %2373 = vmatpush1.msra.mxu0 0.0
    %2374 = vmatprep.subr.mxu0 0.0
    %2375 = vmatpush1.msra.mxu0 0.0
    %2376 = vmatprep.subr.mxu0 0.0
    %2377 = vmatpush1.msra.mxu0 0.0
    %2378 = vmatprep.subr.mxu0 0.0
    %2379 = vmatpush1.msra.mxu0 0.0
    %2380 = vmatprep.subr.mxu0 0.0
    %2381 = vmatpush1.msra.mxu0 0.0
    %2382 = vmatprep.subr.mxu0 0.0
    %2383 = vmatpush1.msra.mxu0 0.0
    %2384 = vmatprep.subr.mxu0 0.0
    %2385 = vmatpush1.msra.mxu0 0.0
    %2386 = vmatprep.subr.mxu0 0.0
    %2387 = vmatpush1.msra.mxu0 0.0
    %2388 = vmatprep.subr.mxu0 0.0
    %2389 = vmatpush1.msra.mxu0 0.0
    %2390 = vmatprep.subr.mxu0 0.0
    %2391 = vmatpush1.msra.mxu0 0.0
    %2392 = vmatprep.subr.mxu0 0.0
    %2393 = vmatpush1.msra.mxu0 0.0
    %2394 = vmatprep.subr.mxu0 0.0
    %2395 = vmatpush1.msra.mxu0 0.0
    %2396 = vmatprep.subr.mxu0 0.0
    %2397 = vmatpush1.msra.mxu0 0.0
    %2398 = vmatprep.subr.mxu0 0.0
    %2399 = vmatpush1.msra.mxu0 0.0
    %2400 = vmatprep.subr.mxu0 0.0
    %2401 = vmatpush1.msra.mxu0 0.0
    %2402 = vmatprep.subr.mxu0 0.0
    %2403 = vmatpush1.msra.mxu0 0.0
    %2404 = vmatprep.subr.mxu0 0.0
    %2405 = vmatpush1.msra.mxu0 0.0
    %2406 = vmatprep.subr.mxu0 0.0
    %2407 = vmatpush1.msra.mxu0 0.0
    %2408 = vmatprep.subr.mxu0 0.0
    %2409 = vmatpush1.msra.mxu0 0.0
    %2410 = vmatprep.subr.mxu0 0.0
    %2411 = vmatpush1.msra.mxu0 0.0
    %2412 = vmatprep.subr.mxu0 0.0
    %2413 = vmatpush1.msra.mxu0 0.0
    %2414 = vmatprep.subr.mxu0 0.0
    %2415 = vmatpush1.msra.mxu0 0.0
    %2416 = vmatprep.subr.mxu0 0.0
    %2417 = vmatpush1.msra.mxu0 0.0
    %2418 = vmatprep.subr.mxu0 0.0
    %2419 = vmatpush1.msra.mxu0 0.0
    %2420 = vmatprep.subr.mxu0 0.0
    %2421 = vmatpush1.msra.mxu0 0.0
    %2422 = vmatprep.subr.mxu0 0.0
    %2423 = vmatpush1.msra.mxu0 0.0
    %2424 = vmatprep.subr.mxu0 0.0
    %2425 = vmatpush1.msra.mxu0 0.0
    %2426 = vmatprep.subr.mxu0 0.0
    %2427 = vmatpush1.msra.mxu0 0.0
    %2428 = vmatprep.mubr.f32.mxu0 0.0
    %2429 = vmatmul.mubr.f32.gmra.mrb[0].mxu0 %v2362
    %v2430 = vpop.f32.mrb[0].mxu0
    %v2431 = vadd.f32 0.0, %v2430
    %v2432 = vpop.f32.mrb[0].mxu0
    %2433 = vdwg.mxu0
    %v2435 = vrot.slane %v2431, 6
    %v2437 = vadd.f32 %v2149, %v2435
    %v2438 = vxor.u32 %v2437, 2147483648
    %v2439 = vmul.f32 %v2438, 1.442695
    %v2440 = vpow.pop %v2439
    %v2441 = vadd.f32 %v2440, 1.0
    %v2442 = vrcp.pop %v2441
    %v2443 = vmul.f32 1.0, %v2442
    %v2444 = vtanh.pop %v2437
    %v2446 = vrot.slane %v2247, 6
    %v2448 = vmul.f32 %v2443, %v2446
    %2450 = vrot.lane.b32.xlu0 %v2444, 32
    %v2451 = vpop.permute.xlu0 %2450
    %v2453 = vmul.f32 %v2443, %v2451
    %2455 = vrot.lane.b32.xlu0 %v2453, 32
    %v2456 = vpop.permute.xlu0 %2455
    %v2458 = vadd.f32 %v2448, %v2456
    %v2459 = vtanh.pop %v2458
    %2461 = vrot.lane.b32.xlu0 %v2459, 32
    %v2462 = vpop.permute.xlu0 %2461
    %v2464 = vmul.f32 %v2443, %v2462
    %2466 = vrot.lane.b32.xlu0 %v2464, 64
    %v2467 = vpop.permute.xlu0 %2466
    %2469 = vst.msk [vmem:[#allocation2] sm:$0xc] %vm600, %v2467
    %v2470 = vrot.slane %v2356, 6
    %2471 = vrot.lane.b32.xlu0 %v2470, 64
    %v2472 = vpop.permute.xlu0 %2471
    %v2473 = vsel %vm284, %v2472, 0
    %2475 = vmatprep.subr.mxu0 0.0
    %2476 = vmatpush1.msra.mxu0 %v2043
    %2477 = vmatprep.subr.mxu0 0.0
    %2478 = vmatpush1.msra.mxu0 %v2044
    %2479 = vmatprep.subr.mxu0 0.0
    %2480 = vmatpush1.msra.mxu0 %v2045
    %2481 = vmatprep.subr.mxu0 0.0
    %2482 = vmatpush1.msra.mxu0 %v2046
    %2483 = vmatprep.subr.mxu0 0.0
    %2484 = vmatpush1.msra.mxu0 0.0
    %2485 = vmatprep.subr.mxu0 0.0
    %2486 = vmatpush1.msra.mxu0 0.0
    %2487 = vmatprep.subr.mxu0 0.0
    %2488 = vmatpush1.msra.mxu0 0.0
    %2489 = vmatprep.subr.mxu0 0.0
    %2490 = vmatpush1.msra.mxu0 0.0
    %2491 = vmatprep.subr.mxu0 0.0
    %2492 = vmatpush1.msra.mxu0 0.0
    %2493 = vmatprep.subr.mxu0 0.0
    %2494 = vmatpush1.msra.mxu0 0.0
    %2495 = vmatprep.subr.mxu0 0.0
    %2496 = vmatpush1.msra.mxu0 0.0
    %2497 = vmatprep.subr.mxu0 0.0
    %2498 = vmatpush1.msra.mxu0 0.0
    %2499 = vmatprep.subr.mxu0 0.0
    %2500 = vmatpush1.msra.mxu0 0.0
    %2501 = vmatprep.subr.mxu0 0.0
    %2502 = vmatpush1.msra.mxu0 0.0
    %2503 = vmatprep.subr.mxu0 0.0
    %2504 = vmatpush1.msra.mxu0 0.0
    %2505 = vmatprep.subr.mxu0 0.0
    %2506 = vmatpush1.msra.mxu0 0.0
    %2507 = vmatprep.subr.mxu0 0.0
    %2508 = vmatpush1.msra.mxu0 0.0
    %2509 = vmatprep.subr.mxu0 0.0
    %2510 = vmatpush1.msra.mxu0 0.0
    %2511 = vmatprep.subr.mxu0 0.0
    %2512 = vmatpush1.msra.mxu0 0.0
    %2513 = vmatprep.subr.mxu0 0.0
    %2514 = vmatpush1.msra.mxu0 0.0
    %2515 = vmatprep.subr.mxu0 0.0
    %2516 = vmatpush1.msra.mxu0 0.0
    %2517 = vmatprep.subr.mxu0 0.0
    %2518 = vmatpush1.msra.mxu0 0.0
    %2519 = vmatprep.subr.mxu0 0.0
    %2520 = vmatpush1.msra.mxu0 0.0
    %2521 = vmatprep.subr.mxu0 0.0
    %2522 = vmatpush1.msra.mxu0 0.0
    %2523 = vmatprep.subr.mxu0 0.0
    %2524 = vmatpush1.msra.mxu0 0.0
    %2525 = vmatprep.subr.mxu0 0.0
    %2526 = vmatpush1.msra.mxu0 0.0
    %2527 = vmatprep.subr.mxu0 0.0
    %2528 = vmatpush1.msra.mxu0 0.0
    %2529 = vmatprep.subr.mxu0 0.0
    %2530 = vmatpush1.msra.mxu0 0.0
    %2531 = vmatprep.subr.mxu0 0.0
    %2532 = vmatpush1.msra.mxu0 0.0
    %2533 = vmatprep.subr.mxu0 0.0
    %2534 = vmatpush1.msra.mxu0 0.0
    %2535 = vmatprep.subr.mxu0 0.0
    %2536 = vmatpush1.msra.mxu0 0.0
    %2537 = vmatprep.subr.mxu0 0.0
    %2538 = vmatpush1.msra.mxu0 0.0
    %2539 = vmatprep.mubr.f32.mxu0 0.0
    %2540 = vmatmul.mubr.f32.gmra.mrb[0].mxu0 %v2473
    %v2541 = vpop.f32.mrb[0].mxu0
    %v2542 = vadd.f32 0.0, %v2541
    %v2543 = vpop.f32.mrb[0].mxu0
    %2544 = vdwg.mxu0
    %v2546 = vrot.slane %v2542, 4
    %v2548 = vadd.f32 %v2157, %v2546
    %v2549 = vxor.u32 %v2548, 2147483648
    %v2550 = vmul.f32 %v2549, 1.442695
    %v2551 = vpow.pop %v2550
    %v2552 = vadd.f32 %v2551, 1.0
    %v2553 = vrcp.pop %v2552
    %v2554 = vmul.f32 1.0, %v2553
    %v2555 = vtanh.pop %v2548
    %v2557 = vrot.slane %v2350, 2
    %v2559 = vmul.f32 %v2554, %v2557
    %2561 = vrot.lane.b32.xlu0 %v2555, 32
    %v2562 = vpop.permute.xlu0 %2561
    %v2564 = vmul.f32 %v2554, %v2562
    %2566 = vrot.lane.b32.xlu0 %v2564, 32
    %v2567 = vpop.permute.xlu0 %2566
    %v2569 = vadd.f32 %v2559, %v2567
    %v2570 = vtanh.pop %v2569
    %2572 = vrot.lane.b32.xlu0 %v2570, 32
    %v2573 = vpop.permute.xlu0 %2572
    %v2575 = vmul.f32 %v2554, %v2573
    %2577 = vrot.lane.b32.xlu0 %v2575, 96
    %v2578 = vpop.permute.xlu0 %2577
    %2580 = vst.msk [vmem:[#allocation2 + $0x8] sm:$0x30] %vm712, %v2578
    %v2581 = vrot.slane %v2464, 2
    %2582 = vrot.lane.b32.xlu0 %v2581, 64
    %v2583 = vpop.permute.xlu0 %2582
    %v2584 = vsel %vm284, %v2583, 0
    %2586 = vmatprep.subr.mxu0 0.0
    %2587 = vmatpush1.msra.mxu0 %v2039
    %2588 = vmatprep.subr.mxu0 0.0
    %2589 = vmatpush1.msra.mxu0 %v2040
    %2590 = vmatprep.subr.mxu0 0.0
    %2591 = vmatpush1.msra.mxu0 %v2041
    %2592 = vmatprep.subr.mxu0 0.0
    %2593 = vmatpush1.msra.mxu0 %v2042
    %2594 = vmatprep.subr.mxu0 0.0
    %2595 = vmatpush1.msra.mxu0 0.0
    %2596 = vmatprep.subr.mxu0 0.0
    %2597 = vmatpush1.msra.mxu0 0.0
    %2598 = vmatprep.subr.mxu0 0.0
    %2599 = vmatpush1.msra.mxu0 0.0
    %2600 = vmatprep.subr.mxu0 0.0
    %2601 = vmatpush1.msra.mxu0 0.0
    %2602 = vmatprep.subr.mxu0 0.0
    %2603 = vmatpush1.msra.mxu0 0.0
    %2604 = vmatprep.subr.mxu0 0.0
    %2605 = vmatpush1.msra.mxu0 0.0
    %2606 = vmatprep.subr.mxu0 0.0
    %2607 = vmatpush1.msra.mxu0 0.0
    %2608 = vmatprep.subr.mxu0 0.0
    %2609 = vmatpush1.msra.mxu0 0.0
    %2610 = vmatprep.subr.mxu0 0.0
    %2611 = vmatpush1.msra.mxu0 0.0
    %2612 = vmatprep.subr.mxu0 0.0
    %2613 = vmatpush1.msra.mxu0 0.0
    %2614 = vmatprep.subr.mxu0 0.0
    %2615 = vmatpush1.msra.mxu0 0.0
    %2616 = vmatprep.subr.mxu0 0.0
    %2617 = vmatpush1.msra.mxu0 0.0
    %2618 = vmatprep.subr.mxu0 0.0
    %2619 = vmatpush1.msra.mxu0 0.0
    %2620 = vmatprep.subr.mxu0 0.0
    %2621 = vmatpush1.msra.mxu0 0.0
    %2622 = vmatprep.subr.mxu0 0.0
    %2623 = vmatpush1.msra.mxu0 0.0
    %2624 = vmatprep.subr.mxu0 0.0
    %2625 = vmatpush1.msra.mxu0 0.0
    %2626 = vmatprep.subr.mxu0 0.0
    %2627 = vmatpush1.msra.mxu0 0.0
    %2628 = vmatprep.subr.mxu0 0.0
    %2629 = vmatpush1.msra.mxu0 0.0
    %2630 = vmatprep.subr.mxu0 0.0
    %2631 = vmatpush1.msra.mxu0 0.0
    %2632 = vmatprep.subr.mxu0 0.0
    %2633 = vmatpush1.msra.mxu0 0.0
    %2634 = vmatprep.subr.mxu0 0.0
    %2635 = vmatpush1.msra.mxu0 0.0
    %2636 = vmatprep.subr.mxu0 0.0
    %2637 = vmatpush1.msra.mxu0 0.0
    %2638 = vmatprep.subr.mxu0 0.0
    %2639 = vmatpush1.msra.mxu0 0.0
    %2640 = vmatprep.subr.mxu0 0.0
    %2641 = vmatpush1.msra.mxu0 0.0
    %2642 = vmatprep.subr.mxu0 0.0
    %2643 = vmatpush1.msra.mxu0 0.0
    %2644 = vmatprep.subr.mxu0 0.0
    %2645 = vmatpush1.msra.mxu0 0.0
    %2646 = vmatprep.subr.mxu0 0.0
    %2647 = vmatpush1.msra.mxu0 0.0
    %2648 = vmatprep.subr.mxu0 0.0
    %2649 = vmatpush1.msra.mxu0 0.0
    %2650 = vmatprep.mubr.f32.mxu0 0.0
    %2651 = vmatmul.mubr.f32.gmra.mrb[0].mxu0 %v2584
    %v2652 = vpop.f32.mrb[0].mxu0
    %v2653 = vadd.f32 0.0, %v2652
    %v2654 = vpop.f32.mrb[0].mxu0
    %2655 = vdwg.mxu0
    %v2657 = vrot.slane %v2653, 4
    %v2659 = vadd.f32 %v2149, %v2657
    %v2660 = vxor.u32 %v2659, 2147483648
    %v2661 = vmul.f32 %v2660, 1.442695
    %v2662 = vpow.pop %v2661
    %v2663 = vadd.f32 %v2662, 1.0
    %v2664 = vrcp.pop %v2663
    %v2665 = vmul.f32 1.0, %v2664
    %v2666 = vtanh.pop %v2659
    %v2668 = vrot.slane %v2458, 6
    %v2670 = vmul.f32 %v2665, %v2668
    %2672 = vrot.lane.b32.xlu0 %v2666, 32
    %v2673 = vpop.permute.xlu0 %2672
    %v2675 = vmul.f32 %v2665, %v2673
    %2677 = vrot.lane.b32.xlu0 %v2675, 32
    %v2678 = vpop.permute.xlu0 %2677
    %v2680 = vadd.f32 %v2670, %v2678
    %v2681 = vtanh.pop %v2680
    %2683 = vrot.lane.b32.xlu0 %v2681, 32
    %v2684 = vpop.permute.xlu0 %2683
    %v2686 = vmul.f32 %v2665, %v2684
    %2688 = vrot.lane.b32.xlu0 %v2686, 64
    %v2689 = vpop.permute.xlu0 %2688
    %2691 = vst.msk [vmem:[#allocation2] sm:$0x30] %vm824, %v2689
    %v2692 = vrot.slane %v2575, 4
    %2693 = vrot.lane.b32.xlu0 %v2692, 64
    %v2694 = vpop.permute.xlu0 %2693
    %v2695 = vsel %vm284, %v2694, 0
    %2697 = vmatprep.subr.mxu0 0.0
    %2698 = vmatpush1.msra.mxu0 %v2043
    %2699 = vmatprep.subr.mxu0 0.0
    %2700 = vmatpush1.msra.mxu0 %v2044
    %2701 = vmatprep.subr.mxu0 0.0
    %2702 = vmatpush1.msra.mxu0 %v2045
    %2703 = vmatprep.subr.mxu0 0.0
    %2704 = vmatpush1.msra.mxu0 %v2046
    %2705 = vmatprep.subr.mxu0 0.0
    %2706 = vmatpush1.msra.mxu0 0.0
    %2707 = vmatprep.subr.mxu0 0.0
    %2708 = vmatpush1.msra.mxu0 0.0
    %2709 = vmatprep.subr.mxu0 0.0
    %2710 = vmatpush1.msra.mxu0 0.0
    %2711 = vmatprep.subr.mxu0 0.0
    %2712 = vmatpush1.msra.mxu0 0.0
    %2713 = vmatprep.subr.mxu0 0.0
    %2714 = vmatpush1.msra.mxu0 0.0
    %2715 = vmatprep.subr.mxu0 0.0
    %2716 = vmatpush1.msra.mxu0 0.0
    %2717 = vmatprep.subr.mxu0 0.0
    %2718 = vmatpush1.msra.mxu0 0.0
    %2719 = vmatprep.subr.mxu0 0.0
    %2720 = vmatpush1.msra.mxu0 0.0
    %2721 = vmatprep.subr.mxu0 0.0
    %2722 = vmatpush1.msra.mxu0 0.0
    %2723 = vmatprep.subr.mxu0 0.0
    %2724 = vmatpush1.msra.mxu0 0.0
    %2725 = vmatprep.subr.mxu0 0.0
    %2726 = vmatpush1.msra.mxu0 0.0
    %2727 = vmatprep.subr.mxu0 0.0
    %2728 = vmatpush1.msra.mxu0 0.0
    %2729 = vmatprep.subr.mxu0 0.0
    %2730 = vmatpush1.msra.mxu0 0.0
    %2731 = vmatprep.subr.mxu0 0.0
    %2732 = vmatpush1.msra.mxu0 0.0
    %2733 = vmatprep.subr.mxu0 0.0
    %2734 = vmatpush1.msra.mxu0 0.0
    %2735 = vmatprep.subr.mxu0 0.0
    %2736 = vmatpush1.msra.mxu0 0.0
    %2737 = vmatprep.subr.mxu0 0.0
    %2738 = vmatpush1.msra.mxu0 0.0
    %2739 = vmatprep.subr.mxu0 0.0
    %2740 = vmatpush1.msra.mxu0 0.0
    %2741 = vmatprep.subr.mxu0 0.0
    %2742 = vmatpush1.msra.mxu0 0.0
    %2743 = vmatprep.subr.mxu0 0.0
    %2744 = vmatpush1.msra.mxu0 0.0
    %2745 = vmatprep.subr.mxu0 0.0
    %2746 = vmatpush1.msra.mxu0 0.0
    %2747 = vmatprep.subr.mxu0 0.0
    %2748 = vmatpush1.msra.mxu0 0.0
    %2749 = vmatprep.subr.mxu0 0.0
    %2750 = vmatpush1.msra.mxu0 0.0
    %2751 = vmatprep.subr.mxu0 0.0
    %2752 = vmatpush1.msra.mxu0 0.0
    %2753 = vmatprep.subr.mxu0 0.0
    %2754 = vmatpush1.msra.mxu0 0.0
    %2755 = vmatprep.subr.mxu0 0.0
    %2756 = vmatpush1.msra.mxu0 0.0
    %2757 = vmatprep.subr.mxu0 0.0
    %2758 = vmatpush1.msra.mxu0 0.0
    %2759 = vmatprep.subr.mxu0 0.0
    %2760 = vmatpush1.msra.mxu0 0.0
    %2761 = vmatprep.mubr.f32.mxu0 0.0
    %2762 = vmatmul.mubr.f32.gmra.mrb[0].mxu0 %v2695
    %v2763 = vpop.f32.mrb[0].mxu0
    %v2764 = vadd.f32 0.0, %v2763
    %v2765 = vpop.f32.mrb[0].mxu0
    %2766 = vdwg.mxu0
    %v2768 = vrot.slane %v2764, 6
    %v2770 = vadd.f32 %v2157, %v2768
    %v2771 = vxor.u32 %v2770, 2147483648
    %v2772 = vmul.f32 %v2771, 1.442695
    %v2773 = vpow.pop %v2772
    %v2774 = vadd.f32 %v2773, 1.0
    %v2775 = vrcp.pop %v2774
    %v2776 = vmul.f32 1.0, %v2775
    %v2777 = vtanh.pop %v2770
    %v2779 = vrot.slane %v2569, 2
    %v2781 = vmul.f32 %v2776, %v2779
    %2783 = vrot.lane.b32.xlu0 %v2777, 32
    %v2784 = vpop.permute.xlu0 %2783
    %v2786 = vmul.f32 %v2776, %v2784
    %2788 = vrot.lane.b32.xlu0 %v2786, 32
    %v2789 = vpop.permute.xlu0 %2788
    %v2791 = vadd.f32 %v2781, %v2789
    %v2792 = vtanh.pop %v2791
    %2794 = vrot.lane.b32.xlu0 %v2792, 32
    %v2795 = vpop.permute.xlu0 %2794
    %v2797 = vmul.f32 %v2776, %v2795
    %2799 = vrot.lane.b32.xlu0 %v2797, 96
    %v2800 = vpop.permute.xlu0 %2799
    %2802 = vst.msk [vmem:[#allocation2 + $0x8] sm:$0xc] %vm936, %v2800
    %v2803 = vrot.slane %v2686, 4
    %2804 = vrot.lane.b32.xlu0 %v2803, 64
    %v2805 = vpop.permute.xlu0 %2804
    %v2806 = vsel %vm284, %v2805, 0
    %2808 = vmatprep.subr.mxu0 0.0
    %2809 = vmatpush1.msra.mxu0 %v2039
    %2810 = vmatprep.subr.mxu0 0.0
    %2811 = vmatpush1.msra.mxu0 %v2040
    %2812 = vmatprep.subr.mxu0 0.0
    %2813 = vmatpush1.msra.mxu0 %v2041
    %2814 = vmatprep.subr.mxu0 0.0
    %2815 = vmatpush1.msra.mxu0 %v2042
    %2816 = vmatprep.subr.mxu0 0.0
    %2817 = vmatpush1.msra.mxu0 0.0
    %2818 = vmatprep.subr.mxu0 0.0
    %2819 = vmatpush1.msra.mxu0 0.0
    %2820 = vmatprep.subr.mxu0 0.0
    %2821 = vmatpush1.msra.mxu0 0.0
    %2822 = vmatprep.subr.mxu0 0.0
    %2823 = vmatpush1.msra.mxu0 0.0
    %2824 = vmatprep.subr.mxu0 0.0
    %2825 = vmatpush1.msra.mxu0 0.0
    %2826 = vmatprep.subr.mxu0 0.0
    %2827 = vmatpush1.msra.mxu0 0.0
    %2828 = vmatprep.subr.mxu0 0.0
    %2829 = vmatpush1.msra.mxu0 0.0
    %2830 = vmatprep.subr.mxu0 0.0
    %2831 = vmatpush1.msra.mxu0 0.0
    %2832 = vmatprep.subr.mxu0 0.0
    %2833 = vmatpush1.msra.mxu0 0.0
    %2834 = vmatprep.subr.mxu0 0.0
    %2835 = vmatpush1.msra.mxu0 0.0
    %2836 = vmatprep.subr.mxu0 0.0
    %2837 = vmatpush1.msra.mxu0 0.0
    %2838 = vmatprep.subr.mxu0 0.0
    %2839 = vmatpush1.msra.mxu0 0.0
    %2840 = vmatprep.subr.mxu0 0.0
    %2841 = vmatpush1.msra.mxu0 0.0
    %2842 = vmatprep.subr.mxu0 0.0
    %2843 = vmatpush1.msra.mxu0 0.0
    %2844 = vmatprep.subr.mxu0 0.0
    %2845 = vmatpush1.msra.mxu0 0.0
    %2846 = vmatprep.subr.mxu0 0.0
    %2847 = vmatpush1.msra.mxu0 0.0
    %2848 = vmatprep.subr.mxu0 0.0
    %2849 = vmatpush1.msra.mxu0 0.0
    %2850 = vmatprep.subr.mxu0 0.0
    %2851 = vmatpush1.msra.mxu0 0.0
    %2852 = vmatprep.subr.mxu0 0.0
    %2853 = vmatpush1.msra.mxu0 0.0
    %2854 = vmatprep.subr.mxu0 0.0
    %2855 = vmatpush1.msra.mxu0 0.0
    %2856 = vmatprep.subr.mxu0 0.0
    %2857 = vmatpush1.msra.mxu0 0.0
    %2858 = vmatprep.subr.mxu0 0.0
    %2859 = vmatpush1.msra.mxu0 0.0
    %2860 = vmatprep.subr.mxu0 0.0
    %2861 = vmatpush1.msra.mxu0 0.0
    %2862 = vmatprep.subr.mxu0 0.0
    %2863 = vmatpush1.msra.mxu0 0.0
    %2864 = vmatprep.subr.mxu0 0.0
    %2865 = vmatpush1.msra.mxu0 0.0
    %2866 = vmatprep.subr.mxu0 0.0
    %2867 = vmatpush1.msra.mxu0 0.0
    %2868 = vmatprep.subr.mxu0 0.0
    %2869 = vmatpush1.msra.mxu0 0.0
    %2870 = vmatprep.subr.mxu0 0.0
    %2871 = vmatpush1.msra.mxu0 0.0
    %2872 = vmatprep.mubr.f32.mxu0 0.0
    %2873 = vmatmul.mubr.f32.gmra.mrb[0].mxu0 %v2806
    %v2874 = vpop.f32.mrb[0].mxu0
    %v2875 = vadd.f32 0.0, %v2874
    %v2876 = vpop.f32.mrb[0].mxu0
    %2877 = vdwg.mxu0
    %v2879 = vrot.slane %v2875, 2
    %v2881 = vadd.f32 %v2149, %v2879
    %v2882 = vxor.u32 %v2881, 2147483648
    %v2883 = vmul.f32 %v2882, 1.442695
    %v2884 = vpow.pop %v2883
    %v2885 = vadd.f32 %v2884, 1.0
    %v2886 = vrcp.pop %v2885
    %v2887 = vmul.f32 1.0, %v2886
    %v2888 = vtanh.pop %v2881
    %v2890 = vrot.slane %v2680, 6
    %v2892 = vmul.f32 %v2887, %v2890
    %2894 = vrot.lane.b32.xlu0 %v2888, 32
    %v2895 = vpop.permute.xlu0 %2894
    %v2897 = vmul.f32 %v2887, %v2895
    %2899 = vrot.lane.b32.xlu0 %v2897, 32
    %v2900 = vpop.permute.xlu0 %2899
    %v2902 = vadd.f32 %v2892, %v2900
    %v2903 = vtanh.pop %v2902
    %2905 = vrot.lane.b32.xlu0 %v2903, 32
    %v2906 = vpop.permute.xlu0 %2905
    %v2908 = vmul.f32 %v2887, %v2906
    %2910 = vrot.lane.b32.xlu0 %v2908, 64
    %v2911 = vpop.permute.xlu0 %2910
    %2913 = vst.msk [vmem:[#allocation2] sm:$0xc0] %vm1048, %v2911
    %v2914 = vrot.slane %v2797, 2
    %2915 = vrot.lane.b32.xlu0 %v2914, 64
    %v2916 = vpop.permute.xlu0 %2915
    %v2917 = vsel %vm284, %v2916, 0
    %2919 = vmatprep.subr.mxu0 0.0
    %2920 = vmatpush1.msra.mxu0 %v2043
    %2921 = vmatprep.subr.mxu0 0.0
    %2922 = vmatpush1.msra.mxu0 %v2044
    %2923 = vmatprep.subr.mxu0 0.0
    %2924 = vmatpush1.msra.mxu0 %v2045
    %2925 = vmatprep.subr.mxu0 0.0
    %2926 = vmatpush1.msra.mxu0 %v2046
    %2927 = vmatprep.subr.mxu0 0.0
    %2928 = vmatpush1.msra.mxu0 0.0
    %2929 = vmatprep.subr.mxu0 0.0
    %2930 = vmatpush1.msra.mxu0 0.0
    %2931 = vmatprep.subr.mxu0 0.0
    %2932 = vmatpush1.msra.mxu0 0.0
    %2933 = vmatprep.subr.mxu0 0.0
    %2934 = vmatpush1.msra.mxu0 0.0
    %2935 = vmatprep.subr.mxu0 0.0
    %2936 = vmatpush1.msra.mxu0 0.0
    %2937 = vmatprep.subr.mxu0 0.0
    %2938 = vmatpush1.msra.mxu0 0.0
    %2939 = vmatprep.subr.mxu0 0.0
    %2940 = vmatpush1.msra.mxu0 0.0
    %2941 = vmatprep.subr.mxu0 0.0
    %2942 = vmatpush1.msra.mxu0 0.0
    %2943 = vmatprep.subr.mxu0 0.0
    %2944 = vmatpush1.msra.mxu0 0.0
    %2945 = vmatprep.subr.mxu0 0.0
    %2946 = vmatpush1.msra.mxu0 0.0
    %2947 = vmatprep.subr.mxu0 0.0
    %2948 = vmatpush1.msra.mxu0 0.0
    %2949 = vmatprep.subr.mxu0 0.0
    %2950 = vmatpush1.msra.mxu0 0.0
    %2951 = vmatprep.subr.mxu0 0.0
    %2952 = vmatpush1.msra.mxu0 0.0
    %2953 = vmatprep.subr.mxu0 0.0
    %2954 = vmatpush1.msra.mxu0 0.0
    %2955 = vmatprep.subr.mxu0 0.0
    %2956 = vmatpush1.msra.mxu0 0.0
    %2957 = vmatprep.subr.mxu0 0.0
    %2958 = vmatpush1.msra.mxu0 0.0
    %2959 = vmatprep.subr.mxu0 0.0
    %2960 = vmatpush1.msra.mxu0 0.0
    %2961 = vmatprep.subr.mxu0 0.0
    %2962 = vmatpush1.msra.mxu0 0.0
    %2963 = vmatprep.subr.mxu0 0.0
    %2964 = vmatpush1.msra.mxu0 0.0
    %2965 = vmatprep.subr.mxu0 0.0
    %2966 = vmatpush1.msra.mxu0 0.0
    %2967 = vmatprep.subr.mxu0 0.0
    %2968 = vmatpush1.msra.mxu0 0.0
    %2969 = vmatprep.subr.mxu0 0.0
    %2970 = vmatpush1.msra.mxu0 0.0
    %2971 = vmatprep.subr.mxu0 0.0
    %2972 = vmatpush1.msra.mxu0 0.0
    %2973 = vmatprep.subr.mxu0 0.0
    %2974 = vmatpush1.msra.mxu0 0.0
    %2975 = vmatprep.subr.mxu0 0.0
    %2976 = vmatpush1.msra.mxu0 0.0
    %2977 = vmatprep.subr.mxu0 0.0
    %2978 = vmatpush1.msra.mxu0 0.0
    %2979 = vmatprep.subr.mxu0 0.0
    %2980 = vmatpush1.msra.mxu0 0.0
    %2981 = vmatprep.subr.mxu0 0.0
    %2982 = vmatpush1.msra.mxu0 0.0
    %2983 = vmatprep.mubr.f32.mxu0 0.0
    %2984 = vmatmul.mubr.f32.gmra.mrb[0].mxu0 %v2917
    %v2985 = vpop.f32.mrb[0].mxu0
    %v2986 = vadd.f32 0.0, %v2985
    %v2987 = vpop.f32.mrb[0].mxu0
    %2988 = vdwg.mxu0
    %v2989 = vadd.f32 %v2157, %v2986
    %v2990 = vxor.u32 %v2989, 2147483648
    %v2991 = vmul.f32 %v2990, 1.442695
    %v2992 = vpow.pop %v2991
    %v2993 = vadd.f32 %v2992, 1.0
    %v2994 = vrcp.pop %v2993
    %v2995 = vmul.f32 1.0, %v2994
    %v2996 = vtanh.pop %v2989
    %v2998 = vrot.slane %v2791, 2
    %v3000 = vmul.f32 %v2995, %v2998
    %3002 = vrot.lane.b32.xlu0 %v2996, 32
    %v3003 = vpop.permute.xlu0 %3002
    %v3005 = vmul.f32 %v2995, %v3003
    %3007 = vrot.lane.b32.xlu0 %v3005, 32
    %v3008 = vpop.permute.xlu0 %3007
    %v3010 = vadd.f32 %v3000, %v3008
    %v3011 = vtanh.pop %v3010
    %3013 = vrot.lane.b32.xlu0 %v3011, 32
    %v3014 = vpop.permute.xlu0 %3013
    %v3016 = vmul.f32 %v2995, %v3014
    %3018 = vrot.lane.b32.xlu0 %v3016, 96
    %v3019 = vpop.permute.xlu0 %3018
    %3021 = vst.msk [vmem:[#allocation2 + $0x8] sm:$0x3] %vm1157, %v3019
    %v3022 = vrot.slane %v2908, 6
    %3023 = vrot.lane.b32.xlu0 %v3022, 64
    %v3024 = vpop.permute.xlu0 %3023
    %v3025 = vsel %vm284, %v3024, 0
    %3027 = vmatprep.subr.mxu0 0.0
    %3028 = vmatpush1.msra.mxu0 %v2039
    %3029 = vmatprep.subr.mxu0 0.0
    %3030 = vmatpush1.msra.mxu0 %v2040
    %3031 = vmatprep.subr.mxu0 0.0
    %3032 = vmatpush1.msra.mxu0 %v2041
    %3033 = vmatprep.subr.mxu0 0.0
    %3034 = vmatpush1.msra.mxu0 %v2042
    %3035 = vmatprep.subr.mxu0 0.0
    %3036 = vmatpush1.msra.mxu0 0.0
    %3037 = vmatprep.subr.mxu0 0.0
    %3038 = vmatpush1.msra.mxu0 0.0
    %3039 = vmatprep.subr.mxu0 0.0
    %3040 = vmatpush1.msra.mxu0 0.0
    %3041 = vmatprep.subr.mxu0 0.0
    %3042 = vmatpush1.msra.mxu0 0.0
    %3043 = vmatprep.subr.mxu0 0.0
    %3044 = vmatpush1.msra.mxu0 0.0
    %3045 = vmatprep.subr.mxu0 0.0
    %3046 = vmatpush1.msra.mxu0 0.0
    %3047 = vmatprep.subr.mxu0 0.0
    %3048 = vmatpush1.msra.mxu0 0.0
    %3049 = vmatprep.subr.mxu0 0.0
    %3050 = vmatpush1.msra.mxu0 0.0
    %3051 = vmatprep.subr.mxu0 0.0
    %3052 = vmatpush1.msra.mxu0 0.0
    %3053 = vmatprep.subr.mxu0 0.0
    %3054 = vmatpush1.msra.mxu0 0.0
    %3055 = vmatprep.subr.mxu0 0.0
    %3056 = vmatpush1.msra.mxu0 0.0
    %3057 = vmatprep.subr.mxu0 0.0
    %3058 = vmatpush1.msra.mxu0 0.0
    %3059 = vmatprep.subr.mxu0 0.0
    %3060 = vmatpush1.msra.mxu0 0.0
    %3061 = vmatprep.subr.mxu0 0.0
    %3062 = vmatpush1.msra.mxu0 0.0
    %3063 = vmatprep.subr.mxu0 0.0
    %3064 = vmatpush1.msra.mxu0 0.0
    %3065 = vmatprep.subr.mxu0 0.0
    %3066 = vmatpush1.msra.mxu0 0.0
    %3067 = vmatprep.subr.mxu0 0.0
    %3068 = vmatpush1.msra.mxu0 0.0
    %3069 = vmatprep.subr.mxu0 0.0
    %3070 = vmatpush1.msra.mxu0 0.0
    %3071 = vmatprep.subr.mxu0 0.0
    %3072 = vmatpush1.msra.mxu0 0.0
    %3073 = vmatprep.subr.mxu0 0.0
    %3074 = vmatpush1.msra.mxu0 0.0
    %3075 = vmatprep.subr.mxu0 0.0
    %3076 = vmatpush1.msra.mxu0 0.0
    %3077 = vmatprep.subr.mxu0 0.0
    %3078 = vmatpush1.msra.mxu0 0.0
    %3079 = vmatprep.subr.mxu0 0.0
    %3080 = vmatpush1.msra.mxu0 0.0
    %3081 = vmatprep.subr.mxu0 0.0
    %3082 = vmatpush1.msra.mxu0 0.0
    %3083 = vmatprep.subr.mxu0 0.0
    %3084 = vmatpush1.msra.mxu0 0.0
    %3085 = vmatprep.subr.mxu0 0.0
    %3086 = vmatpush1.msra.mxu0 0.0
    %3087 = vmatprep.subr.mxu0 0.0
    %3088 = vmatpush1.msra.mxu0 0.0
    %3089 = vmatprep.subr.mxu0 0.0
    %3090 = vmatpush1.msra.mxu0 0.0
    %3091 = vmatprep.mubr.f32.mxu0 0.0
    %3092 = vmatmul.mubr.f32.gmra.mrb[0].mxu0 %v3025
    %v3093 = vpop.f32.mrb[0].mxu0
    %v3094 = vadd.f32 0.0, %v3093
    %v3095 = vpop.f32.mrb[0].mxu0
    %3096 = vdwg.mxu0
    %v3097 = vadd.f32 %v2155, %v3094
    %v3098 = vxor.u32 %v3097, 2147483648
    %v3099 = vmul.f32 %v3098, 1.442695
    %v3100 = vpow.pop %v3099
    %v3101 = vadd.f32 %v3100, 1.0
    %v3102 = vrcp.pop %v3101
    %v3103 = vmul.f32 1.0, %v3102
    %v3104 = vtanh.pop %v3097
    %v3106 = vrot.slane %v2902, 6
    %v3108 = vmul.f32 %v3103, %v3106
    %3110 = vrot.lane.b32.xlu0 %v3104, 32
    %v3111 = vpop.permute.xlu0 %3110
    %v3113 = vmul.f32 %v3103, %v3111
    %3115 = vrot.lane.b32.xlu0 %v3113, 32
    %v3116 = vpop.permute.xlu0 %3115
    %v3118 = vadd.f32 %v3108, %v3116
    %v3119 = vtanh.pop %v3118
    %3121 = vrot.lane.b32.xlu0 %v3119, 32
    %v3122 = vpop.permute.xlu0 %3121
    %v3124 = vmul.f32 %v3103, %v3122
    %3126 = vrot.lane.b32.xlu0 %v3124, 64
    %v3127 = vpop.permute.xlu0 %3126
    %3129 = vst.msk [vmem:[#allocation2 + $0x8] sm:$0x3] %vm387, %v3127
    %3130 = vrot.lane.b32.xlu0 %v3016, 64
    %v3131 = vpop.permute.xlu0 %3130
    %v3132 = vsel %vm284, %v3131, 0
    %3134 = vmatprep.subr.mxu0 0.0
    %3135 = vmatpush1.msra.mxu0 %v2043
    %3136 = vmatprep.subr.mxu0 0.0
    %3137 = vmatpush1.msra.mxu0 %v2044
    %3138 = vmatprep.subr.mxu0 0.0
    %3139 = vmatpush1.msra.mxu0 %v2045
    %3140 = vmatprep.subr.mxu0 0.0
    %3141 = vmatpush1.msra.mxu0 %v2046
    %3142 = vmatprep.subr.mxu0 0.0
    %3143 = vmatpush1.msra.mxu0 0.0
    %3144 = vmatprep.subr.mxu0 0.0
    %3145 = vmatpush1.msra.mxu0 0.0
    %3146 = vmatprep.subr.mxu0 0.0
    %3147 = vmatpush1.msra.mxu0 0.0
    %3148 = vmatprep.subr.mxu0 0.0
    %3149 = vmatpush1.msra.mxu0 0.0
    %3150 = vmatprep.subr.mxu0 0.0
    %3151 = vmatpush1.msra.mxu0 0.0
    %3152 = vmatprep.subr.mxu0 0.0
    %3153 = vmatpush1.msra.mxu0 0.0
    %3154 = vmatprep.subr.mxu0 0.0
    %3155 = vmatpush1.msra.mxu0 0.0
    %3156 = vmatprep.subr.mxu0 0.0
    %3157 = vmatpush1.msra.mxu0 0.0
    %3158 = vmatprep.subr.mxu0 0.0
    %3159 = vmatpush1.msra.mxu0 0.0
    %3160 = vmatprep.subr.mxu0 0.0
    %3161 = vmatpush1.msra.mxu0 0.0
    %3162 = vmatprep.subr.mxu0 0.0
    %3163 = vmatpush1.msra.mxu0 0.0
    %3164 = vmatprep.subr.mxu0 0.0
    %3165 = vmatpush1.msra.mxu0 0.0
    %3166 = vmatprep.subr.mxu0 0.0
    %3167 = vmatpush1.msra.mxu0 0.0
    %3168 = vmatprep.subr.mxu0 0.0
    %3169 = vmatpush1.msra.mxu0 0.0
    %3170 = vmatprep.subr.mxu0 0.0
    %3171 = vmatpush1.msra.mxu0 0.0
    %3172 = vmatprep.subr.mxu0 0.0
    %3173 = vmatpush1.msra.mxu0 0.0
    %3174 = vmatprep.subr.mxu0 0.0
    %3175 = vmatpush1.msra.mxu0 0.0
    %3176 = vmatprep.subr.mxu0 0.0
    %3177 = vmatpush1.msra.mxu0 0.0
    %3178 = vmatprep.subr.mxu0 0.0
    %3179 = vmatpush1.msra.mxu0 0.0
    %3180 = vmatprep.subr.mxu0 0.0
    %3181 = vmatpush1.msra.mxu0 0.0
    %3182 = vmatprep.subr.mxu0 0.0
    %3183 = vmatpush1.msra.mxu0 0.0
    %3184 = vmatprep.subr.mxu0 0.0
    %3185 = vmatpush1.msra.mxu0 0.0
    %3186 = vmatprep.subr.mxu0 0.0
    %3187 = vmatpush1.msra.mxu0 0.0
    %3188 = vmatprep.subr.mxu0 0.0
    %3189 = vmatpush1.msra.mxu0 0.0
    %3190 = vmatprep.subr.mxu0 0.0
    %3191 = vmatpush1.msra.mxu0 0.0
    %3192 = vmatprep.subr.mxu0 0.0
    %3193 = vmatpush1.msra.mxu0 0.0
    %3194 = vmatprep.subr.mxu0 0.0
    %3195 = vmatpush1.msra.mxu0 0.0
    %3196 = vmatprep.subr.mxu0 0.0
    %3197 = vmatpush1.msra.mxu0 0.0
    %3198 = vmatprep.mubr.f32.mxu0 0.0
    %3199 = vmatmul.mubr.f32.gmra.mrb[0].mxu0 %v3132
    %v3200 = vpop.f32.mrb[0].mxu0
    %v3201 = vadd.f32 0.0, %v3200
    %v3202 = vpop.f32.mrb[0].mxu0
    %3203 = vdwg.mxu0
    %v3205 = vrot.slane %v3201, 2
    %v3207 = vadd.f32 %v2151, %v3205
    %v3208 = vxor.u32 %v3207, 2147483648
    %v3209 = vmul.f32 %v3208, 1.442695
    %v3210 = vpow.pop %v3209
    %v3211 = vadd.f32 %v3210, 1.0
    %v3212 = vrcp.pop %v3211
    %v3213 = vmul.f32 1.0, %v3212
    %v3214 = vtanh.pop %v3207
    %v3216 = vrot.slane %v3010, 2
    %v3218 = vmul.f32 %v3213, %v3216
    %3220 = vrot.lane.b32.xlu0 %v3214, 32
    %v3221 = vpop.permute.xlu0 %3220
    %v3223 = vmul.f32 %v3213, %v3221
    %3225 = vrot.lane.b32.xlu0 %v3223, 32
    %v3226 = vpop.permute.xlu0 %3225
    %v3228 = vadd.f32 %v3218, %v3226
    %v3229 = vtanh.pop %v3228
    %3231 = vrot.lane.b32.xlu0 %v3229, 32
    %v3232 = vpop.permute.xlu0 %3231
    %v3234 = vmul.f32 %v3213, %v3232
    %3236 = vrot.lane.b32.xlu0 %v3234, 96
    %v3237 = vpop.permute.xlu0 %3236
    %3239 = vst.msk [vmem:[#allocation2] sm:$0xc0] %vm491, %v3237
    %v3240 = vsel %vm284, %v3127, 0
    %3242 = vmatprep.subr.mxu0 0.0
    %3243 = vmatpush1.msra.mxu0 %v2039
    %3244 = vmatprep.subr.mxu0 0.0
    %3245 = vmatpush1.msra.mxu0 %v2040
    %3246 = vmatprep.subr.mxu0 0.0
    %3247 = vmatpush1.msra.mxu0 %v2041
    %3248 = vmatprep.subr.mxu0 0.0
    %3249 = vmatpush1.msra.mxu0 %v2042
    %3250 = vmatprep.subr.mxu0 0.0
    %3251 = vmatpush1.msra.mxu0 0.0
    %3252 = vmatprep.subr.mxu0 0.0
    %3253 = vmatpush1.msra.mxu0 0.0
    %3254 = vmatprep.subr.mxu0 0.0
    %3255 = vmatpush1.msra.mxu0 0.0
    %3256 = vmatprep.subr.mxu0 0.0
    %3257 = vmatpush1.msra.mxu0 0.0
    %3258 = vmatprep.subr.mxu0 0.0
    %3259 = vmatpush1.msra.mxu0 0.0
    %3260 = vmatprep.subr.mxu0 0.0
    %3261 = vmatpush1.msra.mxu0 0.0
    %3262 = vmatprep.subr.mxu0 0.0
    %3263 = vmatpush1.msra.mxu0 0.0
    %3264 = vmatprep.subr.mxu0 0.0
    %3265 = vmatpush1.msra.mxu0 0.0
    %3266 = vmatprep.subr.mxu0 0.0
    %3267 = vmatpush1.msra.mxu0 0.0
    %3268 = vmatprep.subr.mxu0 0.0
    %3269 = vmatpush1.msra.mxu0 0.0
    %3270 = vmatprep.subr.mxu0 0.0
    %3271 = vmatpush1.msra.mxu0 0.0
    %3272 = vmatprep.subr.mxu0 0.0
    %3273 = vmatpush1.msra.mxu0 0.0
    %3274 = vmatprep.subr.mxu0 0.0
    %3275 = vmatpush1.msra.mxu0 0.0
    %3276 = vmatprep.subr.mxu0 0.0
    %3277 = vmatpush1.msra.mxu0 0.0
    %3278 = vmatprep.subr.mxu0 0.0
    %3279 = vmatpush1.msra.mxu0 0.0
    %3280 = vmatprep.subr.mxu0 0.0
    %3281 = vmatpush1.msra.mxu0 0.0
    %3282 = vmatprep.subr.mxu0 0.0
    %3283 = vmatpush1.msra.mxu0 0.0
    %3284 = vmatprep.subr.mxu0 0.0
    %3285 = vmatpush1.msra.mxu0 0.0
    %3286 = vmatprep.subr.mxu0 0.0
    %3287 = vmatpush1.msra.mxu0 0.0
    %3288 = vmatprep.subr.mxu0 0.0
    %3289 = vmatpush1.msra.mxu0 0.0
    %3290 = vmatprep.subr.mxu0 0.0
    %3291 = vmatpush1.msra.mxu0 0.0
    %3292 = vmatprep.subr.mxu0 0.0
    %3293 = vmatpush1.msra.mxu0 0.0
    %3294 = vmatprep.subr.mxu0 0.0
    %3295 = vmatpush1.msra.mxu0 0.0
    %3296 = vmatprep.subr.mxu0 0.0
    %3297 = vmatpush1.msra.mxu0 0.0
    %3298 = vmatprep.subr.mxu0 0.0
    %3299 = vmatpush1.msra.mxu0 0.0
    %3300 = vmatprep.subr.mxu0 0.0
    %3301 = vmatpush1.msra.mxu0 0.0
    %3302 = vmatprep.subr.mxu0 0.0
    %3303 = vmatpush1.msra.mxu0 0.0
    %3304 = vmatprep.subr.mxu0 0.0
    %3305 = vmatpush1.msra.mxu0 0.0
    %3306 = vmatprep.mubr.f32.mxu0 0.0
    %3307 = vmatmul.mubr.f32.gmra.mrb[0].mxu0 %v3240
    %v3308 = vpop.f32.mrb[0].mxu0
    %v3309 = vadd.f32 0.0, %v3308
    %v3310 = vpop.f32.mrb[0].mxu0
    %3311 = vdwg.mxu0
    %v3313 = vrot.slane %v3309, 6
    %v3315 = vadd.f32 %v2155, %v3313
    %v3316 = vxor.u32 %v3315, 2147483648
    %v3317 = vmul.f32 %v3316, 1.442695
    %v3318 = vpow.pop %v3317
    %v3319 = vadd.f32 %v3318, 1.0
    %v3320 = vrcp.pop %v3319
    %v3321 = vmul.f32 1.0, %v3320
    %v3322 = vtanh.pop %v3315
    %v3324 = vrot.slane %v3118, 6
    %v3326 = vmul.f32 %v3321, %v3324
    %3328 = vrot.lane.b32.xlu0 %v3322, 32
    %v3329 = vpop.permute.xlu0 %3328
    %v3331 = vmul.f32 %v3321, %v3329
    %3333 = vrot.lane.b32.xlu0 %v3331, 32
    %v3334 = vpop.permute.xlu0 %3333
    %v3336 = vadd.f32 %v3326, %v3334
    %v3337 = vtanh.pop %v3336
    %3339 = vrot.lane.b32.xlu0 %v3337, 32
    %v3340 = vpop.permute.xlu0 %3339
    %v3342 = vmul.f32 %v3321, %v3340
    %3344 = vrot.lane.b32.xlu0 %v3342, 64
    %v3345 = vpop.permute.xlu0 %3344
    %3347 = vst.msk [vmem:[#allocation2 + $0x8] sm:$0xc] %vm600, %v3345
    %v3348 = vrot.slane %v3234, 6
    %3349 = vrot.lane.b32.xlu0 %v3348, 64
    %v3350 = vpop.permute.xlu0 %3349
    %v3351 = vsel %vm284, %v3350, 0
    %3353 = vmatprep.subr.mxu0 0.0
    %3354 = vmatpush1.msra.mxu0 %v2043
    %3355 = vmatprep.subr.mxu0 0.0
    %3356 = vmatpush1.msra.mxu0 %v2044
    %3357 = vmatprep.subr.mxu0 0.0
    %3358 = vmatpush1.msra.mxu0 %v2045
    %3359 = vmatprep.subr.mxu0 0.0
    %3360 = vmatpush1.msra.mxu0 %v2046
    %3361 = vmatprep.subr.mxu0 0.0
    %3362 = vmatpush1.msra.mxu0 0.0
    %3363 = vmatprep.subr.mxu0 0.0
    %3364 = vmatpush1.msra.mxu0 0.0
    %3365 = vmatprep.subr.mxu0 0.0
    %3366 = vmatpush1.msra.mxu0 0.0
    %3367 = vmatprep.subr.mxu0 0.0
    %3368 = vmatpush1.msra.mxu0 0.0
    %3369 = vmatprep.subr.mxu0 0.0
    %3370 = vmatpush1.msra.mxu0 0.0
    %3371 = vmatprep.subr.mxu0 0.0
    %3372 = vmatpush1.msra.mxu0 0.0
    %3373 = vmatprep.subr.mxu0 0.0
    %3374 = vmatpush1.msra.mxu0 0.0
    %3375 = vmatprep.subr.mxu0 0.0
    %3376 = vmatpush1.msra.mxu0 0.0
    %3377 = vmatprep.subr.mxu0 0.0
    %3378 = vmatpush1.msra.mxu0 0.0
    %3379 = vmatprep.subr.mxu0 0.0
    %3380 = vmatpush1.msra.mxu0 0.0
    %3381 = vmatprep.subr.mxu0 0.0
    %3382 = vmatpush1.msra.mxu0 0.0
    %3383 = vmatprep.subr.mxu0 0.0
    %3384 = vmatpush1.msra.mxu0 0.0
    %3385 = vmatprep.subr.mxu0 0.0
    %3386 = vmatpush1.msra.mxu0 0.0
    %3387 = vmatprep.subr.mxu0 0.0
    %3388 = vmatpush1.msra.mxu0 0.0
    %3389 = vmatprep.subr.mxu0 0.0
    %3390 = vmatpush1.msra.mxu0 0.0
    %3391 = vmatprep.subr.mxu0 0.0
    %3392 = vmatpush1.msra.mxu0 0.0
    %3393 = vmatprep.subr.mxu0 0.0
    %3394 = vmatpush1.msra.mxu0 0.0
    %3395 = vmatprep.subr.mxu0 0.0
    %3396 = vmatpush1.msra.mxu0 0.0
    %3397 = vmatprep.subr.mxu0 0.0
    %3398 = vmatpush1.msra.mxu0 0.0
    %3399 = vmatprep.subr.mxu0 0.0
    %3400 = vmatpush1.msra.mxu0 0.0
    %3401 = vmatprep.subr.mxu0 0.0
    %3402 = vmatpush1.msra.mxu0 0.0
    %3403 = vmatprep.subr.mxu0 0.0
    %3404 = vmatpush1.msra.mxu0 0.0
    %3405 = vmatprep.subr.mxu0 0.0
    %3406 = vmatpush1.msra.mxu0 0.0
    %3407 = vmatprep.subr.mxu0 0.0
    %3408 = vmatpush1.msra.mxu0 0.0
    %3409 = vmatprep.subr.mxu0 0.0
    %3410 = vmatpush1.msra.mxu0 0.0
    %3411 = vmatprep.subr.mxu0 0.0
    %3412 = vmatpush1.msra.mxu0 0.0
    %3413 = vmatprep.subr.mxu0 0.0
    %3414 = vmatpush1.msra.mxu0 0.0
    %3415 = vmatprep.subr.mxu0 0.0
    %3416 = vmatpush1.msra.mxu0 0.0
    %3417 = vmatprep.mubr.f32.mxu0 0.0
    %3418 = vmatmul.mubr.f32.gmra.mrb[0].mxu0 %v3351
    %v3419 = vpop.f32.mrb[0].mxu0
    %v3420 = vadd.f32 0.0, %v3419
    %v3421 = vpop.f32.mrb[0].mxu0
    %3422 = vdwg.mxu0
    %v3424 = vrot.slane %v3420, 4
    %v3426 = vadd.f32 %v2151, %v3424
    %v3427 = vxor.u32 %v3426, 2147483648
    %v3428 = vmul.f32 %v3427, 1.442695
    %v3429 = vpow.pop %v3428
    %v3430 = vadd.f32 %v3429, 1.0
    %v3431 = vrcp.pop %v3430
    %v3432 = vmul.f32 1.0, %v3431
    %v3433 = vtanh.pop %v3426
    %v3435 = vrot.slane %v3228, 2
    %v3437 = vmul.f32 %v3432, %v3435
    %3439 = vrot.lane.b32.xlu0 %v3433, 32
    %v3440 = vpop.permute.xlu0 %3439
    %v3442 = vmul.f32 %v3432, %v3440
    %3444 = vrot.lane.b32.xlu0 %v3442, 32
    %v3445 = vpop.permute.xlu0 %3444
    %v3447 = vadd.f32 %v3437, %v3445
    %v3448 = vtanh.pop %v3447
    %3450 = vrot.lane.b32.xlu0 %v3448, 32
    %v3451 = vpop.permute.xlu0 %3450
    %v3453 = vmul.f32 %v3432, %v3451
    %3455 = vrot.lane.b32.xlu0 %v3453, 96
    %v3456 = vpop.permute.xlu0 %3455
    %3458 = vst.msk [vmem:[#allocation2] sm:$0x30] %vm712, %v3456
    %v3459 = vrot.slane %v3342, 2
    %3460 = vrot.lane.b32.xlu0 %v3459, 64
    %v3461 = vpop.permute.xlu0 %3460
    %v3462 = vsel %vm284, %v3461, 0
    %3464 = vmatprep.subr.mxu0 0.0
    %3465 = vmatpush1.msra.mxu0 %v2039
    %3466 = vmatprep.subr.mxu0 0.0
    %3467 = vmatpush1.msra.mxu0 %v2040
    %3468 = vmatprep.subr.mxu0 0.0
    %3469 = vmatpush1.msra.mxu0 %v2041
    %3470 = vmatprep.subr.mxu0 0.0
    %3471 = vmatpush1.msra.mxu0 %v2042
    %3472 = vmatprep.subr.mxu0 0.0
    %3473 = vmatpush1.msra.mxu0 0.0
    %3474 = vmatprep.subr.mxu0 0.0
    %3475 = vmatpush1.msra.mxu0 0.0
    %3476 = vmatprep.subr.mxu0 0.0
    %3477 = vmatpush1.msra.mxu0 0.0
    %3478 = vmatprep.subr.mxu0 0.0
    %3479 = vmatpush1.msra.mxu0 0.0
    %3480 = vmatprep.subr.mxu0 0.0
    %3481 = vmatpush1.msra.mxu0 0.0
    %3482 = vmatprep.subr.mxu0 0.0
    %3483 = vmatpush1.msra.mxu0 0.0
    %3484 = vmatprep.subr.mxu0 0.0
    %3485 = vmatpush1.msra.mxu0 0.0
    %3486 = vmatprep.subr.mxu0 0.0
    %3487 = vmatpush1.msra.mxu0 0.0
    %3488 = vmatprep.subr.mxu0 0.0
    %3489 = vmatpush1.msra.mxu0 0.0
    %3490 = vmatprep.subr.mxu0 0.0
    %3491 = vmatpush1.msra.mxu0 0.0
    %3492 = vmatprep.subr.mxu0 0.0
    %3493 = vmatpush1.msra.mxu0 0.0
    %3494 = vmatprep.subr.mxu0 0.0
    %3495 = vmatpush1.msra.mxu0 0.0
    %3496 = vmatprep.subr.mxu0 0.0
    %3497 = vmatpush1.msra.mxu0 0.0
    %3498 = vmatprep.subr.mxu0 0.0
    %3499 = vmatpush1.msra.mxu0 0.0
    %3500 = vmatprep.subr.mxu0 0.0
    %3501 = vmatpush1.msra.mxu0 0.0
    %3502 = vmatprep.subr.mxu0 0.0
    %3503 = vmatpush1.msra.mxu0 0.0
    %3504 = vmatprep.subr.mxu0 0.0
    %3505 = vmatpush1.msra.mxu0 0.0
    %3506 = vmatprep.subr.mxu0 0.0
    %3507 = vmatpush1.msra.mxu0 0.0
    %3508 = vmatprep.subr.mxu0 0.0
    %3509 = vmatpush1.msra.mxu0 0.0
    %3510 = vmatprep.subr.mxu0 0.0
    %3511 = vmatpush1.msra.mxu0 0.0
    %3512 = vmatprep.subr.mxu0 0.0
    %3513 = vmatpush1.msra.mxu0 0.0
    %3514 = vmatprep.subr.mxu0 0.0
    %3515 = vmatpush1.msra.mxu0 0.0
    %3516 = vmatprep.subr.mxu0 0.0
    %3517 = vmatpush1.msra.mxu0 0.0
    %3518 = vmatprep.subr.mxu0 0.0
    %3519 = vmatpush1.msra.mxu0 0.0
    %3520 = vmatprep.subr.mxu0 0.0
    %3521 = vmatpush1.msra.mxu0 0.0
    %3522 = vmatprep.subr.mxu0 0.0
    %3523 = vmatpush1.msra.mxu0 0.0
    %3524 = vmatprep.subr.mxu0 0.0
    %3525 = vmatpush1.msra.mxu0 0.0
    %3526 = vmatprep.subr.mxu0 0.0
    %3527 = vmatpush1.msra.mxu0 0.0
    %3528 = vmatprep.mubr.f32.mxu0 0.0
    %3529 = vmatmul.mubr.f32.gmra.mrb[0].mxu0 %v3462
    %v3530 = vpop.f32.mrb[0].mxu0
    %v3531 = vadd.f32 0.0, %v3530
    %v3532 = vpop.f32.mrb[0].mxu0
    %3533 = vdwg.mxu0
    %v3535 = vrot.slane %v3531, 4
    %v3537 = vadd.f32 %v2155, %v3535
    %v3538 = vxor.u32 %v3537, 2147483648
    %v3539 = vmul.f32 %v3538, 1.442695
    %v3540 = vpow.pop %v3539
    %v3541 = vadd.f32 %v3540, 1.0
    %v3542 = vrcp.pop %v3541
    %v3543 = vmul.f32 1.0, %v3542
    %v3544 = vtanh.pop %v3537
    %v3546 = vrot.slane %v3336, 6
    %v3548 = vmul.f32 %v3543, %v3546
    %3550 = vrot.lane.b32.xlu0 %v3544, 32
    %v3551 = vpop.permute.xlu0 %3550
    %v3553 = vmul.f32 %v3543, %v3551
    %3555 = vrot.lane.b32.xlu0 %v3553, 32
    %v3556 = vpop.permute.xlu0 %3555
    %v3558 = vadd.f32 %v3548, %v3556
    %v3559 = vtanh.pop %v3558
    %3561 = vrot.lane.b32.xlu0 %v3559, 32
    %v3562 = vpop.permute.xlu0 %3561
    %v3564 = vmul.f32 %v3543, %v3562
    %3566 = vrot.lane.b32.xlu0 %v3564, 64
    %v3567 = vpop.permute.xlu0 %3566
    %3569 = vst.msk [vmem:[#allocation2 + $0x8] sm:$0x30] %vm824, %v3567
    %v3570 = vrot.slane %v3453, 4
    %3571 = vrot.lane.b32.xlu0 %v3570, 64
    %v3572 = vpop.permute.xlu0 %3571
    %v3573 = vsel %vm284, %v3572, 0
    %3575 = vmatprep.subr.mxu0 0.0
    %3576 = vmatpush1.msra.mxu0 %v2043
    %3577 = vmatprep.subr.mxu0 0.0
    %3578 = vmatpush1.msra.mxu0 %v2044
    %3579 = vmatprep.subr.mxu0 0.0
    %3580 = vmatpush1.msra.mxu0 %v2045
    %3581 = vmatprep.subr.mxu0 0.0
    %3582 = vmatpush1.msra.mxu0 %v2046
    %3583 = vmatprep.subr.mxu0 0.0
    %3584 = vmatpush1.msra.mxu0 0.0
    %3585 = vmatprep.subr.mxu0 0.0
    %3586 = vmatpush1.msra.mxu0 0.0
    %3587 = vmatprep.subr.mxu0 0.0
    %3588 = vmatpush1.msra.mxu0 0.0
    %3589 = vmatprep.subr.mxu0 0.0
    %3590 = vmatpush1.msra.mxu0 0.0
    %3591 = vmatprep.subr.mxu0 0.0
    %3592 = vmatpush1.msra.mxu0 0.0
    %3593 = vmatprep.subr.mxu0 0.0
    %3594 = vmatpush1.msra.mxu0 0.0
    %3595 = vmatprep.subr.mxu0 0.0
    %3596 = vmatpush1.msra.mxu0 0.0
    %3597 = vmatprep.subr.mxu0 0.0
    %3598 = vmatpush1.msra.mxu0 0.0
    %3599 = vmatprep.subr.mxu0 0.0
    %3600 = vmatpush1.msra.mxu0 0.0
    %3601 = vmatprep.subr.mxu0 0.0
    %3602 = vmatpush1.msra.mxu0 0.0
    %3603 = vmatprep.subr.mxu0 0.0
    %3604 = vmatpush1.msra.mxu0 0.0
    %3605 = vmatprep.subr.mxu0 0.0
    %3606 = vmatpush1.msra.mxu0 0.0
    %3607 = vmatprep.subr.mxu0 0.0
    %3608 = vmatpush1.msra.mxu0 0.0
    %3609 = vmatprep.subr.mxu0 0.0
    %3610 = vmatpush1.msra.mxu0 0.0
    %3611 = vmatprep.subr.mxu0 0.0
    %3612 = vmatpush1.msra.mxu0 0.0
    %3613 = vmatprep.subr.mxu0 0.0
    %3614 = vmatpush1.msra.mxu0 0.0
    %3615 = vmatprep.subr.mxu0 0.0
    %3616 = vmatpush1.msra.mxu0 0.0
    %3617 = vmatprep.subr.mxu0 0.0
    %3618 = vmatpush1.msra.mxu0 0.0
    %3619 = vmatprep.subr.mxu0 0.0
    %3620 = vmatpush1.msra.mxu0 0.0
    %3621 = vmatprep.subr.mxu0 0.0
    %3622 = vmatpush1.msra.mxu0 0.0
    %3623 = vmatprep.subr.mxu0 0.0
    %3624 = vmatpush1.msra.mxu0 0.0
    %3625 = vmatprep.subr.mxu0 0.0
    %3626 = vmatpush1.msra.mxu0 0.0
    %3627 = vmatprep.subr.mxu0 0.0
    %3628 = vmatpush1.msra.mxu0 0.0
    %3629 = vmatprep.subr.mxu0 0.0
    %3630 = vmatpush1.msra.mxu0 0.0
    %3631 = vmatprep.subr.mxu0 0.0
    %3632 = vmatpush1.msra.mxu0 0.0
    %3633 = vmatprep.subr.mxu0 0.0
    %3634 = vmatpush1.msra.mxu0 0.0
    %3635 = vmatprep.subr.mxu0 0.0
    %3636 = vmatpush1.msra.mxu0 0.0
    %3637 = vmatprep.subr.mxu0 0.0
    %3638 = vmatpush1.msra.mxu0 0.0
    %3639 = vmatprep.mubr.f32.mxu0 0.0
    %3640 = vmatmul.mubr.f32.gmra.mrb[0].mxu0 %v3573
    %v3641 = vpop.f32.mrb[0].mxu0
    %v3642 = vadd.f32 0.0, %v3641
    %v3643 = vpop.f32.mrb[0].mxu0
    %3644 = vdwg.mxu0
    %v3646 = vrot.slane %v3642, 6
    %v3648 = vadd.f32 %v2151, %v3646
    %v3649 = vxor.u32 %v3648, 2147483648
    %v3650 = vmul.f32 %v3649, 1.442695
    %v3651 = vpow.pop %v3650
    %v3652 = vadd.f32 %v3651, 1.0
    %v3653 = vrcp.pop %v3652
    %v3654 = vmul.f32 1.0, %v3653
    %v3655 = vtanh.pop %v3648
    %v3657 = vrot.slane %v3447, 2
    %v3659 = vmul.f32 %v3654, %v3657
    %3661 = vrot.lane.b32.xlu0 %v3655, 32
    %v3662 = vpop.permute.xlu0 %3661
    %v3664 = vmul.f32 %v3654, %v3662
    %3666 = vrot.lane.b32.xlu0 %v3664, 32
    %v3667 = vpop.permute.xlu0 %3666
    %v3669 = vadd.f32 %v3659, %v3667
    %v3670 = vtanh.pop %v3669
    %3672 = vrot.lane.b32.xlu0 %v3670, 32
    %v3673 = vpop.permute.xlu0 %3672
    %v3675 = vmul.f32 %v3654, %v3673
    %3677 = vrot.lane.b32.xlu0 %v3675, 96
    %v3678 = vpop.permute.xlu0 %3677
    %3680 = vst.msk [vmem:[#allocation2] sm:$0xc] %vm936, %v3678
    %v3681 = vrot.slane %v3564, 4
    %3682 = vrot.lane.b32.xlu0 %v3681, 64
    %v3683 = vpop.permute.xlu0 %3682
    %v3684 = vsel %vm284, %v3683, 0
    %3686 = vmatprep.subr.mxu0 0.0
    %3687 = vmatpush1.msra.mxu0 %v2039
    %3688 = vmatprep.subr.mxu0 0.0
    %3689 = vmatpush1.msra.mxu0 %v2040
    %3690 = vmatprep.subr.mxu0 0.0
    %3691 = vmatpush1.msra.mxu0 %v2041
    %3692 = vmatprep.subr.mxu0 0.0
    %3693 = vmatpush1.msra.mxu0 %v2042
    %3694 = vmatprep.subr.mxu0 0.0
    %3695 = vmatpush1.msra.mxu0 0.0
    %3696 = vmatprep.subr.mxu0 0.0
    %3697 = vmatpush1.msra.mxu0 0.0
    %3698 = vmatprep.subr.mxu0 0.0
    %3699 = vmatpush1.msra.mxu0 0.0
    %3700 = vmatprep.subr.mxu0 0.0
    %3701 = vmatpush1.msra.mxu0 0.0
    %3702 = vmatprep.subr.mxu0 0.0
    %3703 = vmatpush1.msra.mxu0 0.0
    %3704 = vmatprep.subr.mxu0 0.0
    %3705 = vmatpush1.msra.mxu0 0.0
    %3706 = vmatprep.subr.mxu0 0.0
    %3707 = vmatpush1.msra.mxu0 0.0
    %3708 = vmatprep.subr.mxu0 0.0
    %3709 = vmatpush1.msra.mxu0 0.0
    %3710 = vmatprep.subr.mxu0 0.0
    %3711 = vmatpush1.msra.mxu0 0.0
    %3712 = vmatprep.subr.mxu0 0.0
    %3713 = vmatpush1.msra.mxu0 0.0
    %3714 = vmatprep.subr.mxu0 0.0
    %3715 = vmatpush1.msra.mxu0 0.0
    %3716 = vmatprep.subr.mxu0 0.0
    %3717 = vmatpush1.msra.mxu0 0.0
    %3718 = vmatprep.subr.mxu0 0.0
    %3719 = vmatpush1.msra.mxu0 0.0
    %3720 = vmatprep.subr.mxu0 0.0
    %3721 = vmatpush1.msra.mxu0 0.0
    %3722 = vmatprep.subr.mxu0 0.0
    %3723 = vmatpush1.msra.mxu0 0.0
    %3724 = vmatprep.subr.mxu0 0.0
    %3725 = vmatpush1.msra.mxu0 0.0
    %3726 = vmatprep.subr.mxu0 0.0
    %3727 = vmatpush1.msra.mxu0 0.0
    %3728 = vmatprep.subr.mxu0 0.0
    %3729 = vmatpush1.msra.mxu0 0.0
    %3730 = vmatprep.subr.mxu0 0.0
    %3731 = vmatpush1.msra.mxu0 0.0
    %3732 = vmatprep.subr.mxu0 0.0
    %3733 = vmatpush1.msra.mxu0 0.0
    %3734 = vmatprep.subr.mxu0 0.0
    %3735 = vmatpush1.msra.mxu0 0.0
    %3736 = vmatprep.subr.mxu0 0.0
    %3737 = vmatpush1.msra.mxu0 0.0
    %3738 = vmatprep.subr.mxu0 0.0
    %3739 = vmatpush1.msra.mxu0 0.0
    %3740 = vmatprep.subr.mxu0 0.0
    %3741 = vmatpush1.msra.mxu0 0.0
    %3742 = vmatprep.subr.mxu0 0.0
    %3743 = vmatpush1.msra.mxu0 0.0
    %3744 = vmatprep.subr.mxu0 0.0
    %3745 = vmatpush1.msra.mxu0 0.0
    %3746 = vmatprep.subr.mxu0 0.0
    %3747 = vmatpush1.msra.mxu0 0.0
    %3748 = vmatprep.subr.mxu0 0.0
    %3749 = vmatpush1.msra.mxu0 0.0
    %3750 = vmatprep.mubr.f32.mxu0 0.0
    %3751 = vmatmul.mubr.f32.gmra.mrb[0].mxu0 %v3684
    %v3752 = vpop.f32.mrb[0].mxu0
    %v3753 = vadd.f32 0.0, %v3752
    %v3754 = vpop.f32.mrb[0].mxu0
    %3755 = vdwg.mxu0
    %v3757 = vrot.slane %v3753, 2
    %v3759 = vadd.f32 %v2155, %v3757
    %v3760 = vxor.u32 %v3759, 2147483648
    %v3761 = vmul.f32 %v3760, 1.442695
    %v3762 = vpow.pop %v3761
    %v3763 = vadd.f32 %v3762, 1.0
    %v3764 = vrcp.pop %v3763
    %v3765 = vmul.f32 1.0, %v3764
    %v3766 = vtanh.pop %v3759
    %v3768 = vrot.slane %v3558, 6
    %v3770 = vmul.f32 %v3765, %v3768
    %3772 = vrot.lane.b32.xlu0 %v3766, 32
    %v3773 = vpop.permute.xlu0 %3772
    %v3775 = vmul.f32 %v3765, %v3773
    %3777 = vrot.lane.b32.xlu0 %v3775, 32
    %v3778 = vpop.permute.xlu0 %3777
    %v3780 = vadd.f32 %v3770, %v3778
    %v3781 = vtanh.pop %v3780
    %3783 = vrot.lane.b32.xlu0 %v3781, 32
    %v3784 = vpop.permute.xlu0 %3783
    %v3786 = vmul.f32 %v3765, %v3784
    %3788 = vrot.lane.b32.xlu0 %v3786, 64
    %v3789 = vpop.permute.xlu0 %3788
    %3791 = vst.msk [vmem:[#allocation2 + $0x8] sm:$0xc0] %vm1048, %v3789
    %v3792 = vrot.slane %v3675, 2
    %3793 = vrot.lane.b32.xlu0 %v3792, 64
    %v3794 = vpop.permute.xlu0 %3793
    %v3795 = vsel %vm284, %v3794, 0
    %3797 = vmatprep.subr.mxu0 0.0
    %3798 = vmatpush1.msra.mxu0 %v2043
    %3799 = vmatprep.subr.mxu0 0.0
    %3800 = vmatpush1.msra.mxu0 %v2044
    %3801 = vmatprep.subr.mxu0 0.0
    %3802 = vmatpush1.msra.mxu0 %v2045
    %3803 = vmatprep.subr.mxu0 0.0
    %3804 = vmatpush1.msra.mxu0 %v2046
    %3805 = vmatprep.subr.mxu0 0.0
    %3806 = vmatpush1.msra.mxu0 0.0
    %3807 = vmatprep.subr.mxu0 0.0
    %3808 = vmatpush1.msra.mxu0 0.0
    %3809 = vmatprep.subr.mxu0 0.0
    %3810 = vmatpush1.msra.mxu0 0.0
    %3811 = vmatprep.subr.mxu0 0.0
    %3812 = vmatpush1.msra.mxu0 0.0
    %3813 = vmatprep.subr.mxu0 0.0
    %3814 = vmatpush1.msra.mxu0 0.0
    %3815 = vmatprep.subr.mxu0 0.0
    %3816 = vmatpush1.msra.mxu0 0.0
    %3817 = vmatprep.subr.mxu0 0.0
    %3818 = vmatpush1.msra.mxu0 0.0
    %3819 = vmatprep.subr.mxu0 0.0
    %3820 = vmatpush1.msra.mxu0 0.0
    %3821 = vmatprep.subr.mxu0 0.0
    %3822 = vmatpush1.msra.mxu0 0.0
    %3823 = vmatprep.subr.mxu0 0.0
    %3824 = vmatpush1.msra.mxu0 0.0
    %3825 = vmatprep.subr.mxu0 0.0
    %3826 = vmatpush1.msra.mxu0 0.0
    %3827 = vmatprep.subr.mxu0 0.0
    %3828 = vmatpush1.msra.mxu0 0.0
    %3829 = vmatprep.subr.mxu0 0.0
    %3830 = vmatpush1.msra.mxu0 0.0
    %3831 = vmatprep.subr.mxu0 0.0
    %3832 = vmatpush1.msra.mxu0 0.0
    %3833 = vmatprep.subr.mxu0 0.0
    %3834 = vmatpush1.msra.mxu0 0.0
    %3835 = vmatprep.subr.mxu0 0.0
    %3836 = vmatpush1.msra.mxu0 0.0
    %3837 = vmatprep.subr.mxu0 0.0
    %3838 = vmatpush1.msra.mxu0 0.0
    %3839 = vmatprep.subr.mxu0 0.0
    %3840 = vmatpush1.msra.mxu0 0.0
    %3841 = vmatprep.subr.mxu0 0.0
    %3842 = vmatpush1.msra.mxu0 0.0
    %3843 = vmatprep.subr.mxu0 0.0
    %3844 = vmatpush1.msra.mxu0 0.0
    %3845 = vmatprep.subr.mxu0 0.0
    %3846 = vmatpush1.msra.mxu0 0.0
    %3847 = vmatprep.subr.mxu0 0.0
    %3848 = vmatpush1.msra.mxu0 0.0
    %3849 = vmatprep.subr.mxu0 0.0
    %3850 = vmatpush1.msra.mxu0 0.0
    %3851 = vmatprep.subr.mxu0 0.0
    %3852 = vmatpush1.msra.mxu0 0.0
    %3853 = vmatprep.subr.mxu0 0.0
    %3854 = vmatpush1.msra.mxu0 0.0
    %3855 = vmatprep.subr.mxu0 0.0
    %3856 = vmatpush1.msra.mxu0 0.0
    %3857 = vmatprep.subr.mxu0 0.0
    %3858 = vmatpush1.msra.mxu0 0.0
    %3859 = vmatprep.subr.mxu0 0.0
    %3860 = vmatpush1.msra.mxu0 0.0
    %3861 = vmatprep.mubr.f32.mxu0 0.0
    %3862 = vmatmul.mubr.f32.gmra.mrb[0].mxu0 %v3795
    %v3863 = vpop.f32.mrb[0].mxu0
    %v3864 = vadd.f32 0.0, %v3863
    %v3865 = vpop.f32.mrb[0].mxu0
    %3866 = vdwg.mxu0
    %v3867 = vadd.f32 %v2151, %v3864
    %v3868 = vxor.u32 %v3867, 2147483648
    %v3869 = vmul.f32 %v3868, 1.442695
    %v3870 = vpow.pop %v3869
    %v3871 = vadd.f32 %v3870, 1.0
    %v3872 = vrcp.pop %v3871
    %v3873 = vmul.f32 1.0, %v3872
    %v3874 = vtanh.pop %v3867
    %v3876 = vrot.slane %v3669, 2
    %v3878 = vmul.f32 %v3873, %v3876
    %3880 = vrot.lane.b32.xlu0 %v3874, 32
    %v3881 = vpop.permute.xlu0 %3880
    %v3883 = vmul.f32 %v3873, %v3881
    %3885 = vrot.lane.b32.xlu0 %v3883, 32
    %v3886 = vpop.permute.xlu0 %3885
    %v3888 = vadd.f32 %v3878, %v3886
    %v3889 = vtanh.pop %v3888
    %3891 = vrot.lane.b32.xlu0 %v3889, 32
    %v3892 = vpop.permute.xlu0 %3891
    %v3894 = vmul.f32 %v3873, %v3892
    %3896 = vrot.lane.b32.xlu0 %v3894, 96
    %v3897 = vpop.permute.xlu0 %3896
    %3899 = vst.msk [vmem:[#allocation2] sm:$0x3] %vm1157, %v3897
    %v3900 = vld [vmem:[#allocation2] sm:$0xff]
    %v3901 = vld [vmem:[#allocation2 + $0x8] sm:$0xff]
    %v3902 = vld [vmem:[#allocation14] sm:$0xff]
    %v3903 = vld [vmem:[#allocation14 + $0x8] sm:$0xff]
    %v3904 = vld [vmem:[#allocation14 + $0x10] sm:$0xff]
    %v3905 = vld [vmem:[#allocation14 + $0x18] sm:$0xff]
    %v3906 = vld [vmem:[#allocation15] sm:$0xff]
    %v3907 = vld [vmem:[#allocation15 + $0x8] sm:$0xff]
    %v3908 = vld [vmem:[#allocation15 + $0x10] sm:$0xff]
    %v3909 = vld [vmem:[#allocation15 + $0x18] sm:$0xff]
    %v3910 = vld [vmem:[#allocation12] sm:$0xff]
    %v3911 = vld [vmem:[#allocation12 + $0x8] sm:$0xff]
    %v3912 = vld [vmem:[#allocation12 + $0x10] sm:$0xff]
    %v3913 = vld [vmem:[#allocation12 + $0x18] sm:$0xff]
    %v3914 = vld [vmem:[#allocation12 + $0x20] sm:$0xff]
    %v3915 = vld [vmem:[#allocation12 + $0x28] sm:$0xff]
    %v3916 = vld [vmem:[#allocation12 + $0x30] sm:$0xff]
    %v3917 = vld [vmem:[#allocation12 + $0x38] sm:$0xff]
    %v3918 = vld [vmem:[#allocation12 + $0x40] sm:$0xff]
    %v3919 = vld [vmem:[#allocation12 + $0x48] sm:$0xff]
    %v3920 = vld [vmem:[#allocation12 + $0x50] sm:$0xff]
    %v3921 = vld [vmem:[#allocation12 + $0x58] sm:$0xff]
    %v3922 = vld [vmem:[#allocation12 + $0x60] sm:$0xff]
    %v3923 = vld [vmem:[#allocation12 + $0x68] sm:$0xff]
    %v3924 = vld [vmem:[#allocation12 + $0x70] sm:$0xff]
    %v3925 = vld [vmem:[#allocation12 + $0x78] sm:$0xff]
    %v3926 = vld [vmem:[%s12] sm:$0x3]
    %v3928 = vlaneseq
    %v3929 = vshrl.u32 %v3928, 7
    %v3930 = vsub.s32 0, %v3929
    %v3931 = vrot.slane %v3926, %v3930
    %v3932 = vlaneseq
    %v3933 = vshrl.u32 %v3932, 7
    %v3934 = vsub.s32 1, %v3933
    %v3935 = vrot.slane %v3926, %v3934
    %v3939 = vsel %vm2075, %v3900, 0
    %v3942 = vsel %vm2075, %v3901, 0
    %3944 = vmatprep.subr.mxu0 %v3911
    %3945 = vmatpush1.msra.mxu0 %v3910
    %3946 = vmatprep.subr.mxu0 %v3913
    %3947 = vmatpush1.msra.mxu0 %v3912
    %3948 = vmatprep.subr.mxu0 %v3915
    %3949 = vmatpush1.msra.mxu0 %v3914
    %3950 = vmatprep.subr.mxu0 %v3917
    %3951 = vmatpush1.msra.mxu0 %v3916
    %3952 = vmatprep.subr.mxu0 %v3919
    %3953 = vmatpush1.msra.mxu0 %v3918
    %3954 = vmatprep.subr.mxu0 %v3921
    %3955 = vmatpush1.msra.mxu0 %v3920
    %3956 = vmatprep.subr.mxu0 %v3923
    %3957 = vmatpush1.msra.mxu0 %v3922
    %3958 = vmatprep.subr.mxu0 %v3925
    %3959 = vmatpush1.msra.mxu0 %v3924
    %3960 = vmatprep.subr.mxu0 0.0
    %3961 = vmatpush1.msra.mxu0 0.0
    %3962 = vmatprep.subr.mxu0 0.0
    %3963 = vmatpush1.msra.mxu0 0.0
    %3964 = vmatprep.subr.mxu0 0.0
    %3965 = vmatpush1.msra.mxu0 0.0
    %3966 = vmatprep.subr.mxu0 0.0
    %3967 = vmatpush1.msra.mxu0 0.0
    %3968 = vmatprep.subr.mxu0 0.0
    %3969 = vmatpush1.msra.mxu0 0.0
    %3970 = vmatprep.subr.mxu0 0.0
    %3971 = vmatpush1.msra.mxu0 0.0
    %3972 = vmatprep.subr.mxu0 0.0
    %3973 = vmatpush1.msra.mxu0 0.0
    %3974 = vmatprep.subr.mxu0 0.0
    %3975 = vmatpush1.msra.mxu0 0.0
    %3976 = vmatprep.subr.mxu0 0.0
    %3977 = vmatpush1.msra.mxu0 0.0
    %3978 = vmatprep.subr.mxu0 0.0
    %3979 = vmatpush1.msra.mxu0 0.0
    %3980 = vmatprep.subr.mxu0 0.0
    %3981 = vmatpush1.msra.mxu0 0.0
    %3982 = vmatprep.subr.mxu0 0.0
    %3983 = vmatpush1.msra.mxu0 0.0
    %3984 = vmatprep.subr.mxu0 0.0
    %3985 = vmatpush1.msra.mxu0 0.0
    %3986 = vmatprep.subr.mxu0 0.0
    %3987 = vmatpush1.msra.mxu0 0.0
    %3988 = vmatprep.subr.mxu0 0.0
    %3989 = vmatpush1.msra.mxu0 0.0
    %3990 = vmatprep.subr.mxu0 0.0
    %3991 = vmatpush1.msra.mxu0 0.0
    %3992 = vmatprep.subr.mxu0 0.0
    %3993 = vmatpush1.msra.mxu0 0.0
    %3994 = vmatprep.subr.mxu0 0.0
    %3995 = vmatpush1.msra.mxu0 0.0
    %3996 = vmatprep.subr.mxu0 0.0
    %3997 = vmatpush1.msra.mxu0 0.0
    %3998 = vmatprep.subr.mxu0 0.0
    %3999 = vmatpush1.msra.mxu0 0.0
    %4000 = vmatprep.subr.mxu0 0.0
    %4001 = vmatpush1.msra.mxu0 0.0
    %4002 = vmatprep.subr.mxu0 0.0
    %4003 = vmatpush1.msra.mxu0 0.0
    %4004 = vmatprep.subr.mxu0 0.0
    %4005 = vmatpush1.msra.mxu0 0.0
    %4006 = vmatprep.subr.mxu0 0.0
    %4007 = vmatpush1.msra.mxu0 0.0
    %4008 = vmatprep.mubr.f32.mxu0 0.0
    %4009 = vmatmul.mubr.f32.gmra.mrb[0].mxu0 %v3939
    %v4010 = vpop.f32.mrb[0].mxu0
    %v4011 = vadd.f32 %v3931, %v4010
    %v4012 = vpop.f32.mrb[0].mxu0
    %v4013 = vadd.f32 %v3935, %v4012
    %4014 = vmatprep.mubr.f32.mxu0 0.0
    %4015 = vmatmul.mubr.f32.gmra.mrb[0].mxu0 %v3942
    %v4016 = vpop.f32.mrb[0].mxu0
    %v4017 = vadd.f32 %v3931, %v4016
    %v4018 = vpop.f32.mrb[0].mxu0
    %v4019 = vadd.f32 %v3935, %v4018
    %4020 = vdwg.mxu0
    %4021 = vmatprep.subr.mxu0 0.0
    %4022 = vmatpush1.msra.mxu0 %v3902
    %4023 = vmatprep.subr.mxu0 0.0
    %4024 = vmatpush1.msra.mxu0 %v3903
    %4025 = vmatprep.subr.mxu0 0.0
    %4026 = vmatpush1.msra.mxu0 %v3904
    %4027 = vmatprep.subr.mxu0 0.0
    %4028 = vmatpush1.msra.mxu0 %v3905
    %4029 = vmatprep.subr.mxu0 0.0
    %4030 = vmatpush1.msra.mxu0 0.0
    %4031 = vmatprep.subr.mxu0 0.0
    %4032 = vmatpush1.msra.mxu0 0.0
    %4033 = vmatprep.subr.mxu0 0.0
    %4034 = vmatpush1.msra.mxu0 0.0
    %4035 = vmatprep.subr.mxu0 0.0
    %4036 = vmatpush1.msra.mxu0 0.0
    %4037 = vmatprep.subr.mxu0 0.0
    %4038 = vmatpush1.msra.mxu0 0.0
    %4039 = vmatprep.subr.mxu0 0.0
    %4040 = vmatpush1.msra.mxu0 0.0
    %4041 = vmatprep.subr.mxu0 0.0
    %4042 = vmatpush1.msra.mxu0 0.0
    %4043 = vmatprep.subr.mxu0 0.0
    %4044 = vmatpush1.msra.mxu0 0.0
    %4045 = vmatprep.subr.mxu0 0.0
    %4046 = vmatpush1.msra.mxu0 0.0
    %4047 = vmatprep.subr.mxu0 0.0
    %4048 = vmatpush1.msra.mxu0 0.0
    %4049 = vmatprep.subr.mxu0 0.0
    %4050 = vmatpush1.msra.mxu0 0.0
    %4051 = vmatprep.subr.mxu0 0.0
    %4052 = vmatpush1.msra.mxu0 0.0
    %4053 = vmatprep.subr.mxu0 0.0
    %4054 = vmatpush1.msra.mxu0 0.0
    %4055 = vmatprep.subr.mxu0 0.0
    %4056 = vmatpush1.msra.mxu0 0.0
    %4057 = vmatprep.subr.mxu0 0.0
    %4058 = vmatpush1.msra.mxu0 0.0
    %4059 = vmatprep.subr.mxu0 0.0
    %4060 = vmatpush1.msra.mxu0 0.0
    %4061 = vmatprep.subr.mxu0 0.0
    %4062 = vmatpush1.msra.mxu0 0.0
    %4063 = vmatprep.subr.mxu0 0.0
    %4064 = vmatpush1.msra.mxu0 0.0
    %4065 = vmatprep.subr.mxu0 0.0
    %4066 = vmatpush1.msra.mxu0 0.0
    %4067 = vmatprep.subr.mxu0 0.0
    %4068 = vmatpush1.msra.mxu0 0.0
    %4069 = vmatprep.subr.mxu0 0.0
    %4070 = vmatpush1.msra.mxu0 0.0
    %4071 = vmatprep.subr.mxu0 0.0
    %4072 = vmatpush1.msra.mxu0 0.0
    %4073 = vmatprep.subr.mxu0 0.0
    %4074 = vmatpush1.msra.mxu0 0.0
    %4075 = vmatprep.subr.mxu0 0.0
    %4076 = vmatpush1.msra.mxu0 0.0
    %4077 = vmatprep.subr.mxu0 0.0
    %4078 = vmatpush1.msra.mxu0 0.0
    %4079 = vmatprep.subr.mxu0 0.0
    %4080 = vmatpush1.msra.mxu0 0.0
    %4081 = vmatprep.subr.mxu0 0.0
    %4082 = vmatpush1.msra.mxu0 0.0
    %4083 = vmatprep.subr.mxu0 0.0
    %4084 = vmatpush1.msra.mxu0 0.0
    %4085 = vmatprep.mubr.f32.mxu0 0.0
    %4086 = vmatmul.mubr.f32.gmra.mrb[0].mxu0 %v286
    %v4087 = vpop.f32.mrb[0].mxu0
    %v4088 = vadd.f32 0.0, %v4087
    %v4089 = vpop.f32.mrb[0].mxu0
    %4090 = vdwg.mxu0
    %v4091 = vadd.f32 %v4011, %v4088
    %v4092 = vxor.u32 %v4091, 2147483648
    %v4093 = vmul.f32 %v4092, 1.442695
    %v4094 = vpow.pop %v4093
    %v4095 = vadd.f32 %v4094, 1.0
    %v4096 = vrcp.pop %v4095
    %v4097 = vmul.f32 1.0, %v4096
    %v4098 = vtanh.pop %v4091
    %v4099 = vmul.f32 %v4097, 0.0
    %4101 = vrot.lane.b32.xlu0 %v4098, 32
    %v4102 = vpop.permute.xlu0 %4101
    %v4104 = vmul.f32 %v4097, %v4102
    %4106 = vrot.lane.b32.xlu0 %v4104, 32
    %v4107 = vpop.permute.xlu0 %4106
    %v4109 = vadd.f32 %v4099, %v4107
    %v4110 = vtanh.pop %v4109
    %4112 = vrot.lane.b32.xlu0 %v4110, 32
    %v4113 = vpop.permute.xlu0 %4112
    %v4115 = vmul.f32 %v4097, %v4113
    %4117 = vrot.lane.b32.xlu0 %v4115, 64
    %v4118 = vpop.permute.xlu0 %4117
    %4120 = vst.msk [vmem:[#allocation2] sm:$0x3] %vm387, %v4118
    %4121 = vmatprep.subr.mxu0 0.0
    %4122 = vmatpush1.msra.mxu0 %v3906
    %4123 = vmatprep.subr.mxu0 0.0
    %4124 = vmatpush1.msra.mxu0 %v3907
    %4125 = vmatprep.subr.mxu0 0.0
    %4126 = vmatpush1.msra.mxu0 %v3908
    %4127 = vmatprep.subr.mxu0 0.0
    %4128 = vmatpush1.msra.mxu0 %v3909
    %4129 = vmatprep.subr.mxu0 0.0
    %4130 = vmatpush1.msra.mxu0 0.0
    %4131 = vmatprep.subr.mxu0 0.0
    %4132 = vmatpush1.msra.mxu0 0.0
    %4133 = vmatprep.subr.mxu0 0.0
    %4134 = vmatpush1.msra.mxu0 0.0
    %4135 = vmatprep.subr.mxu0 0.0
    %4136 = vmatpush1.msra.mxu0 0.0
    %4137 = vmatprep.subr.mxu0 0.0
    %4138 = vmatpush1.msra.mxu0 0.0
    %4139 = vmatprep.subr.mxu0 0.0
    %4140 = vmatpush1.msra.mxu0 0.0
    %4141 = vmatprep.subr.mxu0 0.0
    %4142 = vmatpush1.msra.mxu0 0.0
    %4143 = vmatprep.subr.mxu0 0.0
    %4144 = vmatpush1.msra.mxu0 0.0
    %4145 = vmatprep.subr.mxu0 0.0
    %4146 = vmatpush1.msra.mxu0 0.0
    %4147 = vmatprep.subr.mxu0 0.0
    %4148 = vmatpush1.msra.mxu0 0.0
    %4149 = vmatprep.subr.mxu0 0.0
    %4150 = vmatpush1.msra.mxu0 0.0
    %4151 = vmatprep.subr.mxu0 0.0
    %4152 = vmatpush1.msra.mxu0 0.0
    %4153 = vmatprep.subr.mxu0 0.0
    %4154 = vmatpush1.msra.mxu0 0.0
    %4155 = vmatprep.subr.mxu0 0.0
    %4156 = vmatpush1.msra.mxu0 0.0
    %4157 = vmatprep.subr.mxu0 0.0
    %4158 = vmatpush1.msra.mxu0 0.0
    %4159 = vmatprep.subr.mxu0 0.0
    %4160 = vmatpush1.msra.mxu0 0.0
    %4161 = vmatprep.subr.mxu0 0.0
    %4162 = vmatpush1.msra.mxu0 0.0
    %4163 = vmatprep.subr.mxu0 0.0
    %4164 = vmatpush1.msra.mxu0 0.0
    %4165 = vmatprep.subr.mxu0 0.0
    %4166 = vmatpush1.msra.mxu0 0.0
    %4167 = vmatprep.subr.mxu0 0.0
    %4168 = vmatpush1.msra.mxu0 0.0
    %4169 = vmatprep.subr.mxu0 0.0
    %4170 = vmatpush1.msra.mxu0 0.0
    %4171 = vmatprep.subr.mxu0 0.0
    %4172 = vmatpush1.msra.mxu0 0.0
    %4173 = vmatprep.subr.mxu0 0.0
    %4174 = vmatpush1.msra.mxu0 0.0
    %4175 = vmatprep.subr.mxu0 0.0
    %4176 = vmatpush1.msra.mxu0 0.0
    %4177 = vmatprep.subr.mxu0 0.0
    %4178 = vmatpush1.msra.mxu0 0.0
    %4179 = vmatprep.subr.mxu0 0.0
    %4180 = vmatpush1.msra.mxu0 0.0
    %4181 = vmatprep.subr.mxu0 0.0
    %4182 = vmatpush1.msra.mxu0 0.0
    %4183 = vmatprep.subr.mxu0 0.0
    %4184 = vmatpush1.msra.mxu0 0.0
    %4185 = vmatprep.mubr.f32.mxu0 0.0
    %4186 = vmatmul.mubr.f32.gmra.mrb[0].mxu0 %v286
    %v4187 = vpop.f32.mrb[0].mxu0
    %v4188 = vadd.f32 0.0, %v4187
    %v4189 = vpop.f32.mrb[0].mxu0
    %4190 = vdwg.mxu0
    %v4192 = vrot.slane %v4188, 2
    %v4194 = vadd.f32 %v4019, %v4192
    %v4195 = vxor.u32 %v4194, 2147483648
    %v4196 = vmul.f32 %v4195, 1.442695
    %v4197 = vpow.pop %v4196
    %v4198 = vadd.f32 %v4197, 1.0
    %v4199 = vrcp.pop %v4198
    %v4200 = vmul.f32 1.0, %v4199
    %v4201 = vtanh.pop %v4194
    %v4202 = vmul.f32 %v4200, 0.0
    %4204 = vrot.lane.b32.xlu0 %v4201, 32
    %v4205 = vpop.permute.xlu0 %4204
    %v4207 = vmul.f32 %v4200, %v4205
    %4209 = vrot.lane.b32.xlu0 %v4207, 32
    %v4210 = vpop.permute.xlu0 %4209
    %v4212 = vadd.f32 %v4202, %v4210
    %v4213 = vtanh.pop %v4212
    %4215 = vrot.lane.b32.xlu0 %v4213, 32
    %v4216 = vpop.permute.xlu0 %4215
    %v4218 = vmul.f32 %v4200, %v4216
    %4220 = vrot.lane.b32.xlu0 %v4218, 96
    %v4221 = vpop.permute.xlu0 %4220
    %4223 = vst.msk [vmem:[#allocation2 + $0x8] sm:$0xc0] %vm491, %v4221
    %v4224 = vsel %vm284, %v4118, 0
    %4226 = vmatprep.subr.mxu0 0.0
    %4227 = vmatpush1.msra.mxu0 %v3902
    %4228 = vmatprep.subr.mxu0 0.0
    %4229 = vmatpush1.msra.mxu0 %v3903
    %4230 = vmatprep.subr.mxu0 0.0
    %4231 = vmatpush1.msra.mxu0 %v3904
    %4232 = vmatprep.subr.mxu0 0.0
    %4233 = vmatpush1.msra.mxu0 %v3905
    %4234 = vmatprep.subr.mxu0 0.0
    %4235 = vmatpush1.msra.mxu0 0.0
    %4236 = vmatprep.subr.mxu0 0.0
    %4237 = vmatpush1.msra.mxu0 0.0
    %4238 = vmatprep.subr.mxu0 0.0
    %4239 = vmatpush1.msra.mxu0 0.0
    %4240 = vmatprep.subr.mxu0 0.0
    %4241 = vmatpush1.msra.mxu0 0.0
    %4242 = vmatprep.subr.mxu0 0.0
    %4243 = vmatpush1.msra.mxu0 0.0
    %4244 = vmatprep.subr.mxu0 0.0
    %4245 = vmatpush1.msra.mxu0 0.0
    %4246 = vmatprep.subr.mxu0 0.0
    %4247 = vmatpush1.msra.mxu0 0.0
    %4248 = vmatprep.subr.mxu0 0.0
    %4249 = vmatpush1.msra.mxu0 0.0
    %4250 = vmatprep.subr.mxu0 0.0
    %4251 = vmatpush1.msra.mxu0 0.0
    %4252 = vmatprep.subr.mxu0 0.0
    %4253 = vmatpush1.msra.mxu0 0.0
    %4254 = vmatprep.subr.mxu0 0.0
    %4255 = vmatpush1.msra.mxu0 0.0
    %4256 = vmatprep.subr.mxu0 0.0
    %4257 = vmatpush1.msra.mxu0 0.0
    %4258 = vmatprep.subr.mxu0 0.0
    %4259 = vmatpush1.msra.mxu0 0.0
    %4260 = vmatprep.subr.mxu0 0.0
    %4261 = vmatpush1.msra.mxu0 0.0
    %4262 = vmatprep.subr.mxu0 0.0
    %4263 = vmatpush1.msra.mxu0 0.0
    %4264 = vmatprep.subr.mxu0 0.0
    %4265 = vmatpush1.msra.mxu0 0.0
    %4266 = vmatprep.subr.mxu0 0.0
    %4267 = vmatpush1.msra.mxu0 0.0
    %4268 = vmatprep.subr.mxu0 0.0
    %4269 = vmatpush1.msra.mxu0 0.0
    %4270 = vmatprep.subr.mxu0 0.0
    %4271 = vmatpush1.msra.mxu0 0.0
    %4272 = vmatprep.subr.mxu0 0.0
    %4273 = vmatpush1.msra.mxu0 0.0
    %4274 = vmatprep.subr.mxu0 0.0
    %4275 = vmatpush1.msra.mxu0 0.0
    %4276 = vmatprep.subr.mxu0 0.0
    %4277 = vmatpush1.msra.mxu0 0.0
    %4278 = vmatprep.subr.mxu0 0.0
    %4279 = vmatpush1.msra.mxu0 0.0
    %4280 = vmatprep.subr.mxu0 0.0
    %4281 = vmatpush1.msra.mxu0 0.0
    %4282 = vmatprep.subr.mxu0 0.0
    %4283 = vmatpush1.msra.mxu0 0.0
    %4284 = vmatprep.subr.mxu0 0.0
    %4285 = vmatpush1.msra.mxu0 0.0
    %4286 = vmatprep.subr.mxu0 0.0
    %4287 = vmatpush1.msra.mxu0 0.0
    %4288 = vmatprep.subr.mxu0 0.0
    %4289 = vmatpush1.msra.mxu0 0.0
    %4290 = vmatprep.mubr.f32.mxu0 0.0
    %4291 = vmatmul.mubr.f32.gmra.mrb[0].mxu0 %v4224
    %v4292 = vpop.f32.mrb[0].mxu0
    %v4293 = vadd.f32 0.0, %v4292
    %v4294 = vpop.f32.mrb[0].mxu0
    %4295 = vdwg.mxu0
    %v4297 = vrot.slane %v4293, 6
    %v4299 = vadd.f32 %v4011, %v4297
    %v4300 = vxor.u32 %v4299, 2147483648
    %v4301 = vmul.f32 %v4300, 1.442695
    %v4302 = vpow.pop %v4301
    %v4303 = vadd.f32 %v4302, 1.0
    %v4304 = vrcp.pop %v4303
    %v4305 = vmul.f32 1.0, %v4304
    %v4306 = vtanh.pop %v4299
    %v4308 = vrot.slane %v4109, 6
    %v4310 = vmul.f32 %v4305, %v4308
    %4312 = vrot.lane.b32.xlu0 %v4306, 32
    %v4313 = vpop.permute.xlu0 %4312
    %v4315 = vmul.f32 %v4305, %v4313
    %4317 = vrot.lane.b32.xlu0 %v4315, 32
    %v4318 = vpop.permute.xlu0 %4317
    %v4320 = vadd.f32 %v4310, %v4318
    %v4321 = vtanh.pop %v4320
    %4323 = vrot.lane.b32.xlu0 %v4321, 32
    %v4324 = vpop.permute.xlu0 %4323
    %v4326 = vmul.f32 %v4305, %v4324
    %4328 = vrot.lane.b32.xlu0 %v4326, 64
    %v4329 = vpop.permute.xlu0 %4328
    %4331 = vst.msk [vmem:[#allocation2] sm:$0xc] %vm600, %v4329
    %v4332 = vrot.slane %v4218, 6
    %4333 = vrot.lane.b32.xlu0 %v4332, 64
    %v4334 = vpop.permute.xlu0 %4333
    %v4335 = vsel %vm284, %v4334, 0
    %4337 = vmatprep.subr.mxu0 0.0
    %4338 = vmatpush1.msra.mxu0 %v3906
    %4339 = vmatprep.subr.mxu0 0.0
    %4340 = vmatpush1.msra.mxu0 %v3907
    %4341 = vmatprep.subr.mxu0 0.0
    %4342 = vmatpush1.msra.mxu0 %v3908
    %4343 = vmatprep.subr.mxu0 0.0
    %4344 = vmatpush1.msra.mxu0 %v3909
    %4345 = vmatprep.subr.mxu0 0.0
    %4346 = vmatpush1.msra.mxu0 0.0
    %4347 = vmatprep.subr.mxu0 0.0
    %4348 = vmatpush1.msra.mxu0 0.0
    %4349 = vmatprep.subr.mxu0 0.0
    %4350 = vmatpush1.msra.mxu0 0.0
    %4351 = vmatprep.subr.mxu0 0.0
    %4352 = vmatpush1.msra.mxu0 0.0
    %4353 = vmatprep.subr.mxu0 0.0
    %4354 = vmatpush1.msra.mxu0 0.0
    %4355 = vmatprep.subr.mxu0 0.0
    %4356 = vmatpush1.msra.mxu0 0.0
    %4357 = vmatprep.subr.mxu0 0.0
    %4358 = vmatpush1.msra.mxu0 0.0
    %4359 = vmatprep.subr.mxu0 0.0
    %4360 = vmatpush1.msra.mxu0 0.0
    %4361 = vmatprep.subr.mxu0 0.0
    %4362 = vmatpush1.msra.mxu0 0.0
    %4363 = vmatprep.subr.mxu0 0.0
    %4364 = vmatpush1.msra.mxu0 0.0
    %4365 = vmatprep.subr.mxu0 0.0
    %4366 = vmatpush1.msra.mxu0 0.0
    %4367 = vmatprep.subr.mxu0 0.0
    %4368 = vmatpush1.msra.mxu0 0.0
    %4369 = vmatprep.subr.mxu0 0.0
    %4370 = vmatpush1.msra.mxu0 0.0
    %4371 = vmatprep.subr.mxu0 0.0
    %4372 = vmatpush1.msra.mxu0 0.0
    %4373 = vmatprep.subr.mxu0 0.0
    %4374 = vmatpush1.msra.mxu0 0.0
    %4375 = vmatprep.subr.mxu0 0.0
    %4376 = vmatpush1.msra.mxu0 0.0
    %4377 = vmatprep.subr.mxu0 0.0
    %4378 = vmatpush1.msra.mxu0 0.0
    %4379 = vmatprep.subr.mxu0 0.0
    %4380 = vmatpush1.msra.mxu0 0.0
    %4381 = vmatprep.subr.mxu0 0.0
    %4382 = vmatpush1.msra.mxu0 0.0
    %4383 = vmatprep.subr.mxu0 0.0
    %4384 = vmatpush1.msra.mxu0 0.0
    %4385 = vmatprep.subr.mxu0 0.0
    %4386 = vmatpush1.msra.mxu0 0.0
    %4387 = vmatprep.subr.mxu0 0.0
    %4388 = vmatpush1.msra.mxu0 0.0
    %4389 = vmatprep.subr.mxu0 0.0
    %4390 = vmatpush1.msra.mxu0 0.0
    %4391 = vmatprep.subr.mxu0 0.0
    %4392 = vmatpush1.msra.mxu0 0.0
    %4393 = vmatprep.subr.mxu0 0.0
    %4394 = vmatpush1.msra.mxu0 0.0
    %4395 = vmatprep.subr.mxu0 0.0
    %4396 = vmatpush1.msra.mxu0 0.0
    %4397 = vmatprep.subr.mxu0 0.0
    %4398 = vmatpush1.msra.mxu0 0.0
    %4399 = vmatprep.subr.mxu0 0.0
    %4400 = vmatpush1.msra.mxu0 0.0
    %4401 = vmatprep.mubr.f32.mxu0 0.0
    %4402 = vmatmul.mubr.f32.gmra.mrb[0].mxu0 %v4335
    %v4403 = vpop.f32.mrb[0].mxu0
    %v4404 = vadd.f32 0.0, %v4403
    %v4405 = vpop.f32.mrb[0].mxu0
    %4406 = vdwg.mxu0
    %v4408 = vrot.slane %v4404, 4
    %v4410 = vadd.f32 %v4019, %v4408
    %v4411 = vxor.u32 %v4410, 2147483648
    %v4412 = vmul.f32 %v4411, 1.442695
    %v4413 = vpow.pop %v4412
    %v4414 = vadd.f32 %v4413, 1.0
    %v4415 = vrcp.pop %v4414
    %v4416 = vmul.f32 1.0, %v4415
    %v4417 = vtanh.pop %v4410
    %v4419 = vrot.slane %v4212, 2
    %v4421 = vmul.f32 %v4416, %v4419
    %4423 = vrot.lane.b32.xlu0 %v4417, 32
    %v4424 = vpop.permute.xlu0 %4423
    %v4426 = vmul.f32 %v4416, %v4424
    %4428 = vrot.lane.b32.xlu0 %v4426, 32
    %v4429 = vpop.permute.xlu0 %4428
    %v4431 = vadd.f32 %v4421, %v4429
    %v4432 = vtanh.pop %v4431
    %4434 = vrot.lane.b32.xlu0 %v4432, 32
    %v4435 = vpop.permute.xlu0 %4434
    %v4437 = vmul.f32 %v4416, %v4435
    %4439 = vrot.lane.b32.xlu0 %v4437, 96
    %v4440 = vpop.permute.xlu0 %4439
    %4442 = vst.msk [vmem:[#allocation2 + $0x8] sm:$0x30] %vm712, %v4440
    %v4443 = vrot.slane %v4326, 2
    %4444 = vrot.lane.b32.xlu0 %v4443, 64
    %v4445 = vpop.permute.xlu0 %4444
    %v4446 = vsel %vm284, %v4445, 0
    %4448 = vmatprep.subr.mxu0 0.0
    %4449 = vmatpush1.msra.mxu0 %v3902
    %4450 = vmatprep.subr.mxu0 0.0
    %4451 = vmatpush1.msra.mxu0 %v3903
    %4452 = vmatprep.subr.mxu0 0.0
    %4453 = vmatpush1.msra.mxu0 %v3904
    %4454 = vmatprep.subr.mxu0 0.0
    %4455 = vmatpush1.msra.mxu0 %v3905
    %4456 = vmatprep.subr.mxu0 0.0
    %4457 = vmatpush1.msra.mxu0 0.0
    %4458 = vmatprep.subr.mxu0 0.0
    %4459 = vmatpush1.msra.mxu0 0.0
    %4460 = vmatprep.subr.mxu0 0.0
    %4461 = vmatpush1.msra.mxu0 0.0
    %4462 = vmatprep.subr.mxu0 0.0
    %4463 = vmatpush1.msra.mxu0 0.0
    %4464 = vmatprep.subr.mxu0 0.0
    %4465 = vmatpush1.msra.mxu0 0.0
    %4466 = vmatprep.subr.mxu0 0.0
    %4467 = vmatpush1.msra.mxu0 0.0
    %4468 = vmatprep.subr.mxu0 0.0
    %4469 = vmatpush1.msra.mxu0 0.0
    %4470 = vmatprep.subr.mxu0 0.0
    %4471 = vmatpush1.msra.mxu0 0.0
    %4472 = vmatprep.subr.mxu0 0.0
    %4473 = vmatpush1.msra.mxu0 0.0
    %4474 = vmatprep.subr.mxu0 0.0
    %4475 = vmatpush1.msra.mxu0 0.0
    %4476 = vmatprep.subr.mxu0 0.0
    %4477 = vmatpush1.msra.mxu0 0.0
    %4478 = vmatprep.subr.mxu0 0.0
    %4479 = vmatpush1.msra.mxu0 0.0
    %4480 = vmatprep.subr.mxu0 0.0
    %4481 = vmatpush1.msra.mxu0 0.0
    %4482 = vmatprep.subr.mxu0 0.0
    %4483 = vmatpush1.msra.mxu0 0.0
    %4484 = vmatprep.subr.mxu0 0.0
    %4485 = vmatpush1.msra.mxu0 0.0
    %4486 = vmatprep.subr.mxu0 0.0
    %4487 = vmatpush1.msra.mxu0 0.0
    %4488 = vmatprep.subr.mxu0 0.0
    %4489 = vmatpush1.msra.mxu0 0.0
    %4490 = vmatprep.subr.mxu0 0.0
    %4491 = vmatpush1.msra.mxu0 0.0
    %4492 = vmatprep.subr.mxu0 0.0
    %4493 = vmatpush1.msra.mxu0 0.0
    %4494 = vmatprep.subr.mxu0 0.0
    %4495 = vmatpush1.msra.mxu0 0.0
    %4496 = vmatprep.subr.mxu0 0.0
    %4497 = vmatpush1.msra.mxu0 0.0
    %4498 = vmatprep.subr.mxu0 0.0
    %4499 = vmatpush1.msra.mxu0 0.0
    %4500 = vmatprep.subr.mxu0 0.0
    %4501 = vmatpush1.msra.mxu0 0.0
    %4502 = vmatprep.subr.mxu0 0.0
    %4503 = vmatpush1.msra.mxu0 0.0
    %4504 = vmatprep.subr.mxu0 0.0
    %4505 = vmatpush1.msra.mxu0 0.0
    %4506 = vmatprep.subr.mxu0 0.0
    %4507 = vmatpush1.msra.mxu0 0.0
    %4508 = vmatprep.subr.mxu0 0.0
    %4509 = vmatpush1.msra.mxu0 0.0
    %4510 = vmatprep.subr.mxu0 0.0
    %4511 = vmatpush1.msra.mxu0 0.0
    %4512 = vmatprep.mubr.f32.mxu0 0.0
    %4513 = vmatmul.mubr.f32.gmra.mrb[0].mxu0 %v4446
    %v4514 = vpop.f32.mrb[0].mxu0
    %v4515 = vadd.f32 0.0, %v4514
    %v4516 = vpop.f32.mrb[0].mxu0
    %4517 = vdwg.mxu0
    %v4519 = vrot.slane %v4515, 4
    %v4521 = vadd.f32 %v4011, %v4519
    %v4522 = vxor.u32 %v4521, 2147483648
    %v4523 = vmul.f32 %v4522, 1.442695
    %v4524 = vpow.pop %v4523
    %v4525 = vadd.f32 %v4524, 1.0
    %v4526 = vrcp.pop %v4525
    %v4527 = vmul.f32 1.0, %v4526
    %v4528 = vtanh.pop %v4521
    %v4530 = vrot.slane %v4320, 6
    %v4532 = vmul.f32 %v4527, %v4530
    %4534 = vrot.lane.b32.xlu0 %v4528, 32
    %v4535 = vpop.permute.xlu0 %4534
    %v4537 = vmul.f32 %v4527, %v4535
    %4539 = vrot.lane.b32.xlu0 %v4537, 32
    %v4540 = vpop.permute.xlu0 %4539
    %v4542 = vadd.f32 %v4532, %v4540
    %v4543 = vtanh.pop %v4542
    %4545 = vrot.lane.b32.xlu0 %v4543, 32
    %v4546 = vpop.permute.xlu0 %4545
    %v4548 = vmul.f32 %v4527, %v4546
    %4550 = vrot.lane.b32.xlu0 %v4548, 64
    %v4551 = vpop.permute.xlu0 %4550
    %4553 = vst.msk [vmem:[#allocation2] sm:$0x30] %vm824, %v4551
    %v4554 = vrot.slane %v4437, 4
    %4555 = vrot.lane.b32.xlu0 %v4554, 64
    %v4556 = vpop.permute.xlu0 %4555
    %v4557 = vsel %vm284, %v4556, 0
    %4559 = vmatprep.subr.mxu0 0.0
    %4560 = vmatpush1.msra.mxu0 %v3906
    %4561 = vmatprep.subr.mxu0 0.0
    %4562 = vmatpush1.msra.mxu0 %v3907
    %4563 = vmatprep.subr.mxu0 0.0
    %4564 = vmatpush1.msra.mxu0 %v3908
    %4565 = vmatprep.subr.mxu0 0.0
    %4566 = vmatpush1.msra.mxu0 %v3909
    %4567 = vmatprep.subr.mxu0 0.0
    %4568 = vmatpush1.msra.mxu0 0.0
    %4569 = vmatprep.subr.mxu0 0.0
    %4570 = vmatpush1.msra.mxu0 0.0
    %4571 = vmatprep.subr.mxu0 0.0
    %4572 = vmatpush1.msra.mxu0 0.0
    %4573 = vmatprep.subr.mxu0 0.0
    %4574 = vmatpush1.msra.mxu0 0.0
    %4575 = vmatprep.subr.mxu0 0.0
    %4576 = vmatpush1.msra.mxu0 0.0
    %4577 = vmatprep.subr.mxu0 0.0
    %4578 = vmatpush1.msra.mxu0 0.0
    %4579 = vmatprep.subr.mxu0 0.0
    %4580 = vmatpush1.msra.mxu0 0.0
    %4581 = vmatprep.subr.mxu0 0.0
    %4582 = vmatpush1.msra.mxu0 0.0
    %4583 = vmatprep.subr.mxu0 0.0
    %4584 = vmatpush1.msra.mxu0 0.0
    %4585 = vmatprep.subr.mxu0 0.0
    %4586 = vmatpush1.msra.mxu0 0.0
    %4587 = vmatprep.subr.mxu0 0.0
    %4588 = vmatpush1.msra.mxu0 0.0
    %4589 = vmatprep.subr.mxu0 0.0
    %4590 = vmatpush1.msra.mxu0 0.0
    %4591 = vmatprep.subr.mxu0 0.0
    %4592 = vmatpush1.msra.mxu0 0.0
    %4593 = vmatprep.subr.mxu0 0.0
    %4594 = vmatpush1.msra.mxu0 0.0
    %4595 = vmatprep.subr.mxu0 0.0
    %4596 = vmatpush1.msra.mxu0 0.0
    %4597 = vmatprep.subr.mxu0 0.0
    %4598 = vmatpush1.msra.mxu0 0.0
    %4599 = vmatprep.subr.mxu0 0.0
    %4600 = vmatpush1.msra.mxu0 0.0
    %4601 = vmatprep.subr.mxu0 0.0
    %4602 = vmatpush1.msra.mxu0 0.0
    %4603 = vmatprep.subr.mxu0 0.0
    %4604 = vmatpush1.msra.mxu0 0.0
    %4605 = vmatprep.subr.mxu0 0.0
    %4606 = vmatpush1.msra.mxu0 0.0
    %4607 = vmatprep.subr.mxu0 0.0
    %4608 = vmatpush1.msra.mxu0 0.0
    %4609 = vmatprep.subr.mxu0 0.0
    %4610 = vmatpush1.msra.mxu0 0.0
    %4611 = vmatprep.subr.mxu0 0.0
    %4612 = vmatpush1.msra.mxu0 0.0
    %4613 = vmatprep.subr.mxu0 0.0
    %4614 = vmatpush1.msra.mxu0 0.0
    %4615 = vmatprep.subr.mxu0 0.0
    %4616 = vmatpush1.msra.mxu0 0.0
    %4617 = vmatprep.subr.mxu0 0.0
    %4618 = vmatpush1.msra.mxu0 0.0
    %4619 = vmatprep.subr.mxu0 0.0
    %4620 = vmatpush1.msra.mxu0 0.0
    %4621 = vmatprep.subr.mxu0 0.0
    %4622 = vmatpush1.msra.mxu0 0.0
    %4623 = vmatprep.mubr.f32.mxu0 0.0
    %4624 = vmatmul.mubr.f32.gmra.mrb[0].mxu0 %v4557
    %v4625 = vpop.f32.mrb[0].mxu0
    %v4626 = vadd.f32 0.0, %v4625
    %v4627 = vpop.f32.mrb[0].mxu0
    %4628 = vdwg.mxu0
    %v4630 = vrot.slane %v4626, 6
    %v4632 = vadd.f32 %v4019, %v4630
    %v4633 = vxor.u32 %v4632, 2147483648
    %v4634 = vmul.f32 %v4633, 1.442695
    %v4635 = vpow.pop %v4634
    %v4636 = vadd.f32 %v4635, 1.0
    %v4637 = vrcp.pop %v4636
    %v4638 = vmul.f32 1.0, %v4637
    %v4639 = vtanh.pop %v4632
    %v4641 = vrot.slane %v4431, 2
    %v4643 = vmul.f32 %v4638, %v4641
    %4645 = vrot.lane.b32.xlu0 %v4639, 32
    %v4646 = vpop.permute.xlu0 %4645
    %v4648 = vmul.f32 %v4638, %v4646
    %4650 = vrot.lane.b32.xlu0 %v4648, 32
    %v4651 = vpop.permute.xlu0 %4650
    %v4653 = vadd.f32 %v4643, %v4651
    %v4654 = vtanh.pop %v4653
    %4656 = vrot.lane.b32.xlu0 %v4654, 32
    %v4657 = vpop.permute.xlu0 %4656
    %v4659 = vmul.f32 %v4638, %v4657
    %4661 = vrot.lane.b32.xlu0 %v4659, 96
    %v4662 = vpop.permute.xlu0 %4661
    %4664 = vst.msk [vmem:[#allocation2 + $0x8] sm:$0xc] %vm936, %v4662
    %v4665 = vrot.slane %v4548, 4
    %4666 = vrot.lane.b32.xlu0 %v4665, 64
    %v4667 = vpop.permute.xlu0 %4666
    %v4668 = vsel %vm284, %v4667, 0
    %4670 = vmatprep.subr.mxu0 0.0
    %4671 = vmatpush1.msra.mxu0 %v3902
    %4672 = vmatprep.subr.mxu0 0.0
    %4673 = vmatpush1.msra.mxu0 %v3903
    %4674 = vmatprep.subr.mxu0 0.0
    %4675 = vmatpush1.msra.mxu0 %v3904
    %4676 = vmatprep.subr.mxu0 0.0
    %4677 = vmatpush1.msra.mxu0 %v3905
    %4678 = vmatprep.subr.mxu0 0.0
    %4679 = vmatpush1.msra.mxu0 0.0
    %4680 = vmatprep.subr.mxu0 0.0
    %4681 = vmatpush1.msra.mxu0 0.0
    %4682 = vmatprep.subr.mxu0 0.0
    %4683 = vmatpush1.msra.mxu0 0.0
    %4684 = vmatprep.subr.mxu0 0.0
    %4685 = vmatpush1.msra.mxu0 0.0
    %4686 = vmatprep.subr.mxu0 0.0
    %4687 = vmatpush1.msra.mxu0 0.0
    %4688 = vmatprep.subr.mxu0 0.0
    %4689 = vmatpush1.msra.mxu0 0.0
    %4690 = vmatprep.subr.mxu0 0.0
    %4691 = vmatpush1.msra.mxu0 0.0
    %4692 = vmatprep.subr.mxu0 0.0
    %4693 = vmatpush1.msra.mxu0 0.0
    %4694 = vmatprep.subr.mxu0 0.0
    %4695 = vmatpush1.msra.mxu0 0.0
    %4696 = vmatprep.subr.mxu0 0.0
    %4697 = vmatpush1.msra.mxu0 0.0
    %4698 = vmatprep.subr.mxu0 0.0
    %4699 = vmatpush1.msra.mxu0 0.0
    %4700 = vmatprep.subr.mxu0 0.0
    %4701 = vmatpush1.msra.mxu0 0.0
    %4702 = vmatprep.subr.mxu0 0.0
    %4703 = vmatpush1.msra.mxu0 0.0
    %4704 = vmatprep.subr.mxu0 0.0
    %4705 = vmatpush1.msra.mxu0 0.0
    %4706 = vmatprep.subr.mxu0 0.0
    %4707 = vmatpush1.msra.mxu0 0.0
    %4708 = vmatprep.subr.mxu0 0.0
    %4709 = vmatpush1.msra.mxu0 0.0
    %4710 = vmatprep.subr.mxu0 0.0
    %4711 = vmatpush1.msra.mxu0 0.0
    %4712 = vmatprep.subr.mxu0 0.0
    %4713 = vmatpush1.msra.mxu0 0.0
    %4714 = vmatprep.subr.mxu0 0.0
    %4715 = vmatpush1.msra.mxu0 0.0
    %4716 = vmatprep.subr.mxu0 0.0
    %4717 = vmatpush1.msra.mxu0 0.0
    %4718 = vmatprep.subr.mxu0 0.0
    %4719 = vmatpush1.msra.mxu0 0.0
    %4720 = vmatprep.subr.mxu0 0.0
    %4721 = vmatpush1.msra.mxu0 0.0
    %4722 = vmatprep.subr.mxu0 0.0
    %4723 = vmatpush1.msra.mxu0 0.0
    %4724 = vmatprep.subr.mxu0 0.0
    %4725 = vmatpush1.msra.mxu0 0.0
    %4726 = vmatprep.subr.mxu0 0.0
    %4727 = vmatpush1.msra.mxu0 0.0
    %4728 = vmatprep.subr.mxu0 0.0
    %4729 = vmatpush1.msra.mxu0 0.0
    %4730 = vmatprep.subr.mxu0 0.0
    %4731 = vmatpush1.msra.mxu0 0.0
    %4732 = vmatprep.subr.mxu0 0.0
    %4733 = vmatpush1.msra.mxu0 0.0
    %4734 = vmatprep.mubr.f32.mxu0 0.0
    %4735 = vmatmul.mubr.f32.gmra.mrb[0].mxu0 %v4668
    %v4736 = vpop.f32.mrb[0].mxu0
    %v4737 = vadd.f32 0.0, %v4736
    %v4738 = vpop.f32.mrb[0].mxu0
    %4739 = vdwg.mxu0
    %v4741 = vrot.slane %v4737, 2
    %v4743 = vadd.f32 %v4011, %v4741
    %v4744 = vxor.u32 %v4743, 2147483648
    %v4745 = vmul.f32 %v4744, 1.442695
    %v4746 = vpow.pop %v4745
    %v4747 = vadd.f32 %v4746, 1.0
    %v4748 = vrcp.pop %v4747
    %v4749 = vmul.f32 1.0, %v4748
    %v4750 = vtanh.pop %v4743
    %v4752 = vrot.slane %v4542, 6
    %v4754 = vmul.f32 %v4749, %v4752
    %4756 = vrot.lane.b32.xlu0 %v4750, 32
    %v4757 = vpop.permute.xlu0 %4756
    %v4759 = vmul.f32 %v4749, %v4757
    %4761 = vrot.lane.b32.xlu0 %v4759, 32
    %v4762 = vpop.permute.xlu0 %4761
    %v4764 = vadd.f32 %v4754, %v4762
    %v4765 = vtanh.pop %v4764
    %4767 = vrot.lane.b32.xlu0 %v4765, 32
    %v4768 = vpop.permute.xlu0 %4767
    %v4770 = vmul.f32 %v4749, %v4768
    %4772 = vrot.lane.b32.xlu0 %v4770, 64
    %v4773 = vpop.permute.xlu0 %4772
    %4775 = vst.msk [vmem:[#allocation2] sm:$0xc0] %vm1048, %v4773
    %v4776 = vrot.slane %v4659, 2
    %4777 = vrot.lane.b32.xlu0 %v4776, 64
    %v4778 = vpop.permute.xlu0 %4777
    %v4779 = vsel %vm284, %v4778, 0
    %4781 = vmatprep.subr.mxu0 0.0
    %4782 = vmatpush1.msra.mxu0 %v3906
    %4783 = vmatprep.subr.mxu0 0.0
    %4784 = vmatpush1.msra.mxu0 %v3907
    %4785 = vmatprep.subr.mxu0 0.0
    %4786 = vmatpush1.msra.mxu0 %v3908
    %4787 = vmatprep.subr.mxu0 0.0
    %4788 = vmatpush1.msra.mxu0 %v3909
    %4789 = vmatprep.subr.mxu0 0.0
    %4790 = vmatpush1.msra.mxu0 0.0
    %4791 = vmatprep.subr.mxu0 0.0
    %4792 = vmatpush1.msra.mxu0 0.0
    %4793 = vmatprep.subr.mxu0 0.0
    %4794 = vmatpush1.msra.mxu0 0.0
    %4795 = vmatprep.subr.mxu0 0.0
    %4796 = vmatpush1.msra.mxu0 0.0
    %4797 = vmatprep.subr.mxu0 0.0
    %4798 = vmatpush1.msra.mxu0 0.0
    %4799 = vmatprep.subr.mxu0 0.0
    %4800 = vmatpush1.msra.mxu0 0.0
    %4801 = vmatprep.subr.mxu0 0.0
    %4802 = vmatpush1.msra.mxu0 0.0
    %4803 = vmatprep.subr.mxu0 0.0
    %4804 = vmatpush1.msra.mxu0 0.0
    %4805 = vmatprep.subr.mxu0 0.0
    %4806 = vmatpush1.msra.mxu0 0.0
    %4807 = vmatprep.subr.mxu0 0.0
    %4808 = vmatpush1.msra.mxu0 0.0
    %4809 = vmatprep.subr.mxu0 0.0
    %4810 = vmatpush1.msra.mxu0 0.0
    %4811 = vmatprep.subr.mxu0 0.0
    %4812 = vmatpush1.msra.mxu0 0.0
    %4813 = vmatprep.subr.mxu0 0.0
    %4814 = vmatpush1.msra.mxu0 0.0
    %4815 = vmatprep.subr.mxu0 0.0
    %4816 = vmatpush1.msra.mxu0 0.0
    %4817 = vmatprep.subr.mxu0 0.0
    %4818 = vmatpush1.msra.mxu0 0.0
    %4819 = vmatprep.subr.mxu0 0.0
    %4820 = vmatpush1.msra.mxu0 0.0
    %4821 = vmatprep.subr.mxu0 0.0
    %4822 = vmatpush1.msra.mxu0 0.0
    %4823 = vmatprep.subr.mxu0 0.0
    %4824 = vmatpush1.msra.mxu0 0.0
    %4825 = vmatprep.subr.mxu0 0.0
    %4826 = vmatpush1.msra.mxu0 0.0
    %4827 = vmatprep.subr.mxu0 0.0
    %4828 = vmatpush1.msra.mxu0 0.0
    %4829 = vmatprep.subr.mxu0 0.0
    %4830 = vmatpush1.msra.mxu0 0.0
    %4831 = vmatprep.subr.mxu0 0.0
    %4832 = vmatpush1.msra.mxu0 0.0
    %4833 = vmatprep.subr.mxu0 0.0
    %4834 = vmatpush1.msra.mxu0 0.0
    %4835 = vmatprep.subr.mxu0 0.0
    %4836 = vmatpush1.msra.mxu0 0.0
    %4837 = vmatprep.subr.mxu0 0.0
    %4838 = vmatpush1.msra.mxu0 0.0
    %4839 = vmatprep.subr.mxu0 0.0
    %4840 = vmatpush1.msra.mxu0 0.0
    %4841 = vmatprep.subr.mxu0 0.0
    %4842 = vmatpush1.msra.mxu0 0.0
    %4843 = vmatprep.subr.mxu0 0.0
    %4844 = vmatpush1.msra.mxu0 0.0
    %4845 = vmatprep.mubr.f32.mxu0 0.0
    %4846 = vmatmul.mubr.f32.gmra.mrb[0].mxu0 %v4779
    %v4847 = vpop.f32.mrb[0].mxu0
    %v4848 = vadd.f32 0.0, %v4847
    %v4849 = vpop.f32.mrb[0].mxu0
    %4850 = vdwg.mxu0
    %v4851 = vadd.f32 %v4019, %v4848
    %v4852 = vxor.u32 %v4851, 2147483648
    %v4853 = vmul.f32 %v4852, 1.442695
    %v4854 = vpow.pop %v4853
    %v4855 = vadd.f32 %v4854, 1.0
    %v4856 = vrcp.pop %v4855
    %v4857 = vmul.f32 1.0, %v4856
    %v4858 = vtanh.pop %v4851
    %v4860 = vrot.slane %v4653, 2
    %v4862 = vmul.f32 %v4857, %v4860
    %4864 = vrot.lane.b32.xlu0 %v4858, 32
    %v4865 = vpop.permute.xlu0 %4864
    %v4867 = vmul.f32 %v4857, %v4865
    %4869 = vrot.lane.b32.xlu0 %v4867, 32
    %v4870 = vpop.permute.xlu0 %4869
    %v4872 = vadd.f32 %v4862, %v4870
    %v4873 = vtanh.pop %v4872
    %4875 = vrot.lane.b32.xlu0 %v4873, 32
    %v4876 = vpop.permute.xlu0 %4875
    %v4878 = vmul.f32 %v4857, %v4876
    %4880 = vrot.lane.b32.xlu0 %v4878, 96
    %v4881 = vpop.permute.xlu0 %4880
    %4883 = vst.msk [vmem:[#allocation2 + $0x8] sm:$0x3] %vm1157, %v4881
    %v4884 = vrot.slane %v4770, 6
    %4885 = vrot.lane.b32.xlu0 %v4884, 64
    %v4886 = vpop.permute.xlu0 %4885
    %v4887 = vsel %vm284, %v4886, 0
    %4889 = vmatprep.subr.mxu0 0.0
    %4890 = vmatpush1.msra.mxu0 %v3902
    %4891 = vmatprep.subr.mxu0 0.0
    %4892 = vmatpush1.msra.mxu0 %v3903
    %4893 = vmatprep.subr.mxu0 0.0
    %4894 = vmatpush1.msra.mxu0 %v3904
    %4895 = vmatprep.subr.mxu0 0.0
    %4896 = vmatpush1.msra.mxu0 %v3905
    %4897 = vmatprep.subr.mxu0 0.0
    %4898 = vmatpush1.msra.mxu0 0.0
    %4899 = vmatprep.subr.mxu0 0.0
    %4900 = vmatpush1.msra.mxu0 0.0
    %4901 = vmatprep.subr.mxu0 0.0
    %4902 = vmatpush1.msra.mxu0 0.0
    %4903 = vmatprep.subr.mxu0 0.0
    %4904 = vmatpush1.msra.mxu0 0.0
    %4905 = vmatprep.subr.mxu0 0.0
    %4906 = vmatpush1.msra.mxu0 0.0
    %4907 = vmatprep.subr.mxu0 0.0
    %4908 = vmatpush1.msra.mxu0 0.0
    %4909 = vmatprep.subr.mxu0 0.0
    %4910 = vmatpush1.msra.mxu0 0.0
    %4911 = vmatprep.subr.mxu0 0.0
    %4912 = vmatpush1.msra.mxu0 0.0
    %4913 = vmatprep.subr.mxu0 0.0
    %4914 = vmatpush1.msra.mxu0 0.0
    %4915 = vmatprep.subr.mxu0 0.0
    %4916 = vmatpush1.msra.mxu0 0.0
    %4917 = vmatprep.subr.mxu0 0.0
    %4918 = vmatpush1.msra.mxu0 0.0
    %4919 = vmatprep.subr.mxu0 0.0
    %4920 = vmatpush1.msra.mxu0 0.0
    %4921 = vmatprep.subr.mxu0 0.0
    %4922 = vmatpush1.msra.mxu0 0.0
    %4923 = vmatprep.subr.mxu0 0.0
    %4924 = vmatpush1.msra.mxu0 0.0
    %4925 = vmatprep.subr.mxu0 0.0
    %4926 = vmatpush1.msra.mxu0 0.0
    %4927 = vmatprep.subr.mxu0 0.0
    %4928 = vmatpush1.msra.mxu0 0.0
    %4929 = vmatprep.subr.mxu0 0.0
    %4930 = vmatpush1.msra.mxu0 0.0
    %4931 = vmatprep.subr.mxu0 0.0
    %4932 = vmatpush1.msra.mxu0 0.0
    %4933 = vmatprep.subr.mxu0 0.0
    %4934 = vmatpush1.msra.mxu0 0.0
    %4935 = vmatprep.subr.mxu0 0.0
    %4936 = vmatpush1.msra.mxu0 0.0
    %4937 = vmatprep.subr.mxu0 0.0
    %4938 = vmatpush1.msra.mxu0 0.0
    %4939 = vmatprep.subr.mxu0 0.0
    %4940 = vmatpush1.msra.mxu0 0.0
    %4941 = vmatprep.subr.mxu0 0.0
    %4942 = vmatpush1.msra.mxu0 0.0
    %4943 = vmatprep.subr.mxu0 0.0
    %4944 = vmatpush1.msra.mxu0 0.0
    %4945 = vmatprep.subr.mxu0 0.0
    %4946 = vmatpush1.msra.mxu0 0.0
    %4947 = vmatprep.subr.mxu0 0.0
    %4948 = vmatpush1.msra.mxu0 0.0
    %4949 = vmatprep.subr.mxu0 0.0
    %4950 = vmatpush1.msra.mxu0 0.0
    %4951 = vmatprep.subr.mxu0 0.0
    %4952 = vmatpush1.msra.mxu0 0.0
    %4953 = vmatprep.mubr.f32.mxu0 0.0
    %4954 = vmatmul.mubr.f32.gmra.mrb[0].mxu0 %v4887
    %v4955 = vpop.f32.mrb[0].mxu0
    %v4956 = vadd.f32 0.0, %v4955
    %v4957 = vpop.f32.mrb[0].mxu0
    %4958 = vdwg.mxu0
    %v4959 = vadd.f32 %v4017, %v4956
    %v4960 = vxor.u32 %v4959, 2147483648
    %v4961 = vmul.f32 %v4960, 1.442695
    %v4962 = vpow.pop %v4961
    %v4963 = vadd.f32 %v4962, 1.0
    %v4964 = vrcp.pop %v4963
    %v4965 = vmul.f32 1.0, %v4964
    %v4966 = vtanh.pop %v4959
    %v4968 = vrot.slane %v4764, 6
    %v4970 = vmul.f32 %v4965, %v4968
    %4972 = vrot.lane.b32.xlu0 %v4966, 32
    %v4973 = vpop.permute.xlu0 %4972
    %v4975 = vmul.f32 %v4965, %v4973
    %4977 = vrot.lane.b32.xlu0 %v4975, 32
    %v4978 = vpop.permute.xlu0 %4977
    %v4980 = vadd.f32 %v4970, %v4978
    %v4981 = vtanh.pop %v4980
    %4983 = vrot.lane.b32.xlu0 %v4981, 32
    %v4984 = vpop.permute.xlu0 %4983
    %v4986 = vmul.f32 %v4965, %v4984
    %4988 = vrot.lane.b32.xlu0 %v4986, 64
    %v4989 = vpop.permute.xlu0 %4988
    %4991 = vst.msk [vmem:[#allocation2 + $0x8] sm:$0x3] %vm387, %v4989
    %4992 = vrot.lane.b32.xlu0 %v4878, 64
    %v4993 = vpop.permute.xlu0 %4992
    %v4994 = vsel %vm284, %v4993, 0
    %4996 = vmatprep.subr.mxu0 0.0
    %4997 = vmatpush1.msra.mxu0 %v3906
    %4998 = vmatprep.subr.mxu0 0.0
    %4999 = vmatpush1.msra.mxu0 %v3907
    %5000 = vmatprep.subr.mxu0 0.0
    %5001 = vmatpush1.msra.mxu0 %v3908
    %5002 = vmatprep.subr.mxu0 0.0
    %5003 = vmatpush1.msra.mxu0 %v3909
    %5004 = vmatprep.subr.mxu0 0.0
    %5005 = vmatpush1.msra.mxu0 0.0
    %5006 = vmatprep.subr.mxu0 0.0
    %5007 = vmatpush1.msra.mxu0 0.0
    %5008 = vmatprep.subr.mxu0 0.0
    %5009 = vmatpush1.msra.mxu0 0.0
    %5010 = vmatprep.subr.mxu0 0.0
    %5011 = vmatpush1.msra.mxu0 0.0
    %5012 = vmatprep.subr.mxu0 0.0
    %5013 = vmatpush1.msra.mxu0 0.0
    %5014 = vmatprep.subr.mxu0 0.0
    %5015 = vmatpush1.msra.mxu0 0.0
    %5016 = vmatprep.subr.mxu0 0.0
    %5017 = vmatpush1.msra.mxu0 0.0
    %5018 = vmatprep.subr.mxu0 0.0
    %5019 = vmatpush1.msra.mxu0 0.0
    %5020 = vmatprep.subr.mxu0 0.0
    %5021 = vmatpush1.msra.mxu0 0.0
    %5022 = vmatprep.subr.mxu0 0.0
    %5023 = vmatpush1.msra.mxu0 0.0
    %5024 = vmatprep.subr.mxu0 0.0
    %5025 = vmatpush1.msra.mxu0 0.0
    %5026 = vmatprep.subr.mxu0 0.0
    %5027 = vmatpush1.msra.mxu0 0.0
    %5028 = vmatprep.subr.mxu0 0.0
    %5029 = vmatpush1.msra.mxu0 0.0
    %5030 = vmatprep.subr.mxu0 0.0
    %5031 = vmatpush1.msra.mxu0 0.0
    %5032 = vmatprep.subr.mxu0 0.0
    %5033 = vmatpush1.msra.mxu0 0.0
    %5034 = vmatprep.subr.mxu0 0.0
    %5035 = vmatpush1.msra.mxu0 0.0
    %5036 = vmatprep.subr.mxu0 0.0
    %5037 = vmatpush1.msra.mxu0 0.0
    %5038 = vmatprep.subr.mxu0 0.0
    %5039 = vmatpush1.msra.mxu0 0.0
    %5040 = vmatprep.subr.mxu0 0.0
    %5041 = vmatpush1.msra.mxu0 0.0
    %5042 = vmatprep.subr.mxu0 0.0
    %5043 = vmatpush1.msra.mxu0 0.0
    %5044 = vmatprep.subr.mxu0 0.0
    %5045 = vmatpush1.msra.mxu0 0.0
    %5046 = vmatprep.subr.mxu0 0.0
    %5047 = vmatpush1.msra.mxu0 0.0
    %5048 = vmatprep.subr.mxu0 0.0
    %5049 = vmatpush1.msra.mxu0 0.0
    %5050 = vmatprep.subr.mxu0 0.0
    %5051 = vmatpush1.msra.mxu0 0.0
    %5052 = vmatprep.subr.mxu0 0.0
    %5053 = vmatpush1.msra.mxu0 0.0
    %5054 = vmatprep.subr.mxu0 0.0
    %5055 = vmatpush1.msra.mxu0 0.0
    %5056 = vmatprep.subr.mxu0 0.0
    %5057 = vmatpush1.msra.mxu0 0.0
    %5058 = vmatprep.subr.mxu0 0.0
    %5059 = vmatpush1.msra.mxu0 0.0
    %5060 = vmatprep.mubr.f32.mxu0 0.0
    %5061 = vmatmul.mubr.f32.gmra.mrb[0].mxu0 %v4994
    %v5062 = vpop.f32.mrb[0].mxu0
    %v5063 = vadd.f32 0.0, %v5062
    %v5064 = vpop.f32.mrb[0].mxu0
    %5065 = vdwg.mxu0
    %v5067 = vrot.slane %v5063, 2
    %v5069 = vadd.f32 %v4013, %v5067
    %v5070 = vxor.u32 %v5069, 2147483648
    %v5071 = vmul.f32 %v5070, 1.442695
    %v5072 = vpow.pop %v5071
    %v5073 = vadd.f32 %v5072, 1.0
    %v5074 = vrcp.pop %v5073
    %v5075 = vmul.f32 1.0, %v5074
    %v5076 = vtanh.pop %v5069
    %v5078 = vrot.slane %v4872, 2
    %v5080 = vmul.f32 %v5075, %v5078
    %5082 = vrot.lane.b32.xlu0 %v5076, 32
    %v5083 = vpop.permute.xlu0 %5082
    %v5085 = vmul.f32 %v5075, %v5083
    %5087 = vrot.lane.b32.xlu0 %v5085, 32
    %v5088 = vpop.permute.xlu0 %5087
    %v5090 = vadd.f32 %v5080, %v5088
    %v5091 = vtanh.pop %v5090
    %5093 = vrot.lane.b32.xlu0 %v5091, 32
    %v5094 = vpop.permute.xlu0 %5093
    %v5096 = vmul.f32 %v5075, %v5094
    %5098 = vrot.lane.b32.xlu0 %v5096, 96
    %v5099 = vpop.permute.xlu0 %5098
    %5101 = vst.msk [vmem:[#allocation2] sm:$0xc0] %vm491, %v5099
    %v5102 = vsel %vm284, %v4989, 0
    %5104 = vmatprep.subr.mxu0 0.0
    %5105 = vmatpush1.msra.mxu0 %v3902
    %5106 = vmatprep.subr.mxu0 0.0
    %5107 = vmatpush1.msra.mxu0 %v3903
    %5108 = vmatprep.subr.mxu0 0.0
    %5109 = vmatpush1.msra.mxu0 %v3904
    %5110 = vmatprep.subr.mxu0 0.0
    %5111 = vmatpush1.msra.mxu0 %v3905
    %5112 = vmatprep.subr.mxu0 0.0
    %5113 = vmatpush1.msra.mxu0 0.0
    %5114 = vmatprep.subr.mxu0 0.0
    %5115 = vmatpush1.msra.mxu0 0.0
    %5116 = vmatprep.subr.mxu0 0.0
    %5117 = vmatpush1.msra.mxu0 0.0
    %5118 = vmatprep.subr.mxu0 0.0
    %5119 = vmatpush1.msra.mxu0 0.0
    %5120 = vmatprep.subr.mxu0 0.0
    %5121 = vmatpush1.msra.mxu0 0.0
    %5122 = vmatprep.subr.mxu0 0.0
    %5123 = vmatpush1.msra.mxu0 0.0
    %5124 = vmatprep.subr.mxu0 0.0
    %5125 = vmatpush1.msra.mxu0 0.0
    %5126 = vmatprep.subr.mxu0 0.0
    %5127 = vmatpush1.msra.mxu0 0.0
    %5128 = vmatprep.subr.mxu0 0.0
    %5129 = vmatpush1.msra.mxu0 0.0
    %5130 = vmatprep.subr.mxu0 0.0
    %5131 = vmatpush1.msra.mxu0 0.0
    %5132 = vmatprep.subr.mxu0 0.0
    %5133 = vmatpush1.msra.mxu0 0.0
    %5134 = vmatprep.subr.mxu0 0.0
    %5135 = vmatpush1.msra.mxu0 0.0
    %5136 = vmatprep.subr.mxu0 0.0
    %5137 = vmatpush1.msra.mxu0 0.0
    %5138 = vmatprep.subr.mxu0 0.0
    %5139 = vmatpush1.msra.mxu0 0.0
    %5140 = vmatprep.subr.mxu0 0.0
    %5141 = vmatpush1.msra.mxu0 0.0
    %5142 = vmatprep.subr.mxu0 0.0
    %5143 = vmatpush1.msra.mxu0 0.0
    %5144 = vmatprep.subr.mxu0 0.0
    %5145 = vmatpush1.msra.mxu0 0.0
    %5146 = vmatprep.subr.mxu0 0.0
    %5147 = vmatpush1.msra.mxu0 0.0
    %5148 = vmatprep.subr.mxu0 0.0
    %5149 = vmatpush1.msra.mxu0 0.0
    %5150 = vmatprep.subr.mxu0 0.0
    %5151 = vmatpush1.msra.mxu0 0.0
    %5152 = vmatprep.subr.mxu0 0.0
    %5153 = vmatpush1.msra.mxu0 0.0
    %5154 = vmatprep.subr.mxu0 0.0
    %5155 = vmatpush1.msra.mxu0 0.0
    %5156 = vmatprep.subr.mxu0 0.0
    %5157 = vmatpush1.msra.mxu0 0.0
    %5158 = vmatprep.subr.mxu0 0.0
    %5159 = vmatpush1.msra.mxu0 0.0
    %5160 = vmatprep.subr.mxu0 0.0
    %5161 = vmatpush1.msra.mxu0 0.0
    %5162 = vmatprep.subr.mxu0 0.0
    %5163 = vmatpush1.msra.mxu0 0.0
    %5164 = vmatprep.subr.mxu0 0.0
    %5165 = vmatpush1.msra.mxu0 0.0
    %5166 = vmatprep.subr.mxu0 0.0
    %5167 = vmatpush1.msra.mxu0 0.0
    %5168 = vmatprep.mubr.f32.mxu0 0.0
    %5169 = vmatmul.mubr.f32.gmra.mrb[0].mxu0 %v5102
    %v5170 = vpop.f32.mrb[0].mxu0
    %v5171 = vadd.f32 0.0, %v5170
    %v5172 = vpop.f32.mrb[0].mxu0
    %5173 = vdwg.mxu0
    %v5175 = vrot.slane %v5171, 6
    %v5177 = vadd.f32 %v4017, %v5175
    %v5178 = vxor.u32 %v5177, 2147483648
    %v5179 = vmul.f32 %v5178, 1.442695
    %v5180 = vpow.pop %v5179
    %v5181 = vadd.f32 %v5180, 1.0
    %v5182 = vrcp.pop %v5181
    %v5183 = vmul.f32 1.0, %v5182
    %v5184 = vtanh.pop %v5177
    %v5186 = vrot.slane %v4980, 6
    %v5188 = vmul.f32 %v5183, %v5186
    %5190 = vrot.lane.b32.xlu0 %v5184, 32
    %v5191 = vpop.permute.xlu0 %5190
    %v5193 = vmul.f32 %v5183, %v5191
    %5195 = vrot.lane.b32.xlu0 %v5193, 32
    %v5196 = vpop.permute.xlu0 %5195
    %v5198 = vadd.f32 %v5188, %v5196
    %v5199 = vtanh.pop %v5198
    %5201 = vrot.lane.b32.xlu0 %v5199, 32
    %v5202 = vpop.permute.xlu0 %5201
    %v5204 = vmul.f32 %v5183, %v5202
    %5206 = vrot.lane.b32.xlu0 %v5204, 64
    %v5207 = vpop.permute.xlu0 %5206
    %5209 = vst.msk [vmem:[#allocation2 + $0x8] sm:$0xc] %vm600, %v5207
    %v5210 = vrot.slane %v5096, 6
    %5211 = vrot.lane.b32.xlu0 %v5210, 64
    %v5212 = vpop.permute.xlu0 %5211
    %v5213 = vsel %vm284, %v5212, 0
    %5215 = vmatprep.subr.mxu0 0.0
    %5216 = vmatpush1.msra.mxu0 %v3906
    %5217 = vmatprep.subr.mxu0 0.0
    %5218 = vmatpush1.msra.mxu0 %v3907
    %5219 = vmatprep.subr.mxu0 0.0
    %5220 = vmatpush1.msra.mxu0 %v3908
    %5221 = vmatprep.subr.mxu0 0.0
    %5222 = vmatpush1.msra.mxu0 %v3909
    %5223 = vmatprep.subr.mxu0 0.0
    %5224 = vmatpush1.msra.mxu0 0.0
    %5225 = vmatprep.subr.mxu0 0.0
    %5226 = vmatpush1.msra.mxu0 0.0
    %5227 = vmatprep.subr.mxu0 0.0
    %5228 = vmatpush1.msra.mxu0 0.0
    %5229 = vmatprep.subr.mxu0 0.0
    %5230 = vmatpush1.msra.mxu0 0.0
    %5231 = vmatprep.subr.mxu0 0.0
    %5232 = vmatpush1.msra.mxu0 0.0
    %5233 = vmatprep.subr.mxu0 0.0
    %5234 = vmatpush1.msra.mxu0 0.0
    %5235 = vmatprep.subr.mxu0 0.0
    %5236 = vmatpush1.msra.mxu0 0.0
    %5237 = vmatprep.subr.mxu0 0.0
    %5238 = vmatpush1.msra.mxu0 0.0
    %5239 = vmatprep.subr.mxu0 0.0
    %5240 = vmatpush1.msra.mxu0 0.0
    %5241 = vmatprep.subr.mxu0 0.0
    %5242 = vmatpush1.msra.mxu0 0.0
    %5243 = vmatprep.subr.mxu0 0.0
    %5244 = vmatpush1.msra.mxu0 0.0
    %5245 = vmatprep.subr.mxu0 0.0
    %5246 = vmatpush1.msra.mxu0 0.0
    %5247 = vmatprep.subr.mxu0 0.0
    %5248 = vmatpush1.msra.mxu0 0.0
    %5249 = vmatprep.subr.mxu0 0.0
    %5250 = vmatpush1.msra.mxu0 0.0
    %5251 = vmatprep.subr.mxu0 0.0
    %5252 = vmatpush1.msra.mxu0 0.0
    %5253 = vmatprep.subr.mxu0 0.0
    %5254 = vmatpush1.msra.mxu0 0.0
    %5255 = vmatprep.subr.mxu0 0.0
    %5256 = vmatpush1.msra.mxu0 0.0
    %5257 = vmatprep.subr.mxu0 0.0
    %5258 = vmatpush1.msra.mxu0 0.0
    %5259 = vmatprep.subr.mxu0 0.0
    %5260 = vmatpush1.msra.mxu0 0.0
    %5261 = vmatprep.subr.mxu0 0.0
    %5262 = vmatpush1.msra.mxu0 0.0
    %5263 = vmatprep.subr.mxu0 0.0
    %5264 = vmatpush1.msra.mxu0 0.0
    %5265 = vmatprep.subr.mxu0 0.0
    %5266 = vmatpush1.msra.mxu0 0.0
    %5267 = vmatprep.subr.mxu0 0.0
    %5268 = vmatpush1.msra.mxu0 0.0
    %5269 = vmatprep.subr.mxu0 0.0
    %5270 = vmatpush1.msra.mxu0 0.0
    %5271 = vmatprep.subr.mxu0 0.0
    %5272 = vmatpush1.msra.mxu0 0.0
    %5273 = vmatprep.subr.mxu0 0.0
    %5274 = vmatpush1.msra.mxu0 0.0
    %5275 = vmatprep.subr.mxu0 0.0
    %5276 = vmatpush1.msra.mxu0 0.0
    %5277 = vmatprep.subr.mxu0 0.0
    %5278 = vmatpush1.msra.mxu0 0.0
    %5279 = vmatprep.mubr.f32.mxu0 0.0
    %5280 = vmatmul.mubr.f32.gmra.mrb[0].mxu0 %v5213
    %v5281 = vpop.f32.mrb[0].mxu0
    %v5282 = vadd.f32 0.0, %v5281
    %v5283 = vpop.f32.mrb[0].mxu0
    %5284 = vdwg.mxu0
    %v5286 = vrot.slane %v5282, 4
    %v5288 = vadd.f32 %v4013, %v5286
    %v5289 = vxor.u32 %v5288, 2147483648
    %v5290 = vmul.f32 %v5289, 1.442695
    %v5291 = vpow.pop %v5290
    %v5292 = vadd.f32 %v5291, 1.0
    %v5293 = vrcp.pop %v5292
    %v5294 = vmul.f32 1.0, %v5293
    %v5295 = vtanh.pop %v5288
    %v5297 = vrot.slane %v5090, 2
    %v5299 = vmul.f32 %v5294, %v5297
    %5301 = vrot.lane.b32.xlu0 %v5295, 32
    %v5302 = vpop.permute.xlu0 %5301
    %v5304 = vmul.f32 %v5294, %v5302
    %5306 = vrot.lane.b32.xlu0 %v5304, 32
    %v5307 = vpop.permute.xlu0 %5306
    %v5309 = vadd.f32 %v5299, %v5307
    %v5310 = vtanh.pop %v5309
    %5312 = vrot.lane.b32.xlu0 %v5310, 32
    %v5313 = vpop.permute.xlu0 %5312
    %v5315 = vmul.f32 %v5294, %v5313
    %5317 = vrot.lane.b32.xlu0 %v5315, 96
    %v5318 = vpop.permute.xlu0 %5317
    %5320 = vst.msk [vmem:[#allocation2] sm:$0x30] %vm712, %v5318
    %v5321 = vrot.slane %v5204, 2
    %5322 = vrot.lane.b32.xlu0 %v5321, 64
    %v5323 = vpop.permute.xlu0 %5322
    %v5324 = vsel %vm284, %v5323, 0
    %5326 = vmatprep.subr.mxu0 0.0
    %5327 = vmatpush1.msra.mxu0 %v3902
    %5328 = vmatprep.subr.mxu0 0.0
    %5329 = vmatpush1.msra.mxu0 %v3903
    %5330 = vmatprep.subr.mxu0 0.0
    %5331 = vmatpush1.msra.mxu0 %v3904
    %5332 = vmatprep.subr.mxu0 0.0
    %5333 = vmatpush1.msra.mxu0 %v3905
    %5334 = vmatprep.subr.mxu0 0.0
    %5335 = vmatpush1.msra.mxu0 0.0
    %5336 = vmatprep.subr.mxu0 0.0
    %5337 = vmatpush1.msra.mxu0 0.0
    %5338 = vmatprep.subr.mxu0 0.0
    %5339 = vmatpush1.msra.mxu0 0.0
    %5340 = vmatprep.subr.mxu0 0.0
    %5341 = vmatpush1.msra.mxu0 0.0
    %5342 = vmatprep.subr.mxu0 0.0
    %5343 = vmatpush1.msra.mxu0 0.0
    %5344 = vmatprep.subr.mxu0 0.0
    %5345 = vmatpush1.msra.mxu0 0.0
    %5346 = vmatprep.subr.mxu0 0.0
    %5347 = vmatpush1.msra.mxu0 0.0
    %5348 = vmatprep.subr.mxu0 0.0
    %5349 = vmatpush1.msra.mxu0 0.0
    %5350 = vmatprep.subr.mxu0 0.0
    %5351 = vmatpush1.msra.mxu0 0.0
    %5352 = vmatprep.subr.mxu0 0.0
    %5353 = vmatpush1.msra.mxu0 0.0
    %5354 = vmatprep.subr.mxu0 0.0
    %5355 = vmatpush1.msra.mxu0 0.0
    %5356 = vmatprep.subr.mxu0 0.0
    %5357 = vmatpush1.msra.mxu0 0.0
    %5358 = vmatprep.subr.mxu0 0.0
    %5359 = vmatpush1.msra.mxu0 0.0
    %5360 = vmatprep.subr.mxu0 0.0
    %5361 = vmatpush1.msra.mxu0 0.0
    %5362 = vmatprep.subr.mxu0 0.0
    %5363 = vmatpush1.msra.mxu0 0.0
    %5364 = vmatprep.subr.mxu0 0.0
    %5365 = vmatpush1.msra.mxu0 0.0
    %5366 = vmatprep.subr.mxu0 0.0
    %5367 = vmatpush1.msra.mxu0 0.0
    %5368 = vmatprep.subr.mxu0 0.0
    %5369 = vmatpush1.msra.mxu0 0.0
    %5370 = vmatprep.subr.mxu0 0.0
    %5371 = vmatpush1.msra.mxu0 0.0
    %5372 = vmatprep.subr.mxu0 0.0
    %5373 = vmatpush1.msra.mxu0 0.0
    %5374 = vmatprep.subr.mxu0 0.0
    %5375 = vmatpush1.msra.mxu0 0.0
    %5376 = vmatprep.subr.mxu0 0.0
    %5377 = vmatpush1.msra.mxu0 0.0
    %5378 = vmatprep.subr.mxu0 0.0
    %5379 = vmatpush1.msra.mxu0 0.0
    %5380 = vmatprep.subr.mxu0 0.0
    %5381 = vmatpush1.msra.mxu0 0.0
    %5382 = vmatprep.subr.mxu0 0.0
    %5383 = vmatpush1.msra.mxu0 0.0
    %5384 = vmatprep.subr.mxu0 0.0
    %5385 = vmatpush1.msra.mxu0 0.0
    %5386 = vmatprep.subr.mxu0 0.0
    %5387 = vmatpush1.msra.mxu0 0.0
    %5388 = vmatprep.subr.mxu0 0.0
    %5389 = vmatpush1.msra.mxu0 0.0
    %5390 = vmatprep.mubr.f32.mxu0 0.0
    %5391 = vmatmul.mubr.f32.gmra.mrb[0].mxu0 %v5324
    %v5392 = vpop.f32.mrb[0].mxu0
    %v5393 = vadd.f32 0.0, %v5392
    %v5394 = vpop.f32.mrb[0].mxu0
    %5395 = vdwg.mxu0
    %v5397 = vrot.slane %v5393, 4
    %v5399 = vadd.f32 %v4017, %v5397
    %v5400 = vxor.u32 %v5399, 2147483648
    %v5401 = vmul.f32 %v5400, 1.442695
    %v5402 = vpow.pop %v5401
    %v5403 = vadd.f32 %v5402, 1.0
    %v5404 = vrcp.pop %v5403
    %v5405 = vmul.f32 1.0, %v5404
    %v5406 = vtanh.pop %v5399
    %v5408 = vrot.slane %v5198, 6
    %v5410 = vmul.f32 %v5405, %v5408
    %5412 = vrot.lane.b32.xlu0 %v5406, 32
    %v5413 = vpop.permute.xlu0 %5412
    %v5415 = vmul.f32 %v5405, %v5413
    %5417 = vrot.lane.b32.xlu0 %v5415, 32
    %v5418 = vpop.permute.xlu0 %5417
    %v5420 = vadd.f32 %v5410, %v5418
    %v5421 = vtanh.pop %v5420
    %5423 = vrot.lane.b32.xlu0 %v5421, 32
    %v5424 = vpop.permute.xlu0 %5423
    %v5426 = vmul.f32 %v5405, %v5424
    %5428 = vrot.lane.b32.xlu0 %v5426, 64
    %v5429 = vpop.permute.xlu0 %5428
    %5431 = vst.msk [vmem:[#allocation2 + $0x8] sm:$0x30] %vm824, %v5429
    %v5432 = vrot.slane %v5315, 4
    %5433 = vrot.lane.b32.xlu0 %v5432, 64
    %v5434 = vpop.permute.xlu0 %5433
    %v5435 = vsel %vm284, %v5434, 0
    %5437 = vmatprep.subr.mxu0 0.0
    %5438 = vmatpush1.msra.mxu0 %v3906
    %5439 = vmatprep.subr.mxu0 0.0
    %5440 = vmatpush1.msra.mxu0 %v3907
    %5441 = vmatprep.subr.mxu0 0.0
    %5442 = vmatpush1.msra.mxu0 %v3908
    %5443 = vmatprep.subr.mxu0 0.0
    %5444 = vmatpush1.msra.mxu0 %v3909
    %5445 = vmatprep.subr.mxu0 0.0
    %5446 = vmatpush1.msra.mxu0 0.0
    %5447 = vmatprep.subr.mxu0 0.0
    %5448 = vmatpush1.msra.mxu0 0.0
    %5449 = vmatprep.subr.mxu0 0.0
    %5450 = vmatpush1.msra.mxu0 0.0
    %5451 = vmatprep.subr.mxu0 0.0
    %5452 = vmatpush1.msra.mxu0 0.0
    %5453 = vmatprep.subr.mxu0 0.0
    %5454 = vmatpush1.msra.mxu0 0.0
    %5455 = vmatprep.subr.mxu0 0.0
    %5456 = vmatpush1.msra.mxu0 0.0
    %5457 = vmatprep.subr.mxu0 0.0
    %5458 = vmatpush1.msra.mxu0 0.0
    %5459 = vmatprep.subr.mxu0 0.0
    %5460 = vmatpush1.msra.mxu0 0.0
    %5461 = vmatprep.subr.mxu0 0.0
    %5462 = vmatpush1.msra.mxu0 0.0
    %5463 = vmatprep.subr.mxu0 0.0
    %5464 = vmatpush1.msra.mxu0 0.0
    %5465 = vmatprep.subr.mxu0 0.0
    %5466 = vmatpush1.msra.mxu0 0.0
    %5467 = vmatprep.subr.mxu0 0.0
    %5468 = vmatpush1.msra.mxu0 0.0
    %5469 = vmatprep.subr.mxu0 0.0
    %5470 = vmatpush1.msra.mxu0 0.0
    %5471 = vmatprep.subr.mxu0 0.0
    %5472 = vmatpush1.msra.mxu0 0.0
    %5473 = vmatprep.subr.mxu0 0.0
    %5474 = vmatpush1.msra.mxu0 0.0
    %5475 = vmatprep.subr.mxu0 0.0
    %5476 = vmatpush1.msra.mxu0 0.0
    %5477 = vmatprep.subr.mxu0 0.0
    %5478 = vmatpush1.msra.mxu0 0.0
    %5479 = vmatprep.subr.mxu0 0.0
    %5480 = vmatpush1.msra.mxu0 0.0
    %5481 = vmatprep.subr.mxu0 0.0
    %5482 = vmatpush1.msra.mxu0 0.0
    %5483 = vmatprep.subr.mxu0 0.0
    %5484 = vmatpush1.msra.mxu0 0.0
    %5485 = vmatprep.subr.mxu0 0.0
    %5486 = vmatpush1.msra.mxu0 0.0
    %5487 = vmatprep.subr.mxu0 0.0
    %5488 = vmatpush1.msra.mxu0 0.0
    %5489 = vmatprep.subr.mxu0 0.0
    %5490 = vmatpush1.msra.mxu0 0.0
    %5491 = vmatprep.subr.mxu0 0.0
    %5492 = vmatpush1.msra.mxu0 0.0
    %5493 = vmatprep.subr.mxu0 0.0
    %5494 = vmatpush1.msra.mxu0 0.0
    %5495 = vmatprep.subr.mxu0 0.0
    %5496 = vmatpush1.msra.mxu0 0.0
    %5497 = vmatprep.subr.mxu0 0.0
    %5498 = vmatpush1.msra.mxu0 0.0
    %5499 = vmatprep.subr.mxu0 0.0
    %5500 = vmatpush1.msra.mxu0 0.0
    %5501 = vmatprep.mubr.f32.mxu0 0.0
    %5502 = vmatmul.mubr.f32.gmra.mrb[0].mxu0 %v5435
    %v5503 = vpop.f32.mrb[0].mxu0
    %v5504 = vadd.f32 0.0, %v5503
    %v5505 = vpop.f32.mrb[0].mxu0
    %5506 = vdwg.mxu0
    %v5508 = vrot.slane %v5504, 6
    %v5510 = vadd.f32 %v4013, %v5508
    %v5511 = vxor.u32 %v5510, 2147483648
    %v5512 = vmul.f32 %v5511, 1.442695
    %v5513 = vpow.pop %v5512
    %v5514 = vadd.f32 %v5513, 1.0
    %v5515 = vrcp.pop %v5514
    %v5516 = vmul.f32 1.0, %v5515
    %v5517 = vtanh.pop %v5510
    %v5519 = vrot.slane %v5309, 2
    %v5521 = vmul.f32 %v5516, %v5519
    %5523 = vrot.lane.b32.xlu0 %v5517, 32
    %v5524 = vpop.permute.xlu0 %5523
    %v5526 = vmul.f32 %v5516, %v5524
    %5528 = vrot.lane.b32.xlu0 %v5526, 32
    %v5529 = vpop.permute.xlu0 %5528
    %v5531 = vadd.f32 %v5521, %v5529
    %v5532 = vtanh.pop %v5531
    %5534 = vrot.lane.b32.xlu0 %v5532, 32
    %v5535 = vpop.permute.xlu0 %5534
    %v5537 = vmul.f32 %v5516, %v5535
    %5539 = vrot.lane.b32.xlu0 %v5537, 96
    %v5540 = vpop.permute.xlu0 %5539
    %5542 = vst.msk [vmem:[#allocation2] sm:$0xc] %vm936, %v5540
    %v5543 = vrot.slane %v5426, 4
    %5544 = vrot.lane.b32.xlu0 %v5543, 64
    %v5545 = vpop.permute.xlu0 %5544
    %v5546 = vsel %vm284, %v5545, 0
    %5548 = vmatprep.subr.mxu0 0.0
    %5549 = vmatpush1.msra.mxu0 %v3902
    %5550 = vmatprep.subr.mxu0 0.0
    %5551 = vmatpush1.msra.mxu0 %v3903
    %5552 = vmatprep.subr.mxu0 0.0
    %5553 = vmatpush1.msra.mxu0 %v3904
    %5554 = vmatprep.subr.mxu0 0.0
    %5555 = vmatpush1.msra.mxu0 %v3905
    %5556 = vmatprep.subr.mxu0 0.0
    %5557 = vmatpush1.msra.mxu0 0.0
    %5558 = vmatprep.subr.mxu0 0.0
    %5559 = vmatpush1.msra.mxu0 0.0
    %5560 = vmatprep.subr.mxu0 0.0
    %5561 = vmatpush1.msra.mxu0 0.0
    %5562 = vmatprep.subr.mxu0 0.0
    %5563 = vmatpush1.msra.mxu0 0.0
    %5564 = vmatprep.subr.mxu0 0.0
    %5565 = vmatpush1.msra.mxu0 0.0
    %5566 = vmatprep.subr.mxu0 0.0
    %5567 = vmatpush1.msra.mxu0 0.0
    %5568 = vmatprep.subr.mxu0 0.0
    %5569 = vmatpush1.msra.mxu0 0.0
    %5570 = vmatprep.subr.mxu0 0.0
    %5571 = vmatpush1.msra.mxu0 0.0
    %5572 = vmatprep.subr.mxu0 0.0
    %5573 = vmatpush1.msra.mxu0 0.0
    %5574 = vmatprep.subr.mxu0 0.0
    %5575 = vmatpush1.msra.mxu0 0.0
    %5576 = vmatprep.subr.mxu0 0.0
    %5577 = vmatpush1.msra.mxu0 0.0
    %5578 = vmatprep.subr.mxu0 0.0
    %5579 = vmatpush1.msra.mxu0 0.0
    %5580 = vmatprep.subr.mxu0 0.0
    %5581 = vmatpush1.msra.mxu0 0.0
    %5582 = vmatprep.subr.mxu0 0.0
    %5583 = vmatpush1.msra.mxu0 0.0
    %5584 = vmatprep.subr.mxu0 0.0
    %5585 = vmatpush1.msra.mxu0 0.0
    %5586 = vmatprep.subr.mxu0 0.0
    %5587 = vmatpush1.msra.mxu0 0.0
    %5588 = vmatprep.subr.mxu0 0.0
    %5589 = vmatpush1.msra.mxu0 0.0
    %5590 = vmatprep.subr.mxu0 0.0
    %5591 = vmatpush1.msra.mxu0 0.0
    %5592 = vmatprep.subr.mxu0 0.0
    %5593 = vmatpush1.msra.mxu0 0.0
    %5594 = vmatprep.subr.mxu0 0.0
    %5595 = vmatpush1.msra.mxu0 0.0
    %5596 = vmatprep.subr.mxu0 0.0
    %5597 = vmatpush1.msra.mxu0 0.0
    %5598 = vmatprep.subr.mxu0 0.0
    %5599 = vmatpush1.msra.mxu0 0.0
    %5600 = vmatprep.subr.mxu0 0.0
    %5601 = vmatpush1.msra.mxu0 0.0
    %5602 = vmatprep.subr.mxu0 0.0
    %5603 = vmatpush1.msra.mxu0 0.0
    %5604 = vmatprep.subr.mxu0 0.0
    %5605 = vmatpush1.msra.mxu0 0.0
    %5606 = vmatprep.subr.mxu0 0.0
    %5607 = vmatpush1.msra.mxu0 0.0
    %5608 = vmatprep.subr.mxu0 0.0
    %5609 = vmatpush1.msra.mxu0 0.0
    %5610 = vmatprep.subr.mxu0 0.0
    %5611 = vmatpush1.msra.mxu0 0.0
    %5612 = vmatprep.mubr.f32.mxu0 0.0
    %5613 = vmatmul.mubr.f32.gmra.mrb[0].mxu0 %v5546
    %v5614 = vpop.f32.mrb[0].mxu0
    %v5615 = vadd.f32 0.0, %v5614
    %v5616 = vpop.f32.mrb[0].mxu0
    %5617 = vdwg.mxu0
    %v5619 = vrot.slane %v5615, 2
    %v5621 = vadd.f32 %v4017, %v5619
    %v5622 = vxor.u32 %v5621, 2147483648
    %v5623 = vmul.f32 %v5622, 1.442695
    %v5624 = vpow.pop %v5623
    %v5625 = vadd.f32 %v5624, 1.0
    %v5626 = vrcp.pop %v5625
    %v5627 = vmul.f32 1.0, %v5626
    %v5628 = vtanh.pop %v5621
    %v5630 = vrot.slane %v5420, 6
    %v5632 = vmul.f32 %v5627, %v5630
    %5634 = vrot.lane.b32.xlu0 %v5628, 32
    %v5635 = vpop.permute.xlu0 %5634
    %v5637 = vmul.f32 %v5627, %v5635
    %5639 = vrot.lane.b32.xlu0 %v5637, 32
    %v5640 = vpop.permute.xlu0 %5639
    %v5642 = vadd.f32 %v5632, %v5640
    %v5643 = vtanh.pop %v5642
    %5645 = vrot.lane.b32.xlu0 %v5643, 32
    %v5646 = vpop.permute.xlu0 %5645
    %v5648 = vmul.f32 %v5627, %v5646
    %5650 = vrot.lane.b32.xlu0 %v5648, 64
    %v5651 = vpop.permute.xlu0 %5650
    %5653 = vst.msk [vmem:[#allocation2 + $0x8] sm:$0xc0] %vm1048, %v5651
    %v5654 = vrot.slane %v5537, 2
    %5655 = vrot.lane.b32.xlu0 %v5654, 64
    %v5656 = vpop.permute.xlu0 %5655
    %v5657 = vsel %vm284, %v5656, 0
    %5659 = vmatprep.subr.mxu0 0.0
    %5660 = vmatpush1.msra.mxu0 %v3906
    %5661 = vmatprep.subr.mxu0 0.0
    %5662 = vmatpush1.msra.mxu0 %v3907
    %5663 = vmatprep.subr.mxu0 0.0
    %5664 = vmatpush1.msra.mxu0 %v3908
    %5665 = vmatprep.subr.mxu0 0.0
    %5666 = vmatpush1.msra.mxu0 %v3909
    %5667 = vmatprep.subr.mxu0 0.0
    %5668 = vmatpush1.msra.mxu0 0.0
    %5669 = vmatprep.subr.mxu0 0.0
    %5670 = vmatpush1.msra.mxu0 0.0
    %5671 = vmatprep.subr.mxu0 0.0
    %5672 = vmatpush1.msra.mxu0 0.0
    %5673 = vmatprep.subr.mxu0 0.0
    %5674 = vmatpush1.msra.mxu0 0.0
    %5675 = vmatprep.subr.mxu0 0.0
    %5676 = vmatpush1.msra.mxu0 0.0
    %5677 = vmatprep.subr.mxu0 0.0
    %5678 = vmatpush1.msra.mxu0 0.0
    %5679 = vmatprep.subr.mxu0 0.0
    %5680 = vmatpush1.msra.mxu0 0.0
    %5681 = vmatprep.subr.mxu0 0.0
    %5682 = vmatpush1.msra.mxu0 0.0
    %5683 = vmatprep.subr.mxu0 0.0
    %5684 = vmatpush1.msra.mxu0 0.0
    %5685 = vmatprep.subr.mxu0 0.0
    %5686 = vmatpush1.msra.mxu0 0.0
    %5687 = vmatprep.subr.mxu0 0.0
    %5688 = vmatpush1.msra.mxu0 0.0
    %5689 = vmatprep.subr.mxu0 0.0
    %5690 = vmatpush1.msra.mxu0 0.0
    %5691 = vmatprep.subr.mxu0 0.0
    %5692 = vmatpush1.msra.mxu0 0.0
    %5693 = vmatprep.subr.mxu0 0.0
    %5694 = vmatpush1.msra.mxu0 0.0
    %5695 = vmatprep.subr.mxu0 0.0
    %5696 = vmatpush1.msra.mxu0 0.0
    %5697 = vmatprep.subr.mxu0 0.0
    %5698 = vmatpush1.msra.mxu0 0.0
    %5699 = vmatprep.subr.mxu0 0.0
    %5700 = vmatpush1.msra.mxu0 0.0
    %5701 = vmatprep.subr.mxu0 0.0
    %5702 = vmatpush1.msra.mxu0 0.0
    %5703 = vmatprep.subr.mxu0 0.0
    %5704 = vmatpush1.msra.mxu0 0.0
    %5705 = vmatprep.subr.mxu0 0.0
    %5706 = vmatpush1.msra.mxu0 0.0
    %5707 = vmatprep.subr.mxu0 0.0
    %5708 = vmatpush1.msra.mxu0 0.0
    %5709 = vmatprep.subr.mxu0 0.0
    %5710 = vmatpush1.msra.mxu0 0.0
    %5711 = vmatprep.subr.mxu0 0.0
    %5712 = vmatpush1.msra.mxu0 0.0
    %5713 = vmatprep.subr.mxu0 0.0
    %5714 = vmatpush1.msra.mxu0 0.0
    %5715 = vmatprep.subr.mxu0 0.0
    %5716 = vmatpush1.msra.mxu0 0.0
    %5717 = vmatprep.subr.mxu0 0.0
    %5718 = vmatpush1.msra.mxu0 0.0
    %5719 = vmatprep.subr.mxu0 0.0
    %5720 = vmatpush1.msra.mxu0 0.0
    %5721 = vmatprep.subr.mxu0 0.0
    %5722 = vmatpush1.msra.mxu0 0.0
    %5723 = vmatprep.mubr.f32.mxu0 0.0
    %5724 = vmatmul.mubr.f32.gmra.mrb[0].mxu0 %v5657
    %v5725 = vpop.f32.mrb[0].mxu0
    %v5726 = vadd.f32 0.0, %v5725
    %v5727 = vpop.f32.mrb[0].mxu0
    %5728 = vdwg.mxu0
    %v5729 = vadd.f32 %v4013, %v5726
    %v5730 = vxor.u32 %v5729, 2147483648
    %v5731 = vmul.f32 %v5730, 1.442695
    %v5732 = vpow.pop %v5731
    %v5733 = vadd.f32 %v5732, 1.0
    %v5734 = vrcp.pop %v5733
    %v5735 = vmul.f32 1.0, %v5734
    %v5736 = vtanh.pop %v5729
    %v5738 = vrot.slane %v5531, 2
    %v5740 = vmul.f32 %v5735, %v5738
    %5742 = vrot.lane.b32.xlu0 %v5736, 32
    %v5743 = vpop.permute.xlu0 %5742
    %v5745 = vmul.f32 %v5735, %v5743
    %5747 = vrot.lane.b32.xlu0 %v5745, 32
    %v5748 = vpop.permute.xlu0 %5747
    %v5750 = vadd.f32 %v5740, %v5748
    %v5751 = vtanh.pop %v5750
    %5753 = vrot.lane.b32.xlu0 %v5751, 32
    %v5754 = vpop.permute.xlu0 %5753
    %v5756 = vmul.f32 %v5735, %v5754
    %5758 = vrot.lane.b32.xlu0 %v5756, 96
    %v5759 = vpop.permute.xlu0 %5758
    %5761 = vst.msk [vmem:[#allocation2] sm:$0x3] %vm1157, %v5759
    %v5762 = vld [vmem:[#allocation2 + $0x8] sm:$0xff]
    %v5763 = vld [vmem:[%s13] sm:$0xff]
    %v5764 = vld [vmem:[%s13 + $0x8] sm:$0xff]
    %v5765 = vld [vmem:[%s13 + $0x10] sm:$0xff]
    %v5766 = vld [vmem:[%s13 + $0x18] sm:$0xff]
    %v5767 = vld [vmem:[%s13 + $0x20] sm:$0xff]
    %v5768 = vld [vmem:[%s13 + $0x28] sm:$0xff]
    %v5769 = vld [vmem:[%s13 + $0x30] sm:$0xff]
    %v5770 = vld [vmem:[%s13 + $0x38] sm:$0xff]
    %v5771 = vld [vmem:[#allocation17] sm:$0x1]
    %v5773 = vlaneseq
    %v5774 = vshrl.u32 %v5773, 7
    %v5775 = vsub.s32 0, %v5774
    %v5776 = vrot.slane %v5771, %v5775
    %v5779 = vsel %vm2075, %v5762, 0
    %5781 = vmatprep.subr.mxu0 0.0
    %5782 = vmatpush1.msra.mxu0 %v5763
    %5783 = vmatprep.subr.mxu0 0.0
    %5784 = vmatpush1.msra.mxu0 %v5764
    %5785 = vmatprep.subr.mxu0 0.0
    %5786 = vmatpush1.msra.mxu0 %v5765
    %5787 = vmatprep.subr.mxu0 0.0
    %5788 = vmatpush1.msra.mxu0 %v5766
    %5789 = vmatprep.subr.mxu0 0.0
    %5790 = vmatpush1.msra.mxu0 %v5767
    %5791 = vmatprep.subr.mxu0 0.0
    %5792 = vmatpush1.msra.mxu0 %v5768
    %5793 = vmatprep.subr.mxu0 0.0
    %5794 = vmatpush1.msra.mxu0 %v5769
    %5795 = vmatprep.subr.mxu0 0.0
    %5796 = vmatpush1.msra.mxu0 %v5770
    %5797 = vmatprep.subr.mxu0 0.0
    %5798 = vmatpush1.msra.mxu0 0.0
    %5799 = vmatprep.subr.mxu0 0.0
    %5800 = vmatpush1.msra.mxu0 0.0
    %5801 = vmatprep.subr.mxu0 0.0
    %5802 = vmatpush1.msra.mxu0 0.0
    %5803 = vmatprep.subr.mxu0 0.0
    %5804 = vmatpush1.msra.mxu0 0.0
    %5805 = vmatprep.subr.mxu0 0.0
    %5806 = vmatpush1.msra.mxu0 0.0
    %5807 = vmatprep.subr.mxu0 0.0
    %5808 = vmatpush1.msra.mxu0 0.0
    %5809 = vmatprep.subr.mxu0 0.0
    %5810 = vmatpush1.msra.mxu0 0.0
    %5811 = vmatprep.subr.mxu0 0.0
    %5812 = vmatpush1.msra.mxu0 0.0
    %5813 = vmatprep.subr.mxu0 0.0
    %5814 = vmatpush1.msra.mxu0 0.0
    %5815 = vmatprep.subr.mxu0 0.0
    %5816 = vmatpush1.msra.mxu0 0.0
    %5817 = vmatprep.subr.mxu0 0.0
    %5818 = vmatpush1.msra.mxu0 0.0
    %5819 = vmatprep.subr.mxu0 0.0
    %5820 = vmatpush1.msra.mxu0 0.0
    %5821 = vmatprep.subr.mxu0 0.0
    %5822 = vmatpush1.msra.mxu0 0.0
    %5823 = vmatprep.subr.mxu0 0.0
    %5824 = vmatpush1.msra.mxu0 0.0
    %5825 = vmatprep.subr.mxu0 0.0
    %5826 = vmatpush1.msra.mxu0 0.0
    %5827 = vmatprep.subr.mxu0 0.0
    %5828 = vmatpush1.msra.mxu0 0.0
    %5829 = vmatprep.subr.mxu0 0.0
    %5830 = vmatpush1.msra.mxu0 0.0
    %5831 = vmatprep.subr.mxu0 0.0
    %5832 = vmatpush1.msra.mxu0 0.0
    %5833 = vmatprep.subr.mxu0 0.0
    %5834 = vmatpush1.msra.mxu0 0.0
    %5835 = vmatprep.subr.mxu0 0.0
    %5836 = vmatpush1.msra.mxu0 0.0
    %5837 = vmatprep.subr.mxu0 0.0
    %5838 = vmatpush1.msra.mxu0 0.0
    %5839 = vmatprep.subr.mxu0 0.0
    %5840 = vmatpush1.msra.mxu0 0.0
    %5841 = vmatprep.subr.mxu0 0.0
    %5842 = vmatpush1.msra.mxu0 0.0
    %5843 = vmatprep.subr.mxu0 0.0
    %5844 = vmatpush1.msra.mxu0 0.0
    %5845 = vmatprep.mubr.f32.mxu0 0.0
    %5846 = vmatmul.mubr.f32.gmra.mrb[0].mxu0 %v5779
    %v5847 = vpop.f32.mrb[0].mxu0
    %v5848 = vadd.f32 %v5776, %v5847
    %v5849 = vpop.f32.mrb[0].mxu0
    %5850 = vdwg.mxu0
    %vm5851 = vcmask 9216
    %5852 = vst.msk [vmem:[#allocation18] sm:$0x3] %vm5851, %v5848
    // Predicated region
    $region98: #{birnn_basic_forward.1} parent=1 // pred_check
      _
    $region99: #{birnn_basic_forward.1} parent=1 // pred_check_branch
      %5854 = sbr.rel (0) target = $region101
    $region100: #{birnn_basic_forward.1} parent=1 // pred_region
      %s5856 = ssub.s32 32, 32
      %5857 = vsyncadd [#allocation5], %s5856
      %s5859 = sshll.u32 [#allocation18], 4
      %s5860 = int_to_ptr.vmem [resolvable:$true] %s5859
      %5862 = dma.vmem_to_hbm [thread:$0]  %s5860, 32, %s15, [#allocation5]
    $region101: #{birnn_basic_forward.1} parent=1 // pred_fallthru
      _
    // Predicated region
    $region102: #{birnn_basic_forward.1} parent=1 // pred_check
      _
    $region103: #{birnn_basic_forward.1} parent=1 // pred_check_branch
      %5864 = sbr.rel (0) target = $region105
    $region104: #{birnn_basic_forward.1} parent=1 // pred_region
      %5865 = dma.done [#allocation5], 32
    $region105: #{birnn_basic_forward.1} parent=1 // pred_fallthru
      _
    %5866 = vsyncpa [#allocation4], 1
    %5867 = vsyncpa [#allocation7], 1
    %5868 = vsyncpa [#allocation10], 1
    %5869 = vsyncpa [#allocation13], 1
    %5870 = vsyncpa [#allocation16], 1
    %5871 = vsyncpa [#allocation5], 1

</llo_original>
